<compile_context>
chip_gen: v7x
topology: tpu7x:2x2x1
jax: 0.10.0
libtpu: 0.0.40
codegen_flags: <defaults>
</compile_context>

<pallas_src>
import functools
import math

import jax
import jax.numpy as jnp
from jax.experimental import pallas as pl
from jax.experimental.pallas import tpu as pltpu

LEAKY_SLOPE = 0.01  # torch.nn.LeakyReLU() default


# ----------------------------------------------------------------------------
# Small per-generation heuristics (static, trace-time Python).
# ----------------------------------------------------------------------------
def _device_kind():
    try:
        return jax.devices()[0].device_kind.lower()
    except Exception:
        return ""


def _is_v7():
    k = _device_kind()
    return ("v7" in k) or ("7x" in k)


def _conv_cout_tile(cout):
    # v5e/v6e (1 TensorCore): a 256-wide N tile matches the MXU and halves
    # grid steps.  v7x (2 TCs): keep >=2 Cout tiles so both cores get work.
    if cout % 256 == 0 and not _is_v7():
        return 256
    if cout % 128 == 0:
        return 128
    return cout


# ----------------------------------------------------------------------------
# Conv as a single fused GEMM: patches @ W + b, then LeakyReLU.
#   x_ref : (M, 16*Cin)  bf16   (M = B*Ho*Wo; im2col done in XLA glue)
#   w_ref : (16*Cin, tn) bf16
#   b_ref : (1, tn)      f32
#   o_ref : (M, tn)      bf16
# ----------------------------------------------------------------------------
def _conv_gemm_kernel(x_ref, w_ref, b_ref, o_ref, *, slope):
    acc = jnp.dot(x_ref[...], w_ref[...], preferred_element_type=jnp.float32)
    acc = acc + b_ref[...]
    acc = jnp.where(acc > 0, acc, slope * acc)  # LeakyReLU in f32
    o_ref[...] = acc.astype(o_ref.dtype)


def _im2col_4x4_s2_p1(x_nhwc):
    """(B,H,W,C) -> (B, H//2, W//2, 16*C): stride-2 4x4 patches with pad=1.

    Channel order (kh, kw, cin) matches `_conv_w_to_rows`.  Done in XLA so the
    Pallas kernel consumes one contiguous, lane-dense GEMM operand instead of
    doing unaligned strided slices (VMEM relayouts) in-kernel.  Byte cost is
    only ~4x the activation (k=4, s=2), negligible next to the weight stream.
    """
    B, H, W, C = x_nhwc.shape
    Ho, Wo = H // 2, W // 2
    xp = jnp.pad(x_nhwc, ((0, 0), (1, 1), (1, 1), (0, 0)))
    taps = [xp[:, di:di + 2 * Ho:2, dj:dj + 2 * Wo:2, :]
            for di in range(4) for dj in range(4)]
    return jnp.concatenate(taps, axis=-1)


def conv4x4s2(x_nhwc, w, b, *, slope=LEAKY_SLOPE):
    """4x4 / stride-2 / pad-1 conv + bias + LeakyReLU, batch folded into M.

    x_nhwc: (B, H, W, Cin) bf16;  w: (16*Cin, Cout) bf16;  b: (Cout,) f32.
    Returns (B, H//2, W//2, Cout) bf16 (NHWC).
    """
    B, H, W, C = x_nhwc.shape
    Ho, Wo = H // 2, W // 2
    patches = _im2col_4x4_s2_p1(x_nhwc).reshape(B * Ho * Wo, 16 * C)
    M, K = patches.shape
    Cout = w.shape[-1]
    tn = _conv_cout_tile(Cout)
    nt = Cout // tn
    bias = b.reshape(1, Cout).astype(jnp.float32)

    # TODO(synk): for Cout < 128 (conv1) the store is lane-masked; a
    # (B*Ho, Wo*Cout) lane-dense output layout would remove that (modest win).
    cost = pl.CostEstimate(
        flops=2 * M * K * Cout,
        transcendentals=0,
        bytes_accessed=(M * K * nt + K * Cout) * 2 + Cout * 4 + M * Cout * 2)

    y = pl.pallas_call(
        functools.partial(_conv_gemm_kernel, slope=slope),
        out_shape=jax.ShapeDtypeStruct((M, Cout), jnp.bfloat16),
        grid=(nt,),
        in_specs=[
            pl.BlockSpec((M, K), lambda j: (0, 0)),
            pl.BlockSpec((K, tn), lambda j: (0, j)),
            pl.BlockSpec((1, tn), lambda j: (0, j)),
        ],
        out_specs=pl.BlockSpec((M, tn), lambda j: (0, j)),
        compiler_params=pltpu.CompilerParams(
            dimension_semantics=("parallel",)),
        cost_estimate=cost,
    )(patches.astype(jnp.bfloat16), w.astype(jnp.bfloat16), bias)
    return y.reshape(B, Ho, Wo, Cout)


# ----------------------------------------------------------------------------
# Fused MLP head: z = leaky_relu(a @ W1 + b1) @ W2 + b2 in ONE pallas_call.
# Grid = (column split of N1 ["parallel"], K tiles of fc1 ["arbitrary"]).
# fc1 accumulates into a VMEM f32 scratch; fc2 runs in the finalize step on
# the VMEM-resident hidden, so the hidden never round-trips HBM.
# ----------------------------------------------------------------------------
def _mlp_kernel(a_ref, w1_ref, b1_ref, w2_ref, b2_ref, o_ref, acc_ref, *, slope):
    j = pl.program_id(0)
    k = pl.program_id(1)

    @pl.when(k == 0)
    def _():
        acc_ref[...] = jnp.zeros_like(acc_ref)

    acc_ref[...] += jnp.dot(a_ref[...], w1_ref[...],
                            preferred_element_type=jnp.float32)

    @pl.when(k == pl.num_programs(1) - 1)
    def _():
        h = acc_ref[...] + b1_ref[...]
        h = jnp.where(h > 0, h, slope * h)  # LeakyReLU in f32
        z = jnp.dot(h.astype(jnp.bfloat16), w2_ref[...],
                    preferred_element_type=jnp.float32)
        # Add fc2's bias exactly once (only on the j == 0 column split).
        z = z + b2_ref[...] * (j == 0).astype(jnp.float32)
        o_ref[...] = z.astype(o_ref.dtype)


def _pick_k_tile(K, n1h, target=2048, vmem_budget=12 << 20):
    """Largest 128-aligned divisor of K that is <= target and whose
    double-buffered bf16 (tk, n1h) weight block fits the VMEM budget."""
    cap = max(128, vmem_budget // (2 * n1h * 2))
    t = min(K, target, cap)
    t -= t % 128
    while t >= 128:
        if K % t == 0:
            return t
        t -= 128
    return K  # fallback: single K step (no fc1 pipelining)


def mlp_head(a, w1, b1, w2, b2, *, slope=LEAKY_SLOPE):
    M, K = a.shape
    K2, N1 = w1.shape
    N12, Nz = w2.shape
    assert K == K2 and N1 == N12, (a.shape, w1.shape, w2.shape)

    # v7x: split the hidden width across both TensorCores; single-TC chips
    # keep one column block (avoids extra serial grid steps).
    nj = 2 if (_is_v7() and N1 % 256 == 0) else 1
    n1h = N1 // nj
    tk = _pick_k_tile(K, n1h)
    nk = K // tk

    b1r = b1.reshape(1, N1).astype(jnp.float32)
    b2r = b2.reshape(1, Nz).astype(jnp.float32)

    cost = pl.CostEstimate(
        flops=2 * M * K * N1 + 2 * M * N1 * Nz,
        transcendentals=0,
        bytes_accessed=(M * K * nj + K * N1 + N1 * Nz) * 2 + (N1 + Nz) * 4
        + nj * M * Nz * 4)

    partials = pl.pallas_call(
        functools.partial(_mlp_kernel, slope=slope),
        out_shape=jax.ShapeDtypeStruct((nj, M, Nz), jnp.float32),
        grid=(nj, nk),
        in_specs=[
            pl.BlockSpec((M, tk), lambda j, k: (0, k)),
            pl.BlockSpec((tk, n1h), lambda j, k: (k, j)),
            pl.BlockSpec((1, n1h), lambda j, k: (0, j)),
            pl.BlockSpec((n1h, Nz), lambda j, k: (j, 0)),
            pl.BlockSpec((1, Nz), lambda j, k: (0, 0)),
        ],
        out_specs=pl.BlockSpec((None, M, Nz), lambda j, k: (j, 0, 0)),
        scratch_shapes=[pltpu.VMEM((M, n1h), jnp.float32)],
        compiler_params=pltpu.CompilerParams(
            dimension_semantics=("parallel", "arbitrary")),
        cost_estimate=cost,
    )(a.astype(jnp.bfloat16), w1.astype(jnp.bfloat16), b1r,
      w2.astype(jnp.bfloat16), b2r)

    return partials.sum(axis=0) if nj > 1 else partials.reshape(M, Nz)


# ----------------------------------------------------------------------------
# Encoder forward (matches the PyTorch module layer-by-layer).
# ----------------------------------------------------------------------------
def encoder_forward(x_nchw, kp):
    h = jnp.transpose(x_nchw, (0, 2, 3, 1)).astype(jnp.bfloat16)  # NCHW -> NHWC
    for w, b in kp["convs"]:
        h = conv4x4s2(h, w, b)                       # (B, H/2, W/2, Cout) bf16
    # Flatten in NHWC order; fc1_w rows were pre-permuted from torch's NCHW
    # flatten order in prepare_params, so this matches x.view(B, -1) exactly.
    flat = h.reshape(h.shape[0], -1)
    return mlp_head(flat, kp["fc1_w"], kp["fc1_b"], kp["fc2_w"], kp["fc2_b"])


# ----------------------------------------------------------------------------
# Parameters: synthetic init in PyTorch layout + conversion to kernel layout.
# ----------------------------------------------------------------------------
def init_params(key, n_channel=1, size_=4, z_dim=16):
    """PyTorch-layout params: Conv2d (Cout,Cin,kh,kw); Linear (out,in)."""
    k = 4
    dims = [(3, 64 * n_channel),
            (64 * n_channel, 128 * n_channel),
            (128 * n_channel, 256 * n_channel)]
    convs = []
    for cin, cout in dims:
        key, k1, k2 = jax.random.split(key, 3)
        fan_in = cin * k * k
        w = jax.random.normal(k1, (cout, cin, k, k), jnp.float32) / math.sqrt(fan_in)
        b = 0.01 * jax.random.normal(k2, (cout,), jnp.float32)
        convs.append((w, b))
    d_flat = 256 * n_channel * size_ ** 2
    d_hid = 1024 * n_channel
    key, k1, k2, k3, k4 = jax.random.split(key, 5)
    fc1_w = jax.random.normal(k1, (d_hid, d_flat), jnp.float32) / math.sqrt(d_flat)
    fc1_b = 0.01 * jax.random.normal(k2, (d_hid,), jnp.float32)
    fc2_w = jax.random.normal(k3, (z_dim, d_hid), jnp.float32) / math.sqrt(d_hid)
    fc2_b = 0.01 * jax.random.normal(k4, (z_dim,), jnp.float32)
    return {"convs": convs, "fc1_w": fc1_w, "fc1_b": fc1_b,
            "fc2_w": fc2_w, "fc2_b": fc2_b}


def _conv_w_to_rows(w_oihw):
    """torch (Cout,Cin,4,4) -> (16*Cin, Cout), row order (kh, kw, cin),
    matching the im2col channel order."""
    cout, cin, kh, kw = w_oihw.shape
    assert kh == 4 and kw == 4
    return jnp.transpose(w_oihw, (2, 3, 1, 0)).reshape(kh * kw * cin, cout)


def prepare_params(p, n_channel=1, size_=4):
    """One-time conversion of PyTorch-layout params to the kernel layout."""
    convs = [(_conv_w_to_rows(w).astype(jnp.bfloat16), b.astype(jnp.float32))
             for (w, b) in p["convs"]]
    c_last = 256 * n_channel
    d_hid = p["fc1_w"].shape[0]
    # fc1 consumes torch's NCHW flatten; activations here are NHWC-flattened,
    # so permute fc1's input axis from (C,H,W) order to (H,W,C) order once.
    w1 = p["fc1_w"].T.reshape(c_last, size_, size_, d_hid)
    w1 = jnp.transpose(w1, (1, 2, 0, 3)).reshape(size_ * size_ * c_last, d_hid)
    return {
        "convs": convs,
        "fc1_w": w1.astype(jnp.bfloat16),
        "fc1_b": p["fc1_b"].astype(jnp.float32),
        "fc2_w": p["fc2_w"].T.astype(jnp.bfloat16),
        "fc2_b": p["fc2_b"].astype(jnp.float32),
    }


if __name__ == "__main__":
    n_channel, size_, z_dim = 1, 4, 16
    batch = 2
    in_spatial = size_ * 8  # three stride-2 convs: 32 -> 16 -> 8 -> 4 == size_

    key = jax.random.PRNGKey(0)
    key, kx = jax.random.split(key)
    x = jax.random.normal(kx, (batch, 3, in_spatial, in_spatial), jnp.float32)

    params = init_params(key, n_channel=n_channel, size_=size_, z_dim=z_dim)
    kparams = prepare_params(params, n_channel=n_channel, size_=size_)

    fwd = jax.jit(encoder_forward)
    z = fwd(x, kparams)
    jax.block_until_ready(z)

    assert z.shape == (batch, z_dim), z.shape
    assert z.dtype == jnp.float32
    print("KERNEL_OK")
</pallas_src>

<mosaic_0001>
module attributes {stable_mosaic.version = 11 : i64} {
  func.func @_conv_gemm_kernel(%arg0: i32, %arg1: memref<512x48xbf16, #tpu.memory_space<vmem>>, %arg2: memref<48x64xbf16, #tpu.memory_space<vmem>>, %arg3: memref<1x64xf32, #tpu.memory_space<vmem>>, %arg4: memref<512x64xbf16, #tpu.memory_space<vmem>>) attributes {dimension_semantics = [#tpu.dimension_semantics<parallel>], iteration_bounds = array<i64: 1>, scalar_prefetch = 0 : i64, scratch_operands = 0 : i64, tpu.core_type = #tpu.core_type<tc>, window_params = [{pipeline_mode = #tpu.pipeline_mode<synchronous>, transform_indices = @transform_0, window_bounds = array<i64: 512, 48>}, {transform_indices = @transform_1, window_bounds = array<i64: 48, 64>}, {transform_indices = @transform_2, window_bounds = array<i64: 1, 64>}, {transform_indices = @transform_3, window_bounds = array<i64: 512, 64>}]} {
    %c0 = arith.constant 0 : index
    %c0_0 = arith.constant 0 : index
    %0 = vector.load %arg1[%c0, %c0_0] : memref<512x48xbf16, #tpu.memory_space<vmem>>, vector<512x48xbf16>
    %c0_1 = arith.constant 0 : index
    %c0_2 = arith.constant 0 : index
    %1 = vector.load %arg2[%c0_1, %c0_2] : memref<48x64xbf16, #tpu.memory_space<vmem>>, vector<48x64xbf16>
    %cst = arith.constant dense<0.000000e+00> : vector<512x64xf32>
    %2 = tpu.matmul %0, %1, %cst {dimension_numbers = #tpu.dot_dimension_numbers<[1], [0], [0], [1], [0, 0, 1, 1], [], []>} : vector<512x48xbf16>, vector<48x64xbf16>, vector<512x64xf32> -> vector<512x64xf32>
    %c0_3 = arith.constant 0 : index
    %c0_4 = arith.constant 0 : index
    %3 = vector.load %arg3[%c0_3, %c0_4] : memref<1x64xf32, #tpu.memory_space<vmem>>, vector<1x64xf32>
    %4 = vector.broadcast %3 : vector<1x64xf32> to vector<512x64xf32>
    %5 = arith.addf %2, %4 : vector<512x64xf32>
    %cst_5 = arith.constant 0.000000e+00 : f32
    %6 = vector.broadcast %cst_5 : f32 to vector<512x64xf32>
    %7 = arith.cmpf ogt, %5, %6 : vector<512x64xf32>
    %cst_6 = arith.constant 0.00999999977 : f32
    %8 = vector.broadcast %cst_6 : f32 to vector<512x64xf32>
    %9 = arith.mulf %8, %5 : vector<512x64xf32>
    %10 = arith.select %7, %5, %9 : vector<512x64xi1>, vector<512x64xf32>
    %11 = arith.truncf %10 : vector<512x64xf32> to vector<512x64xbf16>
    %c0_7 = arith.constant 0 : index
    %c0_8 = arith.constant 0 : index
    %12 = vector.load %arg4[%c0_7, %c0_8] : memref<512x64xbf16, #tpu.memory_space<vmem>>, vector<512x64xbf16>
    tpu.vector_store %arg4[%c0_7, %c0_8], %11 {strides = array<i32>} : memref<512x64xbf16, #tpu.memory_space<vmem>>, vector<512x64xbf16>,
    return
  }
  func.func @transform_0(%arg0: i32) -> (i32, i32) {
    %c0_i32 = arith.constant 0 : i32
    %c0_i32_0 = arith.constant 0 : i32
    %c0_i32_1 = arith.constant 0 : i32
    return %c0_i32, %c0_i32_0 : i32, i32
  }
  func.func @transform_1(%arg0: i32) -> (i32, i32) {
    %c0_i32 = arith.constant 0 : i32
    %c0_i32_0 = arith.constant 0 : i32
    return %c0_i32, %arg0 : i32, i32
  }
  func.func @transform_2(%arg0: i32) -> (i32, i32) {
    %c0_i32 = arith.constant 0 : i32
    %c0_i32_0 = arith.constant 0 : i32
    return %c0_i32, %arg0 : i32, i32
  }
  func.func @transform_3(%arg0: i32) -> (i32, i32) {
    %c0_i32 = arith.constant 0 : i32
    %c0_i32_0 = arith.constant 0 : i32
    return %c0_i32, %arg0 : i32, i32
  }
}

module attributes {stable_mosaic.version = 11 : i64} {
  func.func @_conv_gemm_kernel(%arg0: i32, %arg1: memref<128x1024xbf16, #tpu.memory_space<vmem>>, %arg2: memref<1024x128xbf16, #tpu.memory_space<vmem>>, %arg3: memref<1x128xf32, #tpu.memory_space<vmem>>, %arg4: memref<128x128xbf16, #tpu.memory_space<vmem>>) attributes {dimension_semantics = [#tpu.dimension_semantics<parallel>], iteration_bounds = array<i64: 1>, scalar_prefetch = 0 : i64, scratch_operands = 0 : i64, tpu.core_type = #tpu.core_type<tc>, window_params = [{pipeline_mode = #tpu.pipeline_mode<synchronous>, transform_indices = @transform_0, window_bounds = array<i64: 128, 1024>}, {transform_indices = @transform_1, window_bounds = array<i64: 1024, 128>}, {transform_indices = @transform_2, window_bounds = array<i64: 1, 128>}, {transform_indices = @transform_3, window_bounds = array<i64: 128, 128>}]} {
    %c0 = arith.constant 0 : index
    %c0_0 = arith.constant 0 : index
    %0 = vector.load %arg1[%c0, %c0_0] : memref<128x1024xbf16, #tpu.memory_space<vmem>>, vector<128x1024xbf16>
    %c0_1 = arith.constant 0 : index
    %c0_2 = arith.constant 0 : index
    %1 = vector.load %arg2[%c0_1, %c0_2] : memref<1024x128xbf16, #tpu.memory_space<vmem>>, vector<1024x128xbf16>
    %cst = arith.constant dense<0.000000e+00> : vector<128x128xf32>
    %2 = tpu.matmul %0, %1, %cst {dimension_numbers = #tpu.dot_dimension_numbers<[1], [0], [0], [1], [0, 0, 1, 1], [], []>} : vector<128x1024xbf16>, vector<1024x128xbf16>, vector<128x128xf32> -> vector<128x128xf32>
    %c0_3 = arith.constant 0 : index
    %c0_4 = arith.constant 0 : index
    %3 = vector.load %arg3[%c0_3, %c0_4] : memref<1x128xf32, #tpu.memory_space<vmem>>, vector<1x128xf32>
    %4 = vector.broadcast %3 : vector<1x128xf32> to vector<128x128xf32>
    %5 = arith.addf %2, %4 : vector<128x128xf32>
    %cst_5 = arith.constant 0.000000e+00 : f32
    %6 = vector.broadcast %cst_5 : f32 to vector<128x128xf32>
    %7 = arith.cmpf ogt, %5, %6 : vector<128x128xf32>
    %cst_6 = arith.constant 0.00999999977 : f32
    %8 = vector.broadcast %cst_6 : f32 to vector<128x128xf32>
    %9 = arith.mulf %8, %5 : vector<128x128xf32>
    %10 = arith.select %7, %5, %9 : vector<128x128xi1>, vector<128x128xf32>
    %11 = arith.truncf %10 : vector<128x128xf32> to vector<128x128xbf16>
    %c0_7 = arith.constant 0 : index
    %c0_8 = arith.constant 0 : index
    %12 = vector.load %arg4[%c0_7, %c0_8] : memref<128x128xbf16, #tpu.memory_space<vmem>>, vector<128x128xbf16>
    tpu.vector_store %arg4[%c0_7, %c0_8], %11 {strides = array<i32>} : memref<128x128xbf16, #tpu.memory_space<vmem>>, vector<128x128xbf16>,
    return
  }
  func.func @transform_0(%arg0: i32) -> (i32, i32) {
    %c0_i32 = arith.constant 0 : i32
    %c0_i32_0 = arith.constant 0 : i32
    %c0_i32_1 = arith.constant 0 : i32
    return %c0_i32, %c0_i32_0 : i32, i32
  }
  func.func @transform_1(%arg0: i32) -> (i32, i32) {
    %c0_i32 = arith.constant 0 : i32
    %c0_i32_0 = arith.constant 0 : i32
    return %c0_i32, %arg0 : i32, i32
  }
  func.func @transform_2(%arg0: i32) -> (i32, i32) {
    %c0_i32 = arith.constant 0 : i32
    %c0_i32_0 = arith.constant 0 : i32
    return %c0_i32, %arg0 : i32, i32
  }
  func.func @transform_3(%arg0: i32) -> (i32, i32) {
    %c0_i32 = arith.constant 0 : i32
    %c0_i32_0 = arith.constant 0 : i32
    return %c0_i32, %arg0 : i32, i32
  }
}

module attributes {stable_mosaic.version = 11 : i64} {
  func.func @_conv_gemm_kernel(%arg0: i32, %arg1: memref<32x2048xbf16, #tpu.memory_space<vmem>>, %arg2: memref<2048x256xbf16, #tpu.memory_space<vmem>>, %arg3: memref<1x256xf32, #tpu.memory_space<vmem>>, %arg4: memref<32x256xbf16, #tpu.memory_space<vmem>>) attributes {dimension_semantics = [#tpu.dimension_semantics<parallel>], iteration_bounds = array<i64: 1>, scalar_prefetch = 0 : i64, scratch_operands = 0 : i64, tpu.core_type = #tpu.core_type<tc>, window_params = [{pipeline_mode = #tpu.pipeline_mode<synchronous>, transform_indices = @transform_0, window_bounds = array<i64: 32, 2048>}, {transform_indices = @transform_1, window_bounds = array<i64: 2048, 256>}, {transform_indices = @transform_2, window_bounds = array<i64: 1, 256>}, {transform_indices = @transform_3, window_bounds = array<i64: 32, 256>}]} {
    %c0 = arith.constant 0 : index
    %c0_0 = arith.constant 0 : index
    %0 = vector.load %arg1[%c0, %c0_0] : memref<32x2048xbf16, #tpu.memory_space<vmem>>, vector<32x2048xbf16>
    %c0_1 = arith.constant 0 : index
    %c0_2 = arith.constant 0 : index
    %1 = vector.load %arg2[%c0_1, %c0_2] : memref<2048x256xbf16, #tpu.memory_space<vmem>>, vector<2048x256xbf16>
    %cst = arith.constant dense<0.000000e+00> : vector<32x256xf32>
    %2 = tpu.matmul %0, %1, %cst {dimension_numbers = #tpu.dot_dimension_numbers<[1], [0], [0], [1], [0, 0, 1, 1], [], []>} : vector<32x2048xbf16>, vector<2048x256xbf16>, vector<32x256xf32> -> vector<32x256xf32>
    %c0_3 = arith.constant 0 : index
    %c0_4 = arith.constant 0 : index
    %3 = vector.load %arg3[%c0_3, %c0_4] : memref<1x256xf32, #tpu.memory_space<vmem>>, vector<1x256xf32>
    %4 = vector.broadcast %3 : vector<1x256xf32> to vector<32x256xf32>
    %5 = arith.addf %2, %4 : vector<32x256xf32>
    %cst_5 = arith.constant 0.000000e+00 : f32
    %6 = vector.broadcast %cst_5 : f32 to vector<32x256xf32>
    %7 = arith.cmpf ogt, %5, %6 : vector<32x256xf32>
    %cst_6 = arith.constant 0.00999999977 : f32
    %8 = vector.broadcast %cst_6 : f32 to vector<32x256xf32>
    %9 = arith.mulf %8, %5 : vector<32x256xf32>
    %10 = arith.select %7, %5, %9 : vector<32x256xi1>, vector<32x256xf32>
    %11 = arith.truncf %10 : vector<32x256xf32> to vector<32x256xbf16>
    %c0_7 = arith.constant 0 : index
    %c0_8 = arith.constant 0 : index
    %12 = vector.load %arg4[%c0_7, %c0_8] : memref<32x256xbf16, #tpu.memory_space<vmem>>, vector<32x256xbf16>
    tpu.vector_store %arg4[%c0_7, %c0_8], %11 {strides = array<i32>} : memref<32x256xbf16, #tpu.memory_space<vmem>>, vector<32x256xbf16>,
    return
  }
  func.func @transform_0(%arg0: i32) -> (i32, i32) {
    %c0_i32 = arith.constant 0 : i32
    %c0_i32_0 = arith.constant 0 : i32
    %c0_i32_1 = arith.constant 0 : i32
    return %c0_i32, %c0_i32_0 : i32, i32
  }
  func.func @transform_1(%arg0: i32) -> (i32, i32) {
    %c0_i32 = arith.constant 0 : i32
    %c0_i32_0 = arith.constant 0 : i32
    return %c0_i32, %arg0 : i32, i32
  }
  func.func @transform_2(%arg0: i32) -> (i32, i32) {
    %c0_i32 = arith.constant 0 : i32
    %c0_i32_0 = arith.constant 0 : i32
    return %c0_i32, %arg0 : i32, i32
  }
  func.func @transform_3(%arg0: i32) -> (i32, i32) {
    %c0_i32 = arith.constant 0 : i32
    %c0_i32_0 = arith.constant 0 : i32
    return %c0_i32, %arg0 : i32, i32
  }
}

module attributes {stable_mosaic.version = 11 : i64} {
  func.func @_mlp_kernel(%arg0: i32, %arg1: i32, %arg2: memref<2x2048xbf16, #tpu.memory_space<vmem>>, %arg3: memref<2048x1024xbf16, #tpu.memory_space<vmem>>, %arg4: memref<1x1024xf32, #tpu.memory_space<vmem>>, %arg5: memref<1024x16xbf16, #tpu.memory_space<vmem>>, %arg6: memref<1x16xf32, #tpu.memory_space<vmem>>, %arg7: memref<1x2x16xf32, #tpu.memory_space<vmem>>, %arg8: memref<2x1024xf32, #tpu.memory_space<vmem>>) attributes {dimension_semantics = [#tpu.dimension_semantics<parallel>, #tpu.dimension_semantics<arbitrary>], iteration_bounds = array<i64: 1, 2>, scalar_prefetch = 0 : i64, scratch_operands = 1 : i64, tpu.core_type = #tpu.core_type<tc>, window_params = [{transform_indices = @transform_0, window_bounds = array<i64: 2, 2048>}, {transform_indices = @transform_1, window_bounds = array<i64: 2048, 1024>}, {transform_indices = @transform_2, window_bounds = array<i64: 1, 1024>}, {transform_indices = @transform_3, window_bounds = array<i64: 1024, 16>}, {pipeline_mode = #tpu.pipeline_mode<synchronous>, transform_indices = @transform_4, window_bounds = array<i64: 1, 16>}, {transform_indices = @transform_5, window_bounds = array<i64: 1, 2, 16>}]} {
    %c0_i32 = arith.constant 0 : i32
    %0 = arith.cmpi eq, %arg1, %c0_i32 : i32
    %1 = arith.extui %0 : i1 to i32
    %c0_i32_0 = arith.constant 0 : i32
    %2 = arith.cmpi ne, %1, %c0_i32_0 : i32
    scf.if %2 {
      %cst_9 = arith.constant 0.000000e+00 : f32
      %12 = vector.broadcast %cst_9 : f32 to vector<2x1024xf32>
      %c0_10 = arith.constant 0 : index
      %c0_11 = arith.constant 0 : index
      %13 = vector.load %arg8[%c0_10, %c0_11] : memref<2x1024xf32, #tpu.memory_space<vmem>>, vector<2x1024xf32>
      tpu.vector_store %arg8[%c0_10, %c0_11], %12 {strides = array<i32>} : memref<2x1024xf32, #tpu.memory_space<vmem>>, vector<2x1024xf32>,
    } else {
    }
    %c0 = arith.constant 0 : index
    %c0_1 = arith.constant 0 : index
    %3 = vector.load %arg8[%c0, %c0_1] : memref<2x1024xf32, #tpu.memory_space<vmem>>, vector<2x1024xf32>
    %c0_2 = arith.constant 0 : index
    %c0_3 = arith.constant 0 : index
    %4 = vector.load %arg2[%c0_2, %c0_3] : memref<2x2048xbf16, #tpu.memory_space<vmem>>, vector<2x2048xbf16>
    %c0_4 = arith.constant 0 : index
    %c0_5 = arith.constant 0 : index
    %5 = vector.load %arg3[%c0_4, %c0_5] : memref<2048x1024xbf16, #tpu.memory_space<vmem>>, vector<2048x1024xbf16>
    %cst = arith.constant dense<0.000000e+00> : vector<2x1024xf32>
    %6 = tpu.matmul %4, %5, %cst {dimension_numbers = #tpu.dot_dimension_numbers<[1], [0], [0], [1], [0, 0, 1, 1], [], []>} : vector<2x2048xbf16>, vector<2048x1024xbf16>, vector<2x1024xf32> -> vector<2x1024xf32>
    %7 = arith.addf %3, %6 : vector<2x1024xf32>
    %c0_6 = arith.constant 0 : index
    %c0_7 = arith.constant 0 : index
    %8 = vector.load %arg8[%c0_6, %c0_7] : memref<2x1024xf32, #tpu.memory_space<vmem>>, vector<2x1024xf32>
    tpu.vector_store %arg8[%c0_6, %c0_7], %7 {strides = array<i32>} : memref<2x1024xf32, #tpu.memory_space<vmem>>, vector<2x1024xf32>,
    %c1_i32 = arith.constant 1 : i32
    %9 = arith.cmpi eq, %arg1, %c1_i32 : i32
    %10 = arith.extui %9 : i1 to i32
    %c0_i32_8 = arith.constant 0 : i32
    %11 = arith.cmpi ne, %10, %c0_i32_8 : i32
    scf.if %11 {
      %c0_9 = arith.constant 0 : index
      %c0_10 = arith.constant 0 : index
      %12 = vector.load %arg8[%c0_9, %c0_10] : memref<2x1024xf32, #tpu.memory_space<vmem>>, vector<2x1024xf32>
      %c0_11 = arith.constant 0 : index
      %c0_12 = arith.constant 0 : index
      %13 = vector.load %arg4[%c0_11, %c0_12] : memref<1x1024xf32, #tpu.memory_space<vmem>>, vector<1x1024xf32>
      %14 = vector.broadcast %13 : vector<1x1024xf32> to vector<2x1024xf32>
      %15 = arith.addf %12, %14 : vector<2x1024xf32>
      %cst_13 = arith.constant 0.000000e+00 : f32
      %16 = vector.broadcast %cst_13 : f32 to vector<2x1024xf32>
      %17 = arith.cmpf ogt, %15, %16 : vector<2x1024xf32>
      %cst_14 = arith.constant 0.00999999977 : f32
      %18 = vector.broadcast %cst_14 : f32 to vector<2x1024xf32>
      %19 = arith.mulf %18, %15 : vector<2x1024xf32>
      %20 = arith.select %17, %15, %19 : vector<2x1024xi1>, vector<2x1024xf32>
      %21 = arith.truncf %20 : vector<2x1024xf32> to vector<2x1024xbf16>
      %c0_15 = arith.constant 0 : index
      %c0_16 = arith.constant 0 : index
      %22 = vector.load %arg5[%c0_15, %c0_16] : memref<1024x16xbf16, #tpu.memory_space<vmem>>, vector<1024x16xbf16>
      %cst_17 = arith.constant dense<0.000000e+00> : vector<2x16xf32>
      %23 = tpu.matmul %21, %22, %cst_17 {dimension_numbers = #tpu.dot_dimension_numbers<[1], [0], [0], [1], [0, 0, 1, 1], [], []>} : vector<2x1024xbf16>, vector<1024x16xbf16>, vector<2x16xf32> -> vector<2x16xf32>
      %c0_18 = arith.constant 0 : index
      %c0_19 = arith.constant 0 : index
      %24 = vector.load %arg6[%c0_18, %c0_19] : memref<1x16xf32, #tpu.memory_space<vmem>>, vector<1x16xf32>
      %c0_i32_20 = arith.constant 0 : i32
      %25 = arith.cmpi eq, %arg0, %c0_i32_20 : i32
      %26 = arith.extui %25 : i1 to i32
      %27 = arith.sitofp %26 : i32 to f32
      %28 = vector.broadcast %27 : f32 to vector<1x16xf32>
      %29 = arith.mulf %24, %28 : vector<1x16xf32>
      %30 = vector.broadcast %29 : vector<1x16xf32> to vector<2x16xf32>
      %31 = arith.addf %23, %30 : vector<2x16xf32>
      %c0_21 = arith.constant 0 : index
      %c0_22 = arith.constant 0 : index
      %c0_23 = arith.constant 0 : index
      %32 = vector.load %arg7[%c0_21, %c0_22, %c0_23] : memref<1x2x16xf32, #tpu.memory_space<vmem>>, vector<1x2x16xf32>
      %33 = vector.shape_cast %32 : vector<1x2x16xf32> to vector<2x16xf32>
      %34 = vector.shape_cast %31 : vector<2x16xf32> to vector<1x2x16xf32>
      tpu.vector_store %arg7[%c0_21, %c0_22, %c0_23], %34 {strides = array<i32>} : memref<1x2x16xf32, #tpu.memory_space<vmem>>, vector<1x2x16xf32>,
    } else {
    }
    return
  }
  func.func @transform_0(%arg0: i32, %arg1: i32) -> (i32, i32) {
    %c0_i32 = arith.constant 0 : i32
    %c0_i32_0 = arith.constant 0 : i32
    return %c0_i32, %arg1 : i32, i32
  }
  func.func @transform_1(%arg0: i32, %arg1: i32) -> (i32, i32) {
    %c0_i32 = arith.constant 0 : i32
    return %arg1, %arg0 : i32, i32
  }
  func.func @transform_2(%arg0: i32, %arg1: i32) -> (i32, i32) {
    %c0_i32 = arith.constant 0 : i32
    %c0_i32_0 = arith.constant 0 : i32
    return %c0_i32, %arg0 : i32, i32
  }
  func.func @transform_3(%arg0: i32, %arg1: i32) -> (i32, i32) {
    %c0_i32 = arith.constant 0 : i32
    %c0_i32_0 = arith.constant 0 : i32
    return %arg0, %c0_i32 : i32, i32
  }
  func.func @transform_4(%arg0: i32, %arg1: i32) -> (i32, i32) {
    %c0_i32 = arith.constant 0 : i32
    %c0_i32_0 = arith.constant 0 : i32
    %c0_i32_1 = arith.constant 0 : i32
    return %c0_i32, %c0_i32_0 : i32, i32
  }
  func.func @transform_5(%arg0: i32, %arg1: i32) -> (i32, i32, i32) {
    %c0_i32 = arith.constant 0 : i32
    %c0_i32_0 = arith.constant 0 : i32
    %c0_i32_1 = arith.constant 0 : i32
    return %arg0, %c0_i32, %c0_i32_0 : i32, i32, i32
  }
}

</mosaic_0001>

<llo_original>
// kernel: encoder_forward.4
$region0: #{encoder_forward.4}
  #allocation0 [shape = 'u32[]', space=smem, size = 0x4, offset = 0x4, fixed_abs, tag = 'smem constant byte address 0x4 - core index']
  #allocation1 [shape = 'u32[144,128]{1,0:T(1,128)}', space=vmem, size = 0x12000, scoped, tag = 'internal scratch']
  %s0 = inlined_call_operand.vmem [shape: bf16[512,48], index: 0, kind: input, shape index: {}]
  %s1 = inlined_call_operand.vmem [shape: bf16[48,64], index: 1, kind: input, shape index: {}]
  %s2 = inlined_call_operand.hbm [shape: f32[1,64], index: 2, kind: input, shape index: {}]
  %s3 = inlined_call_operand.vmem [shape: bf16[512,64], index: 3, kind: output, shape index: {}]
  %s4 = sld [smem:[#allocation0]]
  $region26: #{encoder_forward.4} parent=0
    _
  %s6 = ssub.s32 1, %s4
  %s7 = scalar_select 0, %s6, %s4
  $region1: #{encoder_forward.4} parent=0
    #allocation2 [shape = 'u8[512]{0}', space=vmem, size = 0x400, scoped, tag = 'input window, operand 2, single buffered']
    #allocation3 [shape = 's32[1]{0}', space=sflag, size = 0x4, scoped, tag = 'scoped memory for encoder_forward.4']
    %8 = vsyncpa [#allocation3], 0
    // Predicated region
    $region2: #{encoder_forward.4} parent=1 // pred_check
      _
    $region3: #{encoder_forward.4} parent=1 // pred_check_branch
      %10 = sbr.rel (0) target = $region5
    $region4: #{encoder_forward.4} parent=1 // pred_region
      _
    $region5: #{encoder_forward.4} parent=1 // pred_fallthru
      _
    // Predicated region
    $region6: #{encoder_forward.4} parent=1 // pred_check
      _
    $region7: #{encoder_forward.4} parent=1 // pred_check_branch
      %12 = sbr.rel (0) target = $region9
    $region8: #{encoder_forward.4} parent=1 // pred_region
      _
    $region9: #{encoder_forward.4} parent=1 // pred_fallthru
      _
    // Predicated region
    $region10: #{encoder_forward.4} parent=1 // pred_check
      _
    $region11: #{encoder_forward.4} parent=1 // pred_check_branch
      %14 = sbr.rel (0) target = $region13
    $region12: #{encoder_forward.4} parent=1 // pred_region
      %s16 = ssub.s32 16, 16
      %17 = vsyncadd [#allocation3], %s16
      %s19 = sshll.u32 [#allocation2], 4
      %s20 = int_to_ptr.vmem [resolvable:$true] %s19
      %22 = dma.hbm_to_vmem [thread:$0]  %s2, 16, %s20, [#allocation3]
    $region13: #{encoder_forward.4} parent=1 // pred_fallthru
      _
    // Predicated region
    $region14: #{encoder_forward.4} parent=1 // pred_check
      _
    $region15: #{encoder_forward.4} parent=1 // pred_check_branch
      %24 = sbr.rel (0) target = $region17
    $region16: #{encoder_forward.4} parent=1 // pred_region
      %25 = dma.done [#allocation3], 16
    $region17: #{encoder_forward.4} parent=1 // pred_fallthru
      _
    %v27 = vld [vmem:[%s0] sm:$0xf]
    %v28 = vld [vmem:[%s0 + $0x4] sm:$0xf]
    %v29 = vld [vmem:[%s0 + $0x8] sm:$0xf]
    %v30 = vld [vmem:[%s0 + $0xc] sm:$0xf]
    %v31 = vld [vmem:[%s0 + $0x10] sm:$0xf]
    %v32 = vld [vmem:[%s0 + $0x14] sm:$0xf]
    %v33 = vld [vmem:[%s0 + $0x18] sm:$0xf]
    %v34 = vld [vmem:[%s0 + $0x1c] sm:$0xf]
    %v35 = vld [vmem:[%s0 + $0x20] sm:$0xf]
    %v36 = vld [vmem:[%s0 + $0x24] sm:$0xf]
    %v37 = vld [vmem:[%s0 + $0x28] sm:$0xf]
    %v38 = vld [vmem:[%s0 + $0x2c] sm:$0xf]
    %v39 = vld [vmem:[%s0 + $0x30] sm:$0xf]
    %v40 = vld [vmem:[%s0 + $0x34] sm:$0xf]
    %v41 = vld [vmem:[%s0 + $0x38] sm:$0xf]
    %v42 = vld [vmem:[%s0 + $0x3c] sm:$0xf]
    %v43 = vld [vmem:[%s0 + $0x40] sm:$0xf]
    %v44 = vld [vmem:[%s0 + $0x44] sm:$0xf]
    %v45 = vld [vmem:[%s0 + $0x48] sm:$0xf]
    %v46 = vld [vmem:[%s0 + $0x4c] sm:$0xf]
    %v47 = vld [vmem:[%s0 + $0x50] sm:$0xf]
    %v48 = vld [vmem:[%s0 + $0x54] sm:$0xf]
    %v49 = vld [vmem:[%s0 + $0x58] sm:$0xf]
    %v50 = vld [vmem:[%s0 + $0x5c] sm:$0xf]
    %v51 = vld [vmem:[%s0 + $0x60] sm:$0xf]
    %v52 = vld [vmem:[%s0 + $0x64] sm:$0xf]
    %v53 = vld [vmem:[%s0 + $0x68] sm:$0xf]
    %v54 = vld [vmem:[%s0 + $0x6c] sm:$0xf]
    %v55 = vld [vmem:[%s0 + $0x70] sm:$0xf]
    %v56 = vld [vmem:[%s0 + $0x74] sm:$0xf]
    %v57 = vld [vmem:[%s0 + $0x78] sm:$0xf]
    %v58 = vld [vmem:[%s0 + $0x7c] sm:$0xf]
    %v59 = vld [vmem:[%s0 + $0x80] sm:$0xf]
    %v60 = vld [vmem:[%s0 + $0x84] sm:$0xf]
    %v61 = vld [vmem:[%s0 + $0x88] sm:$0xf]
    %v62 = vld [vmem:[%s0 + $0x8c] sm:$0xf]
    %v63 = vld [vmem:[%s0 + $0x90] sm:$0xf]
    %v64 = vld [vmem:[%s0 + $0x94] sm:$0xf]
    %v65 = vld [vmem:[%s0 + $0x98] sm:$0xf]
    %v66 = vld [vmem:[%s0 + $0x9c] sm:$0xf]
    %v67 = vld [vmem:[%s0 + $0xa0] sm:$0xf]
    %v68 = vld [vmem:[%s0 + $0xa4] sm:$0xf]
    %v69 = vld [vmem:[%s0 + $0xa8] sm:$0xf]
    %v70 = vld [vmem:[%s0 + $0xac] sm:$0xf]
    %v71 = vld [vmem:[%s0 + $0xb0] sm:$0xf]
    %v72 = vld [vmem:[%s0 + $0xb4] sm:$0xf]
    %v73 = vld [vmem:[%s0 + $0xb8] sm:$0xf]
    %v74 = vld [vmem:[%s0 + $0xbc] sm:$0xf]
    %v75 = vld [vmem:[%s0 + $0xc0] sm:$0xf]
    %v76 = vld [vmem:[%s0 + $0xc4] sm:$0xf]
    %v77 = vld [vmem:[%s0 + $0xc8] sm:$0xf]
    %v78 = vld [vmem:[%s0 + $0xcc] sm:$0xf]
    %v79 = vld [vmem:[%s0 + $0xd0] sm:$0xf]
    %v80 = vld [vmem:[%s0 + $0xd4] sm:$0xf]
    %v81 = vld [vmem:[%s0 + $0xd8] sm:$0xf]
    %v82 = vld [vmem:[%s0 + $0xdc] sm:$0xf]
    %v83 = vld [vmem:[%s0 + $0xe0] sm:$0xf]
    %v84 = vld [vmem:[%s0 + $0xe4] sm:$0xf]
    %v85 = vld [vmem:[%s0 + $0xe8] sm:$0xf]
    %v86 = vld [vmem:[%s0 + $0xec] sm:$0xf]
    %v87 = vld [vmem:[%s0 + $0xf0] sm:$0xf]
    %v88 = vld [vmem:[%s0 + $0xf4] sm:$0xf]
    %v89 = vld [vmem:[%s0 + $0xf8] sm:$0xf]
    %v90 = vld [vmem:[%s0 + $0xfc] sm:$0xf]
    %v91 = vld [vmem:[%s1] sm:$0xf]
    %v92 = vld [vmem:[%s1 + $0x4] sm:$0xf]
    %v93 = vld [vmem:[%s1 + $0x8] sm:$0xf]
    %v94 = vld [vmem:[%s1 + $0xc] sm:$0xf]
    %v95 = vld [vmem:[%s1 + $0x10] sm:$0xf]
    %v96 = vld [vmem:[%s1 + $0x14] sm:$0xf]
    %v97 = vld [vmem:[#allocation2] sm:$0x1]
    %v99 = vlaneseq
    %v100 = vshrl.u32 %v99, 7
    %v101 = vsub.s32 0, %v100
    %v102 = vrot.slane %v97, %v101
    %v168 = vunpack.c.l.b16 %v27
    %v169 = vunpack.c.l.b16 %v28
    %v170 = vunpack.c.l.b16 %v29
    %v171 = vunpack.c.l.b16 %v30
    %v172 = vunpack.c.l.b16 %v31
    %v173 = vunpack.c.l.b16 %v32
    %v174 = vunpack.c.l.b16 %v33
    %v175 = vunpack.c.l.b16 %v34
    %v176 = vunpack.c.l.b16 %v35
    %v177 = vunpack.c.l.b16 %v36
    %v178 = vunpack.c.l.b16 %v37
    %v179 = vunpack.c.l.b16 %v38
    %v180 = vunpack.c.l.b16 %v39
    %v181 = vunpack.c.l.b16 %v40
    %v182 = vunpack.c.l.b16 %v41
    %v183 = vunpack.c.l.b16 %v42
    %v184 = vunpack.c.l.b16 %v43
    %v185 = vunpack.c.l.b16 %v44
    %v186 = vunpack.c.l.b16 %v45
    %v187 = vunpack.c.l.b16 %v46
    %v188 = vunpack.c.l.b16 %v47
    %v189 = vunpack.c.l.b16 %v48
    %v190 = vunpack.c.l.b16 %v49
    %v191 = vunpack.c.l.b16 %v50
    %v192 = vunpack.c.l.b16 %v51
    %v193 = vunpack.c.l.b16 %v52
    %v194 = vunpack.c.l.b16 %v53
    %v195 = vunpack.c.l.b16 %v54
    %v196 = vunpack.c.l.b16 %v55
    %v197 = vunpack.c.l.b16 %v56
    %v198 = vunpack.c.l.b16 %v57
    %v199 = vunpack.c.l.b16 %v58
    %v200 = vunpack.c.l.b16 %v59
    %v201 = vunpack.c.l.b16 %v60
    %v202 = vunpack.c.l.b16 %v61
    %v203 = vunpack.c.l.b16 %v62
    %v204 = vunpack.c.l.b16 %v63
    %v205 = vunpack.c.l.b16 %v64
    %v206 = vunpack.c.l.b16 %v65
    %v207 = vunpack.c.l.b16 %v66
    %v208 = vunpack.c.l.b16 %v67
    %v209 = vunpack.c.l.b16 %v68
    %v210 = vunpack.c.l.b16 %v69
    %v211 = vunpack.c.l.b16 %v70
    %v212 = vunpack.c.l.b16 %v71
    %v213 = vunpack.c.l.b16 %v72
    %v214 = vunpack.c.l.b16 %v73
    %v215 = vunpack.c.l.b16 %v74
    %v216 = vunpack.c.l.b16 %v75
    %v217 = vunpack.c.l.b16 %v76
    %v218 = vunpack.c.l.b16 %v77
    %v219 = vunpack.c.l.b16 %v78
    %v220 = vunpack.c.l.b16 %v79
    %v221 = vunpack.c.l.b16 %v80
    %v222 = vunpack.c.l.b16 %v81
    %v223 = vunpack.c.l.b16 %v82
    %v224 = vunpack.c.l.b16 %v83
    %v225 = vunpack.c.l.b16 %v84
    %v226 = vunpack.c.l.b16 %v85
    %v227 = vunpack.c.l.b16 %v86
    %v228 = vunpack.c.l.b16 %v87
    %v229 = vunpack.c.l.b16 %v88
    %v230 = vunpack.c.l.b16 %v89
    %v231 = vunpack.c.l.b16 %v90
    %v232 = vpack.c.b16 %v169, %v168
    %v233 = vpack.c.b16 %v171, %v170
    %v234 = vpack.c.b16 %v173, %v172
    %v235 = vpack.c.b16 %v175, %v174
    %v236 = vpack.c.b16 %v177, %v176
    %v237 = vpack.c.b16 %v179, %v178
    %v238 = vpack.c.b16 %v181, %v180
    %v239 = vpack.c.b16 %v183, %v182
    %v240 = vpack.c.b16 %v185, %v184
    %v241 = vpack.c.b16 %v187, %v186
    %v242 = vpack.c.b16 %v189, %v188
    %v243 = vpack.c.b16 %v191, %v190
    %v244 = vpack.c.b16 %v193, %v192
    %v245 = vpack.c.b16 %v195, %v194
    %v246 = vpack.c.b16 %v197, %v196
    %v247 = vpack.c.b16 %v199, %v198
    %v248 = vpack.c.b16 %v201, %v200
    %v249 = vpack.c.b16 %v203, %v202
    %v250 = vpack.c.b16 %v205, %v204
    %v251 = vpack.c.b16 %v207, %v206
    %v252 = vpack.c.b16 %v209, %v208
    %v253 = vpack.c.b16 %v211, %v210
    %v254 = vpack.c.b16 %v213, %v212
    %v255 = vpack.c.b16 %v215, %v214
    %v256 = vpack.c.b16 %v217, %v216
    %v257 = vpack.c.b16 %v219, %v218
    %v258 = vpack.c.b16 %v221, %v220
    %v259 = vpack.c.b16 %v223, %v222
    %v260 = vpack.c.b16 %v225, %v224
    %v261 = vpack.c.b16 %v227, %v226
    %v262 = vpack.c.b16 %v229, %v228
    %v263 = vpack.c.b16 %v231, %v230
    %v270 = vunpack.c.l.b16 %v91
    %v271 = vunpack.c.l.b16 %v92
    %v272 = vunpack.c.l.b16 %v93
    %v273 = vunpack.c.l.b16 %v94
    %v274 = vunpack.c.l.b16 %v95
    %v275 = vunpack.c.l.b16 %v96
    %v276 = vpack.c.b16 %v271, %v270
    %v277 = vpack.c.b16 %v273, %v272
    %v278 = vpack.c.b16 %v275, %v274
    %vm282 = vcmask 392192
    %v284 = vsel %vm282, %v232, 0
    %v287 = vsel %vm282, %v233, 0
    %v290 = vsel %vm282, %v234, 0
    %v293 = vsel %vm282, %v235, 0
    %v296 = vsel %vm282, %v236, 0
    %v299 = vsel %vm282, %v237, 0
    %v302 = vsel %vm282, %v238, 0
    %v305 = vsel %vm282, %v239, 0
    %v308 = vsel %vm282, %v240, 0
    %v311 = vsel %vm282, %v241, 0
    %v314 = vsel %vm282, %v242, 0
    %v317 = vsel %vm282, %v243, 0
    %v320 = vsel %vm282, %v244, 0
    %v323 = vsel %vm282, %v245, 0
    %v326 = vsel %vm282, %v246, 0
    %v329 = vsel %vm282, %v247, 0
    %v332 = vsel %vm282, %v248, 0
    %v335 = vsel %vm282, %v249, 0
    %v338 = vsel %vm282, %v250, 0
    %v341 = vsel %vm282, %v251, 0
    %v344 = vsel %vm282, %v252, 0
    %v347 = vsel %vm282, %v253, 0
    %v350 = vsel %vm282, %v254, 0
    %v353 = vsel %vm282, %v255, 0
    %v356 = vsel %vm282, %v256, 0
    %v359 = vsel %vm282, %v257, 0
    %v362 = vsel %vm282, %v258, 0
    %v365 = vsel %vm282, %v259, 0
    %v368 = vsel %vm282, %v260, 0
    %v371 = vsel %vm282, %v261, 0
    %v374 = vsel %vm282, %v262, 0
    %v377 = vsel %vm282, %v263, 0
    %379 = vmatprep.subr.bf16.mxu0 0
    %380 = vmatpush1.bf16.msra.mxu0 %v276
    %381 = vmatprep.subr.bf16.mxu0 0
    %382 = vmatpush1.bf16.msra.mxu0 %v277
    %383 = vmatprep.subr.bf16.mxu0 0
    %384 = vmatpush1.bf16.msra.mxu0 %v278
    %385 = vmatprep.subr.bf16.mxu0 0
    %386 = vmatpush1.bf16.msra.mxu0 0
    %387 = vmatprep.subr.bf16.mxu0 0
    %388 = vmatpush1.bf16.msra.mxu0 0
    %389 = vmatprep.subr.bf16.mxu0 0
    %390 = vmatpush1.bf16.msra.mxu0 0
    %391 = vmatprep.subr.bf16.mxu0 0
    %392 = vmatpush1.bf16.msra.mxu0 0
    %393 = vmatprep.subr.bf16.mxu0 0
    %394 = vmatpush1.bf16.msra.mxu0 0
    %395 = vmatprep.subr.bf16.mxu0 0
    %396 = vmatpush1.bf16.msra.mxu0 0
    %397 = vmatprep.subr.bf16.mxu0 0
    %398 = vmatpush1.bf16.msra.mxu0 0
    %399 = vmatprep.subr.bf16.mxu0 0
    %400 = vmatpush1.bf16.msra.mxu0 0
    %401 = vmatprep.subr.bf16.mxu0 0
    %402 = vmatpush1.bf16.msra.mxu0 0
    %403 = vmatprep.subr.bf16.mxu0 0
    %404 = vmatpush1.bf16.msra.mxu0 0
    %405 = vmatprep.subr.bf16.mxu0 0
    %406 = vmatpush1.bf16.msra.mxu0 0
    %407 = vmatprep.subr.bf16.mxu0 0
    %408 = vmatpush1.bf16.msra.mxu0 0
    %409 = vmatprep.subr.bf16.mxu0 0
    %410 = vmatpush1.bf16.msra.mxu0 0
    %411 = vmatprep.mubr.bf16.mxu0 0
    %412 = vmatmul.mubr.bf16.gmra.mrb[0].mxu0 %v284
    %v413 = vpop.f32.mrb[0].mxu0
    %v414 = vadd.f32 %v102, %v413
    %v415 = vpop.f32.mrb[0].mxu0
    %v416 = vpop.f32.mrb[0].mxu0
    %v417 = vadd.f32 %v102, %v416
    %v418 = vpop.f32.mrb[0].mxu0
    %419 = vmatprep.mubr.bf16.mxu0 0
    %420 = vmatmul.mubr.bf16.gmra.mrb[0].mxu0 %v287
    %v421 = vpop.f32.mrb[0].mxu0
    %v422 = vadd.f32 %v102, %v421
    %v423 = vpop.f32.mrb[0].mxu0
    %v424 = vpop.f32.mrb[0].mxu0
    %v425 = vadd.f32 %v102, %v424
    %v426 = vpop.f32.mrb[0].mxu0
    %427 = vmatprep.mubr.bf16.mxu0 0
    %428 = vmatmul.mubr.bf16.gmra.mrb[0].mxu0 %v290
    %v429 = vpop.f32.mrb[0].mxu0
    %v430 = vadd.f32 %v102, %v429
    %v431 = vpop.f32.mrb[0].mxu0
    %v432 = vpop.f32.mrb[0].mxu0
    %v433 = vadd.f32 %v102, %v432
    %v434 = vpop.f32.mrb[0].mxu0
    %435 = vmatprep.mubr.bf16.mxu0 0
    %436 = vmatmul.mubr.bf16.gmra.mrb[0].mxu0 %v293
    %v437 = vpop.f32.mrb[0].mxu0
    %v438 = vadd.f32 %v102, %v437
    %v439 = vpop.f32.mrb[0].mxu0
    %v440 = vpop.f32.mrb[0].mxu0
    %v441 = vadd.f32 %v102, %v440
    %v442 = vpop.f32.mrb[0].mxu0
    %443 = vmatprep.mubr.bf16.mxu0 0
    %444 = vmatmul.mubr.bf16.gmra.mrb[0].mxu0 %v296
    %v445 = vpop.f32.mrb[0].mxu0
    %v446 = vadd.f32 %v102, %v445
    %v447 = vpop.f32.mrb[0].mxu0
    %v448 = vpop.f32.mrb[0].mxu0
    %v449 = vadd.f32 %v102, %v448
    %v450 = vpop.f32.mrb[0].mxu0
    %451 = vmatprep.mubr.bf16.mxu0 0
    %452 = vmatmul.mubr.bf16.gmra.mrb[0].mxu0 %v299
    %v453 = vpop.f32.mrb[0].mxu0
    %v454 = vadd.f32 %v102, %v453
    %v455 = vpop.f32.mrb[0].mxu0
    %v456 = vpop.f32.mrb[0].mxu0
    %v457 = vadd.f32 %v102, %v456
    %v458 = vpop.f32.mrb[0].mxu0
    %459 = vmatprep.mubr.bf16.mxu0 0
    %460 = vmatmul.mubr.bf16.gmra.mrb[0].mxu0 %v302
    %v461 = vpop.f32.mrb[0].mxu0
    %v462 = vadd.f32 %v102, %v461
    %v463 = vpop.f32.mrb[0].mxu0
    %v464 = vpop.f32.mrb[0].mxu0
    %v465 = vadd.f32 %v102, %v464
    %v466 = vpop.f32.mrb[0].mxu0
    %467 = vmatprep.mubr.bf16.mxu0 0
    %468 = vmatmul.mubr.bf16.gmra.mrb[0].mxu0 %v305
    %v469 = vpop.f32.mrb[0].mxu0
    %v470 = vadd.f32 %v102, %v469
    %v471 = vpop.f32.mrb[0].mxu0
    %v472 = vpop.f32.mrb[0].mxu0
    %v473 = vadd.f32 %v102, %v472
    %v474 = vpop.f32.mrb[0].mxu0
    %475 = vmatprep.mubr.bf16.mxu0 0
    %476 = vmatmul.mubr.bf16.gmra.mrb[0].mxu0 %v308
    %v477 = vpop.f32.mrb[0].mxu0
    %v478 = vadd.f32 %v102, %v477
    %v479 = vpop.f32.mrb[0].mxu0
    %v480 = vpop.f32.mrb[0].mxu0
    %v481 = vadd.f32 %v102, %v480
    %v482 = vpop.f32.mrb[0].mxu0
    %483 = vmatprep.mubr.bf16.mxu0 0
    %484 = vmatmul.mubr.bf16.gmra.mrb[0].mxu0 %v311
    %v485 = vpop.f32.mrb[0].mxu0
    %v486 = vadd.f32 %v102, %v485
    %v487 = vpop.f32.mrb[0].mxu0
    %v488 = vpop.f32.mrb[0].mxu0
    %v489 = vadd.f32 %v102, %v488
    %v490 = vpop.f32.mrb[0].mxu0
    %491 = vmatprep.mubr.bf16.mxu0 0
    %492 = vmatmul.mubr.bf16.gmra.mrb[0].mxu0 %v314
    %v493 = vpop.f32.mrb[0].mxu0
    %v494 = vadd.f32 %v102, %v493
    %v495 = vpop.f32.mrb[0].mxu0
    %v496 = vpop.f32.mrb[0].mxu0
    %v497 = vadd.f32 %v102, %v496
    %v498 = vpop.f32.mrb[0].mxu0
    %499 = vmatprep.mubr.bf16.mxu0 0
    %500 = vmatmul.mubr.bf16.gmra.mrb[0].mxu0 %v317
    %v501 = vpop.f32.mrb[0].mxu0
    %v502 = vadd.f32 %v102, %v501
    %v503 = vpop.f32.mrb[0].mxu0
    %v504 = vpop.f32.mrb[0].mxu0
    %v505 = vadd.f32 %v102, %v504
    %v506 = vpop.f32.mrb[0].mxu0
    %507 = vmatprep.mubr.bf16.mxu0 0
    %508 = vmatmul.mubr.bf16.gmra.mrb[0].mxu0 %v320
    %v509 = vpop.f32.mrb[0].mxu0
    %v510 = vadd.f32 %v102, %v509
    %v511 = vpop.f32.mrb[0].mxu0
    %v512 = vpop.f32.mrb[0].mxu0
    %v513 = vadd.f32 %v102, %v512
    %v514 = vpop.f32.mrb[0].mxu0
    %515 = vmatprep.mubr.bf16.mxu0 0
    %516 = vmatmul.mubr.bf16.gmra.mrb[0].mxu0 %v323
    %v517 = vpop.f32.mrb[0].mxu0
    %v518 = vadd.f32 %v102, %v517
    %v519 = vpop.f32.mrb[0].mxu0
    %v520 = vpop.f32.mrb[0].mxu0
    %v521 = vadd.f32 %v102, %v520
    %v522 = vpop.f32.mrb[0].mxu0
    %523 = vmatprep.mubr.bf16.mxu0 0
    %524 = vmatmul.mubr.bf16.gmra.mrb[0].mxu0 %v326
    %v525 = vpop.f32.mrb[0].mxu0
    %v526 = vadd.f32 %v102, %v525
    %v527 = vpop.f32.mrb[0].mxu0
    %v528 = vpop.f32.mrb[0].mxu0
    %v529 = vadd.f32 %v102, %v528
    %v530 = vpop.f32.mrb[0].mxu0
    %531 = vmatprep.mubr.bf16.mxu0 0
    %532 = vmatmul.mubr.bf16.gmra.mrb[0].mxu0 %v329
    %v533 = vpop.f32.mrb[0].mxu0
    %v534 = vadd.f32 %v102, %v533
    %v535 = vpop.f32.mrb[0].mxu0
    %v536 = vpop.f32.mrb[0].mxu0
    %v537 = vadd.f32 %v102, %v536
    %v538 = vpop.f32.mrb[0].mxu0
    %539 = vmatprep.mubr.bf16.mxu0 0
    %540 = vmatmul.mubr.bf16.gmra.mrb[0].mxu0 %v332
    %v541 = vpop.f32.mrb[0].mxu0
    %v542 = vadd.f32 %v102, %v541
    %v543 = vpop.f32.mrb[0].mxu0
    %v544 = vpop.f32.mrb[0].mxu0
    %v545 = vadd.f32 %v102, %v544
    %v546 = vpop.f32.mrb[0].mxu0
    %547 = vmatprep.mubr.bf16.mxu0 0
    %548 = vmatmul.mubr.bf16.gmra.mrb[0].mxu0 %v335
    %v549 = vpop.f32.mrb[0].mxu0
    %v550 = vadd.f32 %v102, %v549
    %v551 = vpop.f32.mrb[0].mxu0
    %v552 = vpop.f32.mrb[0].mxu0
    %v553 = vadd.f32 %v102, %v552
    %v554 = vpop.f32.mrb[0].mxu0
    %555 = vmatprep.mubr.bf16.mxu0 0
    %556 = vmatmul.mubr.bf16.gmra.mrb[0].mxu0 %v338
    %v557 = vpop.f32.mrb[0].mxu0
    %v558 = vadd.f32 %v102, %v557
    %v559 = vpop.f32.mrb[0].mxu0
    %v560 = vpop.f32.mrb[0].mxu0
    %v561 = vadd.f32 %v102, %v560
    %v562 = vpop.f32.mrb[0].mxu0
    %563 = vmatprep.mubr.bf16.mxu0 0
    %564 = vmatmul.mubr.bf16.gmra.mrb[0].mxu0 %v341
    %v565 = vpop.f32.mrb[0].mxu0
    %v566 = vadd.f32 %v102, %v565
    %v567 = vpop.f32.mrb[0].mxu0
    %v568 = vpop.f32.mrb[0].mxu0
    %v569 = vadd.f32 %v102, %v568
    %v570 = vpop.f32.mrb[0].mxu0
    %571 = vmatprep.mubr.bf16.mxu0 0
    %572 = vmatmul.mubr.bf16.gmra.mrb[0].mxu0 %v344
    %v573 = vpop.f32.mrb[0].mxu0
    %v574 = vadd.f32 %v102, %v573
    %v575 = vpop.f32.mrb[0].mxu0
    %v576 = vpop.f32.mrb[0].mxu0
    %v577 = vadd.f32 %v102, %v576
    %v578 = vpop.f32.mrb[0].mxu0
    %579 = vmatprep.mubr.bf16.mxu0 0
    %580 = vmatmul.mubr.bf16.gmra.mrb[0].mxu0 %v347
    %v581 = vpop.f32.mrb[0].mxu0
    %v582 = vadd.f32 %v102, %v581
    %v583 = vpop.f32.mrb[0].mxu0
    %v584 = vpop.f32.mrb[0].mxu0
    %v585 = vadd.f32 %v102, %v584
    %v586 = vpop.f32.mrb[0].mxu0
    %587 = vmatprep.mubr.bf16.mxu0 0
    %588 = vmatmul.mubr.bf16.gmra.mrb[0].mxu0 %v350
    %v589 = vpop.f32.mrb[0].mxu0
    %v590 = vadd.f32 %v102, %v589
    %v591 = vpop.f32.mrb[0].mxu0
    %v592 = vpop.f32.mrb[0].mxu0
    %v593 = vadd.f32 %v102, %v592
    %v594 = vpop.f32.mrb[0].mxu0
    %595 = vmatprep.mubr.bf16.mxu0 0
    %596 = vmatmul.mubr.bf16.gmra.mrb[0].mxu0 %v353
    %v597 = vpop.f32.mrb[0].mxu0
    %v598 = vadd.f32 %v102, %v597
    %v599 = vpop.f32.mrb[0].mxu0
    %v600 = vpop.f32.mrb[0].mxu0
    %v601 = vadd.f32 %v102, %v600
    %v602 = vpop.f32.mrb[0].mxu0
    %603 = vmatprep.mubr.bf16.mxu0 0
    %604 = vmatmul.mubr.bf16.gmra.mrb[0].mxu0 %v356
    %v605 = vpop.f32.mrb[0].mxu0
    %v606 = vadd.f32 %v102, %v605
    %v607 = vpop.f32.mrb[0].mxu0
    %v608 = vpop.f32.mrb[0].mxu0
    %v609 = vadd.f32 %v102, %v608
    %v610 = vpop.f32.mrb[0].mxu0
    %611 = vmatprep.mubr.bf16.mxu0 0
    %612 = vmatmul.mubr.bf16.gmra.mrb[0].mxu0 %v359
    %v613 = vpop.f32.mrb[0].mxu0
    %v614 = vadd.f32 %v102, %v613
    %v615 = vpop.f32.mrb[0].mxu0
    %v616 = vpop.f32.mrb[0].mxu0
    %v617 = vadd.f32 %v102, %v616
    %v618 = vpop.f32.mrb[0].mxu0
    %619 = vmatprep.mubr.bf16.mxu0 0
    %620 = vmatmul.mubr.bf16.gmra.mrb[0].mxu0 %v362
    %v621 = vpop.f32.mrb[0].mxu0
    %v622 = vadd.f32 %v102, %v621
    %v623 = vpop.f32.mrb[0].mxu0
    %v624 = vpop.f32.mrb[0].mxu0
    %v625 = vadd.f32 %v102, %v624
    %v626 = vpop.f32.mrb[0].mxu0
    %627 = vmatprep.mubr.bf16.mxu0 0
    %628 = vmatmul.mubr.bf16.gmra.mrb[0].mxu0 %v365
    %v629 = vpop.f32.mrb[0].mxu0
    %v630 = vadd.f32 %v102, %v629
    %v631 = vpop.f32.mrb[0].mxu0
    %v632 = vpop.f32.mrb[0].mxu0
    %v633 = vadd.f32 %v102, %v632
    %v634 = vpop.f32.mrb[0].mxu0
    %635 = vmatprep.mubr.bf16.mxu0 0
    %636 = vmatmul.mubr.bf16.gmra.mrb[0].mxu0 %v368
    %v637 = vpop.f32.mrb[0].mxu0
    %v638 = vadd.f32 %v102, %v637
    %v639 = vpop.f32.mrb[0].mxu0
    %v640 = vpop.f32.mrb[0].mxu0
    %v641 = vadd.f32 %v102, %v640
    %v642 = vpop.f32.mrb[0].mxu0
    %643 = vmatprep.mubr.bf16.mxu0 0
    %644 = vmatmul.mubr.bf16.gmra.mrb[0].mxu0 %v371
    %v645 = vpop.f32.mrb[0].mxu0
    %v646 = vadd.f32 %v102, %v645
    %v647 = vpop.f32.mrb[0].mxu0
    %v648 = vpop.f32.mrb[0].mxu0
    %v649 = vadd.f32 %v102, %v648
    %v650 = vpop.f32.mrb[0].mxu0
    %651 = vmatprep.mubr.bf16.mxu0 0
    %652 = vmatmul.mubr.bf16.gmra.mrb[0].mxu0 %v374
    %v653 = vpop.f32.mrb[0].mxu0
    %v654 = vadd.f32 %v102, %v653
    %v655 = vpop.f32.mrb[0].mxu0
    %v656 = vpop.f32.mrb[0].mxu0
    %v657 = vadd.f32 %v102, %v656
    %v658 = vpop.f32.mrb[0].mxu0
    %659 = vmatprep.mubr.bf16.mxu0 0
    %660 = vmatmul.mubr.bf16.gmra.mrb[0].mxu0 %v377
    %v661 = vpop.f32.mrb[0].mxu0
    %v662 = vadd.f32 %v102, %v661
    %v663 = vpop.f32.mrb[0].mxu0
    %v664 = vpop.f32.mrb[0].mxu0
    %v665 = vadd.f32 %v102, %v664
    %v666 = vpop.f32.mrb[0].mxu0
    %667 = vdwg.mxu0
    %vm668 = vcmp.gt.f32.partialorder %v414, 0.0
    %vm669 = vcmp.gt.f32.partialorder %v417, 0.0
    %vm670 = vcmp.gt.f32.partialorder %v422, 0.0
    %vm671 = vcmp.gt.f32.partialorder %v425, 0.0
    %vm672 = vcmp.gt.f32.partialorder %v430, 0.0
    %vm673 = vcmp.gt.f32.partialorder %v433, 0.0
    %vm674 = vcmp.gt.f32.partialorder %v438, 0.0
    %vm675 = vcmp.gt.f32.partialorder %v441, 0.0
    %vm676 = vcmp.gt.f32.partialorder %v446, 0.0
    %vm677 = vcmp.gt.f32.partialorder %v449, 0.0
    %vm678 = vcmp.gt.f32.partialorder %v454, 0.0
    %vm679 = vcmp.gt.f32.partialorder %v457, 0.0
    %vm680 = vcmp.gt.f32.partialorder %v462, 0.0
    %vm681 = vcmp.gt.f32.partialorder %v465, 0.0
    %vm682 = vcmp.gt.f32.partialorder %v470, 0.0
    %vm683 = vcmp.gt.f32.partialorder %v473, 0.0
    %vm684 = vcmp.gt.f32.partialorder %v478, 0.0
    %vm685 = vcmp.gt.f32.partialorder %v481, 0.0
    %vm686 = vcmp.gt.f32.partialorder %v486, 0.0
    %vm687 = vcmp.gt.f32.partialorder %v489, 0.0
    %vm688 = vcmp.gt.f32.partialorder %v494, 0.0
    %vm689 = vcmp.gt.f32.partialorder %v497, 0.0
    %vm690 = vcmp.gt.f32.partialorder %v502, 0.0
    %vm691 = vcmp.gt.f32.partialorder %v505, 0.0
    %vm692 = vcmp.gt.f32.partialorder %v510, 0.0
    %vm693 = vcmp.gt.f32.partialorder %v513, 0.0
    %vm694 = vcmp.gt.f32.partialorder %v518, 0.0
    %vm695 = vcmp.gt.f32.partialorder %v521, 0.0
    %vm696 = vcmp.gt.f32.partialorder %v526, 0.0
    %vm697 = vcmp.gt.f32.partialorder %v529, 0.0
    %vm698 = vcmp.gt.f32.partialorder %v534, 0.0
    %vm699 = vcmp.gt.f32.partialorder %v537, 0.0
    %vm700 = vcmp.gt.f32.partialorder %v542, 0.0
    %vm701 = vcmp.gt.f32.partialorder %v545, 0.0
    %vm702 = vcmp.gt.f32.partialorder %v550, 0.0
    %vm703 = vcmp.gt.f32.partialorder %v553, 0.0
    %vm704 = vcmp.gt.f32.partialorder %v558, 0.0
    %vm705 = vcmp.gt.f32.partialorder %v561, 0.0
    %vm706 = vcmp.gt.f32.partialorder %v566, 0.0
    %vm707 = vcmp.gt.f32.partialorder %v569, 0.0
    %vm708 = vcmp.gt.f32.partialorder %v574, 0.0
    %vm709 = vcmp.gt.f32.partialorder %v577, 0.0
    %vm710 = vcmp.gt.f32.partialorder %v582, 0.0
    %vm711 = vcmp.gt.f32.partialorder %v585, 0.0
    %vm712 = vcmp.gt.f32.partialorder %v590, 0.0
    %vm713 = vcmp.gt.f32.partialorder %v593, 0.0
    %vm714 = vcmp.gt.f32.partialorder %v598, 0.0
    %vm715 = vcmp.gt.f32.partialorder %v601, 0.0
    %vm716 = vcmp.gt.f32.partialorder %v606, 0.0
    %vm717 = vcmp.gt.f32.partialorder %v609, 0.0
    %vm718 = vcmp.gt.f32.partialorder %v614, 0.0
    %vm719 = vcmp.gt.f32.partialorder %v617, 0.0
    %vm720 = vcmp.gt.f32.partialorder %v622, 0.0
    %vm721 = vcmp.gt.f32.partialorder %v625, 0.0
    %vm722 = vcmp.gt.f32.partialorder %v630, 0.0
    %vm723 = vcmp.gt.f32.partialorder %v633, 0.0
    %vm724 = vcmp.gt.f32.partialorder %v638, 0.0
    %vm725 = vcmp.gt.f32.partialorder %v641, 0.0
    %vm726 = vcmp.gt.f32.partialorder %v646, 0.0
    %vm727 = vcmp.gt.f32.partialorder %v649, 0.0
    %vm728 = vcmp.gt.f32.partialorder %v654, 0.0
    %vm729 = vcmp.gt.f32.partialorder %v657, 0.0
    %vm730 = vcmp.gt.f32.partialorder %v662, 0.0
    %vm731 = vcmp.gt.f32.partialorder %v665, 0.0
    %v732 = vmul.f32 %v414, 0.01
    %v733 = vmul.f32 %v417, 0.01
    %v734 = vmul.f32 %v422, 0.01
    %v735 = vmul.f32 %v425, 0.01
    %v736 = vmul.f32 %v430, 0.01
    %v737 = vmul.f32 %v433, 0.01
    %v738 = vmul.f32 %v438, 0.01
    %v739 = vmul.f32 %v441, 0.01
    %v740 = vmul.f32 %v446, 0.01
    %v741 = vmul.f32 %v449, 0.01
    %v742 = vmul.f32 %v454, 0.01
    %v743 = vmul.f32 %v457, 0.01
    %v744 = vmul.f32 %v462, 0.01
    %v745 = vmul.f32 %v465, 0.01
    %v746 = vmul.f32 %v470, 0.01
    %v747 = vmul.f32 %v473, 0.01
    %v748 = vmul.f32 %v478, 0.01
    %v749 = vmul.f32 %v481, 0.01
    %v750 = vmul.f32 %v486, 0.01
    %v751 = vmul.f32 %v489, 0.01
    %v752 = vmul.f32 %v494, 0.01
    %v753 = vmul.f32 %v497, 0.01
    %v754 = vmul.f32 %v502, 0.01
    %v755 = vmul.f32 %v505, 0.01
    %v756 = vmul.f32 %v510, 0.01
    %v757 = vmul.f32 %v513, 0.01
    %v758 = vmul.f32 %v518, 0.01
    %v759 = vmul.f32 %v521, 0.01
    %v760 = vmul.f32 %v526, 0.01
    %v761 = vmul.f32 %v529, 0.01
    %v762 = vmul.f32 %v534, 0.01
    %v763 = vmul.f32 %v537, 0.01
    %v764 = vmul.f32 %v542, 0.01
    %v765 = vmul.f32 %v545, 0.01
    %v766 = vmul.f32 %v550, 0.01
    %v767 = vmul.f32 %v553, 0.01
    %v768 = vmul.f32 %v558, 0.01
    %v769 = vmul.f32 %v561, 0.01
    %v770 = vmul.f32 %v566, 0.01
    %v771 = vmul.f32 %v569, 0.01
    %v772 = vmul.f32 %v574, 0.01
    %v773 = vmul.f32 %v577, 0.01
    %v774 = vmul.f32 %v582, 0.01
    %v775 = vmul.f32 %v585, 0.01
    %v776 = vmul.f32 %v590, 0.01
    %v777 = vmul.f32 %v593, 0.01
    %v778 = vmul.f32 %v598, 0.01
    %v779 = vmul.f32 %v601, 0.01
    %v780 = vmul.f32 %v606, 0.01
    %v781 = vmul.f32 %v609, 0.01
    %v782 = vmul.f32 %v614, 0.01
    %v783 = vmul.f32 %v617, 0.01
    %v784 = vmul.f32 %v622, 0.01
    %v785 = vmul.f32 %v625, 0.01
    %v786 = vmul.f32 %v630, 0.01
    %v787 = vmul.f32 %v633, 0.01
    %v788 = vmul.f32 %v638, 0.01
    %v789 = vmul.f32 %v641, 0.01
    %v790 = vmul.f32 %v646, 0.01
    %v791 = vmul.f32 %v649, 0.01
    %v792 = vmul.f32 %v654, 0.01
    %v793 = vmul.f32 %v657, 0.01
    %v794 = vmul.f32 %v662, 0.01
    %v795 = vmul.f32 %v665, 0.01
    %v796 = vsel %vm668, %v414, %v732
    %v797 = vsel %vm669, %v417, %v733
    %v798 = vsel %vm670, %v422, %v734
    %v799 = vsel %vm671, %v425, %v735
    %v800 = vsel %vm672, %v430, %v736
    %v801 = vsel %vm673, %v433, %v737
    %v802 = vsel %vm674, %v438, %v738
    %v803 = vsel %vm675, %v441, %v739
    %v804 = vsel %vm676, %v446, %v740
    %v805 = vsel %vm677, %v449, %v741
    %v806 = vsel %vm678, %v454, %v742
    %v807 = vsel %vm679, %v457, %v743
    %v808 = vsel %vm680, %v462, %v744
    %v809 = vsel %vm681, %v465, %v745
    %v810 = vsel %vm682, %v470, %v746
    %v811 = vsel %vm683, %v473, %v747
    %v812 = vsel %vm684, %v478, %v748
    %v813 = vsel %vm685, %v481, %v749
    %v814 = vsel %vm686, %v486, %v750
    %v815 = vsel %vm687, %v489, %v751
    %v816 = vsel %vm688, %v494, %v752
    %v817 = vsel %vm689, %v497, %v753
    %v818 = vsel %vm690, %v502, %v754
    %v819 = vsel %vm691, %v505, %v755
    %v820 = vsel %vm692, %v510, %v756
    %v821 = vsel %vm693, %v513, %v757
    %v822 = vsel %vm694, %v518, %v758
    %v823 = vsel %vm695, %v521, %v759
    %v824 = vsel %vm696, %v526, %v760
    %v825 = vsel %vm697, %v529, %v761
    %v826 = vsel %vm698, %v534, %v762
    %v827 = vsel %vm699, %v537, %v763
    %v828 = vsel %vm700, %v542, %v764
    %v829 = vsel %vm701, %v545, %v765
    %v830 = vsel %vm702, %v550, %v766
    %v831 = vsel %vm703, %v553, %v767
    %v832 = vsel %vm704, %v558, %v768
    %v833 = vsel %vm705, %v561, %v769
    %v834 = vsel %vm706, %v566, %v770
    %v835 = vsel %vm707, %v569, %v771
    %v836 = vsel %vm708, %v574, %v772
    %v837 = vsel %vm709, %v577, %v773
    %v838 = vsel %vm710, %v582, %v774
    %v839 = vsel %vm711, %v585, %v775
    %v840 = vsel %vm712, %v590, %v776
    %v841 = vsel %vm713, %v593, %v777
    %v842 = vsel %vm714, %v598, %v778
    %v843 = vsel %vm715, %v601, %v779
    %v844 = vsel %vm716, %v606, %v780
    %v845 = vsel %vm717, %v609, %v781
    %v846 = vsel %vm718, %v614, %v782
    %v847 = vsel %vm719, %v617, %v783
    %v848 = vsel %vm720, %v622, %v784
    %v849 = vsel %vm721, %v625, %v785
    %v850 = vsel %vm722, %v630, %v786
    %v851 = vsel %vm723, %v633, %v787
    %v852 = vsel %vm724, %v638, %v788
    %v853 = vsel %vm725, %v641, %v789
    %v854 = vsel %vm726, %v646, %v790
    %v855 = vsel %vm727, %v649, %v791
    %v856 = vsel %vm728, %v654, %v792
    %v857 = vsel %vm729, %v657, %v793
    %v858 = vsel %vm730, %v662, %v794
    %v859 = vsel %vm731, %v665, %v795
    %v860 = vpack.c.bf16 %v797, %v796
    %v861 = vpack.c.bf16 %v799, %v798
    %v862 = vpack.c.bf16 %v801, %v800
    %v863 = vpack.c.bf16 %v803, %v802
    %v864 = vpack.c.bf16 %v805, %v804
    %v865 = vpack.c.bf16 %v807, %v806
    %v866 = vpack.c.bf16 %v809, %v808
    %v867 = vpack.c.bf16 %v811, %v810
    %v868 = vpack.c.bf16 %v813, %v812
    %v869 = vpack.c.bf16 %v815, %v814
    %v870 = vpack.c.bf16 %v817, %v816
    %v871 = vpack.c.bf16 %v819, %v818
    %v872 = vpack.c.bf16 %v821, %v820
    %v873 = vpack.c.bf16 %v823, %v822
    %v874 = vpack.c.bf16 %v825, %v824
    %v875 = vpack.c.bf16 %v827, %v826
    %v876 = vpack.c.bf16 %v829, %v828
    %v877 = vpack.c.bf16 %v831, %v830
    %v878 = vpack.c.bf16 %v833, %v832
    %v879 = vpack.c.bf16 %v835, %v834
    %v880 = vpack.c.bf16 %v837, %v836
    %v881 = vpack.c.bf16 %v839, %v838
    %v882 = vpack.c.bf16 %v841, %v840
    %v883 = vpack.c.bf16 %v843, %v842
    %v884 = vpack.c.bf16 %v845, %v844
    %v885 = vpack.c.bf16 %v847, %v846
    %v886 = vpack.c.bf16 %v849, %v848
    %v887 = vpack.c.bf16 %v851, %v850
    %v888 = vpack.c.bf16 %v853, %v852
    %v889 = vpack.c.bf16 %v855, %v854
    %v890 = vpack.c.bf16 %v857, %v856
    %v891 = vpack.c.bf16 %v859, %v858
    %v924 = vunpack.c.l.b16 %v860
    %v925 = vunpack.c.h.b16 %v860
    %v926 = vunpack.c.l.b16 %v861
    %v927 = vunpack.c.h.b16 %v861
    %v928 = vunpack.c.l.b16 %v862
    %v929 = vunpack.c.h.b16 %v862
    %v930 = vunpack.c.l.b16 %v863
    %v931 = vunpack.c.h.b16 %v863
    %v932 = vunpack.c.l.b16 %v864
    %v933 = vunpack.c.h.b16 %v864
    %v934 = vunpack.c.l.b16 %v865
    %v935 = vunpack.c.h.b16 %v865
    %v936 = vunpack.c.l.b16 %v866
    %v937 = vunpack.c.h.b16 %v866
    %v938 = vunpack.c.l.b16 %v867
    %v939 = vunpack.c.h.b16 %v867
    %v940 = vunpack.c.l.b16 %v868
    %v941 = vunpack.c.h.b16 %v868
    %v942 = vunpack.c.l.b16 %v869
    %v943 = vunpack.c.h.b16 %v869
    %v944 = vunpack.c.l.b16 %v870
    %v945 = vunpack.c.h.b16 %v870
    %v946 = vunpack.c.l.b16 %v871
    %v947 = vunpack.c.h.b16 %v871
    %v948 = vunpack.c.l.b16 %v872
    %v949 = vunpack.c.h.b16 %v872
    %v950 = vunpack.c.l.b16 %v873
    %v951 = vunpack.c.h.b16 %v873
    %v952 = vunpack.c.l.b16 %v874
    %v953 = vunpack.c.h.b16 %v874
    %v954 = vunpack.c.l.b16 %v875
    %v955 = vunpack.c.h.b16 %v875
    %v956 = vunpack.c.l.b16 %v876
    %v957 = vunpack.c.h.b16 %v876
    %v958 = vunpack.c.l.b16 %v877
    %v959 = vunpack.c.h.b16 %v877
    %v960 = vunpack.c.l.b16 %v878
    %v961 = vunpack.c.h.b16 %v878
    %v962 = vunpack.c.l.b16 %v879
    %v963 = vunpack.c.h.b16 %v879
    %v964 = vunpack.c.l.b16 %v880
    %v965 = vunpack.c.h.b16 %v880
    %v966 = vunpack.c.l.b16 %v881
    %v967 = vunpack.c.h.b16 %v881
    %v968 = vunpack.c.l.b16 %v882
    %v969 = vunpack.c.h.b16 %v882
    %v970 = vunpack.c.l.b16 %v883
    %v971 = vunpack.c.h.b16 %v883
    %v972 = vunpack.c.l.b16 %v884
    %v973 = vunpack.c.h.b16 %v884
    %v974 = vunpack.c.l.b16 %v885
    %v975 = vunpack.c.h.b16 %v885
    %v976 = vunpack.c.l.b16 %v886
    %v977 = vunpack.c.h.b16 %v886
    %v978 = vunpack.c.l.b16 %v887
    %v979 = vunpack.c.h.b16 %v887
    %v980 = vunpack.c.l.b16 %v888
    %v981 = vunpack.c.h.b16 %v888
    %v982 = vunpack.c.l.b16 %v889
    %v983 = vunpack.c.h.b16 %v889
    %v984 = vunpack.c.l.b16 %v890
    %v985 = vunpack.c.h.b16 %v890
    %v986 = vunpack.c.l.b16 %v891
    %v987 = vunpack.c.h.b16 %v891
    %v988 = vpack.c.b16 %v924, %v924
    %v989 = vpack.c.b16 %v925, %v925
    %v990 = vpack.c.b16 %v926, %v926
    %v991 = vpack.c.b16 %v927, %v927
    %v992 = vpack.c.b16 %v928, %v928
    %v993 = vpack.c.b16 %v929, %v929
    %v994 = vpack.c.b16 %v930, %v930
    %v995 = vpack.c.b16 %v931, %v931
    %v996 = vpack.c.b16 %v932, %v932
    %v997 = vpack.c.b16 %v933, %v933
    %v998 = vpack.c.b16 %v934, %v934
    %v999 = vpack.c.b16 %v935, %v935
    %v1000 = vpack.c.b16 %v936, %v936
    %v1001 = vpack.c.b16 %v937, %v937
    %v1002 = vpack.c.b16 %v938, %v938
    %v1003 = vpack.c.b16 %v939, %v939
    %v1004 = vpack.c.b16 %v940, %v940
    %v1005 = vpack.c.b16 %v941, %v941
    %v1006 = vpack.c.b16 %v942, %v942
    %v1007 = vpack.c.b16 %v943, %v943
    %v1008 = vpack.c.b16 %v944, %v944
    %v1009 = vpack.c.b16 %v945, %v945
    %v1010 = vpack.c.b16 %v946, %v946
    %v1011 = vpack.c.b16 %v947, %v947
    %v1012 = vpack.c.b16 %v948, %v948
    %v1013 = vpack.c.b16 %v949, %v949
    %v1014 = vpack.c.b16 %v950, %v950
    %v1015 = vpack.c.b16 %v951, %v951
    %v1016 = vpack.c.b16 %v952, %v952
    %v1017 = vpack.c.b16 %v953, %v953
    %v1018 = vpack.c.b16 %v954, %v954
    %v1019 = vpack.c.b16 %v955, %v955
    %v1020 = vpack.c.b16 %v956, %v956
    %v1021 = vpack.c.b16 %v957, %v957
    %v1022 = vpack.c.b16 %v958, %v958
    %v1023 = vpack.c.b16 %v959, %v959
    %v1024 = vpack.c.b16 %v960, %v960
    %v1025 = vpack.c.b16 %v961, %v961
    %v1026 = vpack.c.b16 %v962, %v962
    %v1027 = vpack.c.b16 %v963, %v963
    %v1028 = vpack.c.b16 %v964, %v964
    %v1029 = vpack.c.b16 %v965, %v965
    %v1030 = vpack.c.b16 %v966, %v966
    %v1031 = vpack.c.b16 %v967, %v967
    %v1032 = vpack.c.b16 %v968, %v968
    %v1033 = vpack.c.b16 %v969, %v969
    %v1034 = vpack.c.b16 %v970, %v970
    %v1035 = vpack.c.b16 %v971, %v971
    %v1036 = vpack.c.b16 %v972, %v972
    %v1037 = vpack.c.b16 %v973, %v973
    %v1038 = vpack.c.b16 %v974, %v974
    %v1039 = vpack.c.b16 %v975, %v975
    %v1040 = vpack.c.b16 %v976, %v976
    %v1041 = vpack.c.b16 %v977, %v977
    %v1042 = vpack.c.b16 %v978, %v978
    %v1043 = vpack.c.b16 %v979, %v979
    %v1044 = vpack.c.b16 %v980, %v980
    %v1045 = vpack.c.b16 %v981, %v981
    %v1046 = vpack.c.b16 %v982, %v982
    %v1047 = vpack.c.b16 %v983, %v983
    %v1048 = vpack.c.b16 %v984, %v984
    %v1049 = vpack.c.b16 %v985, %v985
    %v1050 = vpack.c.b16 %v986, %v986
    %v1051 = vpack.c.b16 %v987, %v987
    %vm1116 = vcmask 519168
    %1117 = vst.msk [vmem:[%s3] sm:$0xf] %vm1116, %v988
    %1118 = vst.msk [vmem:[%s3 + $0x4] sm:$0xf] %vm1116, %v989
    %1119 = vst.msk [vmem:[%s3 + $0x8] sm:$0xf] %vm1116, %v990
    %1120 = vst.msk [vmem:[%s3 + $0xc] sm:$0xf] %vm1116, %v991
    %1121 = vst.msk [vmem:[%s3 + $0x10] sm:$0xf] %vm1116, %v992
    %1122 = vst.msk [vmem:[%s3 + $0x14] sm:$0xf] %vm1116, %v993
    %1123 = vst.msk [vmem:[%s3 + $0x18] sm:$0xf] %vm1116, %v994
    %1124 = vst.msk [vmem:[%s3 + $0x1c] sm:$0xf] %vm1116, %v995
    %1125 = vst.msk [vmem:[%s3 + $0x20] sm:$0xf] %vm1116, %v996
    %1126 = vst.msk [vmem:[%s3 + $0x24] sm:$0xf] %vm1116, %v997
    %1127 = vst.msk [vmem:[%s3 + $0x28] sm:$0xf] %vm1116, %v998
    %1128 = vst.msk [vmem:[%s3 + $0x2c] sm:$0xf] %vm1116, %v999
    %1129 = vst.msk [vmem:[%s3 + $0x30] sm:$0xf] %vm1116, %v1000
    %1130 = vst.msk [vmem:[%s3 + $0x34] sm:$0xf] %vm1116, %v1001
    %1131 = vst.msk [vmem:[%s3 + $0x38] sm:$0xf] %vm1116, %v1002
    %1132 = vst.msk [vmem:[%s3 + $0x3c] sm:$0xf] %vm1116, %v1003
    %1133 = vst.msk [vmem:[%s3 + $0x40] sm:$0xf] %vm1116, %v1004
    %1134 = vst.msk [vmem:[%s3 + $0x44] sm:$0xf] %vm1116, %v1005
    %1135 = vst.msk [vmem:[%s3 + $0x48] sm:$0xf] %vm1116, %v1006
    %1136 = vst.msk [vmem:[%s3 + $0x4c] sm:$0xf] %vm1116, %v1007
    %1137 = vst.msk [vmem:[%s3 + $0x50] sm:$0xf] %vm1116, %v1008
    %1138 = vst.msk [vmem:[%s3 + $0x54] sm:$0xf] %vm1116, %v1009
    %1139 = vst.msk [vmem:[%s3 + $0x58] sm:$0xf] %vm1116, %v1010
    %1140 = vst.msk [vmem:[%s3 + $0x5c] sm:$0xf] %vm1116, %v1011
    %1141 = vst.msk [vmem:[%s3 + $0x60] sm:$0xf] %vm1116, %v1012
    %1142 = vst.msk [vmem:[%s3 + $0x64] sm:$0xf] %vm1116, %v1013
    %1143 = vst.msk [vmem:[%s3 + $0x68] sm:$0xf] %vm1116, %v1014
    %1144 = vst.msk [vmem:[%s3 + $0x6c] sm:$0xf] %vm1116, %v1015
    %1145 = vst.msk [vmem:[%s3 + $0x70] sm:$0xf] %vm1116, %v1016
    %1146 = vst.msk [vmem:[%s3 + $0x74] sm:$0xf] %vm1116, %v1017
    %1147 = vst.msk [vmem:[%s3 + $0x78] sm:$0xf] %vm1116, %v1018
    %1148 = vst.msk [vmem:[%s3 + $0x7c] sm:$0xf] %vm1116, %v1019
    %1149 = vst.msk [vmem:[%s3 + $0x80] sm:$0xf] %vm1116, %v1020
    %1150 = vst.msk [vmem:[%s3 + $0x84] sm:$0xf] %vm1116, %v1021
    %1151 = vst.msk [vmem:[%s3 + $0x88] sm:$0xf] %vm1116, %v1022
    %1152 = vst.msk [vmem:[%s3 + $0x8c] sm:$0xf] %vm1116, %v1023
    %1153 = vst.msk [vmem:[%s3 + $0x90] sm:$0xf] %vm1116, %v1024
    %1154 = vst.msk [vmem:[%s3 + $0x94] sm:$0xf] %vm1116, %v1025
    %1155 = vst.msk [vmem:[%s3 + $0x98] sm:$0xf] %vm1116, %v1026
    %1156 = vst.msk [vmem:[%s3 + $0x9c] sm:$0xf] %vm1116, %v1027
    %1157 = vst.msk [vmem:[%s3 + $0xa0] sm:$0xf] %vm1116, %v1028
    %1158 = vst.msk [vmem:[%s3 + $0xa4] sm:$0xf] %vm1116, %v1029
    %1159 = vst.msk [vmem:[%s3 + $0xa8] sm:$0xf] %vm1116, %v1030
    %1160 = vst.msk [vmem:[%s3 + $0xac] sm:$0xf] %vm1116, %v1031
    %1161 = vst.msk [vmem:[%s3 + $0xb0] sm:$0xf] %vm1116, %v1032
    %1162 = vst.msk [vmem:[%s3 + $0xb4] sm:$0xf] %vm1116, %v1033
    %1163 = vst.msk [vmem:[%s3 + $0xb8] sm:$0xf] %vm1116, %v1034
    %1164 = vst.msk [vmem:[%s3 + $0xbc] sm:$0xf] %vm1116, %v1035
    %1165 = vst.msk [vmem:[%s3 + $0xc0] sm:$0xf] %vm1116, %v1036
    %1166 = vst.msk [vmem:[%s3 + $0xc4] sm:$0xf] %vm1116, %v1037
    %1167 = vst.msk [vmem:[%s3 + $0xc8] sm:$0xf] %vm1116, %v1038
    %1168 = vst.msk [vmem:[%s3 + $0xcc] sm:$0xf] %vm1116, %v1039
    %1169 = vst.msk [vmem:[%s3 + $0xd0] sm:$0xf] %vm1116, %v1040
    %1170 = vst.msk [vmem:[%s3 + $0xd4] sm:$0xf] %vm1116, %v1041
    %1171 = vst.msk [vmem:[%s3 + $0xd8] sm:$0xf] %vm1116, %v1042
    %1172 = vst.msk [vmem:[%s3 + $0xdc] sm:$0xf] %vm1116, %v1043
    %1173 = vst.msk [vmem:[%s3 + $0xe0] sm:$0xf] %vm1116, %v1044
    %1174 = vst.msk [vmem:[%s3 + $0xe4] sm:$0xf] %vm1116, %v1045
    %1175 = vst.msk [vmem:[%s3 + $0xe8] sm:$0xf] %vm1116, %v1046
    %1176 = vst.msk [vmem:[%s3 + $0xec] sm:$0xf] %vm1116, %v1047
    %1177 = vst.msk [vmem:[%s3 + $0xf0] sm:$0xf] %vm1116, %v1048
    %1178 = vst.msk [vmem:[%s3 + $0xf4] sm:$0xf] %vm1116, %v1049
    %1179 = vst.msk [vmem:[%s3 + $0xf8] sm:$0xf] %vm1116, %v1050
    %1180 = vst.msk [vmem:[%s3 + $0xfc] sm:$0xf] %vm1116, %v1051
    // Predicated region
    $region18: #{encoder_forward.4} parent=1 // pred_check
      _
    $region19: #{encoder_forward.4} parent=1 // pred_check_branch
      %1182 = sbr.rel (0) target = $region21
    $region20: #{encoder_forward.4} parent=1 // pred_region
      _
    $region21: #{encoder_forward.4} parent=1 // pred_fallthru
      _
    // Predicated region
    $region22: #{encoder_forward.4} parent=1 // pred_check
      _
    $region23: #{encoder_forward.4} parent=1 // pred_check_branch
      %1184 = sbr.rel (0) target = $region25
    $region24: #{encoder_forward.4} parent=1 // pred_region
      _
    $region25: #{encoder_forward.4} parent=1 // pred_fallthru
      _
    %1185 = vsyncpa [#allocation3], 1

// kernel: encoder_forward.5
$region0: #{encoder_forward.5}
  #allocation0 [shape = 'u32[]', space=smem, size = 0x4, offset = 0x4, fixed_abs, tag = 'smem constant byte address 0x4 - core index']
  #allocation1 [shape = 'u32[144,128]{1,0:T(1,128)}', space=vmem, size = 0x12000, scoped, tag = 'internal scratch']
  %s0 = inlined_call_operand.vmem [shape: bf16[128,1024], index: 0, kind: input, shape index: {}]
  %s1 = inlined_call_operand.vmem [shape: bf16[1024,128], index: 1, kind: input, shape index: {}]
  %s2 = inlined_call_operand.vmem [shape: f32[1,128], index: 2, kind: input, shape index: {}]
  %s3 = inlined_call_operand.vmem [shape: bf16[128,128], index: 3, kind: output, shape index: {}]
  %s4 = sld [smem:[#allocation0]]
  $region22: #{encoder_forward.5} parent=0
    _
  %s6 = ssub.s32 1, %s4
  %s7 = scalar_select 0, %s6, %s4
  // Predicated region
  $region2: #{encoder_forward.5} parent=0 // pred_check
    _
  $region3: #{encoder_forward.5} parent=0 // pred_check_branch
    %9 = sbr.rel (0) target = $region5
  $region4: #{encoder_forward.5} parent=0 // pred_region
    _
  $region5: #{encoder_forward.5} parent=0 // pred_fallthru
    _
  // Predicated region
  $region6: #{encoder_forward.5} parent=0 // pred_check
    _
  $region7: #{encoder_forward.5} parent=0 // pred_check_branch
    %11 = sbr.rel (0) target = $region9
  $region8: #{encoder_forward.5} parent=0 // pred_region
    _
  $region9: #{encoder_forward.5} parent=0 // pred_fallthru
    _
  // Predicated region
  $region10: #{encoder_forward.5} parent=0 // pred_check
    _
  $region11: #{encoder_forward.5} parent=0 // pred_check_branch
    %13 = sbr.rel (0) target = $region13
  $region12: #{encoder_forward.5} parent=0 // pred_region
    _
  $region13: #{encoder_forward.5} parent=0 // pred_fallthru
    _
  %v15 = vld [vmem:[%s0] sm:$0xff]
  %v16 = vld [vmem:[%s0 + $0x8] sm:$0xff]
  %v17 = vld [vmem:[%s0 + $0x10] sm:$0xff]
  %v18 = vld [vmem:[%s0 + $0x18] sm:$0xff]
  %v19 = vld [vmem:[%s0 + $0x20] sm:$0xff]
  %v20 = vld [vmem:[%s0 + $0x28] sm:$0xff]
  %v21 = vld [vmem:[%s0 + $0x30] sm:$0xff]
  %v22 = vld [vmem:[%s0 + $0x38] sm:$0xff]
  %v23 = vld [vmem:[%s0 + $0x40] sm:$0xff]
  %v24 = vld [vmem:[%s0 + $0x48] sm:$0xff]
  %v25 = vld [vmem:[%s0 + $0x50] sm:$0xff]
  %v26 = vld [vmem:[%s0 + $0x58] sm:$0xff]
  %v27 = vld [vmem:[%s0 + $0x60] sm:$0xff]
  %v28 = vld [vmem:[%s0 + $0x68] sm:$0xff]
  %v29 = vld [vmem:[%s0 + $0x70] sm:$0xff]
  %v30 = vld [vmem:[%s0 + $0x78] sm:$0xff]
  %v31 = vld [vmem:[%s0 + $0x80] sm:$0xff]
  %v32 = vld [vmem:[%s0 + $0x88] sm:$0xff]
  %v33 = vld [vmem:[%s0 + $0x90] sm:$0xff]
  %v34 = vld [vmem:[%s0 + $0x98] sm:$0xff]
  %v35 = vld [vmem:[%s0 + $0xa0] sm:$0xff]
  %v36 = vld [vmem:[%s0 + $0xa8] sm:$0xff]
  %v37 = vld [vmem:[%s0 + $0xb0] sm:$0xff]
  %v38 = vld [vmem:[%s0 + $0xb8] sm:$0xff]
  %v39 = vld [vmem:[%s0 + $0xc0] sm:$0xff]
  %v40 = vld [vmem:[%s0 + $0xc8] sm:$0xff]
  %v41 = vld [vmem:[%s0 + $0xd0] sm:$0xff]
  %v42 = vld [vmem:[%s0 + $0xd8] sm:$0xff]
  %v43 = vld [vmem:[%s0 + $0xe0] sm:$0xff]
  %v44 = vld [vmem:[%s0 + $0xe8] sm:$0xff]
  %v45 = vld [vmem:[%s0 + $0xf0] sm:$0xff]
  %v46 = vld [vmem:[%s0 + $0xf8] sm:$0xff]
  %v47 = vld [vmem:[%s0 + $0x100] sm:$0xff]
  %v48 = vld [vmem:[%s0 + $0x108] sm:$0xff]
  %v49 = vld [vmem:[%s0 + $0x110] sm:$0xff]
  %v50 = vld [vmem:[%s0 + $0x118] sm:$0xff]
  %v51 = vld [vmem:[%s0 + $0x120] sm:$0xff]
  %v52 = vld [vmem:[%s0 + $0x128] sm:$0xff]
  %v53 = vld [vmem:[%s0 + $0x130] sm:$0xff]
  %v54 = vld [vmem:[%s0 + $0x138] sm:$0xff]
  %v55 = vld [vmem:[%s0 + $0x140] sm:$0xff]
  %v56 = vld [vmem:[%s0 + $0x148] sm:$0xff]
  %v57 = vld [vmem:[%s0 + $0x150] sm:$0xff]
  %v58 = vld [vmem:[%s0 + $0x158] sm:$0xff]
  %v59 = vld [vmem:[%s0 + $0x160] sm:$0xff]
  %v60 = vld [vmem:[%s0 + $0x168] sm:$0xff]
  %v61 = vld [vmem:[%s0 + $0x170] sm:$0xff]
  %v62 = vld [vmem:[%s0 + $0x178] sm:$0xff]
  %v63 = vld [vmem:[%s0 + $0x180] sm:$0xff]
  %v64 = vld [vmem:[%s0 + $0x188] sm:$0xff]
  %v65 = vld [vmem:[%s0 + $0x190] sm:$0xff]
  %v66 = vld [vmem:[%s0 + $0x198] sm:$0xff]
  %v67 = vld [vmem:[%s0 + $0x1a0] sm:$0xff]
  %v68 = vld [vmem:[%s0 + $0x1a8] sm:$0xff]
  %v69 = vld [vmem:[%s0 + $0x1b0] sm:$0xff]
  %v70 = vld [vmem:[%s0 + $0x1b8] sm:$0xff]
  %v71 = vld [vmem:[%s0 + $0x1c0] sm:$0xff]
  %v72 = vld [vmem:[%s0 + $0x1c8] sm:$0xff]
  %v73 = vld [vmem:[%s0 + $0x1d0] sm:$0xff]
  %v74 = vld [vmem:[%s0 + $0x1d8] sm:$0xff]
  %v75 = vld [vmem:[%s0 + $0x1e0] sm:$0xff]
  %v76 = vld [vmem:[%s0 + $0x1e8] sm:$0xff]
  %v77 = vld [vmem:[%s0 + $0x1f0] sm:$0xff]
  %v78 = vld [vmem:[%s0 + $0x1f8] sm:$0xff]
  %v79 = vld [vmem:[%s1] sm:$0xf]
  %v80 = vld [vmem:[%s1 + $0x4] sm:$0xf]
  %v81 = vld [vmem:[%s1 + $0x8] sm:$0xf]
  %v82 = vld [vmem:[%s1 + $0xc] sm:$0xf]
  %v83 = vld [vmem:[%s1 + $0x10] sm:$0xf]
  %v84 = vld [vmem:[%s1 + $0x14] sm:$0xf]
  %v85 = vld [vmem:[%s1 + $0x18] sm:$0xf]
  %v86 = vld [vmem:[%s1 + $0x1c] sm:$0xf]
  %v87 = vld [vmem:[%s1 + $0x20] sm:$0xf]
  %v88 = vld [vmem:[%s1 + $0x24] sm:$0xf]
  %v89 = vld [vmem:[%s1 + $0x28] sm:$0xf]
  %v90 = vld [vmem:[%s1 + $0x2c] sm:$0xf]
  %v91 = vld [vmem:[%s1 + $0x30] sm:$0xf]
  %v92 = vld [vmem:[%s1 + $0x34] sm:$0xf]
  %v93 = vld [vmem:[%s1 + $0x38] sm:$0xf]
  %v94 = vld [vmem:[%s1 + $0x3c] sm:$0xf]
  %v95 = vld [vmem:[%s1 + $0x40] sm:$0xf]
  %v96 = vld [vmem:[%s1 + $0x44] sm:$0xf]
  %v97 = vld [vmem:[%s1 + $0x48] sm:$0xf]
  %v98 = vld [vmem:[%s1 + $0x4c] sm:$0xf]
  %v99 = vld [vmem:[%s1 + $0x50] sm:$0xf]
  %v100 = vld [vmem:[%s1 + $0x54] sm:$0xf]
  %v101 = vld [vmem:[%s1 + $0x58] sm:$0xf]
  %v102 = vld [vmem:[%s1 + $0x5c] sm:$0xf]
  %v103 = vld [vmem:[%s1 + $0x60] sm:$0xf]
  %v104 = vld [vmem:[%s1 + $0x64] sm:$0xf]
  %v105 = vld [vmem:[%s1 + $0x68] sm:$0xf]
  %v106 = vld [vmem:[%s1 + $0x6c] sm:$0xf]
  %v107 = vld [vmem:[%s1 + $0x70] sm:$0xf]
  %v108 = vld [vmem:[%s1 + $0x74] sm:$0xf]
  %v109 = vld [vmem:[%s1 + $0x78] sm:$0xf]
  %v110 = vld [vmem:[%s1 + $0x7c] sm:$0xf]
  %v111 = vld [vmem:[%s1 + $0x80] sm:$0xf]
  %v112 = vld [vmem:[%s1 + $0x84] sm:$0xf]
  %v113 = vld [vmem:[%s1 + $0x88] sm:$0xf]
  %v114 = vld [vmem:[%s1 + $0x8c] sm:$0xf]
  %v115 = vld [vmem:[%s1 + $0x90] sm:$0xf]
  %v116 = vld [vmem:[%s1 + $0x94] sm:$0xf]
  %v117 = vld [vmem:[%s1 + $0x98] sm:$0xf]
  %v118 = vld [vmem:[%s1 + $0x9c] sm:$0xf]
  %v119 = vld [vmem:[%s1 + $0xa0] sm:$0xf]
  %v120 = vld [vmem:[%s1 + $0xa4] sm:$0xf]
  %v121 = vld [vmem:[%s1 + $0xa8] sm:$0xf]
  %v122 = vld [vmem:[%s1 + $0xac] sm:$0xf]
  %v123 = vld [vmem:[%s1 + $0xb0] sm:$0xf]
  %v124 = vld [vmem:[%s1 + $0xb4] sm:$0xf]
  %v125 = vld [vmem:[%s1 + $0xb8] sm:$0xf]
  %v126 = vld [vmem:[%s1 + $0xbc] sm:$0xf]
  %v127 = vld [vmem:[%s1 + $0xc0] sm:$0xf]
  %v128 = vld [vmem:[%s1 + $0xc4] sm:$0xf]
  %v129 = vld [vmem:[%s1 + $0xc8] sm:$0xf]
  %v130 = vld [vmem:[%s1 + $0xcc] sm:$0xf]
  %v131 = vld [vmem:[%s1 + $0xd0] sm:$0xf]
  %v132 = vld [vmem:[%s1 + $0xd4] sm:$0xf]
  %v133 = vld [vmem:[%s1 + $0xd8] sm:$0xf]
  %v134 = vld [vmem:[%s1 + $0xdc] sm:$0xf]
  %v135 = vld [vmem:[%s1 + $0xe0] sm:$0xf]
  %v136 = vld [vmem:[%s1 + $0xe4] sm:$0xf]
  %v137 = vld [vmem:[%s1 + $0xe8] sm:$0xf]
  %v138 = vld [vmem:[%s1 + $0xec] sm:$0xf]
  %v139 = vld [vmem:[%s1 + $0xf0] sm:$0xf]
  %v140 = vld [vmem:[%s1 + $0xf4] sm:$0xf]
  %v141 = vld [vmem:[%s1 + $0xf8] sm:$0xf]
  %v142 = vld [vmem:[%s1 + $0xfc] sm:$0xf]
  %v143 = vld [vmem:[%s1 + $0x100] sm:$0xf]
  %v144 = vld [vmem:[%s1 + $0x104] sm:$0xf]
  %v145 = vld [vmem:[%s1 + $0x108] sm:$0xf]
  %v146 = vld [vmem:[%s1 + $0x10c] sm:$0xf]
  %v147 = vld [vmem:[%s1 + $0x110] sm:$0xf]
  %v148 = vld [vmem:[%s1 + $0x114] sm:$0xf]
  %v149 = vld [vmem:[%s1 + $0x118] sm:$0xf]
  %v150 = vld [vmem:[%s1 + $0x11c] sm:$0xf]
  %v151 = vld [vmem:[%s1 + $0x120] sm:$0xf]
  %v152 = vld [vmem:[%s1 + $0x124] sm:$0xf]
  %v153 = vld [vmem:[%s1 + $0x128] sm:$0xf]
  %v154 = vld [vmem:[%s1 + $0x12c] sm:$0xf]
  %v155 = vld [vmem:[%s1 + $0x130] sm:$0xf]
  %v156 = vld [vmem:[%s1 + $0x134] sm:$0xf]
  %v157 = vld [vmem:[%s1 + $0x138] sm:$0xf]
  %v158 = vld [vmem:[%s1 + $0x13c] sm:$0xf]
  %v159 = vld [vmem:[%s1 + $0x140] sm:$0xf]
  %v160 = vld [vmem:[%s1 + $0x144] sm:$0xf]
  %v161 = vld [vmem:[%s1 + $0x148] sm:$0xf]
  %v162 = vld [vmem:[%s1 + $0x14c] sm:$0xf]
  %v163 = vld [vmem:[%s1 + $0x150] sm:$0xf]
  %v164 = vld [vmem:[%s1 + $0x154] sm:$0xf]
  %v165 = vld [vmem:[%s1 + $0x158] sm:$0xf]
  %v166 = vld [vmem:[%s1 + $0x15c] sm:$0xf]
  %v167 = vld [vmem:[%s1 + $0x160] sm:$0xf]
  %v168 = vld [vmem:[%s1 + $0x164] sm:$0xf]
  %v169 = vld [vmem:[%s1 + $0x168] sm:$0xf]
  %v170 = vld [vmem:[%s1 + $0x16c] sm:$0xf]
  %v171 = vld [vmem:[%s1 + $0x170] sm:$0xf]
  %v172 = vld [vmem:[%s1 + $0x174] sm:$0xf]
  %v173 = vld [vmem:[%s1 + $0x178] sm:$0xf]
  %v174 = vld [vmem:[%s1 + $0x17c] sm:$0xf]
  %v175 = vld [vmem:[%s1 + $0x180] sm:$0xf]
  %v176 = vld [vmem:[%s1 + $0x184] sm:$0xf]
  %v177 = vld [vmem:[%s1 + $0x188] sm:$0xf]
  %v178 = vld [vmem:[%s1 + $0x18c] sm:$0xf]
  %v179 = vld [vmem:[%s1 + $0x190] sm:$0xf]
  %v180 = vld [vmem:[%s1 + $0x194] sm:$0xf]
  %v181 = vld [vmem:[%s1 + $0x198] sm:$0xf]
  %v182 = vld [vmem:[%s1 + $0x19c] sm:$0xf]
  %v183 = vld [vmem:[%s1 + $0x1a0] sm:$0xf]
  %v184 = vld [vmem:[%s1 + $0x1a4] sm:$0xf]
  %v185 = vld [vmem:[%s1 + $0x1a8] sm:$0xf]
  %v186 = vld [vmem:[%s1 + $0x1ac] sm:$0xf]
  %v187 = vld [vmem:[%s1 + $0x1b0] sm:$0xf]
  %v188 = vld [vmem:[%s1 + $0x1b4] sm:$0xf]
  %v189 = vld [vmem:[%s1 + $0x1b8] sm:$0xf]
  %v190 = vld [vmem:[%s1 + $0x1bc] sm:$0xf]
  %v191 = vld [vmem:[%s1 + $0x1c0] sm:$0xf]
  %v192 = vld [vmem:[%s1 + $0x1c4] sm:$0xf]
  %v193 = vld [vmem:[%s1 + $0x1c8] sm:$0xf]
  %v194 = vld [vmem:[%s1 + $0x1cc] sm:$0xf]
  %v195 = vld [vmem:[%s1 + $0x1d0] sm:$0xf]
  %v196 = vld [vmem:[%s1 + $0x1d4] sm:$0xf]
  %v197 = vld [vmem:[%s1 + $0x1d8] sm:$0xf]
  %v198 = vld [vmem:[%s1 + $0x1dc] sm:$0xf]
  %v199 = vld [vmem:[%s1 + $0x1e0] sm:$0xf]
  %v200 = vld [vmem:[%s1 + $0x1e4] sm:$0xf]
  %v201 = vld [vmem:[%s1 + $0x1e8] sm:$0xf]
  %v202 = vld [vmem:[%s1 + $0x1ec] sm:$0xf]
  %v203 = vld [vmem:[%s1 + $0x1f0] sm:$0xf]
  %v204 = vld [vmem:[%s1 + $0x1f4] sm:$0xf]
  %v205 = vld [vmem:[%s1 + $0x1f8] sm:$0xf]
  %v206 = vld [vmem:[%s1 + $0x1fc] sm:$0xf]
  %v207 = vld [vmem:[%s2] sm:$0x1]
  %v209 = vlaneseq
  %v210 = vshrl.u32 %v209, 7
  %v211 = vsub.s32 0, %v210
  %v212 = vrot.slane %v207, %v211
  %v278 = vunpack.c.l.b16 %v15
  %v279 = vunpack.c.h.b16 %v15
  %v280 = vunpack.c.l.b16 %v16
  %v281 = vunpack.c.h.b16 %v16
  %v282 = vunpack.c.l.b16 %v17
  %v283 = vunpack.c.h.b16 %v17
  %v284 = vunpack.c.l.b16 %v18
  %v285 = vunpack.c.h.b16 %v18
  %v286 = vunpack.c.l.b16 %v19
  %v287 = vunpack.c.h.b16 %v19
  %v288 = vunpack.c.l.b16 %v20
  %v289 = vunpack.c.h.b16 %v20
  %v290 = vunpack.c.l.b16 %v21
  %v291 = vunpack.c.h.b16 %v21
  %v292 = vunpack.c.l.b16 %v22
  %v293 = vunpack.c.h.b16 %v22
  %v294 = vunpack.c.l.b16 %v23
  %v295 = vunpack.c.h.b16 %v23
  %v296 = vunpack.c.l.b16 %v24
  %v297 = vunpack.c.h.b16 %v24
  %v298 = vunpack.c.l.b16 %v25
  %v299 = vunpack.c.h.b16 %v25
  %v300 = vunpack.c.l.b16 %v26
  %v301 = vunpack.c.h.b16 %v26
  %v302 = vunpack.c.l.b16 %v27
  %v303 = vunpack.c.h.b16 %v27
  %v304 = vunpack.c.l.b16 %v28
  %v305 = vunpack.c.h.b16 %v28
  %v306 = vunpack.c.l.b16 %v29
  %v307 = vunpack.c.h.b16 %v29
  %v308 = vunpack.c.l.b16 %v30
  %v309 = vunpack.c.h.b16 %v30
  %v310 = vunpack.c.l.b16 %v31
  %v311 = vunpack.c.h.b16 %v31
  %v312 = vunpack.c.l.b16 %v32
  %v313 = vunpack.c.h.b16 %v32
  %v314 = vunpack.c.l.b16 %v33
  %v315 = vunpack.c.h.b16 %v33
  %v316 = vunpack.c.l.b16 %v34
  %v317 = vunpack.c.h.b16 %v34
  %v318 = vunpack.c.l.b16 %v35
  %v319 = vunpack.c.h.b16 %v35
  %v320 = vunpack.c.l.b16 %v36
  %v321 = vunpack.c.h.b16 %v36
  %v322 = vunpack.c.l.b16 %v37
  %v323 = vunpack.c.h.b16 %v37
  %v324 = vunpack.c.l.b16 %v38
  %v325 = vunpack.c.h.b16 %v38
  %v326 = vunpack.c.l.b16 %v39
  %v327 = vunpack.c.h.b16 %v39
  %v328 = vunpack.c.l.b16 %v40
  %v329 = vunpack.c.h.b16 %v40
  %v330 = vunpack.c.l.b16 %v41
  %v331 = vunpack.c.h.b16 %v41
  %v332 = vunpack.c.l.b16 %v42
  %v333 = vunpack.c.h.b16 %v42
  %v334 = vunpack.c.l.b16 %v43
  %v335 = vunpack.c.h.b16 %v43
  %v336 = vunpack.c.l.b16 %v44
  %v337 = vunpack.c.h.b16 %v44
  %v338 = vunpack.c.l.b16 %v45
  %v339 = vunpack.c.h.b16 %v45
  %v340 = vunpack.c.l.b16 %v46
  %v341 = vunpack.c.h.b16 %v46
  %v342 = vunpack.c.l.b16 %v47
  %v343 = vunpack.c.h.b16 %v47
  %v344 = vunpack.c.l.b16 %v48
  %v345 = vunpack.c.h.b16 %v48
  %v346 = vunpack.c.l.b16 %v49
  %v347 = vunpack.c.h.b16 %v49
  %v348 = vunpack.c.l.b16 %v50
  %v349 = vunpack.c.h.b16 %v50
  %v350 = vunpack.c.l.b16 %v51
  %v351 = vunpack.c.h.b16 %v51
  %v352 = vunpack.c.l.b16 %v52
  %v353 = vunpack.c.h.b16 %v52
  %v354 = vunpack.c.l.b16 %v53
  %v355 = vunpack.c.h.b16 %v53
  %v356 = vunpack.c.l.b16 %v54
  %v357 = vunpack.c.h.b16 %v54
  %v358 = vunpack.c.l.b16 %v55
  %v359 = vunpack.c.h.b16 %v55
  %v360 = vunpack.c.l.b16 %v56
  %v361 = vunpack.c.h.b16 %v56
  %v362 = vunpack.c.l.b16 %v57
  %v363 = vunpack.c.h.b16 %v57
  %v364 = vunpack.c.l.b16 %v58
  %v365 = vunpack.c.h.b16 %v58
  %v366 = vunpack.c.l.b16 %v59
  %v367 = vunpack.c.h.b16 %v59
  %v368 = vunpack.c.l.b16 %v60
  %v369 = vunpack.c.h.b16 %v60
  %v370 = vunpack.c.l.b16 %v61
  %v371 = vunpack.c.h.b16 %v61
  %v372 = vunpack.c.l.b16 %v62
  %v373 = vunpack.c.h.b16 %v62
  %v374 = vunpack.c.l.b16 %v63
  %v375 = vunpack.c.h.b16 %v63
  %v376 = vunpack.c.l.b16 %v64
  %v377 = vunpack.c.h.b16 %v64
  %v378 = vunpack.c.l.b16 %v65
  %v379 = vunpack.c.h.b16 %v65
  %v380 = vunpack.c.l.b16 %v66
  %v381 = vunpack.c.h.b16 %v66
  %v382 = vunpack.c.l.b16 %v67
  %v383 = vunpack.c.h.b16 %v67
  %v384 = vunpack.c.l.b16 %v68
  %v385 = vunpack.c.h.b16 %v68
  %v386 = vunpack.c.l.b16 %v69
  %v387 = vunpack.c.h.b16 %v69
  %v388 = vunpack.c.l.b16 %v70
  %v389 = vunpack.c.h.b16 %v70
  %v390 = vunpack.c.l.b16 %v71
  %v391 = vunpack.c.h.b16 %v71
  %v392 = vunpack.c.l.b16 %v72
  %v393 = vunpack.c.h.b16 %v72
  %v394 = vunpack.c.l.b16 %v73
  %v395 = vunpack.c.h.b16 %v73
  %v396 = vunpack.c.l.b16 %v74
  %v397 = vunpack.c.h.b16 %v74
  %v398 = vunpack.c.l.b16 %v75
  %v399 = vunpack.c.h.b16 %v75
  %v400 = vunpack.c.l.b16 %v76
  %v401 = vunpack.c.h.b16 %v76
  %v402 = vunpack.c.l.b16 %v77
  %v403 = vunpack.c.h.b16 %v77
  %v404 = vunpack.c.l.b16 %v78
  %v405 = vunpack.c.h.b16 %v78
  %v406 = vpack.c.b16 %v286, %v278
  %v407 = vpack.c.b16 %v287, %v279
  %v408 = vpack.c.b16 %v288, %v280
  %v409 = vpack.c.b16 %v289, %v281
  %v410 = vpack.c.b16 %v290, %v282
  %v411 = vpack.c.b16 %v291, %v283
  %v412 = vpack.c.b16 %v292, %v284
  %v413 = vpack.c.b16 %v293, %v285
  %v414 = vpack.c.b16 %v302, %v294
  %v415 = vpack.c.b16 %v303, %v295
  %v416 = vpack.c.b16 %v304, %v296
  %v417 = vpack.c.b16 %v305, %v297
  %v418 = vpack.c.b16 %v306, %v298
  %v419 = vpack.c.b16 %v307, %v299
  %v420 = vpack.c.b16 %v308, %v300
  %v421 = vpack.c.b16 %v309, %v301
  %v422 = vpack.c.b16 %v318, %v310
  %v423 = vpack.c.b16 %v319, %v311
  %v424 = vpack.c.b16 %v320, %v312
  %v425 = vpack.c.b16 %v321, %v313
  %v426 = vpack.c.b16 %v322, %v314
  %v427 = vpack.c.b16 %v323, %v315
  %v428 = vpack.c.b16 %v324, %v316
  %v429 = vpack.c.b16 %v325, %v317
  %v430 = vpack.c.b16 %v334, %v326
  %v431 = vpack.c.b16 %v335, %v327
  %v432 = vpack.c.b16 %v336, %v328
  %v433 = vpack.c.b16 %v337, %v329
  %v434 = vpack.c.b16 %v338, %v330
  %v435 = vpack.c.b16 %v339, %v331
  %v436 = vpack.c.b16 %v340, %v332
  %v437 = vpack.c.b16 %v341, %v333
  %v438 = vpack.c.b16 %v350, %v342
  %v439 = vpack.c.b16 %v351, %v343
  %v440 = vpack.c.b16 %v352, %v344
  %v441 = vpack.c.b16 %v353, %v345
  %v442 = vpack.c.b16 %v354, %v346
  %v443 = vpack.c.b16 %v355, %v347
  %v444 = vpack.c.b16 %v356, %v348
  %v445 = vpack.c.b16 %v357, %v349
  %v446 = vpack.c.b16 %v366, %v358
  %v447 = vpack.c.b16 %v367, %v359
  %v448 = vpack.c.b16 %v368, %v360
  %v449 = vpack.c.b16 %v369, %v361
  %v450 = vpack.c.b16 %v370, %v362
  %v451 = vpack.c.b16 %v371, %v363
  %v452 = vpack.c.b16 %v372, %v364
  %v453 = vpack.c.b16 %v373, %v365
  %v454 = vpack.c.b16 %v382, %v374
  %v455 = vpack.c.b16 %v383, %v375
  %v456 = vpack.c.b16 %v384, %v376
  %v457 = vpack.c.b16 %v385, %v377
  %v458 = vpack.c.b16 %v386, %v378
  %v459 = vpack.c.b16 %v387, %v379
  %v460 = vpack.c.b16 %v388, %v380
  %v461 = vpack.c.b16 %v389, %v381
  %v462 = vpack.c.b16 %v398, %v390
  %v463 = vpack.c.b16 %v399, %v391
  %v464 = vpack.c.b16 %v400, %v392
  %v465 = vpack.c.b16 %v401, %v393
  %v466 = vpack.c.b16 %v402, %v394
  %v467 = vpack.c.b16 %v403, %v395
  %v468 = vpack.c.b16 %v404, %v396
  %v469 = vpack.c.b16 %v405, %v397
  %v662 = vunpack.c.l.b16 %v79
  %v663 = vunpack.c.l.b16 %v80
  %v664 = vunpack.c.l.b16 %v81
  %v665 = vunpack.c.l.b16 %v82
  %v666 = vunpack.c.l.b16 %v83
  %v667 = vunpack.c.l.b16 %v84
  %v668 = vunpack.c.l.b16 %v85
  %v669 = vunpack.c.l.b16 %v86
  %v670 = vunpack.c.l.b16 %v87
  %v671 = vunpack.c.l.b16 %v88
  %v672 = vunpack.c.l.b16 %v89
  %v673 = vunpack.c.l.b16 %v90
  %v674 = vunpack.c.l.b16 %v91
  %v675 = vunpack.c.l.b16 %v92
  %v676 = vunpack.c.l.b16 %v93
  %v677 = vunpack.c.l.b16 %v94
  %v678 = vunpack.c.l.b16 %v95
  %v679 = vunpack.c.l.b16 %v96
  %v680 = vunpack.c.l.b16 %v97
  %v681 = vunpack.c.l.b16 %v98
  %v682 = vunpack.c.l.b16 %v99
  %v683 = vunpack.c.l.b16 %v100
  %v684 = vunpack.c.l.b16 %v101
  %v685 = vunpack.c.l.b16 %v102
  %v686 = vunpack.c.l.b16 %v103
  %v687 = vunpack.c.l.b16 %v104
  %v688 = vunpack.c.l.b16 %v105
  %v689 = vunpack.c.l.b16 %v106
  %v690 = vunpack.c.l.b16 %v107
  %v691 = vunpack.c.l.b16 %v108
  %v692 = vunpack.c.l.b16 %v109
  %v693 = vunpack.c.l.b16 %v110
  %v694 = vunpack.c.l.b16 %v111
  %v695 = vunpack.c.l.b16 %v112
  %v696 = vunpack.c.l.b16 %v113
  %v697 = vunpack.c.l.b16 %v114
  %v698 = vunpack.c.l.b16 %v115
  %v699 = vunpack.c.l.b16 %v116
  %v700 = vunpack.c.l.b16 %v117
  %v701 = vunpack.c.l.b16 %v118
  %v702 = vunpack.c.l.b16 %v119
  %v703 = vunpack.c.l.b16 %v120
  %v704 = vunpack.c.l.b16 %v121
  %v705 = vunpack.c.l.b16 %v122
  %v706 = vunpack.c.l.b16 %v123
  %v707 = vunpack.c.l.b16 %v124
  %v708 = vunpack.c.l.b16 %v125
  %v709 = vunpack.c.l.b16 %v126
  %v710 = vunpack.c.l.b16 %v127
  %v711 = vunpack.c.l.b16 %v128
  %v712 = vunpack.c.l.b16 %v129
  %v713 = vunpack.c.l.b16 %v130
  %v714 = vunpack.c.l.b16 %v131
  %v715 = vunpack.c.l.b16 %v132
  %v716 = vunpack.c.l.b16 %v133
  %v717 = vunpack.c.l.b16 %v134
  %v718 = vunpack.c.l.b16 %v135
  %v719 = vunpack.c.l.b16 %v136
  %v720 = vunpack.c.l.b16 %v137
  %v721 = vunpack.c.l.b16 %v138
  %v722 = vunpack.c.l.b16 %v139
  %v723 = vunpack.c.l.b16 %v140
  %v724 = vunpack.c.l.b16 %v141
  %v725 = vunpack.c.l.b16 %v142
  %v726 = vunpack.c.l.b16 %v143
  %v727 = vunpack.c.l.b16 %v144
  %v728 = vunpack.c.l.b16 %v145
  %v729 = vunpack.c.l.b16 %v146
  %v730 = vunpack.c.l.b16 %v147
  %v731 = vunpack.c.l.b16 %v148
  %v732 = vunpack.c.l.b16 %v149
  %v733 = vunpack.c.l.b16 %v150
  %v734 = vunpack.c.l.b16 %v151
  %v735 = vunpack.c.l.b16 %v152
  %v736 = vunpack.c.l.b16 %v153
  %v737 = vunpack.c.l.b16 %v154
  %v738 = vunpack.c.l.b16 %v155
  %v739 = vunpack.c.l.b16 %v156
  %v740 = vunpack.c.l.b16 %v157
  %v741 = vunpack.c.l.b16 %v158
  %v742 = vunpack.c.l.b16 %v159
  %v743 = vunpack.c.l.b16 %v160
  %v744 = vunpack.c.l.b16 %v161
  %v745 = vunpack.c.l.b16 %v162
  %v746 = vunpack.c.l.b16 %v163
  %v747 = vunpack.c.l.b16 %v164
  %v748 = vunpack.c.l.b16 %v165
  %v749 = vunpack.c.l.b16 %v166
  %v750 = vunpack.c.l.b16 %v167
  %v751 = vunpack.c.l.b16 %v168
  %v752 = vunpack.c.l.b16 %v169
  %v753 = vunpack.c.l.b16 %v170
  %v754 = vunpack.c.l.b16 %v171
  %v755 = vunpack.c.l.b16 %v172
  %v756 = vunpack.c.l.b16 %v173
  %v757 = vunpack.c.l.b16 %v174
  %v758 = vunpack.c.l.b16 %v175
  %v759 = vunpack.c.l.b16 %v176
  %v760 = vunpack.c.l.b16 %v177
  %v761 = vunpack.c.l.b16 %v178
  %v762 = vunpack.c.l.b16 %v179
  %v763 = vunpack.c.l.b16 %v180
  %v764 = vunpack.c.l.b16 %v181
  %v765 = vunpack.c.l.b16 %v182
  %v766 = vunpack.c.l.b16 %v183
  %v767 = vunpack.c.l.b16 %v184
  %v768 = vunpack.c.l.b16 %v185
  %v769 = vunpack.c.l.b16 %v186
  %v770 = vunpack.c.l.b16 %v187
  %v771 = vunpack.c.l.b16 %v188
  %v772 = vunpack.c.l.b16 %v189
  %v773 = vunpack.c.l.b16 %v190
  %v774 = vunpack.c.l.b16 %v191
  %v775 = vunpack.c.l.b16 %v192
  %v776 = vunpack.c.l.b16 %v193
  %v777 = vunpack.c.l.b16 %v194
  %v778 = vunpack.c.l.b16 %v195
  %v779 = vunpack.c.l.b16 %v196
  %v780 = vunpack.c.l.b16 %v197
  %v781 = vunpack.c.l.b16 %v198
  %v782 = vunpack.c.l.b16 %v199
  %v783 = vunpack.c.l.b16 %v200
  %v784 = vunpack.c.l.b16 %v201
  %v785 = vunpack.c.l.b16 %v202
  %v786 = vunpack.c.l.b16 %v203
  %v787 = vunpack.c.l.b16 %v204
  %v788 = vunpack.c.l.b16 %v205
  %v789 = vunpack.c.l.b16 %v206
  %v790 = vpack.c.b16 %v663, %v662
  %v791 = vpack.c.b16 %v665, %v664
  %v792 = vpack.c.b16 %v667, %v666
  %v793 = vpack.c.b16 %v669, %v668
  %v794 = vpack.c.b16 %v671, %v670
  %v795 = vpack.c.b16 %v673, %v672
  %v796 = vpack.c.b16 %v675, %v674
  %v797 = vpack.c.b16 %v677, %v676
  %v798 = vpack.c.b16 %v679, %v678
  %v799 = vpack.c.b16 %v681, %v680
  %v800 = vpack.c.b16 %v683, %v682
  %v801 = vpack.c.b16 %v685, %v684
  %v802 = vpack.c.b16 %v687, %v686
  %v803 = vpack.c.b16 %v689, %v688
  %v804 = vpack.c.b16 %v691, %v690
  %v805 = vpack.c.b16 %v693, %v692
  %v806 = vpack.c.b16 %v695, %v694
  %v807 = vpack.c.b16 %v697, %v696
  %v808 = vpack.c.b16 %v699, %v698
  %v809 = vpack.c.b16 %v701, %v700
  %v810 = vpack.c.b16 %v703, %v702
  %v811 = vpack.c.b16 %v705, %v704
  %v812 = vpack.c.b16 %v707, %v706
  %v813 = vpack.c.b16 %v709, %v708
  %v814 = vpack.c.b16 %v711, %v710
  %v815 = vpack.c.b16 %v713, %v712
  %v816 = vpack.c.b16 %v715, %v714
  %v817 = vpack.c.b16 %v717, %v716
  %v818 = vpack.c.b16 %v719, %v718
  %v819 = vpack.c.b16 %v721, %v720
  %v820 = vpack.c.b16 %v723, %v722
  %v821 = vpack.c.b16 %v725, %v724
  %v822 = vpack.c.b16 %v727, %v726
  %v823 = vpack.c.b16 %v729, %v728
  %v824 = vpack.c.b16 %v731, %v730
  %v825 = vpack.c.b16 %v733, %v732
  %v826 = vpack.c.b16 %v735, %v734
  %v827 = vpack.c.b16 %v737, %v736
  %v828 = vpack.c.b16 %v739, %v738
  %v829 = vpack.c.b16 %v741, %v740
  %v830 = vpack.c.b16 %v743, %v742
  %v831 = vpack.c.b16 %v745, %v744
  %v832 = vpack.c.b16 %v747, %v746
  %v833 = vpack.c.b16 %v749, %v748
  %v834 = vpack.c.b16 %v751, %v750
  %v835 = vpack.c.b16 %v753, %v752
  %v836 = vpack.c.b16 %v755, %v754
  %v837 = vpack.c.b16 %v757, %v756
  %v838 = vpack.c.b16 %v759, %v758
  %v839 = vpack.c.b16 %v761, %v760
  %v840 = vpack.c.b16 %v763, %v762
  %v841 = vpack.c.b16 %v765, %v764
  %v842 = vpack.c.b16 %v767, %v766
  %v843 = vpack.c.b16 %v769, %v768
  %v844 = vpack.c.b16 %v771, %v770
  %v845 = vpack.c.b16 %v773, %v772
  %v846 = vpack.c.b16 %v775, %v774
  %v847 = vpack.c.b16 %v777, %v776
  %v848 = vpack.c.b16 %v779, %v778
  %v849 = vpack.c.b16 %v781, %v780
  %v850 = vpack.c.b16 %v783, %v782
  %v851 = vpack.c.b16 %v785, %v784
  %v852 = vpack.c.b16 %v787, %v786
  %v853 = vpack.c.b16 %v789, %v788
  %918 = vmatprep.subr.bf16.mxu0 0
  %919 = vmatpush1.bf16.msra.mxu0 %v790
  %920 = vmatprep.subr.bf16.mxu0 0
  %921 = vmatpush1.bf16.msra.mxu0 %v791
  %922 = vmatprep.subr.bf16.mxu0 0
  %923 = vmatpush1.bf16.msra.mxu0 %v792
  %924 = vmatprep.subr.bf16.mxu0 0
  %925 = vmatpush1.bf16.msra.mxu0 %v793
  %926 = vmatprep.subr.bf16.mxu0 0
  %927 = vmatpush1.bf16.msra.mxu0 %v794
  %928 = vmatprep.subr.bf16.mxu0 0
  %929 = vmatpush1.bf16.msra.mxu0 %v795
  %930 = vmatprep.subr.bf16.mxu0 0
  %931 = vmatpush1.bf16.msra.mxu0 %v796
  %932 = vmatprep.subr.bf16.mxu0 0
  %933 = vmatpush1.bf16.msra.mxu0 %v797
  %934 = vmatprep.subr.bf16.mxu0 0
  %935 = vmatpush1.bf16.msra.mxu0 %v798
  %936 = vmatprep.subr.bf16.mxu0 0
  %937 = vmatpush1.bf16.msra.mxu0 %v799
  %938 = vmatprep.subr.bf16.mxu0 0
  %939 = vmatpush1.bf16.msra.mxu0 %v800
  %940 = vmatprep.subr.bf16.mxu0 0
  %941 = vmatpush1.bf16.msra.mxu0 %v801
  %942 = vmatprep.subr.bf16.mxu0 0
  %943 = vmatpush1.bf16.msra.mxu0 %v802
  %944 = vmatprep.subr.bf16.mxu0 0
  %945 = vmatpush1.bf16.msra.mxu0 %v803
  %946 = vmatprep.subr.bf16.mxu0 0
  %947 = vmatpush1.bf16.msra.mxu0 %v804
  %948 = vmatprep.subr.bf16.mxu0 0
  %949 = vmatpush1.bf16.msra.mxu0 %v805
  %950 = vmatprep.mubr.bf16.mxu0 %v407
  %951 = vmatmul.mubr.bf16.gmra.mrb[0].mxu0 %v406
  %v952 = vpop.f32.mrb[0].mxu0
  %v953 = vadd.f32 %v212, %v952
  %v954 = vpop.f32.mrb[0].mxu0
  %v955 = vpop.f32.mrb[0].mxu0
  %v956 = vadd.f32 %v212, %v955
  %v957 = vpop.f32.mrb[0].mxu0
  %958 = vmatprep.mubr.bf16.mxu0 %v415
  %959 = vmatmul.mubr.bf16.gmra.mrb[0].mxu0 %v414
  %v960 = vpop.f32.mrb[0].mxu0
  %v961 = vadd.f32 %v212, %v960
  %v962 = vpop.f32.mrb[0].mxu0
  %v963 = vpop.f32.mrb[0].mxu0
  %v964 = vadd.f32 %v212, %v963
  %v965 = vpop.f32.mrb[0].mxu0
  %966 = vmatprep.mubr.bf16.mxu0 %v423
  %967 = vmatmul.mubr.bf16.gmra.mrb[0].mxu0 %v422
  %v968 = vpop.f32.mrb[0].mxu0
  %v969 = vadd.f32 %v212, %v968
  %v970 = vpop.f32.mrb[0].mxu0
  %v971 = vpop.f32.mrb[0].mxu0
  %v972 = vadd.f32 %v212, %v971
  %v973 = vpop.f32.mrb[0].mxu0
  %974 = vmatprep.mubr.bf16.mxu0 %v431
  %975 = vmatmul.mubr.bf16.gmra.mrb[0].mxu0 %v430
  %v976 = vpop.f32.mrb[0].mxu0
  %v977 = vadd.f32 %v212, %v976
  %v978 = vpop.f32.mrb[0].mxu0
  %v979 = vpop.f32.mrb[0].mxu0
  %v980 = vadd.f32 %v212, %v979
  %v981 = vpop.f32.mrb[0].mxu0
  %982 = vmatprep.mubr.bf16.mxu0 %v439
  %983 = vmatmul.mubr.bf16.gmra.mrb[0].mxu0 %v438
  %v984 = vpop.f32.mrb[0].mxu0
  %v985 = vadd.f32 %v212, %v984
  %v986 = vpop.f32.mrb[0].mxu0
  %v987 = vpop.f32.mrb[0].mxu0
  %v988 = vadd.f32 %v212, %v987
  %v989 = vpop.f32.mrb[0].mxu0
  %990 = vmatprep.mubr.bf16.mxu0 %v447
  %991 = vmatmul.mubr.bf16.gmra.mrb[0].mxu0 %v446
  %v992 = vpop.f32.mrb[0].mxu0
  %v993 = vadd.f32 %v212, %v992
  %v994 = vpop.f32.mrb[0].mxu0
  %v995 = vpop.f32.mrb[0].mxu0
  %v996 = vadd.f32 %v212, %v995
  %v997 = vpop.f32.mrb[0].mxu0
  %998 = vmatprep.mubr.bf16.mxu0 %v455
  %999 = vmatmul.mubr.bf16.gmra.mrb[0].mxu0 %v454
  %v1000 = vpop.f32.mrb[0].mxu0
  %v1001 = vadd.f32 %v212, %v1000
  %v1002 = vpop.f32.mrb[0].mxu0
  %v1003 = vpop.f32.mrb[0].mxu0
  %v1004 = vadd.f32 %v212, %v1003
  %v1005 = vpop.f32.mrb[0].mxu0
  %1006 = vmatprep.mubr.bf16.mxu0 %v463
  %1007 = vmatmul.mubr.bf16.gmra.mrb[0].mxu0 %v462
  %v1008 = vpop.f32.mrb[0].mxu0
  %v1009 = vadd.f32 %v212, %v1008
  %v1010 = vpop.f32.mrb[0].mxu0
  %v1011 = vpop.f32.mrb[0].mxu0
  %v1012 = vadd.f32 %v212, %v1011
  %v1013 = vpop.f32.mrb[0].mxu0
  %1014 = vdwg.mxu0
  %1015 = vmatprep.subr.bf16.mxu0 0
  %1016 = vmatpush1.bf16.msra.mxu0 %v806
  %1017 = vmatprep.subr.bf16.mxu0 0
  %1018 = vmatpush1.bf16.msra.mxu0 %v807
  %1019 = vmatprep.subr.bf16.mxu0 0
  %1020 = vmatpush1.bf16.msra.mxu0 %v808
  %1021 = vmatprep.subr.bf16.mxu0 0
  %1022 = vmatpush1.bf16.msra.mxu0 %v809
  %1023 = vmatprep.subr.bf16.mxu0 0
  %1024 = vmatpush1.bf16.msra.mxu0 %v810
  %1025 = vmatprep.subr.bf16.mxu0 0
  %1026 = vmatpush1.bf16.msra.mxu0 %v811
  %1027 = vmatprep.subr.bf16.mxu0 0
  %1028 = vmatpush1.bf16.msra.mxu0 %v812
  %1029 = vmatprep.subr.bf16.mxu0 0
  %1030 = vmatpush1.bf16.msra.mxu0 %v813
  %1031 = vmatprep.subr.bf16.mxu0 0
  %1032 = vmatpush1.bf16.msra.mxu0 %v814
  %1033 = vmatprep.subr.bf16.mxu0 0
  %1034 = vmatpush1.bf16.msra.mxu0 %v815
  %1035 = vmatprep.subr.bf16.mxu0 0
  %1036 = vmatpush1.bf16.msra.mxu0 %v816
  %1037 = vmatprep.subr.bf16.mxu0 0
  %1038 = vmatpush1.bf16.msra.mxu0 %v817
  %1039 = vmatprep.subr.bf16.mxu0 0
  %1040 = vmatpush1.bf16.msra.mxu0 %v818
  %1041 = vmatprep.subr.bf16.mxu0 0
  %1042 = vmatpush1.bf16.msra.mxu0 %v819
  %1043 = vmatprep.subr.bf16.mxu0 0
  %1044 = vmatpush1.bf16.msra.mxu0 %v820
  %1045 = vmatprep.subr.bf16.mxu0 0
  %1046 = vmatpush1.bf16.msra.mxu0 %v821
  %1047 = vmatprep.mubr.bf16.mxu0 %v409
  %1048 = vmatmul.mubr.bf16.gmra.mrb[0].mxu0 %v408
  %v1049 = vpop.f32.mrb[0].mxu0
  %v1050 = vadd.f32 %v953, %v1049
  %v1051 = vpop.f32.mrb[0].mxu0
  %v1052 = vpop.f32.mrb[0].mxu0
  %v1053 = vadd.f32 %v956, %v1052
  %v1054 = vpop.f32.mrb[0].mxu0
  %1055 = vmatprep.mubr.bf16.mxu0 %v417
  %1056 = vmatmul.mubr.bf16.gmra.mrb[0].mxu0 %v416
  %v1057 = vpop.f32.mrb[0].mxu0
  %v1058 = vadd.f32 %v961, %v1057
  %v1059 = vpop.f32.mrb[0].mxu0
  %v1060 = vpop.f32.mrb[0].mxu0
  %v1061 = vadd.f32 %v964, %v1060
  %v1062 = vpop.f32.mrb[0].mxu0
  %1063 = vmatprep.mubr.bf16.mxu0 %v425
  %1064 = vmatmul.mubr.bf16.gmra.mrb[0].mxu0 %v424
  %v1065 = vpop.f32.mrb[0].mxu0
  %v1066 = vadd.f32 %v969, %v1065
  %v1067 = vpop.f32.mrb[0].mxu0
  %v1068 = vpop.f32.mrb[0].mxu0
  %v1069 = vadd.f32 %v972, %v1068
  %v1070 = vpop.f32.mrb[0].mxu0
  %1071 = vmatprep.mubr.bf16.mxu0 %v433
  %1072 = vmatmul.mubr.bf16.gmra.mrb[0].mxu0 %v432
  %v1073 = vpop.f32.mrb[0].mxu0
  %v1074 = vadd.f32 %v977, %v1073
  %v1075 = vpop.f32.mrb[0].mxu0
  %v1076 = vpop.f32.mrb[0].mxu0
  %v1077 = vadd.f32 %v980, %v1076
  %v1078 = vpop.f32.mrb[0].mxu0
  %1079 = vmatprep.mubr.bf16.mxu0 %v441
  %1080 = vmatmul.mubr.bf16.gmra.mrb[0].mxu0 %v440
  %v1081 = vpop.f32.mrb[0].mxu0
  %v1082 = vadd.f32 %v985, %v1081
  %v1083 = vpop.f32.mrb[0].mxu0
  %v1084 = vpop.f32.mrb[0].mxu0
  %v1085 = vadd.f32 %v988, %v1084
  %v1086 = vpop.f32.mrb[0].mxu0
  %1087 = vmatprep.mubr.bf16.mxu0 %v449
  %1088 = vmatmul.mubr.bf16.gmra.mrb[0].mxu0 %v448
  %v1089 = vpop.f32.mrb[0].mxu0
  %v1090 = vadd.f32 %v993, %v1089
  %v1091 = vpop.f32.mrb[0].mxu0
  %v1092 = vpop.f32.mrb[0].mxu0
  %v1093 = vadd.f32 %v996, %v1092
  %v1094 = vpop.f32.mrb[0].mxu0
  %1095 = vmatprep.mubr.bf16.mxu0 %v457
  %1096 = vmatmul.mubr.bf16.gmra.mrb[0].mxu0 %v456
  %v1097 = vpop.f32.mrb[0].mxu0
  %v1098 = vadd.f32 %v1001, %v1097
  %v1099 = vpop.f32.mrb[0].mxu0
  %v1100 = vpop.f32.mrb[0].mxu0
  %v1101 = vadd.f32 %v1004, %v1100
  %v1102 = vpop.f32.mrb[0].mxu0
  %1103 = vmatprep.mubr.bf16.mxu0 %v465
  %1104 = vmatmul.mubr.bf16.gmra.mrb[0].mxu0 %v464
  %v1105 = vpop.f32.mrb[0].mxu0
  %v1106 = vadd.f32 %v1009, %v1105
  %v1107 = vpop.f32.mrb[0].mxu0
  %v1108 = vpop.f32.mrb[0].mxu0
  %v1109 = vadd.f32 %v1012, %v1108
  %v1110 = vpop.f32.mrb[0].mxu0
  %1111 = vdwg.mxu0
  %1112 = vmatprep.subr.bf16.mxu0 0
  %1113 = vmatpush1.bf16.msra.mxu0 %v822
  %1114 = vmatprep.subr.bf16.mxu0 0
  %1115 = vmatpush1.bf16.msra.mxu0 %v823
  %1116 = vmatprep.subr.bf16.mxu0 0
  %1117 = vmatpush1.bf16.msra.mxu0 %v824
  %1118 = vmatprep.subr.bf16.mxu0 0
  %1119 = vmatpush1.bf16.msra.mxu0 %v825
  %1120 = vmatprep.subr.bf16.mxu0 0
  %1121 = vmatpush1.bf16.msra.mxu0 %v826
  %1122 = vmatprep.subr.bf16.mxu0 0
  %1123 = vmatpush1.bf16.msra.mxu0 %v827
  %1124 = vmatprep.subr.bf16.mxu0 0
  %1125 = vmatpush1.bf16.msra.mxu0 %v828
  %1126 = vmatprep.subr.bf16.mxu0 0
  %1127 = vmatpush1.bf16.msra.mxu0 %v829
  %1128 = vmatprep.subr.bf16.mxu0 0
  %1129 = vmatpush1.bf16.msra.mxu0 %v830
  %1130 = vmatprep.subr.bf16.mxu0 0
  %1131 = vmatpush1.bf16.msra.mxu0 %v831
  %1132 = vmatprep.subr.bf16.mxu0 0
  %1133 = vmatpush1.bf16.msra.mxu0 %v832
  %1134 = vmatprep.subr.bf16.mxu0 0
  %1135 = vmatpush1.bf16.msra.mxu0 %v833
  %1136 = vmatprep.subr.bf16.mxu0 0
  %1137 = vmatpush1.bf16.msra.mxu0 %v834
  %1138 = vmatprep.subr.bf16.mxu0 0
  %1139 = vmatpush1.bf16.msra.mxu0 %v835
  %1140 = vmatprep.subr.bf16.mxu0 0
  %1141 = vmatpush1.bf16.msra.mxu0 %v836
  %1142 = vmatprep.subr.bf16.mxu0 0
  %1143 = vmatpush1.bf16.msra.mxu0 %v837
  %1144 = vmatprep.mubr.bf16.mxu0 %v411
  %1145 = vmatmul.mubr.bf16.gmra.mrb[0].mxu0 %v410
  %v1146 = vpop.f32.mrb[0].mxu0
  %v1147 = vadd.f32 %v1050, %v1146
  %v1148 = vpop.f32.mrb[0].mxu0
  %v1149 = vpop.f32.mrb[0].mxu0
  %v1150 = vadd.f32 %v1053, %v1149
  %v1151 = vpop.f32.mrb[0].mxu0
  %1152 = vmatprep.mubr.bf16.mxu0 %v419
  %1153 = vmatmul.mubr.bf16.gmra.mrb[0].mxu0 %v418
  %v1154 = vpop.f32.mrb[0].mxu0
  %v1155 = vadd.f32 %v1058, %v1154
  %v1156 = vpop.f32.mrb[0].mxu0
  %v1157 = vpop.f32.mrb[0].mxu0
  %v1158 = vadd.f32 %v1061, %v1157
  %v1159 = vpop.f32.mrb[0].mxu0
  %1160 = vmatprep.mubr.bf16.mxu0 %v427
  %1161 = vmatmul.mubr.bf16.gmra.mrb[0].mxu0 %v426
  %v1162 = vpop.f32.mrb[0].mxu0
  %v1163 = vadd.f32 %v1066, %v1162
  %v1164 = vpop.f32.mrb[0].mxu0
  %v1165 = vpop.f32.mrb[0].mxu0
  %v1166 = vadd.f32 %v1069, %v1165
  %v1167 = vpop.f32.mrb[0].mxu0
  %1168 = vmatprep.mubr.bf16.mxu0 %v435
  %1169 = vmatmul.mubr.bf16.gmra.mrb[0].mxu0 %v434
  %v1170 = vpop.f32.mrb[0].mxu0
  %v1171 = vadd.f32 %v1074, %v1170
  %v1172 = vpop.f32.mrb[0].mxu0
  %v1173 = vpop.f32.mrb[0].mxu0
  %v1174 = vadd.f32 %v1077, %v1173
  %v1175 = vpop.f32.mrb[0].mxu0
  %1176 = vmatprep.mubr.bf16.mxu0 %v443
  %1177 = vmatmul.mubr.bf16.gmra.mrb[0].mxu0 %v442
  %v1178 = vpop.f32.mrb[0].mxu0
  %v1179 = vadd.f32 %v1082, %v1178
  %v1180 = vpop.f32.mrb[0].mxu0
  %v1181 = vpop.f32.mrb[0].mxu0
  %v1182 = vadd.f32 %v1085, %v1181
  %v1183 = vpop.f32.mrb[0].mxu0
  %1184 = vmatprep.mubr.bf16.mxu0 %v451
  %1185 = vmatmul.mubr.bf16.gmra.mrb[0].mxu0 %v450
  %v1186 = vpop.f32.mrb[0].mxu0
  %v1187 = vadd.f32 %v1090, %v1186
  %v1188 = vpop.f32.mrb[0].mxu0
  %v1189 = vpop.f32.mrb[0].mxu0
  %v1190 = vadd.f32 %v1093, %v1189
  %v1191 = vpop.f32.mrb[0].mxu0
  %1192 = vmatprep.mubr.bf16.mxu0 %v459
  %1193 = vmatmul.mubr.bf16.gmra.mrb[0].mxu0 %v458
  %v1194 = vpop.f32.mrb[0].mxu0
  %v1195 = vadd.f32 %v1098, %v1194
  %v1196 = vpop.f32.mrb[0].mxu0
  %v1197 = vpop.f32.mrb[0].mxu0
  %v1198 = vadd.f32 %v1101, %v1197
  %v1199 = vpop.f32.mrb[0].mxu0
  %1200 = vmatprep.mubr.bf16.mxu0 %v467
  %1201 = vmatmul.mubr.bf16.gmra.mrb[0].mxu0 %v466
  %v1202 = vpop.f32.mrb[0].mxu0
  %v1203 = vadd.f32 %v1106, %v1202
  %v1204 = vpop.f32.mrb[0].mxu0
  %v1205 = vpop.f32.mrb[0].mxu0
  %v1206 = vadd.f32 %v1109, %v1205
  %v1207 = vpop.f32.mrb[0].mxu0
  %1208 = vdwg.mxu0
  %1209 = vmatprep.subr.bf16.mxu0 0
  %1210 = vmatpush1.bf16.msra.mxu0 %v838
  %1211 = vmatprep.subr.bf16.mxu0 0
  %1212 = vmatpush1.bf16.msra.mxu0 %v839
  %1213 = vmatprep.subr.bf16.mxu0 0
  %1214 = vmatpush1.bf16.msra.mxu0 %v840
  %1215 = vmatprep.subr.bf16.mxu0 0
  %1216 = vmatpush1.bf16.msra.mxu0 %v841
  %1217 = vmatprep.subr.bf16.mxu0 0
  %1218 = vmatpush1.bf16.msra.mxu0 %v842
  %1219 = vmatprep.subr.bf16.mxu0 0
  %1220 = vmatpush1.bf16.msra.mxu0 %v843
  %1221 = vmatprep.subr.bf16.mxu0 0
  %1222 = vmatpush1.bf16.msra.mxu0 %v844
  %1223 = vmatprep.subr.bf16.mxu0 0
  %1224 = vmatpush1.bf16.msra.mxu0 %v845
  %1225 = vmatprep.subr.bf16.mxu0 0
  %1226 = vmatpush1.bf16.msra.mxu0 %v846
  %1227 = vmatprep.subr.bf16.mxu0 0
  %1228 = vmatpush1.bf16.msra.mxu0 %v847
  %1229 = vmatprep.subr.bf16.mxu0 0
  %1230 = vmatpush1.bf16.msra.mxu0 %v848
  %1231 = vmatprep.subr.bf16.mxu0 0
  %1232 = vmatpush1.bf16.msra.mxu0 %v849
  %1233 = vmatprep.subr.bf16.mxu0 0
  %1234 = vmatpush1.bf16.msra.mxu0 %v850
  %1235 = vmatprep.subr.bf16.mxu0 0
  %1236 = vmatpush1.bf16.msra.mxu0 %v851
  %1237 = vmatprep.subr.bf16.mxu0 0
  %1238 = vmatpush1.bf16.msra.mxu0 %v852
  %1239 = vmatprep.subr.bf16.mxu0 0
  %1240 = vmatpush1.bf16.msra.mxu0 %v853
  %1241 = vmatprep.mubr.bf16.mxu0 %v413
  %1242 = vmatmul.mubr.bf16.gmra.mrb[0].mxu0 %v412
  %v1243 = vpop.f32.mrb[0].mxu0
  %v1244 = vadd.f32 %v1147, %v1243
  %v1245 = vpop.f32.mrb[0].mxu0
  %v1246 = vpop.f32.mrb[0].mxu0
  %v1247 = vadd.f32 %v1150, %v1246
  %v1248 = vpop.f32.mrb[0].mxu0
  %1249 = vmatprep.mubr.bf16.mxu0 %v421
  %1250 = vmatmul.mubr.bf16.gmra.mrb[0].mxu0 %v420
  %v1251 = vpop.f32.mrb[0].mxu0
  %v1252 = vadd.f32 %v1155, %v1251
  %v1253 = vpop.f32.mrb[0].mxu0
  %v1254 = vpop.f32.mrb[0].mxu0
  %v1255 = vadd.f32 %v1158, %v1254
  %v1256 = vpop.f32.mrb[0].mxu0
  %1257 = vmatprep.mubr.bf16.mxu0 %v429
  %1258 = vmatmul.mubr.bf16.gmra.mrb[0].mxu0 %v428
  %v1259 = vpop.f32.mrb[0].mxu0
  %v1260 = vadd.f32 %v1163, %v1259
  %v1261 = vpop.f32.mrb[0].mxu0
  %v1262 = vpop.f32.mrb[0].mxu0
  %v1263 = vadd.f32 %v1166, %v1262
  %v1264 = vpop.f32.mrb[0].mxu0
  %1265 = vmatprep.mubr.bf16.mxu0 %v437
  %1266 = vmatmul.mubr.bf16.gmra.mrb[0].mxu0 %v436
  %v1267 = vpop.f32.mrb[0].mxu0
  %v1268 = vadd.f32 %v1171, %v1267
  %v1269 = vpop.f32.mrb[0].mxu0
  %v1270 = vpop.f32.mrb[0].mxu0
  %v1271 = vadd.f32 %v1174, %v1270
  %v1272 = vpop.f32.mrb[0].mxu0
  %1273 = vmatprep.mubr.bf16.mxu0 %v445
  %1274 = vmatmul.mubr.bf16.gmra.mrb[0].mxu0 %v444
  %v1275 = vpop.f32.mrb[0].mxu0
  %v1276 = vadd.f32 %v1179, %v1275
  %v1277 = vpop.f32.mrb[0].mxu0
  %v1278 = vpop.f32.mrb[0].mxu0
  %v1279 = vadd.f32 %v1182, %v1278
  %v1280 = vpop.f32.mrb[0].mxu0
  %1281 = vmatprep.mubr.bf16.mxu0 %v453
  %1282 = vmatmul.mubr.bf16.gmra.mrb[0].mxu0 %v452
  %v1283 = vpop.f32.mrb[0].mxu0
  %v1284 = vadd.f32 %v1187, %v1283
  %v1285 = vpop.f32.mrb[0].mxu0
  %v1286 = vpop.f32.mrb[0].mxu0
  %v1287 = vadd.f32 %v1190, %v1286
  %v1288 = vpop.f32.mrb[0].mxu0
  %1289 = vmatprep.mubr.bf16.mxu0 %v461
  %1290 = vmatmul.mubr.bf16.gmra.mrb[0].mxu0 %v460
  %v1291 = vpop.f32.mrb[0].mxu0
  %v1292 = vadd.f32 %v1195, %v1291
  %v1293 = vpop.f32.mrb[0].mxu0
  %v1294 = vpop.f32.mrb[0].mxu0
  %v1295 = vadd.f32 %v1198, %v1294
  %v1296 = vpop.f32.mrb[0].mxu0
  %1297 = vmatprep.mubr.bf16.mxu0 %v469
  %1298 = vmatmul.mubr.bf16.gmra.mrb[0].mxu0 %v468
  %v1299 = vpop.f32.mrb[0].mxu0
  %v1300 = vadd.f32 %v1203, %v1299
  %v1301 = vpop.f32.mrb[0].mxu0
  %v1302 = vpop.f32.mrb[0].mxu0
  %v1303 = vadd.f32 %v1206, %v1302
  %v1304 = vpop.f32.mrb[0].mxu0
  %1305 = vdwg.mxu0
  %vm1306 = vcmp.gt.f32.partialorder %v1244, 0.0
  %vm1307 = vcmp.gt.f32.partialorder %v1247, 0.0
  %vm1308 = vcmp.gt.f32.partialorder %v1252, 0.0
  %vm1309 = vcmp.gt.f32.partialorder %v1255, 0.0
  %vm1310 = vcmp.gt.f32.partialorder %v1260, 0.0
  %vm1311 = vcmp.gt.f32.partialorder %v1263, 0.0
  %vm1312 = vcmp.gt.f32.partialorder %v1268, 0.0
  %vm1313 = vcmp.gt.f32.partialorder %v1271, 0.0
  %vm1314 = vcmp.gt.f32.partialorder %v1276, 0.0
  %vm1315 = vcmp.gt.f32.partialorder %v1279, 0.0
  %vm1316 = vcmp.gt.f32.partialorder %v1284, 0.0
  %vm1317 = vcmp.gt.f32.partialorder %v1287, 0.0
  %vm1318 = vcmp.gt.f32.partialorder %v1292, 0.0
  %vm1319 = vcmp.gt.f32.partialorder %v1295, 0.0
  %vm1320 = vcmp.gt.f32.partialorder %v1300, 0.0
  %vm1321 = vcmp.gt.f32.partialorder %v1303, 0.0
  %v1322 = vmul.f32 %v1244, 0.01
  %v1323 = vmul.f32 %v1247, 0.01
  %v1324 = vmul.f32 %v1252, 0.01
  %v1325 = vmul.f32 %v1255, 0.01
  %v1326 = vmul.f32 %v1260, 0.01
  %v1327 = vmul.f32 %v1263, 0.01
  %v1328 = vmul.f32 %v1268, 0.01
  %v1329 = vmul.f32 %v1271, 0.01
  %v1330 = vmul.f32 %v1276, 0.01
  %v1331 = vmul.f32 %v1279, 0.01
  %v1332 = vmul.f32 %v1284, 0.01
  %v1333 = vmul.f32 %v1287, 0.01
  %v1334 = vmul.f32 %v1292, 0.01
  %v1335 = vmul.f32 %v1295, 0.01
  %v1336 = vmul.f32 %v1300, 0.01
  %v1337 = vmul.f32 %v1303, 0.01
  %v1338 = vsel %vm1306, %v1244, %v1322
  %v1339 = vsel %vm1307, %v1247, %v1323
  %v1340 = vsel %vm1308, %v1252, %v1324
  %v1341 = vsel %vm1309, %v1255, %v1325
  %v1342 = vsel %vm1310, %v1260, %v1326
  %v1343 = vsel %vm1311, %v1263, %v1327
  %v1344 = vsel %vm1312, %v1268, %v1328
  %v1345 = vsel %vm1313, %v1271, %v1329
  %v1346 = vsel %vm1314, %v1276, %v1330
  %v1347 = vsel %vm1315, %v1279, %v1331
  %v1348 = vsel %vm1316, %v1284, %v1332
  %v1349 = vsel %vm1317, %v1287, %v1333
  %v1350 = vsel %vm1318, %v1292, %v1334
  %v1351 = vsel %vm1319, %v1295, %v1335
  %v1352 = vsel %vm1320, %v1300, %v1336
  %v1353 = vsel %vm1321, %v1303, %v1337
  %v1354 = vpack.c.bf16 %v1339, %v1338
  %v1355 = vpack.c.bf16 %v1341, %v1340
  %v1356 = vpack.c.bf16 %v1343, %v1342
  %v1357 = vpack.c.bf16 %v1345, %v1344
  %v1358 = vpack.c.bf16 %v1347, %v1346
  %v1359 = vpack.c.bf16 %v1349, %v1348
  %v1360 = vpack.c.bf16 %v1351, %v1350
  %v1361 = vpack.c.bf16 %v1353, %v1352
  %v1370 = vunpack.c.l.b16 %v1354
  %v1371 = vunpack.c.h.b16 %v1354
  %v1372 = vunpack.c.l.b16 %v1355
  %v1373 = vunpack.c.h.b16 %v1355
  %v1374 = vunpack.c.l.b16 %v1356
  %v1375 = vunpack.c.h.b16 %v1356
  %v1376 = vunpack.c.l.b16 %v1357
  %v1377 = vunpack.c.h.b16 %v1357
  %v1378 = vunpack.c.l.b16 %v1358
  %v1379 = vunpack.c.h.b16 %v1358
  %v1380 = vunpack.c.l.b16 %v1359
  %v1381 = vunpack.c.h.b16 %v1359
  %v1382 = vunpack.c.l.b16 %v1360
  %v1383 = vunpack.c.h.b16 %v1360
  %v1384 = vunpack.c.l.b16 %v1361
  %v1385 = vunpack.c.h.b16 %v1361
  %v1386 = vpack.c.b16 %v1370, %v1370
  %v1387 = vpack.c.b16 %v1371, %v1371
  %v1388 = vpack.c.b16 %v1372, %v1372
  %v1389 = vpack.c.b16 %v1373, %v1373
  %v1390 = vpack.c.b16 %v1374, %v1374
  %v1391 = vpack.c.b16 %v1375, %v1375
  %v1392 = vpack.c.b16 %v1376, %v1376
  %v1393 = vpack.c.b16 %v1377, %v1377
  %v1394 = vpack.c.b16 %v1378, %v1378
  %v1395 = vpack.c.b16 %v1379, %v1379
  %v1396 = vpack.c.b16 %v1380, %v1380
  %v1397 = vpack.c.b16 %v1381, %v1381
  %v1398 = vpack.c.b16 %v1382, %v1382
  %v1399 = vpack.c.b16 %v1383, %v1383
  %v1400 = vpack.c.b16 %v1384, %v1384
  %v1401 = vpack.c.b16 %v1385, %v1385
  %1418 = vst [vmem:[%s3] sm:$0xf] %v1386
  %1419 = vst [vmem:[%s3 + $0x4] sm:$0xf] %v1387
  %1420 = vst [vmem:[%s3 + $0x8] sm:$0xf] %v1388
  %1421 = vst [vmem:[%s3 + $0xc] sm:$0xf] %v1389
  %1422 = vst [vmem:[%s3 + $0x10] sm:$0xf] %v1390
  %1423 = vst [vmem:[%s3 + $0x14] sm:$0xf] %v1391
  %1424 = vst [vmem:[%s3 + $0x18] sm:$0xf] %v1392
  %1425 = vst [vmem:[%s3 + $0x1c] sm:$0xf] %v1393
  %1426 = vst [vmem:[%s3 + $0x20] sm:$0xf] %v1394
  %1427 = vst [vmem:[%s3 + $0x24] sm:$0xf] %v1395
  %1428 = vst [vmem:[%s3 + $0x28] sm:$0xf] %v1396
  %1429 = vst [vmem:[%s3 + $0x2c] sm:$0xf] %v1397
  %1430 = vst [vmem:[%s3 + $0x30] sm:$0xf] %v1398
  %1431 = vst [vmem:[%s3 + $0x34] sm:$0xf] %v1399
  %1432 = vst [vmem:[%s3 + $0x38] sm:$0xf] %v1400
  %1433 = vst [vmem:[%s3 + $0x3c] sm:$0xf] %v1401
  // Predicated region
  $region14: #{encoder_forward.5} parent=0 // pred_check
    _
  $region15: #{encoder_forward.5} parent=0 // pred_check_branch
    %1435 = sbr.rel (0) target = $region17
  $region16: #{encoder_forward.5} parent=0 // pred_region
    _
  $region17: #{encoder_forward.5} parent=0 // pred_fallthru
    _
  // Predicated region
  $region18: #{encoder_forward.5} parent=0 // pred_check
    _
  $region19: #{encoder_forward.5} parent=0 // pred_check_branch
    %1437 = sbr.rel (0) target = $region21
  $region20: #{encoder_forward.5} parent=0 // pred_region
    _
  $region21: #{encoder_forward.5} parent=0 // pred_fallthru
    _

// kernel: encoder_forward.6
$region0: #{encoder_forward.6}
  #allocation0 [shape = 'u32[]', space=smem, size = 0x4, offset = 0x4, fixed_abs, tag = 'smem constant byte address 0x4 - core index']
  #allocation1 [shape = 'u32[144,128]{1,0:T(1,128)}', space=vmem, size = 0x12000, scoped, tag = 'internal scratch']
  %s0 = inlined_call_operand.vmem [shape: bf16[32,2048], index: 0, kind: input, shape index: {}]
  %s1 = inlined_call_operand.vmem [shape: bf16[2048,256], index: 1, kind: input, shape index: {}]
  %s2 = inlined_call_operand.vmem [shape: f32[1,256], index: 2, kind: input, shape index: {}]
  %s3 = inlined_call_operand.vmem [shape: bf16[32,256], index: 3, kind: output, shape index: {}]
  %s4 = sld [smem:[#allocation0]]
  $region22: #{encoder_forward.6} parent=0
    _
  %s6 = ssub.s32 1, %s4
  %s7 = scalar_select 0, %s6, %s4
  // Predicated region
  $region2: #{encoder_forward.6} parent=0 // pred_check
    _
  $region3: #{encoder_forward.6} parent=0 // pred_check_branch
    %9 = sbr.rel (0) target = $region5
  $region4: #{encoder_forward.6} parent=0 // pred_region
    _
  $region5: #{encoder_forward.6} parent=0 // pred_fallthru
    _
  // Predicated region
  $region6: #{encoder_forward.6} parent=0 // pred_check
    _
  $region7: #{encoder_forward.6} parent=0 // pred_check_branch
    %11 = sbr.rel (0) target = $region9
  $region8: #{encoder_forward.6} parent=0 // pred_region
    _
  $region9: #{encoder_forward.6} parent=0 // pred_fallthru
    _
  // Predicated region
  $region10: #{encoder_forward.6} parent=0 // pred_check
    _
  $region11: #{encoder_forward.6} parent=0 // pred_check_branch
    %13 = sbr.rel (0) target = $region13
  $region12: #{encoder_forward.6} parent=0 // pred_region
    _
  $region13: #{encoder_forward.6} parent=0 // pred_fallthru
    _
  %v14 = vld [vmem:[%s0] sm:$0xff]
  %v15 = vld [vmem:[%s0 + $0x8] sm:$0xff]
  %v16 = vld [vmem:[%s0 + $0x10] sm:$0xff]
  %v17 = vld [vmem:[%s0 + $0x18] sm:$0xff]
  %v18 = vld [vmem:[%s0 + $0x20] sm:$0xff]
  %v19 = vld [vmem:[%s0 + $0x28] sm:$0xff]
  %v20 = vld [vmem:[%s0 + $0x30] sm:$0xff]
  %v21 = vld [vmem:[%s0 + $0x38] sm:$0xff]
  %v22 = vld [vmem:[%s0 + $0x40] sm:$0xff]
  %v23 = vld [vmem:[%s0 + $0x48] sm:$0xff]
  %v24 = vld [vmem:[%s0 + $0x50] sm:$0xff]
  %v25 = vld [vmem:[%s0 + $0x58] sm:$0xff]
  %v26 = vld [vmem:[%s0 + $0x60] sm:$0xff]
  %v27 = vld [vmem:[%s0 + $0x68] sm:$0xff]
  %v28 = vld [vmem:[%s0 + $0x70] sm:$0xff]
  %v29 = vld [vmem:[%s0 + $0x78] sm:$0xff]
  %v30 = vld [vmem:[%s0 + $0x80] sm:$0xff]
  %v31 = vld [vmem:[%s0 + $0x88] sm:$0xff]
  %v32 = vld [vmem:[%s0 + $0x90] sm:$0xff]
  %v33 = vld [vmem:[%s0 + $0x98] sm:$0xff]
  %v34 = vld [vmem:[%s0 + $0xa0] sm:$0xff]
  %v35 = vld [vmem:[%s0 + $0xa8] sm:$0xff]
  %v36 = vld [vmem:[%s0 + $0xb0] sm:$0xff]
  %v37 = vld [vmem:[%s0 + $0xb8] sm:$0xff]
  %v38 = vld [vmem:[%s0 + $0xc0] sm:$0xff]
  %v39 = vld [vmem:[%s0 + $0xc8] sm:$0xff]
  %v40 = vld [vmem:[%s0 + $0xd0] sm:$0xff]
  %v41 = vld [vmem:[%s0 + $0xd8] sm:$0xff]
  %v42 = vld [vmem:[%s0 + $0xe0] sm:$0xff]
  %v43 = vld [vmem:[%s0 + $0xe8] sm:$0xff]
  %v44 = vld [vmem:[%s0 + $0xf0] sm:$0xff]
  %v45 = vld [vmem:[%s0 + $0xf8] sm:$0xff]
  %v46 = vld [vmem:[%s1] sm:$0xff]
  %v47 = vld [vmem:[%s1 + $0x8] sm:$0xff]
  %v48 = vld [vmem:[%s1 + $0x10] sm:$0xff]
  %v49 = vld [vmem:[%s1 + $0x18] sm:$0xff]
  %v50 = vld [vmem:[%s1 + $0x20] sm:$0xff]
  %v51 = vld [vmem:[%s1 + $0x28] sm:$0xff]
  %v52 = vld [vmem:[%s1 + $0x30] sm:$0xff]
  %v53 = vld [vmem:[%s1 + $0x38] sm:$0xff]
  %v54 = vld [vmem:[%s1 + $0x40] sm:$0xff]
  %v55 = vld [vmem:[%s1 + $0x48] sm:$0xff]
  %v56 = vld [vmem:[%s1 + $0x50] sm:$0xff]
  %v57 = vld [vmem:[%s1 + $0x58] sm:$0xff]
  %v58 = vld [vmem:[%s1 + $0x60] sm:$0xff]
  %v59 = vld [vmem:[%s1 + $0x68] sm:$0xff]
  %v60 = vld [vmem:[%s1 + $0x70] sm:$0xff]
  %v61 = vld [vmem:[%s1 + $0x78] sm:$0xff]
  %v62 = vld [vmem:[%s1 + $0x80] sm:$0xff]
  %v63 = vld [vmem:[%s1 + $0x88] sm:$0xff]
  %v64 = vld [vmem:[%s1 + $0x90] sm:$0xff]
  %v65 = vld [vmem:[%s1 + $0x98] sm:$0xff]
  %v66 = vld [vmem:[%s1 + $0xa0] sm:$0xff]
  %v67 = vld [vmem:[%s1 + $0xa8] sm:$0xff]
  %v68 = vld [vmem:[%s1 + $0xb0] sm:$0xff]
  %v69 = vld [vmem:[%s1 + $0xb8] sm:$0xff]
  %v70 = vld [vmem:[%s1 + $0xc0] sm:$0xff]
  %v71 = vld [vmem:[%s1 + $0xc8] sm:$0xff]
  %v72 = vld [vmem:[%s1 + $0xd0] sm:$0xff]
  %v73 = vld [vmem:[%s1 + $0xd8] sm:$0xff]
  %v74 = vld [vmem:[%s1 + $0xe0] sm:$0xff]
  %v75 = vld [vmem:[%s1 + $0xe8] sm:$0xff]
  %v76 = vld [vmem:[%s1 + $0xf0] sm:$0xff]
  %v77 = vld [vmem:[%s1 + $0xf8] sm:$0xff]
  %v78 = vld [vmem:[%s1 + $0x100] sm:$0xff]
  %v79 = vld [vmem:[%s1 + $0x108] sm:$0xff]
  %v80 = vld [vmem:[%s1 + $0x110] sm:$0xff]
  %v81 = vld [vmem:[%s1 + $0x118] sm:$0xff]
  %v82 = vld [vmem:[%s1 + $0x120] sm:$0xff]
  %v83 = vld [vmem:[%s1 + $0x128] sm:$0xff]
  %v84 = vld [vmem:[%s1 + $0x130] sm:$0xff]
  %v85 = vld [vmem:[%s1 + $0x138] sm:$0xff]
  %v86 = vld [vmem:[%s1 + $0x140] sm:$0xff]
  %v87 = vld [vmem:[%s1 + $0x148] sm:$0xff]
  %v88 = vld [vmem:[%s1 + $0x150] sm:$0xff]
  %v89 = vld [vmem:[%s1 + $0x158] sm:$0xff]
  %v90 = vld [vmem:[%s1 + $0x160] sm:$0xff]
  %v91 = vld [vmem:[%s1 + $0x168] sm:$0xff]
  %v92 = vld [vmem:[%s1 + $0x170] sm:$0xff]
  %v93 = vld [vmem:[%s1 + $0x178] sm:$0xff]
  %v94 = vld [vmem:[%s1 + $0x180] sm:$0xff]
  %v95 = vld [vmem:[%s1 + $0x188] sm:$0xff]
  %v96 = vld [vmem:[%s1 + $0x190] sm:$0xff]
  %v97 = vld [vmem:[%s1 + $0x198] sm:$0xff]
  %v98 = vld [vmem:[%s1 + $0x1a0] sm:$0xff]
  %v99 = vld [vmem:[%s1 + $0x1a8] sm:$0xff]
  %v100 = vld [vmem:[%s1 + $0x1b0] sm:$0xff]
  %v101 = vld [vmem:[%s1 + $0x1b8] sm:$0xff]
  %v102 = vld [vmem:[%s1 + $0x1c0] sm:$0xff]
  %v103 = vld [vmem:[%s1 + $0x1c8] sm:$0xff]
  %v104 = vld [vmem:[%s1 + $0x1d0] sm:$0xff]
  %v105 = vld [vmem:[%s1 + $0x1d8] sm:$0xff]
  %v106 = vld [vmem:[%s1 + $0x1e0] sm:$0xff]
  %v107 = vld [vmem:[%s1 + $0x1e8] sm:$0xff]
  %v108 = vld [vmem:[%s1 + $0x1f0] sm:$0xff]
  %v109 = vld [vmem:[%s1 + $0x1f8] sm:$0xff]
  %v110 = vld [vmem:[%s1 + $0x200] sm:$0xff]
  %v111 = vld [vmem:[%s1 + $0x208] sm:$0xff]
  %v112 = vld [vmem:[%s1 + $0x210] sm:$0xff]
  %v113 = vld [vmem:[%s1 + $0x218] sm:$0xff]
  %v114 = vld [vmem:[%s1 + $0x220] sm:$0xff]
  %v115 = vld [vmem:[%s1 + $0x228] sm:$0xff]
  %v116 = vld [vmem:[%s1 + $0x230] sm:$0xff]
  %v117 = vld [vmem:[%s1 + $0x238] sm:$0xff]
  %v118 = vld [vmem:[%s1 + $0x240] sm:$0xff]
  %v119 = vld [vmem:[%s1 + $0x248] sm:$0xff]
  %v120 = vld [vmem:[%s1 + $0x250] sm:$0xff]
  %v121 = vld [vmem:[%s1 + $0x258] sm:$0xff]
  %v122 = vld [vmem:[%s1 + $0x260] sm:$0xff]
  %v123 = vld [vmem:[%s1 + $0x268] sm:$0xff]
  %v124 = vld [vmem:[%s1 + $0x270] sm:$0xff]
  %v125 = vld [vmem:[%s1 + $0x278] sm:$0xff]
  %v126 = vld [vmem:[%s1 + $0x280] sm:$0xff]
  %v127 = vld [vmem:[%s1 + $0x288] sm:$0xff]
  %v128 = vld [vmem:[%s1 + $0x290] sm:$0xff]
  %v129 = vld [vmem:[%s1 + $0x298] sm:$0xff]
  %v130 = vld [vmem:[%s1 + $0x2a0] sm:$0xff]
  %v131 = vld [vmem:[%s1 + $0x2a8] sm:$0xff]
  %v132 = vld [vmem:[%s1 + $0x2b0] sm:$0xff]
  %v133 = vld [vmem:[%s1 + $0x2b8] sm:$0xff]
  %v134 = vld [vmem:[%s1 + $0x2c0] sm:$0xff]
  %v135 = vld [vmem:[%s1 + $0x2c8] sm:$0xff]
  %v136 = vld [vmem:[%s1 + $0x2d0] sm:$0xff]
  %v137 = vld [vmem:[%s1 + $0x2d8] sm:$0xff]
  %v138 = vld [vmem:[%s1 + $0x2e0] sm:$0xff]
  %v139 = vld [vmem:[%s1 + $0x2e8] sm:$0xff]
  %v140 = vld [vmem:[%s1 + $0x2f0] sm:$0xff]
  %v141 = vld [vmem:[%s1 + $0x2f8] sm:$0xff]
  %v142 = vld [vmem:[%s1 + $0x300] sm:$0xff]
  %v143 = vld [vmem:[%s1 + $0x308] sm:$0xff]
  %v144 = vld [vmem:[%s1 + $0x310] sm:$0xff]
  %v145 = vld [vmem:[%s1 + $0x318] sm:$0xff]
  %v146 = vld [vmem:[%s1 + $0x320] sm:$0xff]
  %v147 = vld [vmem:[%s1 + $0x328] sm:$0xff]
  %v148 = vld [vmem:[%s1 + $0x330] sm:$0xff]
  %v149 = vld [vmem:[%s1 + $0x338] sm:$0xff]
  %v150 = vld [vmem:[%s1 + $0x340] sm:$0xff]
  %v151 = vld [vmem:[%s1 + $0x348] sm:$0xff]
  %v152 = vld [vmem:[%s1 + $0x350] sm:$0xff]
  %v153 = vld [vmem:[%s1 + $0x358] sm:$0xff]
  %v154 = vld [vmem:[%s1 + $0x360] sm:$0xff]
  %v155 = vld [vmem:[%s1 + $0x368] sm:$0xff]
  %v156 = vld [vmem:[%s1 + $0x370] sm:$0xff]
  %v157 = vld [vmem:[%s1 + $0x378] sm:$0xff]
  %v158 = vld [vmem:[%s1 + $0x380] sm:$0xff]
  %v159 = vld [vmem:[%s1 + $0x388] sm:$0xff]
  %v160 = vld [vmem:[%s1 + $0x390] sm:$0xff]
  %v161 = vld [vmem:[%s1 + $0x398] sm:$0xff]
  %v162 = vld [vmem:[%s1 + $0x3a0] sm:$0xff]
  %v163 = vld [vmem:[%s1 + $0x3a8] sm:$0xff]
  %v164 = vld [vmem:[%s1 + $0x3b0] sm:$0xff]
  %v165 = vld [vmem:[%s1 + $0x3b8] sm:$0xff]
  %v166 = vld [vmem:[%s1 + $0x3c0] sm:$0xff]
  %v167 = vld [vmem:[%s1 + $0x3c8] sm:$0xff]
  %v168 = vld [vmem:[%s1 + $0x3d0] sm:$0xff]
  %v169 = vld [vmem:[%s1 + $0x3d8] sm:$0xff]
  %v170 = vld [vmem:[%s1 + $0x3e0] sm:$0xff]
  %v171 = vld [vmem:[%s1 + $0x3e8] sm:$0xff]
  %v172 = vld [vmem:[%s1 + $0x3f0] sm:$0xff]
  %v173 = vld [vmem:[%s1 + $0x3f8] sm:$0xff]
  %v174 = vld [vmem:[%s1 + $0x400] sm:$0xff]
  %v175 = vld [vmem:[%s1 + $0x408] sm:$0xff]
  %v176 = vld [vmem:[%s1 + $0x410] sm:$0xff]
  %v177 = vld [vmem:[%s1 + $0x418] sm:$0xff]
  %v178 = vld [vmem:[%s1 + $0x420] sm:$0xff]
  %v179 = vld [vmem:[%s1 + $0x428] sm:$0xff]
  %v180 = vld [vmem:[%s1 + $0x430] sm:$0xff]
  %v181 = vld [vmem:[%s1 + $0x438] sm:$0xff]
  %v182 = vld [vmem:[%s1 + $0x440] sm:$0xff]
  %v183 = vld [vmem:[%s1 + $0x448] sm:$0xff]
  %v184 = vld [vmem:[%s1 + $0x450] sm:$0xff]
  %v185 = vld [vmem:[%s1 + $0x458] sm:$0xff]
  %v186 = vld [vmem:[%s1 + $0x460] sm:$0xff]
  %v187 = vld [vmem:[%s1 + $0x468] sm:$0xff]
  %v188 = vld [vmem:[%s1 + $0x470] sm:$0xff]
  %v189 = vld [vmem:[%s1 + $0x478] sm:$0xff]
  %v190 = vld [vmem:[%s1 + $0x480] sm:$0xff]
  %v191 = vld [vmem:[%s1 + $0x488] sm:$0xff]
  %v192 = vld [vmem:[%s1 + $0x490] sm:$0xff]
  %v193 = vld [vmem:[%s1 + $0x498] sm:$0xff]
  %v194 = vld [vmem:[%s1 + $0x4a0] sm:$0xff]
  %v195 = vld [vmem:[%s1 + $0x4a8] sm:$0xff]
  %v196 = vld [vmem:[%s1 + $0x4b0] sm:$0xff]
  %v197 = vld [vmem:[%s1 + $0x4b8] sm:$0xff]
  %v198 = vld [vmem:[%s1 + $0x4c0] sm:$0xff]
  %v199 = vld [vmem:[%s1 + $0x4c8] sm:$0xff]
  %v200 = vld [vmem:[%s1 + $0x4d0] sm:$0xff]
  %v201 = vld [vmem:[%s1 + $0x4d8] sm:$0xff]
  %v202 = vld [vmem:[%s1 + $0x4e0] sm:$0xff]
  %v203 = vld [vmem:[%s1 + $0x4e8] sm:$0xff]
  %v204 = vld [vmem:[%s1 + $0x4f0] sm:$0xff]
  %v205 = vld [vmem:[%s1 + $0x4f8] sm:$0xff]
  %v206 = vld [vmem:[%s1 + $0x500] sm:$0xff]
  %v207 = vld [vmem:[%s1 + $0x508] sm:$0xff]
  %v208 = vld [vmem:[%s1 + $0x510] sm:$0xff]
  %v209 = vld [vmem:[%s1 + $0x518] sm:$0xff]
  %v210 = vld [vmem:[%s1 + $0x520] sm:$0xff]
  %v211 = vld [vmem:[%s1 + $0x528] sm:$0xff]
  %v212 = vld [vmem:[%s1 + $0x530] sm:$0xff]
  %v213 = vld [vmem:[%s1 + $0x538] sm:$0xff]
  %v214 = vld [vmem:[%s1 + $0x540] sm:$0xff]
  %v215 = vld [vmem:[%s1 + $0x548] sm:$0xff]
  %v216 = vld [vmem:[%s1 + $0x550] sm:$0xff]
  %v217 = vld [vmem:[%s1 + $0x558] sm:$0xff]
  %v218 = vld [vmem:[%s1 + $0x560] sm:$0xff]
  %v219 = vld [vmem:[%s1 + $0x568] sm:$0xff]
  %v220 = vld [vmem:[%s1 + $0x570] sm:$0xff]
  %v221 = vld [vmem:[%s1 + $0x578] sm:$0xff]
  %v222 = vld [vmem:[%s1 + $0x580] sm:$0xff]
  %v223 = vld [vmem:[%s1 + $0x588] sm:$0xff]
  %v224 = vld [vmem:[%s1 + $0x590] sm:$0xff]
  %v225 = vld [vmem:[%s1 + $0x598] sm:$0xff]
  %v226 = vld [vmem:[%s1 + $0x5a0] sm:$0xff]
  %v227 = vld [vmem:[%s1 + $0x5a8] sm:$0xff]
  %v228 = vld [vmem:[%s1 + $0x5b0] sm:$0xff]
  %v229 = vld [vmem:[%s1 + $0x5b8] sm:$0xff]
  %v230 = vld [vmem:[%s1 + $0x5c0] sm:$0xff]
  %v231 = vld [vmem:[%s1 + $0x5c8] sm:$0xff]
  %v232 = vld [vmem:[%s1 + $0x5d0] sm:$0xff]
  %v233 = vld [vmem:[%s1 + $0x5d8] sm:$0xff]
  %v234 = vld [vmem:[%s1 + $0x5e0] sm:$0xff]
  %v235 = vld [vmem:[%s1 + $0x5e8] sm:$0xff]
  %v236 = vld [vmem:[%s1 + $0x5f0] sm:$0xff]
  %v237 = vld [vmem:[%s1 + $0x5f8] sm:$0xff]
  %v238 = vld [vmem:[%s1 + $0x600] sm:$0xff]
  %v239 = vld [vmem:[%s1 + $0x608] sm:$0xff]
  %v240 = vld [vmem:[%s1 + $0x610] sm:$0xff]
  %v241 = vld [vmem:[%s1 + $0x618] sm:$0xff]
  %v242 = vld [vmem:[%s1 + $0x620] sm:$0xff]
  %v243 = vld [vmem:[%s1 + $0x628] sm:$0xff]
  %v244 = vld [vmem:[%s1 + $0x630] sm:$0xff]
  %v245 = vld [vmem:[%s1 + $0x638] sm:$0xff]
  %v246 = vld [vmem:[%s1 + $0x640] sm:$0xff]
  %v247 = vld [vmem:[%s1 + $0x648] sm:$0xff]
  %v248 = vld [vmem:[%s1 + $0x650] sm:$0xff]
  %v249 = vld [vmem:[%s1 + $0x658] sm:$0xff]
  %v250 = vld [vmem:[%s1 + $0x660] sm:$0xff]
  %v251 = vld [vmem:[%s1 + $0x668] sm:$0xff]
  %v252 = vld [vmem:[%s1 + $0x670] sm:$0xff]
  %v253 = vld [vmem:[%s1 + $0x678] sm:$0xff]
  %v254 = vld [vmem:[%s1 + $0x680] sm:$0xff]
  %v255 = vld [vmem:[%s1 + $0x688] sm:$0xff]
  %v256 = vld [vmem:[%s1 + $0x690] sm:$0xff]
  %v257 = vld [vmem:[%s1 + $0x698] sm:$0xff]
  %v258 = vld [vmem:[%s1 + $0x6a0] sm:$0xff]
  %v259 = vld [vmem:[%s1 + $0x6a8] sm:$0xff]
  %v260 = vld [vmem:[%s1 + $0x6b0] sm:$0xff]
  %v261 = vld [vmem:[%s1 + $0x6b8] sm:$0xff]
  %v262 = vld [vmem:[%s1 + $0x6c0] sm:$0xff]
  %v263 = vld [vmem:[%s1 + $0x6c8] sm:$0xff]
  %v264 = vld [vmem:[%s1 + $0x6d0] sm:$0xff]
  %v265 = vld [vmem:[%s1 + $0x6d8] sm:$0xff]
  %v266 = vld [vmem:[%s1 + $0x6e0] sm:$0xff]
  %v267 = vld [vmem:[%s1 + $0x6e8] sm:$0xff]
  %v268 = vld [vmem:[%s1 + $0x6f0] sm:$0xff]
  %v269 = vld [vmem:[%s1 + $0x6f8] sm:$0xff]
  %v270 = vld [vmem:[%s1 + $0x700] sm:$0xff]
  %v271 = vld [vmem:[%s1 + $0x708] sm:$0xff]
  %v272 = vld [vmem:[%s1 + $0x710] sm:$0xff]
  %v273 = vld [vmem:[%s1 + $0x718] sm:$0xff]
  %v274 = vld [vmem:[%s1 + $0x720] sm:$0xff]
  %v275 = vld [vmem:[%s1 + $0x728] sm:$0xff]
  %v276 = vld [vmem:[%s1 + $0x730] sm:$0xff]
  %v277 = vld [vmem:[%s1 + $0x738] sm:$0xff]
  %v278 = vld [vmem:[%s1 + $0x740] sm:$0xff]
  %v279 = vld [vmem:[%s1 + $0x748] sm:$0xff]
  %v280 = vld [vmem:[%s1 + $0x750] sm:$0xff]
  %v281 = vld [vmem:[%s1 + $0x758] sm:$0xff]
  %v282 = vld [vmem:[%s1 + $0x760] sm:$0xff]
  %v283 = vld [vmem:[%s1 + $0x768] sm:$0xff]
  %v284 = vld [vmem:[%s1 + $0x770] sm:$0xff]
  %v285 = vld [vmem:[%s1 + $0x778] sm:$0xff]
  %v286 = vld [vmem:[%s1 + $0x780] sm:$0xff]
  %v287 = vld [vmem:[%s1 + $0x788] sm:$0xff]
  %v288 = vld [vmem:[%s1 + $0x790] sm:$0xff]
  %v289 = vld [vmem:[%s1 + $0x798] sm:$0xff]
  %v290 = vld [vmem:[%s1 + $0x7a0] sm:$0xff]
  %v291 = vld [vmem:[%s1 + $0x7a8] sm:$0xff]
  %v292 = vld [vmem:[%s1 + $0x7b0] sm:$0xff]
  %v293 = vld [vmem:[%s1 + $0x7b8] sm:$0xff]
  %v294 = vld [vmem:[%s1 + $0x7c0] sm:$0xff]
  %v295 = vld [vmem:[%s1 + $0x7c8] sm:$0xff]
  %v296 = vld [vmem:[%s1 + $0x7d0] sm:$0xff]
  %v297 = vld [vmem:[%s1 + $0x7d8] sm:$0xff]
  %v298 = vld [vmem:[%s1 + $0x7e0] sm:$0xff]
  %v299 = vld [vmem:[%s1 + $0x7e8] sm:$0xff]
  %v300 = vld [vmem:[%s1 + $0x7f0] sm:$0xff]
  %v301 = vld [vmem:[%s1 + $0x7f8] sm:$0xff]
  %v302 = vld [vmem:[%s2] sm:$0x3]
  %v304 = vlaneseq
  %v305 = vshrl.u32 %v304, 7
  %v306 = vsub.s32 0, %v305
  %v307 = vrot.slane %v302, %v306
  %v308 = vlaneseq
  %v309 = vshrl.u32 %v308, 7
  %v310 = vsub.s32 1, %v309
  %v311 = vrot.slane %v302, %v310
  %v346 = vunpack.c.l.b16 %v14
  %v347 = vunpack.c.h.b16 %v14
  %v348 = vunpack.c.l.b16 %v15
  %v349 = vunpack.c.h.b16 %v15
  %v350 = vunpack.c.l.b16 %v16
  %v351 = vunpack.c.h.b16 %v16
  %v352 = vunpack.c.l.b16 %v17
  %v353 = vunpack.c.h.b16 %v17
  %v354 = vunpack.c.l.b16 %v18
  %v355 = vunpack.c.h.b16 %v18
  %v356 = vunpack.c.l.b16 %v19
  %v357 = vunpack.c.h.b16 %v19
  %v358 = vunpack.c.l.b16 %v20
  %v359 = vunpack.c.h.b16 %v20
  %v360 = vunpack.c.l.b16 %v21
  %v361 = vunpack.c.h.b16 %v21
  %v362 = vunpack.c.l.b16 %v22
  %v363 = vunpack.c.h.b16 %v22
  %v364 = vunpack.c.l.b16 %v23
  %v365 = vunpack.c.h.b16 %v23
  %v366 = vunpack.c.l.b16 %v24
  %v367 = vunpack.c.h.b16 %v24
  %v368 = vunpack.c.l.b16 %v25
  %v369 = vunpack.c.h.b16 %v25
  %v370 = vunpack.c.l.b16 %v26
  %v371 = vunpack.c.h.b16 %v26
  %v372 = vunpack.c.l.b16 %v27
  %v373 = vunpack.c.h.b16 %v27
  %v374 = vunpack.c.l.b16 %v28
  %v375 = vunpack.c.h.b16 %v28
  %v376 = vunpack.c.l.b16 %v29
  %v377 = vunpack.c.h.b16 %v29
  %v378 = vunpack.c.l.b16 %v30
  %v379 = vunpack.c.h.b16 %v30
  %v380 = vunpack.c.l.b16 %v31
  %v381 = vunpack.c.h.b16 %v31
  %v382 = vunpack.c.l.b16 %v32
  %v383 = vunpack.c.h.b16 %v32
  %v384 = vunpack.c.l.b16 %v33
  %v385 = vunpack.c.h.b16 %v33
  %v386 = vunpack.c.l.b16 %v34
  %v387 = vunpack.c.h.b16 %v34
  %v388 = vunpack.c.l.b16 %v35
  %v389 = vunpack.c.h.b16 %v35
  %v390 = vunpack.c.l.b16 %v36
  %v391 = vunpack.c.h.b16 %v36
  %v392 = vunpack.c.l.b16 %v37
  %v393 = vunpack.c.h.b16 %v37
  %v394 = vunpack.c.l.b16 %v38
  %v395 = vunpack.c.h.b16 %v38
  %v396 = vunpack.c.l.b16 %v39
  %v397 = vunpack.c.h.b16 %v39
  %v398 = vunpack.c.l.b16 %v40
  %v399 = vunpack.c.h.b16 %v40
  %v400 = vunpack.c.l.b16 %v41
  %v401 = vunpack.c.h.b16 %v41
  %v402 = vunpack.c.l.b16 %v42
  %v403 = vunpack.c.h.b16 %v42
  %v404 = vunpack.c.l.b16 %v43
  %v405 = vunpack.c.h.b16 %v43
  %v406 = vunpack.c.l.b16 %v44
  %v407 = vunpack.c.h.b16 %v44
  %v408 = vunpack.c.l.b16 %v45
  %v409 = vunpack.c.h.b16 %v45
  %v410 = vpack.c.b16 %v362, %v346
  %v411 = vpack.c.b16 %v363, %v347
  %v412 = vpack.c.b16 %v364, %v348
  %v413 = vpack.c.b16 %v365, %v349
  %v414 = vpack.c.b16 %v366, %v350
  %v415 = vpack.c.b16 %v367, %v351
  %v416 = vpack.c.b16 %v368, %v352
  %v417 = vpack.c.b16 %v369, %v353
  %v418 = vpack.c.b16 %v370, %v354
  %v419 = vpack.c.b16 %v371, %v355
  %v420 = vpack.c.b16 %v372, %v356
  %v421 = vpack.c.b16 %v373, %v357
  %v422 = vpack.c.b16 %v374, %v358
  %v423 = vpack.c.b16 %v375, %v359
  %v424 = vpack.c.b16 %v376, %v360
  %v425 = vpack.c.b16 %v377, %v361
  %v426 = vpack.c.b16 %v394, %v378
  %v427 = vpack.c.b16 %v395, %v379
  %v428 = vpack.c.b16 %v396, %v380
  %v429 = vpack.c.b16 %v397, %v381
  %v430 = vpack.c.b16 %v398, %v382
  %v431 = vpack.c.b16 %v399, %v383
  %v432 = vpack.c.b16 %v400, %v384
  %v433 = vpack.c.b16 %v401, %v385
  %v434 = vpack.c.b16 %v402, %v386
  %v435 = vpack.c.b16 %v403, %v387
  %v436 = vpack.c.b16 %v404, %v388
  %v437 = vpack.c.b16 %v405, %v389
  %v438 = vpack.c.b16 %v406, %v390
  %v439 = vpack.c.b16 %v407, %v391
  %v440 = vpack.c.b16 %v408, %v392
  %v441 = vpack.c.b16 %v409, %v393
  %v730 = vunpack.c.l.b16 %v46
  %v731 = vunpack.c.h.b16 %v46
  %v732 = vunpack.c.l.b16 %v47
  %v733 = vunpack.c.h.b16 %v47
  %v734 = vunpack.c.l.b16 %v48
  %v735 = vunpack.c.h.b16 %v48
  %v736 = vunpack.c.l.b16 %v49
  %v737 = vunpack.c.h.b16 %v49
  %v738 = vunpack.c.l.b16 %v50
  %v739 = vunpack.c.h.b16 %v50
  %v740 = vunpack.c.l.b16 %v51
  %v741 = vunpack.c.h.b16 %v51
  %v742 = vunpack.c.l.b16 %v52
  %v743 = vunpack.c.h.b16 %v52
  %v744 = vunpack.c.l.b16 %v53
  %v745 = vunpack.c.h.b16 %v53
  %v746 = vunpack.c.l.b16 %v54
  %v747 = vunpack.c.h.b16 %v54
  %v748 = vunpack.c.l.b16 %v55
  %v749 = vunpack.c.h.b16 %v55
  %v750 = vunpack.c.l.b16 %v56
  %v751 = vunpack.c.h.b16 %v56
  %v752 = vunpack.c.l.b16 %v57
  %v753 = vunpack.c.h.b16 %v57
  %v754 = vunpack.c.l.b16 %v58
  %v755 = vunpack.c.h.b16 %v58
  %v756 = vunpack.c.l.b16 %v59
  %v757 = vunpack.c.h.b16 %v59
  %v758 = vunpack.c.l.b16 %v60
  %v759 = vunpack.c.h.b16 %v60
  %v760 = vunpack.c.l.b16 %v61
  %v761 = vunpack.c.h.b16 %v61
  %v762 = vunpack.c.l.b16 %v62
  %v763 = vunpack.c.h.b16 %v62
  %v764 = vunpack.c.l.b16 %v63
  %v765 = vunpack.c.h.b16 %v63
  %v766 = vunpack.c.l.b16 %v64
  %v767 = vunpack.c.h.b16 %v64
  %v768 = vunpack.c.l.b16 %v65
  %v769 = vunpack.c.h.b16 %v65
  %v770 = vunpack.c.l.b16 %v66
  %v771 = vunpack.c.h.b16 %v66
  %v772 = vunpack.c.l.b16 %v67
  %v773 = vunpack.c.h.b16 %v67
  %v774 = vunpack.c.l.b16 %v68
  %v775 = vunpack.c.h.b16 %v68
  %v776 = vunpack.c.l.b16 %v69
  %v777 = vunpack.c.h.b16 %v69
  %v778 = vunpack.c.l.b16 %v70
  %v779 = vunpack.c.h.b16 %v70
  %v780 = vunpack.c.l.b16 %v71
  %v781 = vunpack.c.h.b16 %v71
  %v782 = vunpack.c.l.b16 %v72
  %v783 = vunpack.c.h.b16 %v72
  %v784 = vunpack.c.l.b16 %v73
  %v785 = vunpack.c.h.b16 %v73
  %v786 = vunpack.c.l.b16 %v74
  %v787 = vunpack.c.h.b16 %v74
  %v788 = vunpack.c.l.b16 %v75
  %v789 = vunpack.c.h.b16 %v75
  %v790 = vunpack.c.l.b16 %v76
  %v791 = vunpack.c.h.b16 %v76
  %v792 = vunpack.c.l.b16 %v77
  %v793 = vunpack.c.h.b16 %v77
  %v794 = vunpack.c.l.b16 %v78
  %v795 = vunpack.c.h.b16 %v78
  %v796 = vunpack.c.l.b16 %v79
  %v797 = vunpack.c.h.b16 %v79
  %v798 = vunpack.c.l.b16 %v80
  %v799 = vunpack.c.h.b16 %v80
  %v800 = vunpack.c.l.b16 %v81
  %v801 = vunpack.c.h.b16 %v81
  %v802 = vunpack.c.l.b16 %v82
  %v803 = vunpack.c.h.b16 %v82
  %v804 = vunpack.c.l.b16 %v83
  %v805 = vunpack.c.h.b16 %v83
  %v806 = vunpack.c.l.b16 %v84
  %v807 = vunpack.c.h.b16 %v84
  %v808 = vunpack.c.l.b16 %v85
  %v809 = vunpack.c.h.b16 %v85
  %v810 = vunpack.c.l.b16 %v86
  %v811 = vunpack.c.h.b16 %v86
  %v812 = vunpack.c.l.b16 %v87
  %v813 = vunpack.c.h.b16 %v87
  %v814 = vunpack.c.l.b16 %v88
  %v815 = vunpack.c.h.b16 %v88
  %v816 = vunpack.c.l.b16 %v89
  %v817 = vunpack.c.h.b16 %v89
  %v818 = vunpack.c.l.b16 %v90
  %v819 = vunpack.c.h.b16 %v90
  %v820 = vunpack.c.l.b16 %v91
  %v821 = vunpack.c.h.b16 %v91
  %v822 = vunpack.c.l.b16 %v92
  %v823 = vunpack.c.h.b16 %v92
  %v824 = vunpack.c.l.b16 %v93
  %v825 = vunpack.c.h.b16 %v93
  %v826 = vunpack.c.l.b16 %v94
  %v827 = vunpack.c.h.b16 %v94
  %v828 = vunpack.c.l.b16 %v95
  %v829 = vunpack.c.h.b16 %v95
  %v830 = vunpack.c.l.b16 %v96
  %v831 = vunpack.c.h.b16 %v96
  %v832 = vunpack.c.l.b16 %v97
  %v833 = vunpack.c.h.b16 %v97
  %v834 = vunpack.c.l.b16 %v98
  %v835 = vunpack.c.h.b16 %v98
  %v836 = vunpack.c.l.b16 %v99
  %v837 = vunpack.c.h.b16 %v99
  %v838 = vunpack.c.l.b16 %v100
  %v839 = vunpack.c.h.b16 %v100
  %v840 = vunpack.c.l.b16 %v101
  %v841 = vunpack.c.h.b16 %v101
  %v842 = vunpack.c.l.b16 %v102
  %v843 = vunpack.c.h.b16 %v102
  %v844 = vunpack.c.l.b16 %v103
  %v845 = vunpack.c.h.b16 %v103
  %v846 = vunpack.c.l.b16 %v104
  %v847 = vunpack.c.h.b16 %v104
  %v848 = vunpack.c.l.b16 %v105
  %v849 = vunpack.c.h.b16 %v105
  %v850 = vunpack.c.l.b16 %v106
  %v851 = vunpack.c.h.b16 %v106
  %v852 = vunpack.c.l.b16 %v107
  %v853 = vunpack.c.h.b16 %v107
  %v854 = vunpack.c.l.b16 %v108
  %v855 = vunpack.c.h.b16 %v108
  %v856 = vunpack.c.l.b16 %v109
  %v857 = vunpack.c.h.b16 %v109
  %v858 = vunpack.c.l.b16 %v110
  %v859 = vunpack.c.h.b16 %v110
  %v860 = vunpack.c.l.b16 %v111
  %v861 = vunpack.c.h.b16 %v111
  %v862 = vunpack.c.l.b16 %v112
  %v863 = vunpack.c.h.b16 %v112
  %v864 = vunpack.c.l.b16 %v113
  %v865 = vunpack.c.h.b16 %v113
  %v866 = vunpack.c.l.b16 %v114
  %v867 = vunpack.c.h.b16 %v114
  %v868 = vunpack.c.l.b16 %v115
  %v869 = vunpack.c.h.b16 %v115
  %v870 = vunpack.c.l.b16 %v116
  %v871 = vunpack.c.h.b16 %v116
  %v872 = vunpack.c.l.b16 %v117
  %v873 = vunpack.c.h.b16 %v117
  %v874 = vunpack.c.l.b16 %v118
  %v875 = vunpack.c.h.b16 %v118
  %v876 = vunpack.c.l.b16 %v119
  %v877 = vunpack.c.h.b16 %v119
  %v878 = vunpack.c.l.b16 %v120
  %v879 = vunpack.c.h.b16 %v120
  %v880 = vunpack.c.l.b16 %v121
  %v881 = vunpack.c.h.b16 %v121
  %v882 = vunpack.c.l.b16 %v122
  %v883 = vunpack.c.h.b16 %v122
  %v884 = vunpack.c.l.b16 %v123
  %v885 = vunpack.c.h.b16 %v123
  %v886 = vunpack.c.l.b16 %v124
  %v887 = vunpack.c.h.b16 %v124
  %v888 = vunpack.c.l.b16 %v125
  %v889 = vunpack.c.h.b16 %v125
  %v890 = vunpack.c.l.b16 %v126
  %v891 = vunpack.c.h.b16 %v126
  %v892 = vunpack.c.l.b16 %v127
  %v893 = vunpack.c.h.b16 %v127
  %v894 = vunpack.c.l.b16 %v128
  %v895 = vunpack.c.h.b16 %v128
  %v896 = vunpack.c.l.b16 %v129
  %v897 = vunpack.c.h.b16 %v129
  %v898 = vunpack.c.l.b16 %v130
  %v899 = vunpack.c.h.b16 %v130
  %v900 = vunpack.c.l.b16 %v131
  %v901 = vunpack.c.h.b16 %v131
  %v902 = vunpack.c.l.b16 %v132
  %v903 = vunpack.c.h.b16 %v132
  %v904 = vunpack.c.l.b16 %v133
  %v905 = vunpack.c.h.b16 %v133
  %v906 = vunpack.c.l.b16 %v134
  %v907 = vunpack.c.h.b16 %v134
  %v908 = vunpack.c.l.b16 %v135
  %v909 = vunpack.c.h.b16 %v135
  %v910 = vunpack.c.l.b16 %v136
  %v911 = vunpack.c.h.b16 %v136
  %v912 = vunpack.c.l.b16 %v137
  %v913 = vunpack.c.h.b16 %v137
  %v914 = vunpack.c.l.b16 %v138
  %v915 = vunpack.c.h.b16 %v138
  %v916 = vunpack.c.l.b16 %v139
  %v917 = vunpack.c.h.b16 %v139
  %v918 = vunpack.c.l.b16 %v140
  %v919 = vunpack.c.h.b16 %v140
  %v920 = vunpack.c.l.b16 %v141
  %v921 = vunpack.c.h.b16 %v141
  %v922 = vunpack.c.l.b16 %v142
  %v923 = vunpack.c.h.b16 %v142
  %v924 = vunpack.c.l.b16 %v143
  %v925 = vunpack.c.h.b16 %v143
  %v926 = vunpack.c.l.b16 %v144
  %v927 = vunpack.c.h.b16 %v144
  %v928 = vunpack.c.l.b16 %v145
  %v929 = vunpack.c.h.b16 %v145
  %v930 = vunpack.c.l.b16 %v146
  %v931 = vunpack.c.h.b16 %v146
  %v932 = vunpack.c.l.b16 %v147
  %v933 = vunpack.c.h.b16 %v147
  %v934 = vunpack.c.l.b16 %v148
  %v935 = vunpack.c.h.b16 %v148
  %v936 = vunpack.c.l.b16 %v149
  %v937 = vunpack.c.h.b16 %v149
  %v938 = vunpack.c.l.b16 %v150
  %v939 = vunpack.c.h.b16 %v150
  %v940 = vunpack.c.l.b16 %v151
  %v941 = vunpack.c.h.b16 %v151
  %v942 = vunpack.c.l.b16 %v152
  %v943 = vunpack.c.h.b16 %v152
  %v944 = vunpack.c.l.b16 %v153
  %v945 = vunpack.c.h.b16 %v153
  %v946 = vunpack.c.l.b16 %v154
  %v947 = vunpack.c.h.b16 %v154
  %v948 = vunpack.c.l.b16 %v155
  %v949 = vunpack.c.h.b16 %v155
  %v950 = vunpack.c.l.b16 %v156
  %v951 = vunpack.c.h.b16 %v156
  %v952 = vunpack.c.l.b16 %v157
  %v953 = vunpack.c.h.b16 %v157
  %v954 = vunpack.c.l.b16 %v158
  %v955 = vunpack.c.h.b16 %v158
  %v956 = vunpack.c.l.b16 %v159
  %v957 = vunpack.c.h.b16 %v159
  %v958 = vunpack.c.l.b16 %v160
  %v959 = vunpack.c.h.b16 %v160
  %v960 = vunpack.c.l.b16 %v161
  %v961 = vunpack.c.h.b16 %v161
  %v962 = vunpack.c.l.b16 %v162
  %v963 = vunpack.c.h.b16 %v162
  %v964 = vunpack.c.l.b16 %v163
  %v965 = vunpack.c.h.b16 %v163
  %v966 = vunpack.c.l.b16 %v164
  %v967 = vunpack.c.h.b16 %v164
  %v968 = vunpack.c.l.b16 %v165
  %v969 = vunpack.c.h.b16 %v165
  %v970 = vunpack.c.l.b16 %v166
  %v971 = vunpack.c.h.b16 %v166
  %v972 = vunpack.c.l.b16 %v167
  %v973 = vunpack.c.h.b16 %v167
  %v974 = vunpack.c.l.b16 %v168
  %v975 = vunpack.c.h.b16 %v168
  %v976 = vunpack.c.l.b16 %v169
  %v977 = vunpack.c.h.b16 %v169
  %v978 = vunpack.c.l.b16 %v170
  %v979 = vunpack.c.h.b16 %v170
  %v980 = vunpack.c.l.b16 %v171
  %v981 = vunpack.c.h.b16 %v171
  %v982 = vunpack.c.l.b16 %v172
  %v983 = vunpack.c.h.b16 %v172
  %v984 = vunpack.c.l.b16 %v173
  %v985 = vunpack.c.h.b16 %v173
  %v986 = vunpack.c.l.b16 %v174
  %v987 = vunpack.c.h.b16 %v174
  %v988 = vunpack.c.l.b16 %v175
  %v989 = vunpack.c.h.b16 %v175
  %v990 = vunpack.c.l.b16 %v176
  %v991 = vunpack.c.h.b16 %v176
  %v992 = vunpack.c.l.b16 %v177
  %v993 = vunpack.c.h.b16 %v177
  %v994 = vunpack.c.l.b16 %v178
  %v995 = vunpack.c.h.b16 %v178
  %v996 = vunpack.c.l.b16 %v179
  %v997 = vunpack.c.h.b16 %v179
  %v998 = vunpack.c.l.b16 %v180
  %v999 = vunpack.c.h.b16 %v180
  %v1000 = vunpack.c.l.b16 %v181
  %v1001 = vunpack.c.h.b16 %v181
  %v1002 = vunpack.c.l.b16 %v182
  %v1003 = vunpack.c.h.b16 %v182
  %v1004 = vunpack.c.l.b16 %v183
  %v1005 = vunpack.c.h.b16 %v183
  %v1006 = vunpack.c.l.b16 %v184
  %v1007 = vunpack.c.h.b16 %v184
  %v1008 = vunpack.c.l.b16 %v185
  %v1009 = vunpack.c.h.b16 %v185
  %v1010 = vunpack.c.l.b16 %v186
  %v1011 = vunpack.c.h.b16 %v186
  %v1012 = vunpack.c.l.b16 %v187
  %v1013 = vunpack.c.h.b16 %v187
  %v1014 = vunpack.c.l.b16 %v188
  %v1015 = vunpack.c.h.b16 %v188
  %v1016 = vunpack.c.l.b16 %v189
  %v1017 = vunpack.c.h.b16 %v189
  %v1018 = vunpack.c.l.b16 %v190
  %v1019 = vunpack.c.h.b16 %v190
  %v1020 = vunpack.c.l.b16 %v191
  %v1021 = vunpack.c.h.b16 %v191
  %v1022 = vunpack.c.l.b16 %v192
  %v1023 = vunpack.c.h.b16 %v192
  %v1024 = vunpack.c.l.b16 %v193
  %v1025 = vunpack.c.h.b16 %v193
  %v1026 = vunpack.c.l.b16 %v194
  %v1027 = vunpack.c.h.b16 %v194
  %v1028 = vunpack.c.l.b16 %v195
  %v1029 = vunpack.c.h.b16 %v195
  %v1030 = vunpack.c.l.b16 %v196
  %v1031 = vunpack.c.h.b16 %v196
  %v1032 = vunpack.c.l.b16 %v197
  %v1033 = vunpack.c.h.b16 %v197
  %v1034 = vunpack.c.l.b16 %v198
  %v1035 = vunpack.c.h.b16 %v198
  %v1036 = vunpack.c.l.b16 %v199
  %v1037 = vunpack.c.h.b16 %v199
  %v1038 = vunpack.c.l.b16 %v200
  %v1039 = vunpack.c.h.b16 %v200
  %v1040 = vunpack.c.l.b16 %v201
  %v1041 = vunpack.c.h.b16 %v201
  %v1042 = vunpack.c.l.b16 %v202
  %v1043 = vunpack.c.h.b16 %v202
  %v1044 = vunpack.c.l.b16 %v203
  %v1045 = vunpack.c.h.b16 %v203
  %v1046 = vunpack.c.l.b16 %v204
  %v1047 = vunpack.c.h.b16 %v204
  %v1048 = vunpack.c.l.b16 %v205
  %v1049 = vunpack.c.h.b16 %v205
  %v1050 = vunpack.c.l.b16 %v206
  %v1051 = vunpack.c.h.b16 %v206
  %v1052 = vunpack.c.l.b16 %v207
  %v1053 = vunpack.c.h.b16 %v207
  %v1054 = vunpack.c.l.b16 %v208
  %v1055 = vunpack.c.h.b16 %v208
  %v1056 = vunpack.c.l.b16 %v209
  %v1057 = vunpack.c.h.b16 %v209
  %v1058 = vunpack.c.l.b16 %v210
  %v1059 = vunpack.c.h.b16 %v210
  %v1060 = vunpack.c.l.b16 %v211
  %v1061 = vunpack.c.h.b16 %v211
  %v1062 = vunpack.c.l.b16 %v212
  %v1063 = vunpack.c.h.b16 %v212
  %v1064 = vunpack.c.l.b16 %v213
  %v1065 = vunpack.c.h.b16 %v213
  %v1066 = vunpack.c.l.b16 %v214
  %v1067 = vunpack.c.h.b16 %v214
  %v1068 = vunpack.c.l.b16 %v215
  %v1069 = vunpack.c.h.b16 %v215
  %v1070 = vunpack.c.l.b16 %v216
  %v1071 = vunpack.c.h.b16 %v216
  %v1072 = vunpack.c.l.b16 %v217
  %v1073 = vunpack.c.h.b16 %v217
  %v1074 = vunpack.c.l.b16 %v218
  %v1075 = vunpack.c.h.b16 %v218
  %v1076 = vunpack.c.l.b16 %v219
  %v1077 = vunpack.c.h.b16 %v219
  %v1078 = vunpack.c.l.b16 %v220
  %v1079 = vunpack.c.h.b16 %v220
  %v1080 = vunpack.c.l.b16 %v221
  %v1081 = vunpack.c.h.b16 %v221
  %v1082 = vunpack.c.l.b16 %v222
  %v1083 = vunpack.c.h.b16 %v222
  %v1084 = vunpack.c.l.b16 %v223
  %v1085 = vunpack.c.h.b16 %v223
  %v1086 = vunpack.c.l.b16 %v224
  %v1087 = vunpack.c.h.b16 %v224
  %v1088 = vunpack.c.l.b16 %v225
  %v1089 = vunpack.c.h.b16 %v225
  %v1090 = vunpack.c.l.b16 %v226
  %v1091 = vunpack.c.h.b16 %v226
  %v1092 = vunpack.c.l.b16 %v227
  %v1093 = vunpack.c.h.b16 %v227
  %v1094 = vunpack.c.l.b16 %v228
  %v1095 = vunpack.c.h.b16 %v228
  %v1096 = vunpack.c.l.b16 %v229
  %v1097 = vunpack.c.h.b16 %v229
  %v1098 = vunpack.c.l.b16 %v230
  %v1099 = vunpack.c.h.b16 %v230
  %v1100 = vunpack.c.l.b16 %v231
  %v1101 = vunpack.c.h.b16 %v231
  %v1102 = vunpack.c.l.b16 %v232
  %v1103 = vunpack.c.h.b16 %v232
  %v1104 = vunpack.c.l.b16 %v233
  %v1105 = vunpack.c.h.b16 %v233
  %v1106 = vunpack.c.l.b16 %v234
  %v1107 = vunpack.c.h.b16 %v234
  %v1108 = vunpack.c.l.b16 %v235
  %v1109 = vunpack.c.h.b16 %v235
  %v1110 = vunpack.c.l.b16 %v236
  %v1111 = vunpack.c.h.b16 %v236
  %v1112 = vunpack.c.l.b16 %v237
  %v1113 = vunpack.c.h.b16 %v237
  %v1114 = vunpack.c.l.b16 %v238
  %v1115 = vunpack.c.h.b16 %v238
  %v1116 = vunpack.c.l.b16 %v239
  %v1117 = vunpack.c.h.b16 %v239
  %v1118 = vunpack.c.l.b16 %v240
  %v1119 = vunpack.c.h.b16 %v240
  %v1120 = vunpack.c.l.b16 %v241
  %v1121 = vunpack.c.h.b16 %v241
  %v1122 = vunpack.c.l.b16 %v242
  %v1123 = vunpack.c.h.b16 %v242
  %v1124 = vunpack.c.l.b16 %v243
  %v1125 = vunpack.c.h.b16 %v243
  %v1126 = vunpack.c.l.b16 %v244
  %v1127 = vunpack.c.h.b16 %v244
  %v1128 = vunpack.c.l.b16 %v245
  %v1129 = vunpack.c.h.b16 %v245
  %v1130 = vunpack.c.l.b16 %v246
  %v1131 = vunpack.c.h.b16 %v246
  %v1132 = vunpack.c.l.b16 %v247
  %v1133 = vunpack.c.h.b16 %v247
  %v1134 = vunpack.c.l.b16 %v248
  %v1135 = vunpack.c.h.b16 %v248
  %v1136 = vunpack.c.l.b16 %v249
  %v1137 = vunpack.c.h.b16 %v249
  %v1138 = vunpack.c.l.b16 %v250
  %v1139 = vunpack.c.h.b16 %v250
  %v1140 = vunpack.c.l.b16 %v251
  %v1141 = vunpack.c.h.b16 %v251
  %v1142 = vunpack.c.l.b16 %v252
  %v1143 = vunpack.c.h.b16 %v252
  %v1144 = vunpack.c.l.b16 %v253
  %v1145 = vunpack.c.h.b16 %v253
  %v1146 = vunpack.c.l.b16 %v254
  %v1147 = vunpack.c.h.b16 %v254
  %v1148 = vunpack.c.l.b16 %v255
  %v1149 = vunpack.c.h.b16 %v255
  %v1150 = vunpack.c.l.b16 %v256
  %v1151 = vunpack.c.h.b16 %v256
  %v1152 = vunpack.c.l.b16 %v257
  %v1153 = vunpack.c.h.b16 %v257
  %v1154 = vunpack.c.l.b16 %v258
  %v1155 = vunpack.c.h.b16 %v258
  %v1156 = vunpack.c.l.b16 %v259
  %v1157 = vunpack.c.h.b16 %v259
  %v1158 = vunpack.c.l.b16 %v260
  %v1159 = vunpack.c.h.b16 %v260
  %v1160 = vunpack.c.l.b16 %v261
  %v1161 = vunpack.c.h.b16 %v261
  %v1162 = vunpack.c.l.b16 %v262
  %v1163 = vunpack.c.h.b16 %v262
  %v1164 = vunpack.c.l.b16 %v263
  %v1165 = vunpack.c.h.b16 %v263
  %v1166 = vunpack.c.l.b16 %v264
  %v1167 = vunpack.c.h.b16 %v264
  %v1168 = vunpack.c.l.b16 %v265
  %v1169 = vunpack.c.h.b16 %v265
  %v1170 = vunpack.c.l.b16 %v266
  %v1171 = vunpack.c.h.b16 %v266
  %v1172 = vunpack.c.l.b16 %v267
  %v1173 = vunpack.c.h.b16 %v267
  %v1174 = vunpack.c.l.b16 %v268
  %v1175 = vunpack.c.h.b16 %v268
  %v1176 = vunpack.c.l.b16 %v269
  %v1177 = vunpack.c.h.b16 %v269
  %v1178 = vunpack.c.l.b16 %v270
  %v1179 = vunpack.c.h.b16 %v270
  %v1180 = vunpack.c.l.b16 %v271
  %v1181 = vunpack.c.h.b16 %v271
  %v1182 = vunpack.c.l.b16 %v272
  %v1183 = vunpack.c.h.b16 %v272
  %v1184 = vunpack.c.l.b16 %v273
  %v1185 = vunpack.c.h.b16 %v273
  %v1186 = vunpack.c.l.b16 %v274
  %v1187 = vunpack.c.h.b16 %v274
  %v1188 = vunpack.c.l.b16 %v275
  %v1189 = vunpack.c.h.b16 %v275
  %v1190 = vunpack.c.l.b16 %v276
  %v1191 = vunpack.c.h.b16 %v276
  %v1192 = vunpack.c.l.b16 %v277
  %v1193 = vunpack.c.h.b16 %v277
  %v1194 = vunpack.c.l.b16 %v278
  %v1195 = vunpack.c.h.b16 %v278
  %v1196 = vunpack.c.l.b16 %v279
  %v1197 = vunpack.c.h.b16 %v279
  %v1198 = vunpack.c.l.b16 %v280
  %v1199 = vunpack.c.h.b16 %v280
  %v1200 = vunpack.c.l.b16 %v281
  %v1201 = vunpack.c.h.b16 %v281
  %v1202 = vunpack.c.l.b16 %v282
  %v1203 = vunpack.c.h.b16 %v282
  %v1204 = vunpack.c.l.b16 %v283
  %v1205 = vunpack.c.h.b16 %v283
  %v1206 = vunpack.c.l.b16 %v284
  %v1207 = vunpack.c.h.b16 %v284
  %v1208 = vunpack.c.l.b16 %v285
  %v1209 = vunpack.c.h.b16 %v285
  %v1210 = vunpack.c.l.b16 %v286
  %v1211 = vunpack.c.h.b16 %v286
  %v1212 = vunpack.c.l.b16 %v287
  %v1213 = vunpack.c.h.b16 %v287
  %v1214 = vunpack.c.l.b16 %v288
  %v1215 = vunpack.c.h.b16 %v288
  %v1216 = vunpack.c.l.b16 %v289
  %v1217 = vunpack.c.h.b16 %v289
  %v1218 = vunpack.c.l.b16 %v290
  %v1219 = vunpack.c.h.b16 %v290
  %v1220 = vunpack.c.l.b16 %v291
  %v1221 = vunpack.c.h.b16 %v291
  %v1222 = vunpack.c.l.b16 %v292
  %v1223 = vunpack.c.h.b16 %v292
  %v1224 = vunpack.c.l.b16 %v293
  %v1225 = vunpack.c.h.b16 %v293
  %v1226 = vunpack.c.l.b16 %v294
  %v1227 = vunpack.c.h.b16 %v294
  %v1228 = vunpack.c.l.b16 %v295
  %v1229 = vunpack.c.h.b16 %v295
  %v1230 = vunpack.c.l.b16 %v296
  %v1231 = vunpack.c.h.b16 %v296
  %v1232 = vunpack.c.l.b16 %v297
  %v1233 = vunpack.c.h.b16 %v297
  %v1234 = vunpack.c.l.b16 %v298
  %v1235 = vunpack.c.h.b16 %v298
  %v1236 = vunpack.c.l.b16 %v299
  %v1237 = vunpack.c.h.b16 %v299
  %v1238 = vunpack.c.l.b16 %v300
  %v1239 = vunpack.c.h.b16 %v300
  %v1240 = vunpack.c.l.b16 %v301
  %v1241 = vunpack.c.h.b16 %v301
  %v1242 = vpack.c.b16 %v732, %v730
  %v1243 = vpack.c.b16 %v733, %v731
  %v1244 = vpack.c.b16 %v736, %v734
  %v1245 = vpack.c.b16 %v737, %v735
  %v1246 = vpack.c.b16 %v740, %v738
  %v1247 = vpack.c.b16 %v741, %v739
  %v1248 = vpack.c.b16 %v744, %v742
  %v1249 = vpack.c.b16 %v745, %v743
  %v1250 = vpack.c.b16 %v748, %v746
  %v1251 = vpack.c.b16 %v749, %v747
  %v1252 = vpack.c.b16 %v752, %v750
  %v1253 = vpack.c.b16 %v753, %v751
  %v1254 = vpack.c.b16 %v756, %v754
  %v1255 = vpack.c.b16 %v757, %v755
  %v1256 = vpack.c.b16 %v760, %v758
  %v1257 = vpack.c.b16 %v761, %v759
  %v1258 = vpack.c.b16 %v764, %v762
  %v1259 = vpack.c.b16 %v765, %v763
  %v1260 = vpack.c.b16 %v768, %v766
  %v1261 = vpack.c.b16 %v769, %v767
  %v1262 = vpack.c.b16 %v772, %v770
  %v1263 = vpack.c.b16 %v773, %v771
  %v1264 = vpack.c.b16 %v776, %v774
  %v1265 = vpack.c.b16 %v777, %v775
  %v1266 = vpack.c.b16 %v780, %v778
  %v1267 = vpack.c.b16 %v781, %v779
  %v1268 = vpack.c.b16 %v784, %v782
  %v1269 = vpack.c.b16 %v785, %v783
  %v1270 = vpack.c.b16 %v788, %v786
  %v1271 = vpack.c.b16 %v789, %v787
  %v1272 = vpack.c.b16 %v792, %v790
  %v1273 = vpack.c.b16 %v793, %v791
  %v1274 = vpack.c.b16 %v796, %v794
  %v1275 = vpack.c.b16 %v797, %v795
  %v1276 = vpack.c.b16 %v800, %v798
  %v1277 = vpack.c.b16 %v801, %v799
  %v1278 = vpack.c.b16 %v804, %v802
  %v1279 = vpack.c.b16 %v805, %v803
  %v1280 = vpack.c.b16 %v808, %v806
  %v1281 = vpack.c.b16 %v809, %v807
  %v1282 = vpack.c.b16 %v812, %v810
  %v1283 = vpack.c.b16 %v813, %v811
  %v1284 = vpack.c.b16 %v816, %v814
  %v1285 = vpack.c.b16 %v817, %v815
  %v1286 = vpack.c.b16 %v820, %v818
  %v1287 = vpack.c.b16 %v821, %v819
  %v1288 = vpack.c.b16 %v824, %v822
  %v1289 = vpack.c.b16 %v825, %v823
  %v1290 = vpack.c.b16 %v828, %v826
  %v1291 = vpack.c.b16 %v829, %v827
  %v1292 = vpack.c.b16 %v832, %v830
  %v1293 = vpack.c.b16 %v833, %v831
  %v1294 = vpack.c.b16 %v836, %v834
  %v1295 = vpack.c.b16 %v837, %v835
  %v1296 = vpack.c.b16 %v840, %v838
  %v1297 = vpack.c.b16 %v841, %v839
  %v1298 = vpack.c.b16 %v844, %v842
  %v1299 = vpack.c.b16 %v845, %v843
  %v1300 = vpack.c.b16 %v848, %v846
  %v1301 = vpack.c.b16 %v849, %v847
  %v1302 = vpack.c.b16 %v852, %v850
  %v1303 = vpack.c.b16 %v853, %v851
  %v1304 = vpack.c.b16 %v856, %v854
  %v1305 = vpack.c.b16 %v857, %v855
  %v1306 = vpack.c.b16 %v860, %v858
  %v1307 = vpack.c.b16 %v861, %v859
  %v1308 = vpack.c.b16 %v864, %v862
  %v1309 = vpack.c.b16 %v865, %v863
  %v1310 = vpack.c.b16 %v868, %v866
  %v1311 = vpack.c.b16 %v869, %v867
  %v1312 = vpack.c.b16 %v872, %v870
  %v1313 = vpack.c.b16 %v873, %v871
  %v1314 = vpack.c.b16 %v876, %v874
  %v1315 = vpack.c.b16 %v877, %v875
  %v1316 = vpack.c.b16 %v880, %v878
  %v1317 = vpack.c.b16 %v881, %v879
  %v1318 = vpack.c.b16 %v884, %v882
  %v1319 = vpack.c.b16 %v885, %v883
  %v1320 = vpack.c.b16 %v888, %v886
  %v1321 = vpack.c.b16 %v889, %v887
  %v1322 = vpack.c.b16 %v892, %v890
  %v1323 = vpack.c.b16 %v893, %v891
  %v1324 = vpack.c.b16 %v896, %v894
  %v1325 = vpack.c.b16 %v897, %v895
  %v1326 = vpack.c.b16 %v900, %v898
  %v1327 = vpack.c.b16 %v901, %v899
  %v1328 = vpack.c.b16 %v904, %v902
  %v1329 = vpack.c.b16 %v905, %v903
  %v1330 = vpack.c.b16 %v908, %v906
  %v1331 = vpack.c.b16 %v909, %v907
  %v1332 = vpack.c.b16 %v912, %v910
  %v1333 = vpack.c.b16 %v913, %v911
  %v1334 = vpack.c.b16 %v916, %v914
  %v1335 = vpack.c.b16 %v917, %v915
  %v1336 = vpack.c.b16 %v920, %v918
  %v1337 = vpack.c.b16 %v921, %v919
  %v1338 = vpack.c.b16 %v924, %v922
  %v1339 = vpack.c.b16 %v925, %v923
  %v1340 = vpack.c.b16 %v928, %v926
  %v1341 = vpack.c.b16 %v929, %v927
  %v1342 = vpack.c.b16 %v932, %v930
  %v1343 = vpack.c.b16 %v933, %v931
  %v1344 = vpack.c.b16 %v936, %v934
  %v1345 = vpack.c.b16 %v937, %v935
  %v1346 = vpack.c.b16 %v940, %v938
  %v1347 = vpack.c.b16 %v941, %v939
  %v1348 = vpack.c.b16 %v944, %v942
  %v1349 = vpack.c.b16 %v945, %v943
  %v1350 = vpack.c.b16 %v948, %v946
  %v1351 = vpack.c.b16 %v949, %v947
  %v1352 = vpack.c.b16 %v952, %v950
  %v1353 = vpack.c.b16 %v953, %v951
  %v1354 = vpack.c.b16 %v956, %v954
  %v1355 = vpack.c.b16 %v957, %v955
  %v1356 = vpack.c.b16 %v960, %v958
  %v1357 = vpack.c.b16 %v961, %v959
  %v1358 = vpack.c.b16 %v964, %v962
  %v1359 = vpack.c.b16 %v965, %v963
  %v1360 = vpack.c.b16 %v968, %v966
  %v1361 = vpack.c.b16 %v969, %v967
  %v1362 = vpack.c.b16 %v972, %v970
  %v1363 = vpack.c.b16 %v973, %v971
  %v1364 = vpack.c.b16 %v976, %v974
  %v1365 = vpack.c.b16 %v977, %v975
  %v1366 = vpack.c.b16 %v980, %v978
  %v1367 = vpack.c.b16 %v981, %v979
  %v1368 = vpack.c.b16 %v984, %v982
  %v1369 = vpack.c.b16 %v985, %v983
  %v1370 = vpack.c.b16 %v988, %v986
  %v1371 = vpack.c.b16 %v989, %v987
  %v1372 = vpack.c.b16 %v992, %v990
  %v1373 = vpack.c.b16 %v993, %v991
  %v1374 = vpack.c.b16 %v996, %v994
  %v1375 = vpack.c.b16 %v997, %v995
  %v1376 = vpack.c.b16 %v1000, %v998
  %v1377 = vpack.c.b16 %v1001, %v999
  %v1378 = vpack.c.b16 %v1004, %v1002
  %v1379 = vpack.c.b16 %v1005, %v1003
  %v1380 = vpack.c.b16 %v1008, %v1006
  %v1381 = vpack.c.b16 %v1009, %v1007
  %v1382 = vpack.c.b16 %v1012, %v1010
  %v1383 = vpack.c.b16 %v1013, %v1011
  %v1384 = vpack.c.b16 %v1016, %v1014
  %v1385 = vpack.c.b16 %v1017, %v1015
  %v1386 = vpack.c.b16 %v1020, %v1018
  %v1387 = vpack.c.b16 %v1021, %v1019
  %v1388 = vpack.c.b16 %v1024, %v1022
  %v1389 = vpack.c.b16 %v1025, %v1023
  %v1390 = vpack.c.b16 %v1028, %v1026
  %v1391 = vpack.c.b16 %v1029, %v1027
  %v1392 = vpack.c.b16 %v1032, %v1030
  %v1393 = vpack.c.b16 %v1033, %v1031
  %v1394 = vpack.c.b16 %v1036, %v1034
  %v1395 = vpack.c.b16 %v1037, %v1035
  %v1396 = vpack.c.b16 %v1040, %v1038
  %v1397 = vpack.c.b16 %v1041, %v1039
  %v1398 = vpack.c.b16 %v1044, %v1042
  %v1399 = vpack.c.b16 %v1045, %v1043
  %v1400 = vpack.c.b16 %v1048, %v1046
  %v1401 = vpack.c.b16 %v1049, %v1047
  %v1402 = vpack.c.b16 %v1052, %v1050
  %v1403 = vpack.c.b16 %v1053, %v1051
  %v1404 = vpack.c.b16 %v1056, %v1054
  %v1405 = vpack.c.b16 %v1057, %v1055
  %v1406 = vpack.c.b16 %v1060, %v1058
  %v1407 = vpack.c.b16 %v1061, %v1059
  %v1408 = vpack.c.b16 %v1064, %v1062
  %v1409 = vpack.c.b16 %v1065, %v1063
  %v1410 = vpack.c.b16 %v1068, %v1066
  %v1411 = vpack.c.b16 %v1069, %v1067
  %v1412 = vpack.c.b16 %v1072, %v1070
  %v1413 = vpack.c.b16 %v1073, %v1071
  %v1414 = vpack.c.b16 %v1076, %v1074
  %v1415 = vpack.c.b16 %v1077, %v1075
  %v1416 = vpack.c.b16 %v1080, %v1078
  %v1417 = vpack.c.b16 %v1081, %v1079
  %v1418 = vpack.c.b16 %v1084, %v1082
  %v1419 = vpack.c.b16 %v1085, %v1083
  %v1420 = vpack.c.b16 %v1088, %v1086
  %v1421 = vpack.c.b16 %v1089, %v1087
  %v1422 = vpack.c.b16 %v1092, %v1090
  %v1423 = vpack.c.b16 %v1093, %v1091
  %v1424 = vpack.c.b16 %v1096, %v1094
  %v1425 = vpack.c.b16 %v1097, %v1095
  %v1426 = vpack.c.b16 %v1100, %v1098
  %v1427 = vpack.c.b16 %v1101, %v1099
  %v1428 = vpack.c.b16 %v1104, %v1102
  %v1429 = vpack.c.b16 %v1105, %v1103
  %v1430 = vpack.c.b16 %v1108, %v1106
  %v1431 = vpack.c.b16 %v1109, %v1107
  %v1432 = vpack.c.b16 %v1112, %v1110
  %v1433 = vpack.c.b16 %v1113, %v1111
  %v1434 = vpack.c.b16 %v1116, %v1114
  %v1435 = vpack.c.b16 %v1117, %v1115
  %v1436 = vpack.c.b16 %v1120, %v1118
  %v1437 = vpack.c.b16 %v1121, %v1119
  %v1438 = vpack.c.b16 %v1124, %v1122
  %v1439 = vpack.c.b16 %v1125, %v1123
  %v1440 = vpack.c.b16 %v1128, %v1126
  %v1441 = vpack.c.b16 %v1129, %v1127
  %v1442 = vpack.c.b16 %v1132, %v1130
  %v1443 = vpack.c.b16 %v1133, %v1131
  %v1444 = vpack.c.b16 %v1136, %v1134
  %v1445 = vpack.c.b16 %v1137, %v1135
  %v1446 = vpack.c.b16 %v1140, %v1138
  %v1447 = vpack.c.b16 %v1141, %v1139
  %v1448 = vpack.c.b16 %v1144, %v1142
  %v1449 = vpack.c.b16 %v1145, %v1143
  %v1450 = vpack.c.b16 %v1148, %v1146
  %v1451 = vpack.c.b16 %v1149, %v1147
  %v1452 = vpack.c.b16 %v1152, %v1150
  %v1453 = vpack.c.b16 %v1153, %v1151
  %v1454 = vpack.c.b16 %v1156, %v1154
  %v1455 = vpack.c.b16 %v1157, %v1155
  %v1456 = vpack.c.b16 %v1160, %v1158
  %v1457 = vpack.c.b16 %v1161, %v1159
  %v1458 = vpack.c.b16 %v1164, %v1162
  %v1459 = vpack.c.b16 %v1165, %v1163
  %v1460 = vpack.c.b16 %v1168, %v1166
  %v1461 = vpack.c.b16 %v1169, %v1167
  %v1462 = vpack.c.b16 %v1172, %v1170
  %v1463 = vpack.c.b16 %v1173, %v1171
  %v1464 = vpack.c.b16 %v1176, %v1174
  %v1465 = vpack.c.b16 %v1177, %v1175
  %v1466 = vpack.c.b16 %v1180, %v1178
  %v1467 = vpack.c.b16 %v1181, %v1179
  %v1468 = vpack.c.b16 %v1184, %v1182
  %v1469 = vpack.c.b16 %v1185, %v1183
  %v1470 = vpack.c.b16 %v1188, %v1186
  %v1471 = vpack.c.b16 %v1189, %v1187
  %v1472 = vpack.c.b16 %v1192, %v1190
  %v1473 = vpack.c.b16 %v1193, %v1191
  %v1474 = vpack.c.b16 %v1196, %v1194
  %v1475 = vpack.c.b16 %v1197, %v1195
  %v1476 = vpack.c.b16 %v1200, %v1198
  %v1477 = vpack.c.b16 %v1201, %v1199
  %v1478 = vpack.c.b16 %v1204, %v1202
  %v1479 = vpack.c.b16 %v1205, %v1203
  %v1480 = vpack.c.b16 %v1208, %v1206
  %v1481 = vpack.c.b16 %v1209, %v1207
  %v1482 = vpack.c.b16 %v1212, %v1210
  %v1483 = vpack.c.b16 %v1213, %v1211
  %v1484 = vpack.c.b16 %v1216, %v1214
  %v1485 = vpack.c.b16 %v1217, %v1215
  %v1486 = vpack.c.b16 %v1220, %v1218
  %v1487 = vpack.c.b16 %v1221, %v1219
  %v1488 = vpack.c.b16 %v1224, %v1222
  %v1489 = vpack.c.b16 %v1225, %v1223
  %v1490 = vpack.c.b16 %v1228, %v1226
  %v1491 = vpack.c.b16 %v1229, %v1227
  %v1492 = vpack.c.b16 %v1232, %v1230
  %v1493 = vpack.c.b16 %v1233, %v1231
  %v1494 = vpack.c.b16 %v1236, %v1234
  %v1495 = vpack.c.b16 %v1237, %v1235
  %v1496 = vpack.c.b16 %v1240, %v1238
  %v1497 = vpack.c.b16 %v1241, %v1239
  %1754 = vmatprep.subr.bf16.mxu0 %v1243
  %1755 = vmatpush1.bf16.msra.mxu0 %v1242
  %1756 = vmatprep.subr.bf16.mxu0 %v1245
  %1757 = vmatpush1.bf16.msra.mxu0 %v1244
  %1758 = vmatprep.subr.bf16.mxu0 %v1247
  %1759 = vmatpush1.bf16.msra.mxu0 %v1246
  %1760 = vmatprep.subr.bf16.mxu0 %v1249
  %1761 = vmatpush1.bf16.msra.mxu0 %v1248
  %1762 = vmatprep.subr.bf16.mxu0 %v1251
  %1763 = vmatpush1.bf16.msra.mxu0 %v1250
  %1764 = vmatprep.subr.bf16.mxu0 %v1253
  %1765 = vmatpush1.bf16.msra.mxu0 %v1252
  %1766 = vmatprep.subr.bf16.mxu0 %v1255
  %1767 = vmatpush1.bf16.msra.mxu0 %v1254
  %1768 = vmatprep.subr.bf16.mxu0 %v1257
  %1769 = vmatpush1.bf16.msra.mxu0 %v1256
  %1770 = vmatprep.subr.bf16.mxu0 %v1259
  %1771 = vmatpush1.bf16.msra.mxu0 %v1258
  %1772 = vmatprep.subr.bf16.mxu0 %v1261
  %1773 = vmatpush1.bf16.msra.mxu0 %v1260
  %1774 = vmatprep.subr.bf16.mxu0 %v1263
  %1775 = vmatpush1.bf16.msra.mxu0 %v1262
  %1776 = vmatprep.subr.bf16.mxu0 %v1265
  %1777 = vmatpush1.bf16.msra.mxu0 %v1264
  %1778 = vmatprep.subr.bf16.mxu0 %v1267
  %1779 = vmatpush1.bf16.msra.mxu0 %v1266
  %1780 = vmatprep.subr.bf16.mxu0 %v1269
  %1781 = vmatpush1.bf16.msra.mxu0 %v1268
  %1782 = vmatprep.subr.bf16.mxu0 %v1271
  %1783 = vmatpush1.bf16.msra.mxu0 %v1270
  %1784 = vmatprep.subr.bf16.mxu0 %v1273
  %1785 = vmatpush1.bf16.msra.mxu0 %v1272
  %1786 = vmatprep.mubr.bf16.mxu0 %v411
  %1787 = vmatmul.mubr.bf16.gmra.mrb[0].mxu0 %v410
  %v1788 = vpop.f32.mrb[0].mxu0
  %v1789 = vadd.f32 %v307, %v1788
  %v1790 = vpop.f32.mrb[0].mxu0
  %v1791 = vadd.f32 %v311, %v1790
  %v1792 = vpop.f32.mrb[0].mxu0
  %v1793 = vadd.f32 %v307, %v1792
  %v1794 = vpop.f32.mrb[0].mxu0
  %v1795 = vadd.f32 %v311, %v1794
  %1796 = vmatprep.mubr.bf16.mxu0 %v427
  %1797 = vmatmul.mubr.bf16.gmra.mrb[0].mxu0 %v426
  %v1798 = vpop.f32.mrb[0].mxu0
  %v1799 = vadd.f32 %v307, %v1798
  %v1800 = vpop.f32.mrb[0].mxu0
  %v1801 = vadd.f32 %v311, %v1800
  %v1802 = vpop.f32.mrb[0].mxu0
  %v1803 = vadd.f32 %v307, %v1802
  %v1804 = vpop.f32.mrb[0].mxu0
  %v1805 = vadd.f32 %v311, %v1804
  %1806 = vdwg.mxu0
  %1807 = vmatprep.subr.bf16.mxu0 %v1275
  %1808 = vmatpush1.bf16.msra.mxu0 %v1274
  %1809 = vmatprep.subr.bf16.mxu0 %v1277
  %1810 = vmatpush1.bf16.msra.mxu0 %v1276
  %1811 = vmatprep.subr.bf16.mxu0 %v1279
  %1812 = vmatpush1.bf16.msra.mxu0 %v1278
  %1813 = vmatprep.subr.bf16.mxu0 %v1281
  %1814 = vmatpush1.bf16.msra.mxu0 %v1280
  %1815 = vmatprep.subr.bf16.mxu0 %v1283
  %1816 = vmatpush1.bf16.msra.mxu0 %v1282
  %1817 = vmatprep.subr.bf16.mxu0 %v1285
  %1818 = vmatpush1.bf16.msra.mxu0 %v1284
  %1819 = vmatprep.subr.bf16.mxu0 %v1287
  %1820 = vmatpush1.bf16.msra.mxu0 %v1286
  %1821 = vmatprep.subr.bf16.mxu0 %v1289
  %1822 = vmatpush1.bf16.msra.mxu0 %v1288
  %1823 = vmatprep.subr.bf16.mxu0 %v1291
  %1824 = vmatpush1.bf16.msra.mxu0 %v1290
  %1825 = vmatprep.subr.bf16.mxu0 %v1293
  %1826 = vmatpush1.bf16.msra.mxu0 %v1292
  %1827 = vmatprep.subr.bf16.mxu0 %v1295
  %1828 = vmatpush1.bf16.msra.mxu0 %v1294
  %1829 = vmatprep.subr.bf16.mxu0 %v1297
  %1830 = vmatpush1.bf16.msra.mxu0 %v1296
  %1831 = vmatprep.subr.bf16.mxu0 %v1299
  %1832 = vmatpush1.bf16.msra.mxu0 %v1298
  %1833 = vmatprep.subr.bf16.mxu0 %v1301
  %1834 = vmatpush1.bf16.msra.mxu0 %v1300
  %1835 = vmatprep.subr.bf16.mxu0 %v1303
  %1836 = vmatpush1.bf16.msra.mxu0 %v1302
  %1837 = vmatprep.subr.bf16.mxu0 %v1305
  %1838 = vmatpush1.bf16.msra.mxu0 %v1304
  %1839 = vmatprep.mubr.bf16.mxu0 %v413
  %1840 = vmatmul.mubr.bf16.gmra.mrb[0].mxu0 %v412
  %v1841 = vpop.f32.mrb[0].mxu0
  %v1842 = vadd.f32 %v1789, %v1841
  %v1843 = vpop.f32.mrb[0].mxu0
  %v1844 = vadd.f32 %v1791, %v1843
  %v1845 = vpop.f32.mrb[0].mxu0
  %v1846 = vadd.f32 %v1793, %v1845
  %v1847 = vpop.f32.mrb[0].mxu0
  %v1848 = vadd.f32 %v1795, %v1847
  %1849 = vmatprep.mubr.bf16.mxu0 %v429
  %1850 = vmatmul.mubr.bf16.gmra.mrb[0].mxu0 %v428
  %v1851 = vpop.f32.mrb[0].mxu0
  %v1852 = vadd.f32 %v1799, %v1851
  %v1853 = vpop.f32.mrb[0].mxu0
  %v1854 = vadd.f32 %v1801, %v1853
  %v1855 = vpop.f32.mrb[0].mxu0
  %v1856 = vadd.f32 %v1803, %v1855
  %v1857 = vpop.f32.mrb[0].mxu0
  %v1858 = vadd.f32 %v1805, %v1857
  %1859 = vdwg.mxu0
  %1860 = vmatprep.subr.bf16.mxu0 %v1307
  %1861 = vmatpush1.bf16.msra.mxu0 %v1306
  %1862 = vmatprep.subr.bf16.mxu0 %v1309
  %1863 = vmatpush1.bf16.msra.mxu0 %v1308
  %1864 = vmatprep.subr.bf16.mxu0 %v1311
  %1865 = vmatpush1.bf16.msra.mxu0 %v1310
  %1866 = vmatprep.subr.bf16.mxu0 %v1313
  %1867 = vmatpush1.bf16.msra.mxu0 %v1312
  %1868 = vmatprep.subr.bf16.mxu0 %v1315
  %1869 = vmatpush1.bf16.msra.mxu0 %v1314
  %1870 = vmatprep.subr.bf16.mxu0 %v1317
  %1871 = vmatpush1.bf16.msra.mxu0 %v1316
  %1872 = vmatprep.subr.bf16.mxu0 %v1319
  %1873 = vmatpush1.bf16.msra.mxu0 %v1318
  %1874 = vmatprep.subr.bf16.mxu0 %v1321
  %1875 = vmatpush1.bf16.msra.mxu0 %v1320
  %1876 = vmatprep.subr.bf16.mxu0 %v1323
  %1877 = vmatpush1.bf16.msra.mxu0 %v1322
  %1878 = vmatprep.subr.bf16.mxu0 %v1325
  %1879 = vmatpush1.bf16.msra.mxu0 %v1324
  %1880 = vmatprep.subr.bf16.mxu0 %v1327
  %1881 = vmatpush1.bf16.msra.mxu0 %v1326
  %1882 = vmatprep.subr.bf16.mxu0 %v1329
  %1883 = vmatpush1.bf16.msra.mxu0 %v1328
  %1884 = vmatprep.subr.bf16.mxu0 %v1331
  %1885 = vmatpush1.bf16.msra.mxu0 %v1330
  %1886 = vmatprep.subr.bf16.mxu0 %v1333
  %1887 = vmatpush1.bf16.msra.mxu0 %v1332
  %1888 = vmatprep.subr.bf16.mxu0 %v1335
  %1889 = vmatpush1.bf16.msra.mxu0 %v1334
  %1890 = vmatprep.subr.bf16.mxu0 %v1337
  %1891 = vmatpush1.bf16.msra.mxu0 %v1336
  %1892 = vmatprep.mubr.bf16.mxu0 %v415
  %1893 = vmatmul.mubr.bf16.gmra.mrb[0].mxu0 %v414
  %v1894 = vpop.f32.mrb[0].mxu0
  %v1895 = vadd.f32 %v1842, %v1894
  %v1896 = vpop.f32.mrb[0].mxu0
  %v1897 = vadd.f32 %v1844, %v1896
  %v1898 = vpop.f32.mrb[0].mxu0
  %v1899 = vadd.f32 %v1846, %v1898
  %v1900 = vpop.f32.mrb[0].mxu0
  %v1901 = vadd.f32 %v1848, %v1900
  %1902 = vmatprep.mubr.bf16.mxu0 %v431
  %1903 = vmatmul.mubr.bf16.gmra.mrb[0].mxu0 %v430
  %v1904 = vpop.f32.mrb[0].mxu0
  %v1905 = vadd.f32 %v1852, %v1904
  %v1906 = vpop.f32.mrb[0].mxu0
  %v1907 = vadd.f32 %v1854, %v1906
  %v1908 = vpop.f32.mrb[0].mxu0
  %v1909 = vadd.f32 %v1856, %v1908
  %v1910 = vpop.f32.mrb[0].mxu0
  %v1911 = vadd.f32 %v1858, %v1910
  %1912 = vdwg.mxu0
  %1913 = vmatprep.subr.bf16.mxu0 %v1339
  %1914 = vmatpush1.bf16.msra.mxu0 %v1338
  %1915 = vmatprep.subr.bf16.mxu0 %v1341
  %1916 = vmatpush1.bf16.msra.mxu0 %v1340
  %1917 = vmatprep.subr.bf16.mxu0 %v1343
  %1918 = vmatpush1.bf16.msra.mxu0 %v1342
  %1919 = vmatprep.subr.bf16.mxu0 %v1345
  %1920 = vmatpush1.bf16.msra.mxu0 %v1344
  %1921 = vmatprep.subr.bf16.mxu0 %v1347
  %1922 = vmatpush1.bf16.msra.mxu0 %v1346
  %1923 = vmatprep.subr.bf16.mxu0 %v1349
  %1924 = vmatpush1.bf16.msra.mxu0 %v1348
  %1925 = vmatprep.subr.bf16.mxu0 %v1351
  %1926 = vmatpush1.bf16.msra.mxu0 %v1350
  %1927 = vmatprep.subr.bf16.mxu0 %v1353
  %1928 = vmatpush1.bf16.msra.mxu0 %v1352
  %1929 = vmatprep.subr.bf16.mxu0 %v1355
  %1930 = vmatpush1.bf16.msra.mxu0 %v1354
  %1931 = vmatprep.subr.bf16.mxu0 %v1357
  %1932 = vmatpush1.bf16.msra.mxu0 %v1356
  %1933 = vmatprep.subr.bf16.mxu0 %v1359
  %1934 = vmatpush1.bf16.msra.mxu0 %v1358
  %1935 = vmatprep.subr.bf16.mxu0 %v1361
  %1936 = vmatpush1.bf16.msra.mxu0 %v1360
  %1937 = vmatprep.subr.bf16.mxu0 %v1363
  %1938 = vmatpush1.bf16.msra.mxu0 %v1362
  %1939 = vmatprep.subr.bf16.mxu0 %v1365
  %1940 = vmatpush1.bf16.msra.mxu0 %v1364
  %1941 = vmatprep.subr.bf16.mxu0 %v1367
  %1942 = vmatpush1.bf16.msra.mxu0 %v1366
  %1943 = vmatprep.subr.bf16.mxu0 %v1369
  %1944 = vmatpush1.bf16.msra.mxu0 %v1368
  %1945 = vmatprep.mubr.bf16.mxu0 %v417
  %1946 = vmatmul.mubr.bf16.gmra.mrb[0].mxu0 %v416
  %v1947 = vpop.f32.mrb[0].mxu0
  %v1948 = vadd.f32 %v1895, %v1947
  %v1949 = vpop.f32.mrb[0].mxu0
  %v1950 = vadd.f32 %v1897, %v1949
  %v1951 = vpop.f32.mrb[0].mxu0
  %v1952 = vadd.f32 %v1899, %v1951
  %v1953 = vpop.f32.mrb[0].mxu0
  %v1954 = vadd.f32 %v1901, %v1953
  %1955 = vmatprep.mubr.bf16.mxu0 %v433
  %1956 = vmatmul.mubr.bf16.gmra.mrb[0].mxu0 %v432
  %v1957 = vpop.f32.mrb[0].mxu0
  %v1958 = vadd.f32 %v1905, %v1957
  %v1959 = vpop.f32.mrb[0].mxu0
  %v1960 = vadd.f32 %v1907, %v1959
  %v1961 = vpop.f32.mrb[0].mxu0
  %v1962 = vadd.f32 %v1909, %v1961
  %v1963 = vpop.f32.mrb[0].mxu0
  %v1964 = vadd.f32 %v1911, %v1963
  %1965 = vdwg.mxu0
  %1966 = vmatprep.subr.bf16.mxu0 %v1371
  %1967 = vmatpush1.bf16.msra.mxu0 %v1370
  %1968 = vmatprep.subr.bf16.mxu0 %v1373
  %1969 = vmatpush1.bf16.msra.mxu0 %v1372
  %1970 = vmatprep.subr.bf16.mxu0 %v1375
  %1971 = vmatpush1.bf16.msra.mxu0 %v1374
  %1972 = vmatprep.subr.bf16.mxu0 %v1377
  %1973 = vmatpush1.bf16.msra.mxu0 %v1376
  %1974 = vmatprep.subr.bf16.mxu0 %v1379
  %1975 = vmatpush1.bf16.msra.mxu0 %v1378
  %1976 = vmatprep.subr.bf16.mxu0 %v1381
  %1977 = vmatpush1.bf16.msra.mxu0 %v1380
  %1978 = vmatprep.subr.bf16.mxu0 %v1383
  %1979 = vmatpush1.bf16.msra.mxu0 %v1382
  %1980 = vmatprep.subr.bf16.mxu0 %v1385
  %1981 = vmatpush1.bf16.msra.mxu0 %v1384
  %1982 = vmatprep.subr.bf16.mxu0 %v1387
  %1983 = vmatpush1.bf16.msra.mxu0 %v1386
  %1984 = vmatprep.subr.bf16.mxu0 %v1389
  %1985 = vmatpush1.bf16.msra.mxu0 %v1388
  %1986 = vmatprep.subr.bf16.mxu0 %v1391
  %1987 = vmatpush1.bf16.msra.mxu0 %v1390
  %1988 = vmatprep.subr.bf16.mxu0 %v1393
  %1989 = vmatpush1.bf16.msra.mxu0 %v1392
  %1990 = vmatprep.subr.bf16.mxu0 %v1395
  %1991 = vmatpush1.bf16.msra.mxu0 %v1394
  %1992 = vmatprep.subr.bf16.mxu0 %v1397
  %1993 = vmatpush1.bf16.msra.mxu0 %v1396
  %1994 = vmatprep.subr.bf16.mxu0 %v1399
  %1995 = vmatpush1.bf16.msra.mxu0 %v1398
  %1996 = vmatprep.subr.bf16.mxu0 %v1401
  %1997 = vmatpush1.bf16.msra.mxu0 %v1400
  %1998 = vmatprep.mubr.bf16.mxu0 %v419
  %1999 = vmatmul.mubr.bf16.gmra.mrb[0].mxu0 %v418
  %v2000 = vpop.f32.mrb[0].mxu0
  %v2001 = vadd.f32 %v1948, %v2000
  %v2002 = vpop.f32.mrb[0].mxu0
  %v2003 = vadd.f32 %v1950, %v2002
  %v2004 = vpop.f32.mrb[0].mxu0
  %v2005 = vadd.f32 %v1952, %v2004
  %v2006 = vpop.f32.mrb[0].mxu0
  %v2007 = vadd.f32 %v1954, %v2006
  %2008 = vmatprep.mubr.bf16.mxu0 %v435
  %2009 = vmatmul.mubr.bf16.gmra.mrb[0].mxu0 %v434
  %v2010 = vpop.f32.mrb[0].mxu0
  %v2011 = vadd.f32 %v1958, %v2010
  %v2012 = vpop.f32.mrb[0].mxu0
  %v2013 = vadd.f32 %v1960, %v2012
  %v2014 = vpop.f32.mrb[0].mxu0
  %v2015 = vadd.f32 %v1962, %v2014
  %v2016 = vpop.f32.mrb[0].mxu0
  %v2017 = vadd.f32 %v1964, %v2016
  %2018 = vdwg.mxu0
  %2019 = vmatprep.subr.bf16.mxu0 %v1403
  %2020 = vmatpush1.bf16.msra.mxu0 %v1402
  %2021 = vmatprep.subr.bf16.mxu0 %v1405
  %2022 = vmatpush1.bf16.msra.mxu0 %v1404
  %2023 = vmatprep.subr.bf16.mxu0 %v1407
  %2024 = vmatpush1.bf16.msra.mxu0 %v1406
  %2025 = vmatprep.subr.bf16.mxu0 %v1409
  %2026 = vmatpush1.bf16.msra.mxu0 %v1408
  %2027 = vmatprep.subr.bf16.mxu0 %v1411
  %2028 = vmatpush1.bf16.msra.mxu0 %v1410
  %2029 = vmatprep.subr.bf16.mxu0 %v1413
  %2030 = vmatpush1.bf16.msra.mxu0 %v1412
  %2031 = vmatprep.subr.bf16.mxu0 %v1415
  %2032 = vmatpush1.bf16.msra.mxu0 %v1414
  %2033 = vmatprep.subr.bf16.mxu0 %v1417
  %2034 = vmatpush1.bf16.msra.mxu0 %v1416
  %2035 = vmatprep.subr.bf16.mxu0 %v1419
  %2036 = vmatpush1.bf16.msra.mxu0 %v1418
  %2037 = vmatprep.subr.bf16.mxu0 %v1421
  %2038 = vmatpush1.bf16.msra.mxu0 %v1420
  %2039 = vmatprep.subr.bf16.mxu0 %v1423
  %2040 = vmatpush1.bf16.msra.mxu0 %v1422
  %2041 = vmatprep.subr.bf16.mxu0 %v1425
  %2042 = vmatpush1.bf16.msra.mxu0 %v1424
  %2043 = vmatprep.subr.bf16.mxu0 %v1427
  %2044 = vmatpush1.bf16.msra.mxu0 %v1426
  %2045 = vmatprep.subr.bf16.mxu0 %v1429
  %2046 = vmatpush1.bf16.msra.mxu0 %v1428
  %2047 = vmatprep.subr.bf16.mxu0 %v1431
  %2048 = vmatpush1.bf16.msra.mxu0 %v1430
  %2049 = vmatprep.subr.bf16.mxu0 %v1433
  %2050 = vmatpush1.bf16.msra.mxu0 %v1432
  %2051 = vmatprep.mubr.bf16.mxu0 %v421
  %2052 = vmatmul.mubr.bf16.gmra.mrb[0].mxu0 %v420
  %v2053 = vpop.f32.mrb[0].mxu0
  %v2054 = vadd.f32 %v2001, %v2053
  %v2055 = vpop.f32.mrb[0].mxu0
  %v2056 = vadd.f32 %v2003, %v2055
  %v2057 = vpop.f32.mrb[0].mxu0
  %v2058 = vadd.f32 %v2005, %v2057
  %v2059 = vpop.f32.mrb[0].mxu0
  %v2060 = vadd.f32 %v2007, %v2059
  %2061 = vmatprep.mubr.bf16.mxu0 %v437
  %2062 = vmatmul.mubr.bf16.gmra.mrb[0].mxu0 %v436
  %v2063 = vpop.f32.mrb[0].mxu0
  %v2064 = vadd.f32 %v2011, %v2063
  %v2065 = vpop.f32.mrb[0].mxu0
  %v2066 = vadd.f32 %v2013, %v2065
  %v2067 = vpop.f32.mrb[0].mxu0
  %v2068 = vadd.f32 %v2015, %v2067
  %v2069 = vpop.f32.mrb[0].mxu0
  %v2070 = vadd.f32 %v2017, %v2069
  %2071 = vdwg.mxu0
  %2072 = vmatprep.subr.bf16.mxu0 %v1435
  %2073 = vmatpush1.bf16.msra.mxu0 %v1434
  %2074 = vmatprep.subr.bf16.mxu0 %v1437
  %2075 = vmatpush1.bf16.msra.mxu0 %v1436
  %2076 = vmatprep.subr.bf16.mxu0 %v1439
  %2077 = vmatpush1.bf16.msra.mxu0 %v1438
  %2078 = vmatprep.subr.bf16.mxu0 %v1441
  %2079 = vmatpush1.bf16.msra.mxu0 %v1440
  %2080 = vmatprep.subr.bf16.mxu0 %v1443
  %2081 = vmatpush1.bf16.msra.mxu0 %v1442
  %2082 = vmatprep.subr.bf16.mxu0 %v1445
  %2083 = vmatpush1.bf16.msra.mxu0 %v1444
  %2084 = vmatprep.subr.bf16.mxu0 %v1447
  %2085 = vmatpush1.bf16.msra.mxu0 %v1446
  %2086 = vmatprep.subr.bf16.mxu0 %v1449
  %2087 = vmatpush1.bf16.msra.mxu0 %v1448
  %2088 = vmatprep.subr.bf16.mxu0 %v1451
  %2089 = vmatpush1.bf16.msra.mxu0 %v1450
  %2090 = vmatprep.subr.bf16.mxu0 %v1453
  %2091 = vmatpush1.bf16.msra.mxu0 %v1452
  %2092 = vmatprep.subr.bf16.mxu0 %v1455
  %2093 = vmatpush1.bf16.msra.mxu0 %v1454
  %2094 = vmatprep.subr.bf16.mxu0 %v1457
  %2095 = vmatpush1.bf16.msra.mxu0 %v1456
  %2096 = vmatprep.subr.bf16.mxu0 %v1459
  %2097 = vmatpush1.bf16.msra.mxu0 %v1458
  %2098 = vmatprep.subr.bf16.mxu0 %v1461
  %2099 = vmatpush1.bf16.msra.mxu0 %v1460
  %2100 = vmatprep.subr.bf16.mxu0 %v1463
  %2101 = vmatpush1.bf16.msra.mxu0 %v1462
  %2102 = vmatprep.subr.bf16.mxu0 %v1465
  %2103 = vmatpush1.bf16.msra.mxu0 %v1464
  %2104 = vmatprep.mubr.bf16.mxu0 %v423
  %2105 = vmatmul.mubr.bf16.gmra.mrb[0].mxu0 %v422
  %v2106 = vpop.f32.mrb[0].mxu0
  %v2107 = vadd.f32 %v2054, %v2106
  %v2108 = vpop.f32.mrb[0].mxu0
  %v2109 = vadd.f32 %v2056, %v2108
  %v2110 = vpop.f32.mrb[0].mxu0
  %v2111 = vadd.f32 %v2058, %v2110
  %v2112 = vpop.f32.mrb[0].mxu0
  %v2113 = vadd.f32 %v2060, %v2112
  %2114 = vmatprep.mubr.bf16.mxu0 %v439
  %2115 = vmatmul.mubr.bf16.gmra.mrb[0].mxu0 %v438
  %v2116 = vpop.f32.mrb[0].mxu0
  %v2117 = vadd.f32 %v2064, %v2116
  %v2118 = vpop.f32.mrb[0].mxu0
  %v2119 = vadd.f32 %v2066, %v2118
  %v2120 = vpop.f32.mrb[0].mxu0
  %v2121 = vadd.f32 %v2068, %v2120
  %v2122 = vpop.f32.mrb[0].mxu0
  %v2123 = vadd.f32 %v2070, %v2122
  %2124 = vdwg.mxu0
  %2125 = vmatprep.subr.bf16.mxu0 %v1467
  %2126 = vmatpush1.bf16.msra.mxu0 %v1466
  %2127 = vmatprep.subr.bf16.mxu0 %v1469
  %2128 = vmatpush1.bf16.msra.mxu0 %v1468
  %2129 = vmatprep.subr.bf16.mxu0 %v1471
  %2130 = vmatpush1.bf16.msra.mxu0 %v1470
  %2131 = vmatprep.subr.bf16.mxu0 %v1473
  %2132 = vmatpush1.bf16.msra.mxu0 %v1472
  %2133 = vmatprep.subr.bf16.mxu0 %v1475
  %2134 = vmatpush1.bf16.msra.mxu0 %v1474
  %2135 = vmatprep.subr.bf16.mxu0 %v1477
  %2136 = vmatpush1.bf16.msra.mxu0 %v1476
  %2137 = vmatprep.subr.bf16.mxu0 %v1479
  %2138 = vmatpush1.bf16.msra.mxu0 %v1478
  %2139 = vmatprep.subr.bf16.mxu0 %v1481
  %2140 = vmatpush1.bf16.msra.mxu0 %v1480
  %2141 = vmatprep.subr.bf16.mxu0 %v1483
  %2142 = vmatpush1.bf16.msra.mxu0 %v1482
  %2143 = vmatprep.subr.bf16.mxu0 %v1485
  %2144 = vmatpush1.bf16.msra.mxu0 %v1484
  %2145 = vmatprep.subr.bf16.mxu0 %v1487
  %2146 = vmatpush1.bf16.msra.mxu0 %v1486
  %2147 = vmatprep.subr.bf16.mxu0 %v1489
  %2148 = vmatpush1.bf16.msra.mxu0 %v1488
  %2149 = vmatprep.subr.bf16.mxu0 %v1491
  %2150 = vmatpush1.bf16.msra.mxu0 %v1490
  %2151 = vmatprep.subr.bf16.mxu0 %v1493
  %2152 = vmatpush1.bf16.msra.mxu0 %v1492
  %2153 = vmatprep.subr.bf16.mxu0 %v1495
  %2154 = vmatpush1.bf16.msra.mxu0 %v1494
  %2155 = vmatprep.subr.bf16.mxu0 %v1497
  %2156 = vmatpush1.bf16.msra.mxu0 %v1496
  %2157 = vmatprep.mubr.bf16.mxu0 %v425
  %2158 = vmatmul.mubr.bf16.gmra.mrb[0].mxu0 %v424
  %v2159 = vpop.f32.mrb[0].mxu0
  %v2160 = vadd.f32 %v2107, %v2159
  %v2161 = vpop.f32.mrb[0].mxu0
  %v2162 = vadd.f32 %v2109, %v2161
  %v2163 = vpop.f32.mrb[0].mxu0
  %v2164 = vadd.f32 %v2111, %v2163
  %v2165 = vpop.f32.mrb[0].mxu0
  %v2166 = vadd.f32 %v2113, %v2165
  %2167 = vmatprep.mubr.bf16.mxu0 %v441
  %2168 = vmatmul.mubr.bf16.gmra.mrb[0].mxu0 %v440
  %v2169 = vpop.f32.mrb[0].mxu0
  %v2170 = vadd.f32 %v2117, %v2169
  %v2171 = vpop.f32.mrb[0].mxu0
  %v2172 = vadd.f32 %v2119, %v2171
  %v2173 = vpop.f32.mrb[0].mxu0
  %v2174 = vadd.f32 %v2121, %v2173
  %v2175 = vpop.f32.mrb[0].mxu0
  %v2176 = vadd.f32 %v2123, %v2175
  %2177 = vdwg.mxu0
  %vm2178 = vcmp.gt.f32.partialorder %v2160, 0.0
  %vm2179 = vcmp.gt.f32.partialorder %v2162, 0.0
  %vm2180 = vcmp.gt.f32.partialorder %v2164, 0.0
  %vm2181 = vcmp.gt.f32.partialorder %v2166, 0.0
  %vm2182 = vcmp.gt.f32.partialorder %v2170, 0.0
  %vm2183 = vcmp.gt.f32.partialorder %v2172, 0.0
  %vm2184 = vcmp.gt.f32.partialorder %v2174, 0.0
  %vm2185 = vcmp.gt.f32.partialorder %v2176, 0.0
  %v2186 = vmul.f32 %v2160, 0.01
  %v2187 = vmul.f32 %v2162, 0.01
  %v2188 = vmul.f32 %v2164, 0.01
  %v2189 = vmul.f32 %v2166, 0.01
  %v2190 = vmul.f32 %v2170, 0.01
  %v2191 = vmul.f32 %v2172, 0.01
  %v2192 = vmul.f32 %v2174, 0.01
  %v2193 = vmul.f32 %v2176, 0.01
  %v2194 = vsel %vm2178, %v2160, %v2186
  %v2195 = vsel %vm2179, %v2162, %v2187
  %v2196 = vsel %vm2180, %v2164, %v2188
  %v2197 = vsel %vm2181, %v2166, %v2189
  %v2198 = vsel %vm2182, %v2170, %v2190
  %v2199 = vsel %vm2183, %v2172, %v2191
  %v2200 = vsel %vm2184, %v2174, %v2192
  %v2201 = vsel %vm2185, %v2176, %v2193
  %v2202 = vpack.c.bf16 %v2196, %v2194
  %v2203 = vpack.c.bf16 %v2197, %v2195
  %v2204 = vpack.c.bf16 %v2200, %v2198
  %v2205 = vpack.c.bf16 %v2201, %v2199
  %v2210 = vunpack.c.l.b16 %v2202
  %v2211 = vunpack.c.l.b16 %v2203
  %v2212 = vunpack.c.h.b16 %v2202
  %v2213 = vunpack.c.h.b16 %v2203
  %v2214 = vunpack.c.l.b16 %v2204
  %v2215 = vunpack.c.l.b16 %v2205
  %v2216 = vunpack.c.h.b16 %v2204
  %v2217 = vunpack.c.h.b16 %v2205
  %v2218 = vpack.c.b16 %v2211, %v2210
  %v2219 = vpack.c.b16 %v2213, %v2212
  %v2220 = vpack.c.b16 %v2215, %v2214
  %v2221 = vpack.c.b16 %v2217, %v2216
  %2226 = vst [vmem:[%s3] sm:$0xff] %v2218
  %2227 = vst [vmem:[%s3 + $0x8] sm:$0xff] %v2219
  %2228 = vst [vmem:[%s3 + $0x10] sm:$0xff] %v2220
  %2229 = vst [vmem:[%s3 + $0x18] sm:$0xff] %v2221
  // Predicated region
  $region14: #{encoder_forward.6} parent=0 // pred_check
    _
  $region15: #{encoder_forward.6} parent=0 // pred_check_branch
    %2231 = sbr.rel (0) target = $region17
  $region16: #{encoder_forward.6} parent=0 // pred_region
    _
  $region17: #{encoder_forward.6} parent=0 // pred_fallthru
    _
  // Predicated region
  $region18: #{encoder_forward.6} parent=0 // pred_check
    _
  $region19: #{encoder_forward.6} parent=0 // pred_check_branch
    %2233 = sbr.rel (0) target = $region21
  $region20: #{encoder_forward.6} parent=0 // pred_region
    _
  $region21: #{encoder_forward.6} parent=0 // pred_fallthru
    _

// kernel: encoder_forward.7
$region0: #{encoder_forward.7}
  #allocation0 [shape = 'u32[]', space=smem, size = 0x4, offset = 0x4, fixed_abs, tag = 'smem constant byte address 0x4 - core index']
  #allocation1 [shape = 'u32[144,128]{1,0:T(1,128)}', space=vmem, size = 0x12000, scoped, tag = 'internal scratch']
  #allocation2 [shape = 'f32[2,1024]{1,0:T(2,128)}', space=vmem, size = 0x2000, scoped, tag = 'scratch operand']
  %s0 = inlined_call_operand.vmem [shape: bf16[2,4096], index: 0, kind: input, shape index: {}]
  %s1 = inlined_call_operand.vmem [shape: bf16[4096,1024], index: 1, kind: input, shape index: {}]
  %s2 = inlined_call_operand.vmem [shape: f32[1,1024], index: 2, kind: input, shape index: {}]
  %s3 = inlined_call_operand.vmem [shape: bf16[1024,16], index: 3, kind: input, shape index: {}]
  %s4 = inlined_call_operand.vmem [shape: f32[1,16], index: 4, kind: input, shape index: {}]
  %s5 = inlined_call_operand.hbm [shape: f32[1,2,16], index: 5, kind: output, shape index: {}]
  %s6 = sld [smem:[#allocation0]]
  $region61: #{encoder_forward.7} parent=0
    _
  %s8 = ssub.s32 1, %s6
  %s9 = scalar_select 0, %s8, %s6
  $region1: #{encoder_forward.7} parent=0
    #allocation3 [shape = 'u8[1024]{0}', space=vmem, size = 0x400, scoped, tag = 'output window, operand 0, single buffered']
    #allocation4 [shape = 's32[2]{0}', space=sflag, size = 0x8, scoped, tag = 'scoped memory for encoder_forward.7']
    %10 = vsyncpa [#allocation4], 0
    loop: start=0, step=1, limit=4
    $region2: #{encoder_forward.7} parent=1 // loop_pre_header
      _
    $region3: #{encoder_forward.7} parent=1 // loop_header
      %s12 = sphi 0, %s16
      %p13 = scmp.ge.s32.totalorder %s12, 4
      %s19 = sphi 0, %s31
      %s20 = sphi 0, %s27
      %s21 = sphi 0, %s19
      %s22 = sphi 0, %s20
      %s23 = sphi 0, %s21
      %s24 = sphi 0, %s22
      %s34 = sphi 0, %s36
      %s37 = sphi 0, %s34
      %s38 = sphi 0, %s37
      %s54 = sphi 0, %s38
      %s62 = sphi 0, %s64
      %s65 = sphi 0, %s62
      %s66 = sphi 0, %s65
      %s82 = sphi 0, %s66
      %s88 = sphi 0, %s90
      %s91 = sphi 0, %s88
      %s92 = sphi 0, %s91
      %s108 = sphi 0, %s92
      %s114 = sphi 0, %s116
      %s117 = sphi 0, %s114
      %s118 = sphi 0, %s117
      %s134 = sphi 0, %s118
      %s138 = sphi 0, %s138
      %s140 = sphi 0, %s138
      %s141 = sphi 0, %s140
      %s155 = sphi 0, %s141
      %s161 = sphi 0, %s163
      %s164 = sphi 0, %s161
      %s165 = sphi 0, %s164
      %s181 = sphi 0, %s165
    $region4: #{encoder_forward.7} parent=1 // loop_header_branch
      %15 = sbr.rel (%p13) target = $region8
    $region5: #{encoder_forward.7} parent=1 // loop_body
      %s17 = ssub.s32 %s12, 1
      %s18 = ssub.s32 %s12, 2
      %s25 = sadd.s32 1, %s20
      %p26 = scmp.ge.s32.totalorder %s25, 2
      %s27 = scalar_select %p26, 0, %s25
      %s28 = sadd.s32 1, %s19
      %s29 = scalar_select %p26, %s28, %s19
      %p30 = scmp.ge.s32.totalorder %s29, 1
      %s31 = scalar_select %p30, 0, %s29
      %s32 = ssub.s32 %s20, %s27
      %p33 = scmp.eq.s32.totalorder %s32, 0
      %s35 = sadd.s32 %s34, 1
      %s36 = scalar_select %p33, %s34, %s35
      %p39 = pneg %p33
      %p40 = scmp.eq.s32.totalorder %s12, 1
      %p41 = por %p39, %p40
      %p42 = scmp.ne.s32.totalorder %s34, %s37
      %p43 = scmp.eq.s32.totalorder %s12, 0
      %p44 = por %p42, %p43
      %p45 = scmp.ne.s32.totalorder %s34, %s37
      %p46 = scmp.eq.s32.totalorder %s17, 1
      %p47 = por %p45, %p46
      %p48 = scmp.ne.s32.totalorder %s37, %s38
      %p49 = scmp.eq.s32.totalorder %s17, 0
      %p50 = por %p48, %p49
      %p51 = scmp.ne.s32.totalorder %s37, %s38
      %p52 = scmp.eq.s32.totalorder %s18, 1
      %p53 = por %p51, %p52
      %p55 = scmp.ne.s32.totalorder %s38, %s54
      %p56 = scmp.eq.s32.totalorder %s18, 0
      %p57 = por %p55, %p56
      %s58 = ssub.s32 %s20, %s27
      %s59 = ssub.s32 %s19, %s31
      %s60 = sor.u32 %s58, %s59
      %p61 = scmp.eq.s32.totalorder %s60, 0
      %s63 = sadd.s32 %s62, 1
      %s64 = scalar_select %p61, %s62, %s63
      %p67 = pneg %p61
      %p68 = scmp.eq.s32.totalorder %s12, 1
      %p69 = por %p67, %p68
      %p70 = scmp.ne.s32.totalorder %s62, %s65
      %p71 = scmp.eq.s32.totalorder %s12, 0
      %p72 = por %p70, %p71
      %p73 = scmp.ne.s32.totalorder %s62, %s65
      %p74 = scmp.eq.s32.totalorder %s17, 1
      %p75 = por %p73, %p74
      %p76 = scmp.ne.s32.totalorder %s65, %s66
      %p77 = scmp.eq.s32.totalorder %s17, 0
      %p78 = por %p76, %p77
      %p79 = scmp.ne.s32.totalorder %s65, %s66
      %p80 = scmp.eq.s32.totalorder %s18, 1
      %p81 = por %p79, %p80
      %p83 = scmp.ne.s32.totalorder %s66, %s82
      %p84 = scmp.eq.s32.totalorder %s18, 0
      %p85 = por %p83, %p84
      %s86 = ssub.s32 %s19, %s31
      %p87 = scmp.eq.s32.totalorder %s86, 0
      %s89 = sadd.s32 %s88, 1
      %s90 = scalar_select %p87, %s88, %s89
      %p93 = pneg %p87
      %p94 = scmp.eq.s32.totalorder %s12, 1
      %p95 = por %p93, %p94
      %p96 = scmp.ne.s32.totalorder %s88, %s91
      %p97 = scmp.eq.s32.totalorder %s12, 0
      %p98 = por %p96, %p97
      %p99 = scmp.ne.s32.totalorder %s88, %s91
      %p100 = scmp.eq.s32.totalorder %s17, 1
      %p101 = por %p99, %p100
      %p102 = scmp.ne.s32.totalorder %s91, %s92
      %p103 = scmp.eq.s32.totalorder %s17, 0
      %p104 = por %p102, %p103
      %p105 = scmp.ne.s32.totalorder %s91, %s92
      %p106 = scmp.eq.s32.totalorder %s18, 1
      %p107 = por %p105, %p106
      %p109 = scmp.ne.s32.totalorder %s92, %s108
      %p110 = scmp.eq.s32.totalorder %s18, 0
      %p111 = por %p109, %p110
      %s112 = ssub.s32 %s19, %s31
      %p113 = scmp.eq.s32.totalorder %s112, 0
      %s115 = sadd.s32 %s114, 1
      %s116 = scalar_select %p113, %s114, %s115
      %p119 = pneg %p113
      %p120 = scmp.eq.s32.totalorder %s12, 1
      %p121 = por %p119, %p120
      %p122 = scmp.ne.s32.totalorder %s114, %s117
      %p123 = scmp.eq.s32.totalorder %s12, 0
      %p124 = por %p122, %p123
      %p125 = scmp.ne.s32.totalorder %s114, %s117
      %p126 = scmp.eq.s32.totalorder %s17, 1
      %p127 = por %p125, %p126
      %p128 = scmp.ne.s32.totalorder %s117, %s118
      %p129 = scmp.eq.s32.totalorder %s17, 0
      %p130 = por %p128, %p129
      %p131 = scmp.ne.s32.totalorder %s117, %s118
      %p132 = scmp.eq.s32.totalorder %s18, 1
      %p133 = por %p131, %p132
      %p135 = scmp.ne.s32.totalorder %s118, %s134
      %p136 = scmp.eq.s32.totalorder %s18, 0
      %p137 = por %p135, %p136
      %s139 = sadd.s32 %s138, 1
      %p142 = scmp.eq.s32.totalorder %s12, 1
      %p143 = scmp.ne.s32.totalorder %s138, %s140
      %p144 = scmp.eq.s32.totalorder %s12, 0
      %p145 = por %p143, %p144
      %p146 = scmp.ne.s32.totalorder %s138, %s140
      %p147 = scmp.eq.s32.totalorder %s17, 1
      %p148 = por %p146, %p147
      %p149 = scmp.ne.s32.totalorder %s140, %s141
      %p150 = scmp.eq.s32.totalorder %s17, 0
      %p151 = por %p149, %p150
      %p152 = scmp.ne.s32.totalorder %s140, %s141
      %p153 = scmp.eq.s32.totalorder %s18, 1
      %p154 = por %p152, %p153
      %p156 = scmp.ne.s32.totalorder %s141, %s155
      %p157 = scmp.eq.s32.totalorder %s18, 0
      %p158 = por %p156, %p157
      %s159 = ssub.s32 %s19, %s31
      %p160 = scmp.eq.s32.totalorder %s159, 0
      %s162 = sadd.s32 %s161, 1
      %s163 = scalar_select %p160, %s161, %s162
      %p166 = pneg %p160
      %p167 = scmp.eq.s32.totalorder %s12, 1
      %p168 = por %p166, %p167
      %p169 = scmp.ne.s32.totalorder %s161, %s164
      %p170 = scmp.eq.s32.totalorder %s12, 0
      %p171 = por %p169, %p170
      %p172 = scmp.ne.s32.totalorder %s161, %s164
      %p173 = scmp.eq.s32.totalorder %s17, 1
      %p174 = por %p172, %p173
      %p175 = scmp.ne.s32.totalorder %s164, %s165
      %p176 = scmp.eq.s32.totalorder %s17, 0
      %p177 = por %p175, %p176
      %p178 = scmp.ne.s32.totalorder %s164, %s165
      %p179 = scmp.eq.s32.totalorder %s18, 1
      %p180 = por %p178, %p179
      %p182 = scmp.ne.s32.totalorder %s165, %s181
      %p183 = scmp.eq.s32.totalorder %s18, 0
      %p184 = por %p182, %p183
      %p185 = scmp.le.s32.totalorder 1, %s12
      %p186 = scmp.lt.s32.totalorder %s12, 3
      %p187 = pnand %p185, %p186
      %p188 = pneg %p187
      // Predicated region
      $region9: #{encoder_forward.7} parent=5 // pred_check
        _
      $region10: #{encoder_forward.7} parent=5 // pred_check_branch
        %190 = sbr.rel (%p187) target = $region12
      $region11: #{encoder_forward.7} parent=5 // pred_region
        %s191 = ssub.s32 %s12, 1
        // Predicated region
        $region13: #{encoder_forward.7} parent=11 // pred_check
          %p192 = pneg %p104
        $region14: #{encoder_forward.7} parent=11 // pred_check_branch
          %194 = sbr.rel (%p192) target = $region16
        $region15: #{encoder_forward.7} parent=11 // pred_region
          %s195 = smul.u32 8, %s21
          %p196 = scmp.lt.s32.totalorder %s195, 7
          %s197 = scalar_select %p196, %s195, 7
          %s198 = scalar_lea.vmem %s2, %s197
          %s199 = smul.u32 8, %s21
        $region16: #{encoder_forward.7} parent=11 // pred_fallthru
          _
        // Predicated region
        $region17: #{encoder_forward.7} parent=11 // pred_check
          %p200 = pneg %p130
        $region18: #{encoder_forward.7} parent=11 // pred_check_branch
          %202 = sbr.rel (%p200) target = $region20
        $region19: #{encoder_forward.7} parent=11 // pred_region
          %s203 = smul.u32 128, %s21
          %p204 = scmp.lt.s32.totalorder %s203, 127
          %s205 = scalar_select %p204, %s203, 127
          %s206 = smul.addr %s205, 4
          %s207 = scalar_lea.vmem %s3, %s206
          %s208 = smul.u32 128, %s21
        $region20: #{encoder_forward.7} parent=11 // pred_fallthru
          _
        // Predicated region
        $region21: #{encoder_forward.7} parent=11 // pred_check
          %p209 = pneg %p151
        $region22: #{encoder_forward.7} parent=11 // pred_check_branch
          %211 = sbr.rel (%p209) target = $region24
        $region23: #{encoder_forward.7} parent=11 // pred_region
          _
        $region24: #{encoder_forward.7} parent=11 // pred_fallthru
          _
      $region12: #{encoder_forward.7} parent=5 // pred_fallthru
        _
      %p212 = scmp.lt.s32.totalorder %s12, 2
      // Predicated region
      $region25: #{encoder_forward.7} parent=5 // pred_check
        %p213 = pneg %p212
      $region26: #{encoder_forward.7} parent=5 // pred_check_branch
        %215 = sbr.rel (%p213) target = $region28
      $region27: #{encoder_forward.7} parent=5 // pred_region
        // Predicated region
        $region29: #{encoder_forward.7} parent=27 // pred_check
          %p216 = pneg %p44
        $region30: #{encoder_forward.7} parent=27 // pred_check_branch
          %218 = sbr.rel (%p216) target = $region32
        $region31: #{encoder_forward.7} parent=27 // pred_region
          %s219 = smul.u32 16, %s20
          %p220 = scmp.lt.s32.totalorder %s219, 31
          %s221 = scalar_select %p220, %s219, 31
          %s222 = scalar_lea.vmem %s0, %s221
          %s223 = smul.u32 16, %s20
        $region32: #{encoder_forward.7} parent=27 // pred_fallthru
          _
        // Predicated region
        $region33: #{encoder_forward.7} parent=27 // pred_check
          %p224 = pneg %p72
        $region34: #{encoder_forward.7} parent=27 // pred_check_branch
          %226 = sbr.rel (%p224) target = $region36
        $region35: #{encoder_forward.7} parent=27 // pred_region
          %s227 = smul.u32 256, %s20
          %s228 = smul.u32 8, %s19
          %p229 = scmp.lt.s32.totalorder %s227, 511
          %s230 = scalar_select %p229, %s227, 511
          %p231 = scmp.lt.s32.totalorder %s228, 7
          %s232 = scalar_select %p231, %s228, 7
          %s233 = smul.addr %s230, 8
          %s234 = sadd.s32 %s232, %s233
          %s235 = smul.addr %s234, 4
          %s236 = scalar_lea.vmem %s1, %s235
          %s237 = smul.u32 256, %s20
          %s238 = smul.u32 8, %s19
        $region36: #{encoder_forward.7} parent=27 // pred_fallthru
          _
      $region28: #{encoder_forward.7} parent=5 // pred_fallthru
        _
      %p239 = scmp.le.s32.totalorder 1, %s12
      %p240 = scmp.lt.s32.totalorder %s12, 3
      %p241 = pnand %p239, %p240
      %p242 = pneg %p241
      // Predicated region
      $region37: #{encoder_forward.7} parent=5 // pred_check
        _
      $region38: #{encoder_forward.7} parent=5 // pred_check_branch
        %244 = sbr.rel (%p241) target = $region40
      $region39: #{encoder_forward.7} parent=5 // pred_region
        %s245 = ssub.s32 %s12, 1
        %s246 = smul.u32 16, %s22
        %p247 = scmp.lt.s32.totalorder %s246, 31
        %s248 = scalar_select %p247, %s246, 31
        %s249 = scalar_lea.vmem %s0, %s248
        %p250 = pneg %p50
        %p251 = pneg %p47
        %s252 = smul.u32 256, %s22
        %s253 = smul.u32 8, %s21
        %p254 = scmp.lt.s32.totalorder %s252, 511
        %s255 = scalar_select %p254, %s252, 511
        %p256 = scmp.lt.s32.totalorder %s253, 7
        %s257 = scalar_select %p256, %s253, 7
        %s258 = smul.addr %s255, 8
        %s259 = sadd.s32 %s257, %s258
        %s260 = smul.addr %s259, 4
        %s261 = scalar_lea.vmem %s1, %s260
        %p262 = pneg %p78
        %p263 = pneg %p75
        %s264 = smul.u32 8, %s21
        %p265 = scmp.lt.s32.totalorder %s264, 7
        %s266 = scalar_select %p265, %s264, 7
        %s267 = scalar_lea.vmem %s2, %s266
        %p268 = pneg %p104
        %p269 = pneg %p101
        %s270 = smul.u32 128, %s21
        %p271 = scmp.lt.s32.totalorder %s270, 127
        %s272 = scalar_select %p271, %s270, 127
        %s273 = smul.addr %s272, 4
        %s274 = scalar_lea.vmem %s3, %s273
        %p275 = pneg %p130
        %p276 = pneg %p127
        %p277 = pneg %p151
        %p278 = pneg %p148
        %p279 = pneg %p177
        %p280 = pneg %p174
        %s281 = smul.u32 16, %s22
        %p282 = scmp.lt.s32.totalorder %s281, 31
        %s283 = scalar_select %p282, %s281, 31
        %s284 = scalar_lea.vmem %s0, %s283
        %s285 = smul.u32 16, %s22
        %s286 = smul.u32 256, %s22
        %s287 = smul.u32 8, %s21
        %p288 = scmp.lt.s32.totalorder %s286, 511
        %s289 = scalar_select %p288, %s286, 511
        %p290 = scmp.lt.s32.totalorder %s287, 7
        %s291 = scalar_select %p290, %s287, 7
        %s292 = smul.addr %s289, 8
        %s293 = sadd.s32 %s291, %s292
        %s294 = smul.addr %s293, 4
        %s295 = scalar_lea.vmem %s1, %s294
        %s296 = smul.u32 256, %s22
        %s297 = smul.u32 8, %s21
        %s298 = smul.u32 8, %s21
        %p299 = scmp.lt.s32.totalorder %s298, 7
        %s300 = scalar_select %p299, %s298, 7
        %s301 = scalar_lea.vmem %s2, %s300
        %s302 = smul.u32 8, %s21
        %s303 = smul.u32 128, %s21
        %p304 = scmp.lt.s32.totalorder %s303, 127
        %s305 = scalar_select %p304, %s303, 127
        %s306 = smul.addr %s305, 4
        %s307 = scalar_lea.vmem %s3, %s306
        %s308 = smul.u32 128, %s21
        %p310 = scmp.eq.s32.totalorder %s22, 0
        // Predicated region
        $region41: #{encoder_forward.7} parent=39 // pred_check
          %p311 = pneg %p310
        $region42: #{encoder_forward.7} parent=39 // pred_check_branch
          %313 = sbr.rel (%p311) target = $region44
        $region43: #{encoder_forward.7} parent=39 // pred_region
          %314 = vst [vmem:[#allocation2] sm:$0xff] 0.0
          %315 = vst [vmem:[#allocation2 + $0x8] sm:$0xff] 0.0
        $region44: #{encoder_forward.7} parent=39 // pred_fallthru
          _
        %v316 = vld [vmem:[#allocation2] sm:$0xff]
        %v317 = vld [vmem:[#allocation2 + $0x8] sm:$0xff]
        %v318 = vld [vmem:[%s284] sm:$0xff]
        %v319 = vld [vmem:[%s284 + $0x8] sm:$0xff]
        %v320 = vld [vmem:[%s295] sm:$0xff]
        %v321 = vld [vmem:[%s295 + $0x8] sm:$0xff]
        %v322 = vld [vmem:[%s295 + $0x10] sm:$0xff]
        %v323 = vld [vmem:[%s295 + $0x18] sm:$0xff]
        %v324 = vld [vmem:[%s295 + $0x20] sm:$0xff]
        %v325 = vld [vmem:[%s295 + $0x28] sm:$0xff]
        %v326 = vld [vmem:[%s295 + $0x30] sm:$0xff]
        %v327 = vld [vmem:[%s295 + $0x38] sm:$0xff]
        %v328 = vld [vmem:[%s295 + $0x40] sm:$0xff]
        %v329 = vld [vmem:[%s295 + $0x48] sm:$0xff]
        %v330 = vld [vmem:[%s295 + $0x50] sm:$0xff]
        %v331 = vld [vmem:[%s295 + $0x58] sm:$0xff]
        %v332 = vld [vmem:[%s295 + $0x60] sm:$0xff]
        %v333 = vld [vmem:[%s295 + $0x68] sm:$0xff]
        %v334 = vld [vmem:[%s295 + $0x70] sm:$0xff]
        %v335 = vld [vmem:[%s295 + $0x78] sm:$0xff]
        %v336 = vld [vmem:[%s295 + $0x80] sm:$0xff]
        %v337 = vld [vmem:[%s295 + $0x88] sm:$0xff]
        %v338 = vld [vmem:[%s295 + $0x90] sm:$0xff]
        %v339 = vld [vmem:[%s295 + $0x98] sm:$0xff]
        %v340 = vld [vmem:[%s295 + $0xa0] sm:$0xff]
        %v341 = vld [vmem:[%s295 + $0xa8] sm:$0xff]
        %v342 = vld [vmem:[%s295 + $0xb0] sm:$0xff]
        %v343 = vld [vmem:[%s295 + $0xb8] sm:$0xff]
        %v344 = vld [vmem:[%s295 + $0xc0] sm:$0xff]
        %v345 = vld [vmem:[%s295 + $0xc8] sm:$0xff]
        %v346 = vld [vmem:[%s295 + $0xd0] sm:$0xff]
        %v347 = vld [vmem:[%s295 + $0xd8] sm:$0xff]
        %v348 = vld [vmem:[%s295 + $0xe0] sm:$0xff]
        %v349 = vld [vmem:[%s295 + $0xe8] sm:$0xff]
        %v350 = vld [vmem:[%s295 + $0xf0] sm:$0xff]
        %v351 = vld [vmem:[%s295 + $0xf8] sm:$0xff]
        %v352 = vld [vmem:[%s295 + $0x100] sm:$0xff]
        %v353 = vld [vmem:[%s295 + $0x108] sm:$0xff]
        %v354 = vld [vmem:[%s295 + $0x110] sm:$0xff]
        %v355 = vld [vmem:[%s295 + $0x118] sm:$0xff]
        %v356 = vld [vmem:[%s295 + $0x120] sm:$0xff]
        %v357 = vld [vmem:[%s295 + $0x128] sm:$0xff]
        %v358 = vld [vmem:[%s295 + $0x130] sm:$0xff]
        %v359 = vld [vmem:[%s295 + $0x138] sm:$0xff]
        %v360 = vld [vmem:[%s295 + $0x140] sm:$0xff]
        %v361 = vld [vmem:[%s295 + $0x148] sm:$0xff]
        %v362 = vld [vmem:[%s295 + $0x150] sm:$0xff]
        %v363 = vld [vmem:[%s295 + $0x158] sm:$0xff]
        %v364 = vld [vmem:[%s295 + $0x160] sm:$0xff]
        %v365 = vld [vmem:[%s295 + $0x168] sm:$0xff]
        %v366 = vld [vmem:[%s295 + $0x170] sm:$0xff]
        %v367 = vld [vmem:[%s295 + $0x178] sm:$0xff]
        %v368 = vld [vmem:[%s295 + $0x180] sm:$0xff]
        %v369 = vld [vmem:[%s295 + $0x188] sm:$0xff]
        %v370 = vld [vmem:[%s295 + $0x190] sm:$0xff]
        %v371 = vld [vmem:[%s295 + $0x198] sm:$0xff]
        %v372 = vld [vmem:[%s295 + $0x1a0] sm:$0xff]
        %v373 = vld [vmem:[%s295 + $0x1a8] sm:$0xff]
        %v374 = vld [vmem:[%s295 + $0x1b0] sm:$0xff]
        %v375 = vld [vmem:[%s295 + $0x1b8] sm:$0xff]
        %v376 = vld [vmem:[%s295 + $0x1c0] sm:$0xff]
        %v377 = vld [vmem:[%s295 + $0x1c8] sm:$0xff]
        %v378 = vld [vmem:[%s295 + $0x1d0] sm:$0xff]
        %v379 = vld [vmem:[%s295 + $0x1d8] sm:$0xff]
        %v380 = vld [vmem:[%s295 + $0x1e0] sm:$0xff]
        %v381 = vld [vmem:[%s295 + $0x1e8] sm:$0xff]
        %v382 = vld [vmem:[%s295 + $0x1f0] sm:$0xff]
        %v383 = vld [vmem:[%s295 + $0x1f8] sm:$0xff]
        %v384 = vld [vmem:[%s295 + $0x200] sm:$0xff]
        %v385 = vld [vmem:[%s295 + $0x208] sm:$0xff]
        %v386 = vld [vmem:[%s295 + $0x210] sm:$0xff]
        %v387 = vld [vmem:[%s295 + $0x218] sm:$0xff]
        %v388 = vld [vmem:[%s295 + $0x220] sm:$0xff]
        %v389 = vld [vmem:[%s295 + $0x228] sm:$0xff]
        %v390 = vld [vmem:[%s295 + $0x230] sm:$0xff]
        %v391 = vld [vmem:[%s295 + $0x238] sm:$0xff]
        %v392 = vld [vmem:[%s295 + $0x240] sm:$0xff]
        %v393 = vld [vmem:[%s295 + $0x248] sm:$0xff]
        %v394 = vld [vmem:[%s295 + $0x250] sm:$0xff]
        %v395 = vld [vmem:[%s295 + $0x258] sm:$0xff]
        %v396 = vld [vmem:[%s295 + $0x260] sm:$0xff]
        %v397 = vld [vmem:[%s295 + $0x268] sm:$0xff]
        %v398 = vld [vmem:[%s295 + $0x270] sm:$0xff]
        %v399 = vld [vmem:[%s295 + $0x278] sm:$0xff]
        %v400 = vld [vmem:[%s295 + $0x280] sm:$0xff]
        %v401 = vld [vmem:[%s295 + $0x288] sm:$0xff]
        %v402 = vld [vmem:[%s295 + $0x290] sm:$0xff]
        %v403 = vld [vmem:[%s295 + $0x298] sm:$0xff]
        %v404 = vld [vmem:[%s295 + $0x2a0] sm:$0xff]
        %v405 = vld [vmem:[%s295 + $0x2a8] sm:$0xff]
        %v406 = vld [vmem:[%s295 + $0x2b0] sm:$0xff]
        %v407 = vld [vmem:[%s295 + $0x2b8] sm:$0xff]
        %v408 = vld [vmem:[%s295 + $0x2c0] sm:$0xff]
        %v409 = vld [vmem:[%s295 + $0x2c8] sm:$0xff]
        %v410 = vld [vmem:[%s295 + $0x2d0] sm:$0xff]
        %v411 = vld [vmem:[%s295 + $0x2d8] sm:$0xff]
        %v412 = vld [vmem:[%s295 + $0x2e0] sm:$0xff]
        %v413 = vld [vmem:[%s295 + $0x2e8] sm:$0xff]
        %v414 = vld [vmem:[%s295 + $0x2f0] sm:$0xff]
        %v415 = vld [vmem:[%s295 + $0x2f8] sm:$0xff]
        %v416 = vld [vmem:[%s295 + $0x300] sm:$0xff]
        %v417 = vld [vmem:[%s295 + $0x308] sm:$0xff]
        %v418 = vld [vmem:[%s295 + $0x310] sm:$0xff]
        %v419 = vld [vmem:[%s295 + $0x318] sm:$0xff]
        %v420 = vld [vmem:[%s295 + $0x320] sm:$0xff]
        %v421 = vld [vmem:[%s295 + $0x328] sm:$0xff]
        %v422 = vld [vmem:[%s295 + $0x330] sm:$0xff]
        %v423 = vld [vmem:[%s295 + $0x338] sm:$0xff]
        %v424 = vld [vmem:[%s295 + $0x340] sm:$0xff]
        %v425 = vld [vmem:[%s295 + $0x348] sm:$0xff]
        %v426 = vld [vmem:[%s295 + $0x350] sm:$0xff]
        %v427 = vld [vmem:[%s295 + $0x358] sm:$0xff]
        %v428 = vld [vmem:[%s295 + $0x360] sm:$0xff]
        %v429 = vld [vmem:[%s295 + $0x368] sm:$0xff]
        %v430 = vld [vmem:[%s295 + $0x370] sm:$0xff]
        %v431 = vld [vmem:[%s295 + $0x378] sm:$0xff]
        %v432 = vld [vmem:[%s295 + $0x380] sm:$0xff]
        %v433 = vld [vmem:[%s295 + $0x388] sm:$0xff]
        %v434 = vld [vmem:[%s295 + $0x390] sm:$0xff]
        %v435 = vld [vmem:[%s295 + $0x398] sm:$0xff]
        %v436 = vld [vmem:[%s295 + $0x3a0] sm:$0xff]
        %v437 = vld [vmem:[%s295 + $0x3a8] sm:$0xff]
        %v438 = vld [vmem:[%s295 + $0x3b0] sm:$0xff]
        %v439 = vld [vmem:[%s295 + $0x3b8] sm:$0xff]
        %v440 = vld [vmem:[%s295 + $0x3c0] sm:$0xff]
        %v441 = vld [vmem:[%s295 + $0x3c8] sm:$0xff]
        %v442 = vld [vmem:[%s295 + $0x3d0] sm:$0xff]
        %v443 = vld [vmem:[%s295 + $0x3d8] sm:$0xff]
        %v444 = vld [vmem:[%s295 + $0x3e0] sm:$0xff]
        %v445 = vld [vmem:[%s295 + $0x3e8] sm:$0xff]
        %v446 = vld [vmem:[%s295 + $0x3f0] sm:$0xff]
        %v447 = vld [vmem:[%s295 + $0x3f8] sm:$0xff]
        %v448 = vld [vmem:[%s295 + $0x400] sm:$0xff]
        %v449 = vld [vmem:[%s295 + $0x408] sm:$0xff]
        %v450 = vld [vmem:[%s295 + $0x410] sm:$0xff]
        %v451 = vld [vmem:[%s295 + $0x418] sm:$0xff]
        %v452 = vld [vmem:[%s295 + $0x420] sm:$0xff]
        %v453 = vld [vmem:[%s295 + $0x428] sm:$0xff]
        %v454 = vld [vmem:[%s295 + $0x430] sm:$0xff]
        %v455 = vld [vmem:[%s295 + $0x438] sm:$0xff]
        %v456 = vld [vmem:[%s295 + $0x440] sm:$0xff]
        %v457 = vld [vmem:[%s295 + $0x448] sm:$0xff]
        %v458 = vld [vmem:[%s295 + $0x450] sm:$0xff]
        %v459 = vld [vmem:[%s295 + $0x458] sm:$0xff]
        %v460 = vld [vmem:[%s295 + $0x460] sm:$0xff]
        %v461 = vld [vmem:[%s295 + $0x468] sm:$0xff]
        %v462 = vld [vmem:[%s295 + $0x470] sm:$0xff]
        %v463 = vld [vmem:[%s295 + $0x478] sm:$0xff]
        %v464 = vld [vmem:[%s295 + $0x480] sm:$0xff]
        %v465 = vld [vmem:[%s295 + $0x488] sm:$0xff]
        %v466 = vld [vmem:[%s295 + $0x490] sm:$0xff]
        %v467 = vld [vmem:[%s295 + $0x498] sm:$0xff]
        %v468 = vld [vmem:[%s295 + $0x4a0] sm:$0xff]
        %v469 = vld [vmem:[%s295 + $0x4a8] sm:$0xff]
        %v470 = vld [vmem:[%s295 + $0x4b0] sm:$0xff]
        %v471 = vld [vmem:[%s295 + $0x4b8] sm:$0xff]
        %v472 = vld [vmem:[%s295 + $0x4c0] sm:$0xff]
        %v473 = vld [vmem:[%s295 + $0x4c8] sm:$0xff]
        %v474 = vld [vmem:[%s295 + $0x4d0] sm:$0xff]
        %v475 = vld [vmem:[%s295 + $0x4d8] sm:$0xff]
        %v476 = vld [vmem:[%s295 + $0x4e0] sm:$0xff]
        %v477 = vld [vmem:[%s295 + $0x4e8] sm:$0xff]
        %v478 = vld [vmem:[%s295 + $0x4f0] sm:$0xff]
        %v479 = vld [vmem:[%s295 + $0x4f8] sm:$0xff]
        %v480 = vld [vmem:[%s295 + $0x500] sm:$0xff]
        %v481 = vld [vmem:[%s295 + $0x508] sm:$0xff]
        %v482 = vld [vmem:[%s295 + $0x510] sm:$0xff]
        %v483 = vld [vmem:[%s295 + $0x518] sm:$0xff]
        %v484 = vld [vmem:[%s295 + $0x520] sm:$0xff]
        %v485 = vld [vmem:[%s295 + $0x528] sm:$0xff]
        %v486 = vld [vmem:[%s295 + $0x530] sm:$0xff]
        %v487 = vld [vmem:[%s295 + $0x538] sm:$0xff]
        %v488 = vld [vmem:[%s295 + $0x540] sm:$0xff]
        %v489 = vld [vmem:[%s295 + $0x548] sm:$0xff]
        %v490 = vld [vmem:[%s295 + $0x550] sm:$0xff]
        %v491 = vld [vmem:[%s295 + $0x558] sm:$0xff]
        %v492 = vld [vmem:[%s295 + $0x560] sm:$0xff]
        %v493 = vld [vmem:[%s295 + $0x568] sm:$0xff]
        %v494 = vld [vmem:[%s295 + $0x570] sm:$0xff]
        %v495 = vld [vmem:[%s295 + $0x578] sm:$0xff]
        %v496 = vld [vmem:[%s295 + $0x580] sm:$0xff]
        %v497 = vld [vmem:[%s295 + $0x588] sm:$0xff]
        %v498 = vld [vmem:[%s295 + $0x590] sm:$0xff]
        %v499 = vld [vmem:[%s295 + $0x598] sm:$0xff]
        %v500 = vld [vmem:[%s295 + $0x5a0] sm:$0xff]
        %v501 = vld [vmem:[%s295 + $0x5a8] sm:$0xff]
        %v502 = vld [vmem:[%s295 + $0x5b0] sm:$0xff]
        %v503 = vld [vmem:[%s295 + $0x5b8] sm:$0xff]
        %v504 = vld [vmem:[%s295 + $0x5c0] sm:$0xff]
        %v505 = vld [vmem:[%s295 + $0x5c8] sm:$0xff]
        %v506 = vld [vmem:[%s295 + $0x5d0] sm:$0xff]
        %v507 = vld [vmem:[%s295 + $0x5d8] sm:$0xff]
        %v508 = vld [vmem:[%s295 + $0x5e0] sm:$0xff]
        %v509 = vld [vmem:[%s295 + $0x5e8] sm:$0xff]
        %v510 = vld [vmem:[%s295 + $0x5f0] sm:$0xff]
        %v511 = vld [vmem:[%s295 + $0x5f8] sm:$0xff]
        %v512 = vld [vmem:[%s295 + $0x600] sm:$0xff]
        %v513 = vld [vmem:[%s295 + $0x608] sm:$0xff]
        %v514 = vld [vmem:[%s295 + $0x610] sm:$0xff]
        %v515 = vld [vmem:[%s295 + $0x618] sm:$0xff]
        %v516 = vld [vmem:[%s295 + $0x620] sm:$0xff]
        %v517 = vld [vmem:[%s295 + $0x628] sm:$0xff]
        %v518 = vld [vmem:[%s295 + $0x630] sm:$0xff]
        %v519 = vld [vmem:[%s295 + $0x638] sm:$0xff]
        %v520 = vld [vmem:[%s295 + $0x640] sm:$0xff]
        %v521 = vld [vmem:[%s295 + $0x648] sm:$0xff]
        %v522 = vld [vmem:[%s295 + $0x650] sm:$0xff]
        %v523 = vld [vmem:[%s295 + $0x658] sm:$0xff]
        %v524 = vld [vmem:[%s295 + $0x660] sm:$0xff]
        %v525 = vld [vmem:[%s295 + $0x668] sm:$0xff]
        %v526 = vld [vmem:[%s295 + $0x670] sm:$0xff]
        %v527 = vld [vmem:[%s295 + $0x678] sm:$0xff]
        %v528 = vld [vmem:[%s295 + $0x680] sm:$0xff]
        %v529 = vld [vmem:[%s295 + $0x688] sm:$0xff]
        %v530 = vld [vmem:[%s295 + $0x690] sm:$0xff]
        %v531 = vld [vmem:[%s295 + $0x698] sm:$0xff]
        %v532 = vld [vmem:[%s295 + $0x6a0] sm:$0xff]
        %v533 = vld [vmem:[%s295 + $0x6a8] sm:$0xff]
        %v534 = vld [vmem:[%s295 + $0x6b0] sm:$0xff]
        %v535 = vld [vmem:[%s295 + $0x6b8] sm:$0xff]
        %v536 = vld [vmem:[%s295 + $0x6c0] sm:$0xff]
        %v537 = vld [vmem:[%s295 + $0x6c8] sm:$0xff]
        %v538 = vld [vmem:[%s295 + $0x6d0] sm:$0xff]
        %v539 = vld [vmem:[%s295 + $0x6d8] sm:$0xff]
        %v540 = vld [vmem:[%s295 + $0x6e0] sm:$0xff]
        %v541 = vld [vmem:[%s295 + $0x6e8] sm:$0xff]
        %v542 = vld [vmem:[%s295 + $0x6f0] sm:$0xff]
        %v543 = vld [vmem:[%s295 + $0x6f8] sm:$0xff]
        %v544 = vld [vmem:[%s295 + $0x700] sm:$0xff]
        %v545 = vld [vmem:[%s295 + $0x708] sm:$0xff]
        %v546 = vld [vmem:[%s295 + $0x710] sm:$0xff]
        %v547 = vld [vmem:[%s295 + $0x718] sm:$0xff]
        %v548 = vld [vmem:[%s295 + $0x720] sm:$0xff]
        %v549 = vld [vmem:[%s295 + $0x728] sm:$0xff]
        %v550 = vld [vmem:[%s295 + $0x730] sm:$0xff]
        %v551 = vld [vmem:[%s295 + $0x738] sm:$0xff]
        %v552 = vld [vmem:[%s295 + $0x740] sm:$0xff]
        %v553 = vld [vmem:[%s295 + $0x748] sm:$0xff]
        %v554 = vld [vmem:[%s295 + $0x750] sm:$0xff]
        %v555 = vld [vmem:[%s295 + $0x758] sm:$0xff]
        %v556 = vld [vmem:[%s295 + $0x760] sm:$0xff]
        %v557 = vld [vmem:[%s295 + $0x768] sm:$0xff]
        %v558 = vld [vmem:[%s295 + $0x770] sm:$0xff]
        %v559 = vld [vmem:[%s295 + $0x778] sm:$0xff]
        %v560 = vld [vmem:[%s295 + $0x780] sm:$0xff]
        %v561 = vld [vmem:[%s295 + $0x788] sm:$0xff]
        %v562 = vld [vmem:[%s295 + $0x790] sm:$0xff]
        %v563 = vld [vmem:[%s295 + $0x798] sm:$0xff]
        %v564 = vld [vmem:[%s295 + $0x7a0] sm:$0xff]
        %v565 = vld [vmem:[%s295 + $0x7a8] sm:$0xff]
        %v566 = vld [vmem:[%s295 + $0x7b0] sm:$0xff]
        %v567 = vld [vmem:[%s295 + $0x7b8] sm:$0xff]
        %v568 = vld [vmem:[%s295 + $0x7c0] sm:$0xff]
        %v569 = vld [vmem:[%s295 + $0x7c8] sm:$0xff]
        %v570 = vld [vmem:[%s295 + $0x7d0] sm:$0xff]
        %v571 = vld [vmem:[%s295 + $0x7d8] sm:$0xff]
        %v572 = vld [vmem:[%s295 + $0x7e0] sm:$0xff]
        %v573 = vld [vmem:[%s295 + $0x7e8] sm:$0xff]
        %v574 = vld [vmem:[%s295 + $0x7f0] sm:$0xff]
        %v575 = vld [vmem:[%s295 + $0x7f8] sm:$0xff]
        %v576 = vld [vmem:[%s295 + $0x800] sm:$0xff]
        %v577 = vld [vmem:[%s295 + $0x808] sm:$0xff]
        %v578 = vld [vmem:[%s295 + $0x810] sm:$0xff]
        %v579 = vld [vmem:[%s295 + $0x818] sm:$0xff]
        %v580 = vld [vmem:[%s295 + $0x820] sm:$0xff]
        %v581 = vld [vmem:[%s295 + $0x828] sm:$0xff]
        %v582 = vld [vmem:[%s295 + $0x830] sm:$0xff]
        %v583 = vld [vmem:[%s295 + $0x838] sm:$0xff]
        %v584 = vld [vmem:[%s295 + $0x840] sm:$0xff]
        %v585 = vld [vmem:[%s295 + $0x848] sm:$0xff]
        %v586 = vld [vmem:[%s295 + $0x850] sm:$0xff]
        %v587 = vld [vmem:[%s295 + $0x858] sm:$0xff]
        %v588 = vld [vmem:[%s295 + $0x860] sm:$0xff]
        %v589 = vld [vmem:[%s295 + $0x868] sm:$0xff]
        %v590 = vld [vmem:[%s295 + $0x870] sm:$0xff]
        %v591 = vld [vmem:[%s295 + $0x878] sm:$0xff]
        %v592 = vld [vmem:[%s295 + $0x880] sm:$0xff]
        %v593 = vld [vmem:[%s295 + $0x888] sm:$0xff]
        %v594 = vld [vmem:[%s295 + $0x890] sm:$0xff]
        %v595 = vld [vmem:[%s295 + $0x898] sm:$0xff]
        %v596 = vld [vmem:[%s295 + $0x8a0] sm:$0xff]
        %v597 = vld [vmem:[%s295 + $0x8a8] sm:$0xff]
        %v598 = vld [vmem:[%s295 + $0x8b0] sm:$0xff]
        %v599 = vld [vmem:[%s295 + $0x8b8] sm:$0xff]
        %v600 = vld [vmem:[%s295 + $0x8c0] sm:$0xff]
        %v601 = vld [vmem:[%s295 + $0x8c8] sm:$0xff]
        %v602 = vld [vmem:[%s295 + $0x8d0] sm:$0xff]
        %v603 = vld [vmem:[%s295 + $0x8d8] sm:$0xff]
        %v604 = vld [vmem:[%s295 + $0x8e0] sm:$0xff]
        %v605 = vld [vmem:[%s295 + $0x8e8] sm:$0xff]
        %v606 = vld [vmem:[%s295 + $0x8f0] sm:$0xff]
        %v607 = vld [vmem:[%s295 + $0x8f8] sm:$0xff]
        %v608 = vld [vmem:[%s295 + $0x900] sm:$0xff]
        %v609 = vld [vmem:[%s295 + $0x908] sm:$0xff]
        %v610 = vld [vmem:[%s295 + $0x910] sm:$0xff]
        %v611 = vld [vmem:[%s295 + $0x918] sm:$0xff]
        %v612 = vld [vmem:[%s295 + $0x920] sm:$0xff]
        %v613 = vld [vmem:[%s295 + $0x928] sm:$0xff]
        %v614 = vld [vmem:[%s295 + $0x930] sm:$0xff]
        %v615 = vld [vmem:[%s295 + $0x938] sm:$0xff]
        %v616 = vld [vmem:[%s295 + $0x940] sm:$0xff]
        %v617 = vld [vmem:[%s295 + $0x948] sm:$0xff]
        %v618 = vld [vmem:[%s295 + $0x950] sm:$0xff]
        %v619 = vld [vmem:[%s295 + $0x958] sm:$0xff]
        %v620 = vld [vmem:[%s295 + $0x960] sm:$0xff]
        %v621 = vld [vmem:[%s295 + $0x968] sm:$0xff]
        %v622 = vld [vmem:[%s295 + $0x970] sm:$0xff]
        %v623 = vld [vmem:[%s295 + $0x978] sm:$0xff]
        %v624 = vld [vmem:[%s295 + $0x980] sm:$0xff]
        %v625 = vld [vmem:[%s295 + $0x988] sm:$0xff]
        %v626 = vld [vmem:[%s295 + $0x990] sm:$0xff]
        %v627 = vld [vmem:[%s295 + $0x998] sm:$0xff]
        %v628 = vld [vmem:[%s295 + $0x9a0] sm:$0xff]
        %v629 = vld [vmem:[%s295 + $0x9a8] sm:$0xff]
        %v630 = vld [vmem:[%s295 + $0x9b0] sm:$0xff]
        %v631 = vld [vmem:[%s295 + $0x9b8] sm:$0xff]
        %v632 = vld [vmem:[%s295 + $0x9c0] sm:$0xff]
        %v633 = vld [vmem:[%s295 + $0x9c8] sm:$0xff]
        %v634 = vld [vmem:[%s295 + $0x9d0] sm:$0xff]
        %v635 = vld [vmem:[%s295 + $0x9d8] sm:$0xff]
        %v636 = vld [vmem:[%s295 + $0x9e0] sm:$0xff]
        %v637 = vld [vmem:[%s295 + $0x9e8] sm:$0xff]
        %v638 = vld [vmem:[%s295 + $0x9f0] sm:$0xff]
        %v639 = vld [vmem:[%s295 + $0x9f8] sm:$0xff]
        %v640 = vld [vmem:[%s295 + $0xa00] sm:$0xff]
        %v641 = vld [vmem:[%s295 + $0xa08] sm:$0xff]
        %v642 = vld [vmem:[%s295 + $0xa10] sm:$0xff]
        %v643 = vld [vmem:[%s295 + $0xa18] sm:$0xff]
        %v644 = vld [vmem:[%s295 + $0xa20] sm:$0xff]
        %v645 = vld [vmem:[%s295 + $0xa28] sm:$0xff]
        %v646 = vld [vmem:[%s295 + $0xa30] sm:$0xff]
        %v647 = vld [vmem:[%s295 + $0xa38] sm:$0xff]
        %v648 = vld [vmem:[%s295 + $0xa40] sm:$0xff]
        %v649 = vld [vmem:[%s295 + $0xa48] sm:$0xff]
        %v650 = vld [vmem:[%s295 + $0xa50] sm:$0xff]
        %v651 = vld [vmem:[%s295 + $0xa58] sm:$0xff]
        %v652 = vld [vmem:[%s295 + $0xa60] sm:$0xff]
        %v653 = vld [vmem:[%s295 + $0xa68] sm:$0xff]
        %v654 = vld [vmem:[%s295 + $0xa70] sm:$0xff]
        %v655 = vld [vmem:[%s295 + $0xa78] sm:$0xff]
        %v656 = vld [vmem:[%s295 + $0xa80] sm:$0xff]
        %v657 = vld [vmem:[%s295 + $0xa88] sm:$0xff]
        %v658 = vld [vmem:[%s295 + $0xa90] sm:$0xff]
        %v659 = vld [vmem:[%s295 + $0xa98] sm:$0xff]
        %v660 = vld [vmem:[%s295 + $0xaa0] sm:$0xff]
        %v661 = vld [vmem:[%s295 + $0xaa8] sm:$0xff]
        %v662 = vld [vmem:[%s295 + $0xab0] sm:$0xff]
        %v663 = vld [vmem:[%s295 + $0xab8] sm:$0xff]
        %v664 = vld [vmem:[%s295 + $0xac0] sm:$0xff]
        %v665 = vld [vmem:[%s295 + $0xac8] sm:$0xff]
        %v666 = vld [vmem:[%s295 + $0xad0] sm:$0xff]
        %v667 = vld [vmem:[%s295 + $0xad8] sm:$0xff]
        %v668 = vld [vmem:[%s295 + $0xae0] sm:$0xff]
        %v669 = vld [vmem:[%s295 + $0xae8] sm:$0xff]
        %v670 = vld [vmem:[%s295 + $0xaf0] sm:$0xff]
        %v671 = vld [vmem:[%s295 + $0xaf8] sm:$0xff]
        %v672 = vld [vmem:[%s295 + $0xb00] sm:$0xff]
        %v673 = vld [vmem:[%s295 + $0xb08] sm:$0xff]
        %v674 = vld [vmem:[%s295 + $0xb10] sm:$0xff]
        %v675 = vld [vmem:[%s295 + $0xb18] sm:$0xff]
        %v676 = vld [vmem:[%s295 + $0xb20] sm:$0xff]
        %v677 = vld [vmem:[%s295 + $0xb28] sm:$0xff]
        %v678 = vld [vmem:[%s295 + $0xb30] sm:$0xff]
        %v679 = vld [vmem:[%s295 + $0xb38] sm:$0xff]
        %v680 = vld [vmem:[%s295 + $0xb40] sm:$0xff]
        %v681 = vld [vmem:[%s295 + $0xb48] sm:$0xff]
        %v682 = vld [vmem:[%s295 + $0xb50] sm:$0xff]
        %v683 = vld [vmem:[%s295 + $0xb58] sm:$0xff]
        %v684 = vld [vmem:[%s295 + $0xb60] sm:$0xff]
        %v685 = vld [vmem:[%s295 + $0xb68] sm:$0xff]
        %v686 = vld [vmem:[%s295 + $0xb70] sm:$0xff]
        %v687 = vld [vmem:[%s295 + $0xb78] sm:$0xff]
        %v688 = vld [vmem:[%s295 + $0xb80] sm:$0xff]
        %v689 = vld [vmem:[%s295 + $0xb88] sm:$0xff]
        %v690 = vld [vmem:[%s295 + $0xb90] sm:$0xff]
        %v691 = vld [vmem:[%s295 + $0xb98] sm:$0xff]
        %v692 = vld [vmem:[%s295 + $0xba0] sm:$0xff]
        %v693 = vld [vmem:[%s295 + $0xba8] sm:$0xff]
        %v694 = vld [vmem:[%s295 + $0xbb0] sm:$0xff]
        %v695 = vld [vmem:[%s295 + $0xbb8] sm:$0xff]
        %v696 = vld [vmem:[%s295 + $0xbc0] sm:$0xff]
        %v697 = vld [vmem:[%s295 + $0xbc8] sm:$0xff]
        %v698 = vld [vmem:[%s295 + $0xbd0] sm:$0xff]
        %v699 = vld [vmem:[%s295 + $0xbd8] sm:$0xff]
        %v700 = vld [vmem:[%s295 + $0xbe0] sm:$0xff]
        %v701 = vld [vmem:[%s295 + $0xbe8] sm:$0xff]
        %v702 = vld [vmem:[%s295 + $0xbf0] sm:$0xff]
        %v703 = vld [vmem:[%s295 + $0xbf8] sm:$0xff]
        %v704 = vld [vmem:[%s295 + $0xc00] sm:$0xff]
        %v705 = vld [vmem:[%s295 + $0xc08] sm:$0xff]
        %v706 = vld [vmem:[%s295 + $0xc10] sm:$0xff]
        %v707 = vld [vmem:[%s295 + $0xc18] sm:$0xff]
        %v708 = vld [vmem:[%s295 + $0xc20] sm:$0xff]
        %v709 = vld [vmem:[%s295 + $0xc28] sm:$0xff]
        %v710 = vld [vmem:[%s295 + $0xc30] sm:$0xff]
        %v711 = vld [vmem:[%s295 + $0xc38] sm:$0xff]
        %v712 = vld [vmem:[%s295 + $0xc40] sm:$0xff]
        %v713 = vld [vmem:[%s295 + $0xc48] sm:$0xff]
        %v714 = vld [vmem:[%s295 + $0xc50] sm:$0xff]
        %v715 = vld [vmem:[%s295 + $0xc58] sm:$0xff]
        %v716 = vld [vmem:[%s295 + $0xc60] sm:$0xff]
        %v717 = vld [vmem:[%s295 + $0xc68] sm:$0xff]
        %v718 = vld [vmem:[%s295 + $0xc70] sm:$0xff]
        %v719 = vld [vmem:[%s295 + $0xc78] sm:$0xff]
        %v720 = vld [vmem:[%s295 + $0xc80] sm:$0xff]
        %v721 = vld [vmem:[%s295 + $0xc88] sm:$0xff]
        %v722 = vld [vmem:[%s295 + $0xc90] sm:$0xff]
        %v723 = vld [vmem:[%s295 + $0xc98] sm:$0xff]
        %v724 = vld [vmem:[%s295 + $0xca0] sm:$0xff]
        %v725 = vld [vmem:[%s295 + $0xca8] sm:$0xff]
        %v726 = vld [vmem:[%s295 + $0xcb0] sm:$0xff]
        %v727 = vld [vmem:[%s295 + $0xcb8] sm:$0xff]
        %v728 = vld [vmem:[%s295 + $0xcc0] sm:$0xff]
        %v729 = vld [vmem:[%s295 + $0xcc8] sm:$0xff]
        %v730 = vld [vmem:[%s295 + $0xcd0] sm:$0xff]
        %v731 = vld [vmem:[%s295 + $0xcd8] sm:$0xff]
        %v732 = vld [vmem:[%s295 + $0xce0] sm:$0xff]
        %v733 = vld [vmem:[%s295 + $0xce8] sm:$0xff]
        %v734 = vld [vmem:[%s295 + $0xcf0] sm:$0xff]
        %v735 = vld [vmem:[%s295 + $0xcf8] sm:$0xff]
        %v736 = vld [vmem:[%s295 + $0xd00] sm:$0xff]
        %v737 = vld [vmem:[%s295 + $0xd08] sm:$0xff]
        %v738 = vld [vmem:[%s295 + $0xd10] sm:$0xff]
        %v739 = vld [vmem:[%s295 + $0xd18] sm:$0xff]
        %v740 = vld [vmem:[%s295 + $0xd20] sm:$0xff]
        %v741 = vld [vmem:[%s295 + $0xd28] sm:$0xff]
        %v742 = vld [vmem:[%s295 + $0xd30] sm:$0xff]
        %v743 = vld [vmem:[%s295 + $0xd38] sm:$0xff]
        %v744 = vld [vmem:[%s295 + $0xd40] sm:$0xff]
        %v745 = vld [vmem:[%s295 + $0xd48] sm:$0xff]
        %v746 = vld [vmem:[%s295 + $0xd50] sm:$0xff]
        %v747 = vld [vmem:[%s295 + $0xd58] sm:$0xff]
        %v748 = vld [vmem:[%s295 + $0xd60] sm:$0xff]
        %v749 = vld [vmem:[%s295 + $0xd68] sm:$0xff]
        %v750 = vld [vmem:[%s295 + $0xd70] sm:$0xff]
        %v751 = vld [vmem:[%s295 + $0xd78] sm:$0xff]
        %v752 = vld [vmem:[%s295 + $0xd80] sm:$0xff]
        %v753 = vld [vmem:[%s295 + $0xd88] sm:$0xff]
        %v754 = vld [vmem:[%s295 + $0xd90] sm:$0xff]
        %v755 = vld [vmem:[%s295 + $0xd98] sm:$0xff]
        %v756 = vld [vmem:[%s295 + $0xda0] sm:$0xff]
        %v757 = vld [vmem:[%s295 + $0xda8] sm:$0xff]
        %v758 = vld [vmem:[%s295 + $0xdb0] sm:$0xff]
        %v759 = vld [vmem:[%s295 + $0xdb8] sm:$0xff]
        %v760 = vld [vmem:[%s295 + $0xdc0] sm:$0xff]
        %v761 = vld [vmem:[%s295 + $0xdc8] sm:$0xff]
        %v762 = vld [vmem:[%s295 + $0xdd0] sm:$0xff]
        %v763 = vld [vmem:[%s295 + $0xdd8] sm:$0xff]
        %v764 = vld [vmem:[%s295 + $0xde0] sm:$0xff]
        %v765 = vld [vmem:[%s295 + $0xde8] sm:$0xff]
        %v766 = vld [vmem:[%s295 + $0xdf0] sm:$0xff]
        %v767 = vld [vmem:[%s295 + $0xdf8] sm:$0xff]
        %v768 = vld [vmem:[%s295 + $0xe00] sm:$0xff]
        %v769 = vld [vmem:[%s295 + $0xe08] sm:$0xff]
        %v770 = vld [vmem:[%s295 + $0xe10] sm:$0xff]
        %v771 = vld [vmem:[%s295 + $0xe18] sm:$0xff]
        %v772 = vld [vmem:[%s295 + $0xe20] sm:$0xff]
        %v773 = vld [vmem:[%s295 + $0xe28] sm:$0xff]
        %v774 = vld [vmem:[%s295 + $0xe30] sm:$0xff]
        %v775 = vld [vmem:[%s295 + $0xe38] sm:$0xff]
        %v776 = vld [vmem:[%s295 + $0xe40] sm:$0xff]
        %v777 = vld [vmem:[%s295 + $0xe48] sm:$0xff]
        %v778 = vld [vmem:[%s295 + $0xe50] sm:$0xff]
        %v779 = vld [vmem:[%s295 + $0xe58] sm:$0xff]
        %v780 = vld [vmem:[%s295 + $0xe60] sm:$0xff]
        %v781 = vld [vmem:[%s295 + $0xe68] sm:$0xff]
        %v782 = vld [vmem:[%s295 + $0xe70] sm:$0xff]
        %v783 = vld [vmem:[%s295 + $0xe78] sm:$0xff]
        %v784 = vld [vmem:[%s295 + $0xe80] sm:$0xff]
        %v785 = vld [vmem:[%s295 + $0xe88] sm:$0xff]
        %v786 = vld [vmem:[%s295 + $0xe90] sm:$0xff]
        %v787 = vld [vmem:[%s295 + $0xe98] sm:$0xff]
        %v788 = vld [vmem:[%s295 + $0xea0] sm:$0xff]
        %v789 = vld [vmem:[%s295 + $0xea8] sm:$0xff]
        %v790 = vld [vmem:[%s295 + $0xeb0] sm:$0xff]
        %v791 = vld [vmem:[%s295 + $0xeb8] sm:$0xff]
        %v792 = vld [vmem:[%s295 + $0xec0] sm:$0xff]
        %v793 = vld [vmem:[%s295 + $0xec8] sm:$0xff]
        %v794 = vld [vmem:[%s295 + $0xed0] sm:$0xff]
        %v795 = vld [vmem:[%s295 + $0xed8] sm:$0xff]
        %v796 = vld [vmem:[%s295 + $0xee0] sm:$0xff]
        %v797 = vld [vmem:[%s295 + $0xee8] sm:$0xff]
        %v798 = vld [vmem:[%s295 + $0xef0] sm:$0xff]
        %v799 = vld [vmem:[%s295 + $0xef8] sm:$0xff]
        %v800 = vld [vmem:[%s295 + $0xf00] sm:$0xff]
        %v801 = vld [vmem:[%s295 + $0xf08] sm:$0xff]
        %v802 = vld [vmem:[%s295 + $0xf10] sm:$0xff]
        %v803 = vld [vmem:[%s295 + $0xf18] sm:$0xff]
        %v804 = vld [vmem:[%s295 + $0xf20] sm:$0xff]
        %v805 = vld [vmem:[%s295 + $0xf28] sm:$0xff]
        %v806 = vld [vmem:[%s295 + $0xf30] sm:$0xff]
        %v807 = vld [vmem:[%s295 + $0xf38] sm:$0xff]
        %v808 = vld [vmem:[%s295 + $0xf40] sm:$0xff]
        %v809 = vld [vmem:[%s295 + $0xf48] sm:$0xff]
        %v810 = vld [vmem:[%s295 + $0xf50] sm:$0xff]
        %v811 = vld [vmem:[%s295 + $0xf58] sm:$0xff]
        %v812 = vld [vmem:[%s295 + $0xf60] sm:$0xff]
        %v813 = vld [vmem:[%s295 + $0xf68] sm:$0xff]
        %v814 = vld [vmem:[%s295 + $0xf70] sm:$0xff]
        %v815 = vld [vmem:[%s295 + $0xf78] sm:$0xff]
        %v816 = vld [vmem:[%s295 + $0xf80] sm:$0xff]
        %v817 = vld [vmem:[%s295 + $0xf88] sm:$0xff]
        %v818 = vld [vmem:[%s295 + $0xf90] sm:$0xff]
        %v819 = vld [vmem:[%s295 + $0xf98] sm:$0xff]
        %v820 = vld [vmem:[%s295 + $0xfa0] sm:$0xff]
        %v821 = vld [vmem:[%s295 + $0xfa8] sm:$0xff]
        %v822 = vld [vmem:[%s295 + $0xfb0] sm:$0xff]
        %v823 = vld [vmem:[%s295 + $0xfb8] sm:$0xff]
        %v824 = vld [vmem:[%s295 + $0xfc0] sm:$0xff]
        %v825 = vld [vmem:[%s295 + $0xfc8] sm:$0xff]
        %v826 = vld [vmem:[%s295 + $0xfd0] sm:$0xff]
        %v827 = vld [vmem:[%s295 + $0xfd8] sm:$0xff]
        %v828 = vld [vmem:[%s295 + $0xfe0] sm:$0xff]
        %v829 = vld [vmem:[%s295 + $0xfe8] sm:$0xff]
        %v830 = vld [vmem:[%s295 + $0xff0] sm:$0xff]
        %v831 = vld [vmem:[%s295 + $0xff8] sm:$0xff]
        %v832 = vld [vmem:[%s295 + $0x1000] sm:$0xff]
        %v833 = vld [vmem:[%s295 + $0x1008] sm:$0xff]
        %v834 = vld [vmem:[%s295 + $0x1010] sm:$0xff]
        %v835 = vld [vmem:[%s295 + $0x1018] sm:$0xff]
        %v836 = vld [vmem:[%s295 + $0x1020] sm:$0xff]
        %v837 = vld [vmem:[%s295 + $0x1028] sm:$0xff]
        %v838 = vld [vmem:[%s295 + $0x1030] sm:$0xff]
        %v839 = vld [vmem:[%s295 + $0x1038] sm:$0xff]
        %v840 = vld [vmem:[%s295 + $0x1040] sm:$0xff]
        %v841 = vld [vmem:[%s295 + $0x1048] sm:$0xff]
        %v842 = vld [vmem:[%s295 + $0x1050] sm:$0xff]
        %v843 = vld [vmem:[%s295 + $0x1058] sm:$0xff]
        %v844 = vld [vmem:[%s295 + $0x1060] sm:$0xff]
        %v845 = vld [vmem:[%s295 + $0x1068] sm:$0xff]
        %v846 = vld [vmem:[%s295 + $0x1070] sm:$0xff]
        %v847 = vld [vmem:[%s295 + $0x1078] sm:$0xff]
        %v848 = vld [vmem:[%s295 + $0x1080] sm:$0xff]
        %v849 = vld [vmem:[%s295 + $0x1088] sm:$0xff]
        %v850 = vld [vmem:[%s295 + $0x1090] sm:$0xff]
        %v851 = vld [vmem:[%s295 + $0x1098] sm:$0xff]
        %v852 = vld [vmem:[%s295 + $0x10a0] sm:$0xff]
        %v853 = vld [vmem:[%s295 + $0x10a8] sm:$0xff]
        %v854 = vld [vmem:[%s295 + $0x10b0] sm:$0xff]
        %v855 = vld [vmem:[%s295 + $0x10b8] sm:$0xff]
        %v856 = vld [vmem:[%s295 + $0x10c0] sm:$0xff]
        %v857 = vld [vmem:[%s295 + $0x10c8] sm:$0xff]
        %v858 = vld [vmem:[%s295 + $0x10d0] sm:$0xff]
        %v859 = vld [vmem:[%s295 + $0x10d8] sm:$0xff]
        %v860 = vld [vmem:[%s295 + $0x10e0] sm:$0xff]
        %v861 = vld [vmem:[%s295 + $0x10e8] sm:$0xff]
        %v862 = vld [vmem:[%s295 + $0x10f0] sm:$0xff]
        %v863 = vld [vmem:[%s295 + $0x10f8] sm:$0xff]
        %v864 = vld [vmem:[%s295 + $0x1100] sm:$0xff]
        %v865 = vld [vmem:[%s295 + $0x1108] sm:$0xff]
        %v866 = vld [vmem:[%s295 + $0x1110] sm:$0xff]
        %v867 = vld [vmem:[%s295 + $0x1118] sm:$0xff]
        %v868 = vld [vmem:[%s295 + $0x1120] sm:$0xff]
        %v869 = vld [vmem:[%s295 + $0x1128] sm:$0xff]
        %v870 = vld [vmem:[%s295 + $0x1130] sm:$0xff]
        %v871 = vld [vmem:[%s295 + $0x1138] sm:$0xff]
        %v872 = vld [vmem:[%s295 + $0x1140] sm:$0xff]
        %v873 = vld [vmem:[%s295 + $0x1148] sm:$0xff]
        %v874 = vld [vmem:[%s295 + $0x1150] sm:$0xff]
        %v875 = vld [vmem:[%s295 + $0x1158] sm:$0xff]
        %v876 = vld [vmem:[%s295 + $0x1160] sm:$0xff]
        %v877 = vld [vmem:[%s295 + $0x1168] sm:$0xff]
        %v878 = vld [vmem:[%s295 + $0x1170] sm:$0xff]
        %v879 = vld [vmem:[%s295 + $0x1178] sm:$0xff]
        %v880 = vld [vmem:[%s295 + $0x1180] sm:$0xff]
        %v881 = vld [vmem:[%s295 + $0x1188] sm:$0xff]
        %v882 = vld [vmem:[%s295 + $0x1190] sm:$0xff]
        %v883 = vld [vmem:[%s295 + $0x1198] sm:$0xff]
        %v884 = vld [vmem:[%s295 + $0x11a0] sm:$0xff]
        %v885 = vld [vmem:[%s295 + $0x11a8] sm:$0xff]
        %v886 = vld [vmem:[%s295 + $0x11b0] sm:$0xff]
        %v887 = vld [vmem:[%s295 + $0x11b8] sm:$0xff]
        %v888 = vld [vmem:[%s295 + $0x11c0] sm:$0xff]
        %v889 = vld [vmem:[%s295 + $0x11c8] sm:$0xff]
        %v890 = vld [vmem:[%s295 + $0x11d0] sm:$0xff]
        %v891 = vld [vmem:[%s295 + $0x11d8] sm:$0xff]
        %v892 = vld [vmem:[%s295 + $0x11e0] sm:$0xff]
        %v893 = vld [vmem:[%s295 + $0x11e8] sm:$0xff]
        %v894 = vld [vmem:[%s295 + $0x11f0] sm:$0xff]
        %v895 = vld [vmem:[%s295 + $0x11f8] sm:$0xff]
        %v896 = vld [vmem:[%s295 + $0x1200] sm:$0xff]
        %v897 = vld [vmem:[%s295 + $0x1208] sm:$0xff]
        %v898 = vld [vmem:[%s295 + $0x1210] sm:$0xff]
        %v899 = vld [vmem:[%s295 + $0x1218] sm:$0xff]
        %v900 = vld [vmem:[%s295 + $0x1220] sm:$0xff]
        %v901 = vld [vmem:[%s295 + $0x1228] sm:$0xff]
        %v902 = vld [vmem:[%s295 + $0x1230] sm:$0xff]
        %v903 = vld [vmem:[%s295 + $0x1238] sm:$0xff]
        %v904 = vld [vmem:[%s295 + $0x1240] sm:$0xff]
        %v905 = vld [vmem:[%s295 + $0x1248] sm:$0xff]
        %v906 = vld [vmem:[%s295 + $0x1250] sm:$0xff]
        %v907 = vld [vmem:[%s295 + $0x1258] sm:$0xff]
        %v908 = vld [vmem:[%s295 + $0x1260] sm:$0xff]
        %v909 = vld [vmem:[%s295 + $0x1268] sm:$0xff]
        %v910 = vld [vmem:[%s295 + $0x1270] sm:$0xff]
        %v911 = vld [vmem:[%s295 + $0x1278] sm:$0xff]
        %v912 = vld [vmem:[%s295 + $0x1280] sm:$0xff]
        %v913 = vld [vmem:[%s295 + $0x1288] sm:$0xff]
        %v914 = vld [vmem:[%s295 + $0x1290] sm:$0xff]
        %v915 = vld [vmem:[%s295 + $0x1298] sm:$0xff]
        %v916 = vld [vmem:[%s295 + $0x12a0] sm:$0xff]
        %v917 = vld [vmem:[%s295 + $0x12a8] sm:$0xff]
        %v918 = vld [vmem:[%s295 + $0x12b0] sm:$0xff]
        %v919 = vld [vmem:[%s295 + $0x12b8] sm:$0xff]
        %v920 = vld [vmem:[%s295 + $0x12c0] sm:$0xff]
        %v921 = vld [vmem:[%s295 + $0x12c8] sm:$0xff]
        %v922 = vld [vmem:[%s295 + $0x12d0] sm:$0xff]
        %v923 = vld [vmem:[%s295 + $0x12d8] sm:$0xff]
        %v924 = vld [vmem:[%s295 + $0x12e0] sm:$0xff]
        %v925 = vld [vmem:[%s295 + $0x12e8] sm:$0xff]
        %v926 = vld [vmem:[%s295 + $0x12f0] sm:$0xff]
        %v927 = vld [vmem:[%s295 + $0x12f8] sm:$0xff]
        %v928 = vld [vmem:[%s295 + $0x1300] sm:$0xff]
        %v929 = vld [vmem:[%s295 + $0x1308] sm:$0xff]
        %v930 = vld [vmem:[%s295 + $0x1310] sm:$0xff]
        %v931 = vld [vmem:[%s295 + $0x1318] sm:$0xff]
        %v932 = vld [vmem:[%s295 + $0x1320] sm:$0xff]
        %v933 = vld [vmem:[%s295 + $0x1328] sm:$0xff]
        %v934 = vld [vmem:[%s295 + $0x1330] sm:$0xff]
        %v935 = vld [vmem:[%s295 + $0x1338] sm:$0xff]
        %v936 = vld [vmem:[%s295 + $0x1340] sm:$0xff]
        %v937 = vld [vmem:[%s295 + $0x1348] sm:$0xff]
        %v938 = vld [vmem:[%s295 + $0x1350] sm:$0xff]
        %v939 = vld [vmem:[%s295 + $0x1358] sm:$0xff]
        %v940 = vld [vmem:[%s295 + $0x1360] sm:$0xff]
        %v941 = vld [vmem:[%s295 + $0x1368] sm:$0xff]
        %v942 = vld [vmem:[%s295 + $0x1370] sm:$0xff]
        %v943 = vld [vmem:[%s295 + $0x1378] sm:$0xff]
        %v944 = vld [vmem:[%s295 + $0x1380] sm:$0xff]
        %v945 = vld [vmem:[%s295 + $0x1388] sm:$0xff]
        %v946 = vld [vmem:[%s295 + $0x1390] sm:$0xff]
        %v947 = vld [vmem:[%s295 + $0x1398] sm:$0xff]
        %v948 = vld [vmem:[%s295 + $0x13a0] sm:$0xff]
        %v949 = vld [vmem:[%s295 + $0x13a8] sm:$0xff]
        %v950 = vld [vmem:[%s295 + $0x13b0] sm:$0xff]
        %v951 = vld [vmem:[%s295 + $0x13b8] sm:$0xff]
        %v952 = vld [vmem:[%s295 + $0x13c0] sm:$0xff]
        %v953 = vld [vmem:[%s295 + $0x13c8] sm:$0xff]
        %v954 = vld [vmem:[%s295 + $0x13d0] sm:$0xff]
        %v955 = vld [vmem:[%s295 + $0x13d8] sm:$0xff]
        %v956 = vld [vmem:[%s295 + $0x13e0] sm:$0xff]
        %v957 = vld [vmem:[%s295 + $0x13e8] sm:$0xff]
        %v958 = vld [vmem:[%s295 + $0x13f0] sm:$0xff]
        %v959 = vld [vmem:[%s295 + $0x13f8] sm:$0xff]
        %v960 = vld [vmem:[%s295 + $0x1400] sm:$0xff]
        %v961 = vld [vmem:[%s295 + $0x1408] sm:$0xff]
        %v962 = vld [vmem:[%s295 + $0x1410] sm:$0xff]
        %v963 = vld [vmem:[%s295 + $0x1418] sm:$0xff]
        %v964 = vld [vmem:[%s295 + $0x1420] sm:$0xff]
        %v965 = vld [vmem:[%s295 + $0x1428] sm:$0xff]
        %v966 = vld [vmem:[%s295 + $0x1430] sm:$0xff]
        %v967 = vld [vmem:[%s295 + $0x1438] sm:$0xff]
        %v968 = vld [vmem:[%s295 + $0x1440] sm:$0xff]
        %v969 = vld [vmem:[%s295 + $0x1448] sm:$0xff]
        %v970 = vld [vmem:[%s295 + $0x1450] sm:$0xff]
        %v971 = vld [vmem:[%s295 + $0x1458] sm:$0xff]
        %v972 = vld [vmem:[%s295 + $0x1460] sm:$0xff]
        %v973 = vld [vmem:[%s295 + $0x1468] sm:$0xff]
        %v974 = vld [vmem:[%s295 + $0x1470] sm:$0xff]
        %v975 = vld [vmem:[%s295 + $0x1478] sm:$0xff]
        %v976 = vld [vmem:[%s295 + $0x1480] sm:$0xff]
        %v977 = vld [vmem:[%s295 + $0x1488] sm:$0xff]
        %v978 = vld [vmem:[%s295 + $0x1490] sm:$0xff]
        %v979 = vld [vmem:[%s295 + $0x1498] sm:$0xff]
        %v980 = vld [vmem:[%s295 + $0x14a0] sm:$0xff]
        %v981 = vld [vmem:[%s295 + $0x14a8] sm:$0xff]
        %v982 = vld [vmem:[%s295 + $0x14b0] sm:$0xff]
        %v983 = vld [vmem:[%s295 + $0x14b8] sm:$0xff]
        %v984 = vld [vmem:[%s295 + $0x14c0] sm:$0xff]
        %v985 = vld [vmem:[%s295 + $0x14c8] sm:$0xff]
        %v986 = vld [vmem:[%s295 + $0x14d0] sm:$0xff]
        %v987 = vld [vmem:[%s295 + $0x14d8] sm:$0xff]
        %v988 = vld [vmem:[%s295 + $0x14e0] sm:$0xff]
        %v989 = vld [vmem:[%s295 + $0x14e8] sm:$0xff]
        %v990 = vld [vmem:[%s295 + $0x14f0] sm:$0xff]
        %v991 = vld [vmem:[%s295 + $0x14f8] sm:$0xff]
        %v992 = vld [vmem:[%s295 + $0x1500] sm:$0xff]
        %v993 = vld [vmem:[%s295 + $0x1508] sm:$0xff]
        %v994 = vld [vmem:[%s295 + $0x1510] sm:$0xff]
        %v995 = vld [vmem:[%s295 + $0x1518] sm:$0xff]
        %v996 = vld [vmem:[%s295 + $0x1520] sm:$0xff]
        %v997 = vld [vmem:[%s295 + $0x1528] sm:$0xff]
        %v998 = vld [vmem:[%s295 + $0x1530] sm:$0xff]
        %v999 = vld [vmem:[%s295 + $0x1538] sm:$0xff]
        %v1000 = vld [vmem:[%s295 + $0x1540] sm:$0xff]
        %v1001 = vld [vmem:[%s295 + $0x1548] sm:$0xff]
        %v1002 = vld [vmem:[%s295 + $0x1550] sm:$0xff]
        %v1003 = vld [vmem:[%s295 + $0x1558] sm:$0xff]
        %v1004 = vld [vmem:[%s295 + $0x1560] sm:$0xff]
        %v1005 = vld [vmem:[%s295 + $0x1568] sm:$0xff]
        %v1006 = vld [vmem:[%s295 + $0x1570] sm:$0xff]
        %v1007 = vld [vmem:[%s295 + $0x1578] sm:$0xff]
        %v1008 = vld [vmem:[%s295 + $0x1580] sm:$0xff]
        %v1009 = vld [vmem:[%s295 + $0x1588] sm:$0xff]
        %v1010 = vld [vmem:[%s295 + $0x1590] sm:$0xff]
        %v1011 = vld [vmem:[%s295 + $0x1598] sm:$0xff]
        %v1012 = vld [vmem:[%s295 + $0x15a0] sm:$0xff]
        %v1013 = vld [vmem:[%s295 + $0x15a8] sm:$0xff]
        %v1014 = vld [vmem:[%s295 + $0x15b0] sm:$0xff]
        %v1015 = vld [vmem:[%s295 + $0x15b8] sm:$0xff]
        %v1016 = vld [vmem:[%s295 + $0x15c0] sm:$0xff]
        %v1017 = vld [vmem:[%s295 + $0x15c8] sm:$0xff]
        %v1018 = vld [vmem:[%s295 + $0x15d0] sm:$0xff]
        %v1019 = vld [vmem:[%s295 + $0x15d8] sm:$0xff]
        %v1020 = vld [vmem:[%s295 + $0x15e0] sm:$0xff]
        %v1021 = vld [vmem:[%s295 + $0x15e8] sm:$0xff]
        %v1022 = vld [vmem:[%s295 + $0x15f0] sm:$0xff]
        %v1023 = vld [vmem:[%s295 + $0x15f8] sm:$0xff]
        %v1024 = vld [vmem:[%s295 + $0x1600] sm:$0xff]
        %v1025 = vld [vmem:[%s295 + $0x1608] sm:$0xff]
        %v1026 = vld [vmem:[%s295 + $0x1610] sm:$0xff]
        %v1027 = vld [vmem:[%s295 + $0x1618] sm:$0xff]
        %v1028 = vld [vmem:[%s295 + $0x1620] sm:$0xff]
        %v1029 = vld [vmem:[%s295 + $0x1628] sm:$0xff]
        %v1030 = vld [vmem:[%s295 + $0x1630] sm:$0xff]
        %v1031 = vld [vmem:[%s295 + $0x1638] sm:$0xff]
        %v1032 = vld [vmem:[%s295 + $0x1640] sm:$0xff]
        %v1033 = vld [vmem:[%s295 + $0x1648] sm:$0xff]
        %v1034 = vld [vmem:[%s295 + $0x1650] sm:$0xff]
        %v1035 = vld [vmem:[%s295 + $0x1658] sm:$0xff]
        %v1036 = vld [vmem:[%s295 + $0x1660] sm:$0xff]
        %v1037 = vld [vmem:[%s295 + $0x1668] sm:$0xff]
        %v1038 = vld [vmem:[%s295 + $0x1670] sm:$0xff]
        %v1039 = vld [vmem:[%s295 + $0x1678] sm:$0xff]
        %v1040 = vld [vmem:[%s295 + $0x1680] sm:$0xff]
        %v1041 = vld [vmem:[%s295 + $0x1688] sm:$0xff]
        %v1042 = vld [vmem:[%s295 + $0x1690] sm:$0xff]
        %v1043 = vld [vmem:[%s295 + $0x1698] sm:$0xff]
        %v1044 = vld [vmem:[%s295 + $0x16a0] sm:$0xff]
        %v1045 = vld [vmem:[%s295 + $0x16a8] sm:$0xff]
        %v1046 = vld [vmem:[%s295 + $0x16b0] sm:$0xff]
        %v1047 = vld [vmem:[%s295 + $0x16b8] sm:$0xff]
        %v1048 = vld [vmem:[%s295 + $0x16c0] sm:$0xff]
        %v1049 = vld [vmem:[%s295 + $0x16c8] sm:$0xff]
        %v1050 = vld [vmem:[%s295 + $0x16d0] sm:$0xff]
        %v1051 = vld [vmem:[%s295 + $0x16d8] sm:$0xff]
        %v1052 = vld [vmem:[%s295 + $0x16e0] sm:$0xff]
        %v1053 = vld [vmem:[%s295 + $0x16e8] sm:$0xff]
        %v1054 = vld [vmem:[%s295 + $0x16f0] sm:$0xff]
        %v1055 = vld [vmem:[%s295 + $0x16f8] sm:$0xff]
        %v1056 = vld [vmem:[%s295 + $0x1700] sm:$0xff]
        %v1057 = vld [vmem:[%s295 + $0x1708] sm:$0xff]
        %v1058 = vld [vmem:[%s295 + $0x1710] sm:$0xff]
        %v1059 = vld [vmem:[%s295 + $0x1718] sm:$0xff]
        %v1060 = vld [vmem:[%s295 + $0x1720] sm:$0xff]
        %v1061 = vld [vmem:[%s295 + $0x1728] sm:$0xff]
        %v1062 = vld [vmem:[%s295 + $0x1730] sm:$0xff]
        %v1063 = vld [vmem:[%s295 + $0x1738] sm:$0xff]
        %v1064 = vld [vmem:[%s295 + $0x1740] sm:$0xff]
        %v1065 = vld [vmem:[%s295 + $0x1748] sm:$0xff]
        %v1066 = vld [vmem:[%s295 + $0x1750] sm:$0xff]
        %v1067 = vld [vmem:[%s295 + $0x1758] sm:$0xff]
        %v1068 = vld [vmem:[%s295 + $0x1760] sm:$0xff]
        %v1069 = vld [vmem:[%s295 + $0x1768] sm:$0xff]
        %v1070 = vld [vmem:[%s295 + $0x1770] sm:$0xff]
        %v1071 = vld [vmem:[%s295 + $0x1778] sm:$0xff]
        %v1072 = vld [vmem:[%s295 + $0x1780] sm:$0xff]
        %v1073 = vld [vmem:[%s295 + $0x1788] sm:$0xff]
        %v1074 = vld [vmem:[%s295 + $0x1790] sm:$0xff]
        %v1075 = vld [vmem:[%s295 + $0x1798] sm:$0xff]
        %v1076 = vld [vmem:[%s295 + $0x17a0] sm:$0xff]
        %v1077 = vld [vmem:[%s295 + $0x17a8] sm:$0xff]
        %v1078 = vld [vmem:[%s295 + $0x17b0] sm:$0xff]
        %v1079 = vld [vmem:[%s295 + $0x17b8] sm:$0xff]
        %v1080 = vld [vmem:[%s295 + $0x17c0] sm:$0xff]
        %v1081 = vld [vmem:[%s295 + $0x17c8] sm:$0xff]
        %v1082 = vld [vmem:[%s295 + $0x17d0] sm:$0xff]
        %v1083 = vld [vmem:[%s295 + $0x17d8] sm:$0xff]
        %v1084 = vld [vmem:[%s295 + $0x17e0] sm:$0xff]
        %v1085 = vld [vmem:[%s295 + $0x17e8] sm:$0xff]
        %v1086 = vld [vmem:[%s295 + $0x17f0] sm:$0xff]
        %v1087 = vld [vmem:[%s295 + $0x17f8] sm:$0xff]
        %v1088 = vld [vmem:[%s295 + $0x1800] sm:$0xff]
        %v1089 = vld [vmem:[%s295 + $0x1808] sm:$0xff]
        %v1090 = vld [vmem:[%s295 + $0x1810] sm:$0xff]
        %v1091 = vld [vmem:[%s295 + $0x1818] sm:$0xff]
        %v1092 = vld [vmem:[%s295 + $0x1820] sm:$0xff]
        %v1093 = vld [vmem:[%s295 + $0x1828] sm:$0xff]
        %v1094 = vld [vmem:[%s295 + $0x1830] sm:$0xff]
        %v1095 = vld [vmem:[%s295 + $0x1838] sm:$0xff]
        %v1096 = vld [vmem:[%s295 + $0x1840] sm:$0xff]
        %v1097 = vld [vmem:[%s295 + $0x1848] sm:$0xff]
        %v1098 = vld [vmem:[%s295 + $0x1850] sm:$0xff]
        %v1099 = vld [vmem:[%s295 + $0x1858] sm:$0xff]
        %v1100 = vld [vmem:[%s295 + $0x1860] sm:$0xff]
        %v1101 = vld [vmem:[%s295 + $0x1868] sm:$0xff]
        %v1102 = vld [vmem:[%s295 + $0x1870] sm:$0xff]
        %v1103 = vld [vmem:[%s295 + $0x1878] sm:$0xff]
        %v1104 = vld [vmem:[%s295 + $0x1880] sm:$0xff]
        %v1105 = vld [vmem:[%s295 + $0x1888] sm:$0xff]
        %v1106 = vld [vmem:[%s295 + $0x1890] sm:$0xff]
        %v1107 = vld [vmem:[%s295 + $0x1898] sm:$0xff]
        %v1108 = vld [vmem:[%s295 + $0x18a0] sm:$0xff]
        %v1109 = vld [vmem:[%s295 + $0x18a8] sm:$0xff]
        %v1110 = vld [vmem:[%s295 + $0x18b0] sm:$0xff]
        %v1111 = vld [vmem:[%s295 + $0x18b8] sm:$0xff]
        %v1112 = vld [vmem:[%s295 + $0x18c0] sm:$0xff]
        %v1113 = vld [vmem:[%s295 + $0x18c8] sm:$0xff]
        %v1114 = vld [vmem:[%s295 + $0x18d0] sm:$0xff]
        %v1115 = vld [vmem:[%s295 + $0x18d8] sm:$0xff]
        %v1116 = vld [vmem:[%s295 + $0x18e0] sm:$0xff]
        %v1117 = vld [vmem:[%s295 + $0x18e8] sm:$0xff]
        %v1118 = vld [vmem:[%s295 + $0x18f0] sm:$0xff]
        %v1119 = vld [vmem:[%s295 + $0x18f8] sm:$0xff]
        %v1120 = vld [vmem:[%s295 + $0x1900] sm:$0xff]
        %v1121 = vld [vmem:[%s295 + $0x1908] sm:$0xff]
        %v1122 = vld [vmem:[%s295 + $0x1910] sm:$0xff]
        %v1123 = vld [vmem:[%s295 + $0x1918] sm:$0xff]
        %v1124 = vld [vmem:[%s295 + $0x1920] sm:$0xff]
        %v1125 = vld [vmem:[%s295 + $0x1928] sm:$0xff]
        %v1126 = vld [vmem:[%s295 + $0x1930] sm:$0xff]
        %v1127 = vld [vmem:[%s295 + $0x1938] sm:$0xff]
        %v1128 = vld [vmem:[%s295 + $0x1940] sm:$0xff]
        %v1129 = vld [vmem:[%s295 + $0x1948] sm:$0xff]
        %v1130 = vld [vmem:[%s295 + $0x1950] sm:$0xff]
        %v1131 = vld [vmem:[%s295 + $0x1958] sm:$0xff]
        %v1132 = vld [vmem:[%s295 + $0x1960] sm:$0xff]
        %v1133 = vld [vmem:[%s295 + $0x1968] sm:$0xff]
        %v1134 = vld [vmem:[%s295 + $0x1970] sm:$0xff]
        %v1135 = vld [vmem:[%s295 + $0x1978] sm:$0xff]
        %v1136 = vld [vmem:[%s295 + $0x1980] sm:$0xff]
        %v1137 = vld [vmem:[%s295 + $0x1988] sm:$0xff]
        %v1138 = vld [vmem:[%s295 + $0x1990] sm:$0xff]
        %v1139 = vld [vmem:[%s295 + $0x1998] sm:$0xff]
        %v1140 = vld [vmem:[%s295 + $0x19a0] sm:$0xff]
        %v1141 = vld [vmem:[%s295 + $0x19a8] sm:$0xff]
        %v1142 = vld [vmem:[%s295 + $0x19b0] sm:$0xff]
        %v1143 = vld [vmem:[%s295 + $0x19b8] sm:$0xff]
        %v1144 = vld [vmem:[%s295 + $0x19c0] sm:$0xff]
        %v1145 = vld [vmem:[%s295 + $0x19c8] sm:$0xff]
        %v1146 = vld [vmem:[%s295 + $0x19d0] sm:$0xff]
        %v1147 = vld [vmem:[%s295 + $0x19d8] sm:$0xff]
        %v1148 = vld [vmem:[%s295 + $0x19e0] sm:$0xff]
        %v1149 = vld [vmem:[%s295 + $0x19e8] sm:$0xff]
        %v1150 = vld [vmem:[%s295 + $0x19f0] sm:$0xff]
        %v1151 = vld [vmem:[%s295 + $0x19f8] sm:$0xff]
        %v1152 = vld [vmem:[%s295 + $0x1a00] sm:$0xff]
        %v1153 = vld [vmem:[%s295 + $0x1a08] sm:$0xff]
        %v1154 = vld [vmem:[%s295 + $0x1a10] sm:$0xff]
        %v1155 = vld [vmem:[%s295 + $0x1a18] sm:$0xff]
        %v1156 = vld [vmem:[%s295 + $0x1a20] sm:$0xff]
        %v1157 = vld [vmem:[%s295 + $0x1a28] sm:$0xff]
        %v1158 = vld [vmem:[%s295 + $0x1a30] sm:$0xff]
        %v1159 = vld [vmem:[%s295 + $0x1a38] sm:$0xff]
        %v1160 = vld [vmem:[%s295 + $0x1a40] sm:$0xff]
        %v1161 = vld [vmem:[%s295 + $0x1a48] sm:$0xff]
        %v1162 = vld [vmem:[%s295 + $0x1a50] sm:$0xff]
        %v1163 = vld [vmem:[%s295 + $0x1a58] sm:$0xff]
        %v1164 = vld [vmem:[%s295 + $0x1a60] sm:$0xff]
        %v1165 = vld [vmem:[%s295 + $0x1a68] sm:$0xff]
        %v1166 = vld [vmem:[%s295 + $0x1a70] sm:$0xff]
        %v1167 = vld [vmem:[%s295 + $0x1a78] sm:$0xff]
        %v1168 = vld [vmem:[%s295 + $0x1a80] sm:$0xff]
        %v1169 = vld [vmem:[%s295 + $0x1a88] sm:$0xff]
        %v1170 = vld [vmem:[%s295 + $0x1a90] sm:$0xff]
        %v1171 = vld [vmem:[%s295 + $0x1a98] sm:$0xff]
        %v1172 = vld [vmem:[%s295 + $0x1aa0] sm:$0xff]
        %v1173 = vld [vmem:[%s295 + $0x1aa8] sm:$0xff]
        %v1174 = vld [vmem:[%s295 + $0x1ab0] sm:$0xff]
        %v1175 = vld [vmem:[%s295 + $0x1ab8] sm:$0xff]
        %v1176 = vld [vmem:[%s295 + $0x1ac0] sm:$0xff]
        %v1177 = vld [vmem:[%s295 + $0x1ac8] sm:$0xff]
        %v1178 = vld [vmem:[%s295 + $0x1ad0] sm:$0xff]
        %v1179 = vld [vmem:[%s295 + $0x1ad8] sm:$0xff]
        %v1180 = vld [vmem:[%s295 + $0x1ae0] sm:$0xff]
        %v1181 = vld [vmem:[%s295 + $0x1ae8] sm:$0xff]
        %v1182 = vld [vmem:[%s295 + $0x1af0] sm:$0xff]
        %v1183 = vld [vmem:[%s295 + $0x1af8] sm:$0xff]
        %v1184 = vld [vmem:[%s295 + $0x1b00] sm:$0xff]
        %v1185 = vld [vmem:[%s295 + $0x1b08] sm:$0xff]
        %v1186 = vld [vmem:[%s295 + $0x1b10] sm:$0xff]
        %v1187 = vld [vmem:[%s295 + $0x1b18] sm:$0xff]
        %v1188 = vld [vmem:[%s295 + $0x1b20] sm:$0xff]
        %v1189 = vld [vmem:[%s295 + $0x1b28] sm:$0xff]
        %v1190 = vld [vmem:[%s295 + $0x1b30] sm:$0xff]
        %v1191 = vld [vmem:[%s295 + $0x1b38] sm:$0xff]
        %v1192 = vld [vmem:[%s295 + $0x1b40] sm:$0xff]
        %v1193 = vld [vmem:[%s295 + $0x1b48] sm:$0xff]
        %v1194 = vld [vmem:[%s295 + $0x1b50] sm:$0xff]
        %v1195 = vld [vmem:[%s295 + $0x1b58] sm:$0xff]
        %v1196 = vld [vmem:[%s295 + $0x1b60] sm:$0xff]
        %v1197 = vld [vmem:[%s295 + $0x1b68] sm:$0xff]
        %v1198 = vld [vmem:[%s295 + $0x1b70] sm:$0xff]
        %v1199 = vld [vmem:[%s295 + $0x1b78] sm:$0xff]
        %v1200 = vld [vmem:[%s295 + $0x1b80] sm:$0xff]
        %v1201 = vld [vmem:[%s295 + $0x1b88] sm:$0xff]
        %v1202 = vld [vmem:[%s295 + $0x1b90] sm:$0xff]
        %v1203 = vld [vmem:[%s295 + $0x1b98] sm:$0xff]
        %v1204 = vld [vmem:[%s295 + $0x1ba0] sm:$0xff]
        %v1205 = vld [vmem:[%s295 + $0x1ba8] sm:$0xff]
        %v1206 = vld [vmem:[%s295 + $0x1bb0] sm:$0xff]
        %v1207 = vld [vmem:[%s295 + $0x1bb8] sm:$0xff]
        %v1208 = vld [vmem:[%s295 + $0x1bc0] sm:$0xff]
        %v1209 = vld [vmem:[%s295 + $0x1bc8] sm:$0xff]
        %v1210 = vld [vmem:[%s295 + $0x1bd0] sm:$0xff]
        %v1211 = vld [vmem:[%s295 + $0x1bd8] sm:$0xff]
        %v1212 = vld [vmem:[%s295 + $0x1be0] sm:$0xff]
        %v1213 = vld [vmem:[%s295 + $0x1be8] sm:$0xff]
        %v1214 = vld [vmem:[%s295 + $0x1bf0] sm:$0xff]
        %v1215 = vld [vmem:[%s295 + $0x1bf8] sm:$0xff]
        %v1216 = vld [vmem:[%s295 + $0x1c00] sm:$0xff]
        %v1217 = vld [vmem:[%s295 + $0x1c08] sm:$0xff]
        %v1218 = vld [vmem:[%s295 + $0x1c10] sm:$0xff]
        %v1219 = vld [vmem:[%s295 + $0x1c18] sm:$0xff]
        %v1220 = vld [vmem:[%s295 + $0x1c20] sm:$0xff]
        %v1221 = vld [vmem:[%s295 + $0x1c28] sm:$0xff]
        %v1222 = vld [vmem:[%s295 + $0x1c30] sm:$0xff]
        %v1223 = vld [vmem:[%s295 + $0x1c38] sm:$0xff]
        %v1224 = vld [vmem:[%s295 + $0x1c40] sm:$0xff]
        %v1225 = vld [vmem:[%s295 + $0x1c48] sm:$0xff]
        %v1226 = vld [vmem:[%s295 + $0x1c50] sm:$0xff]
        %v1227 = vld [vmem:[%s295 + $0x1c58] sm:$0xff]
        %v1228 = vld [vmem:[%s295 + $0x1c60] sm:$0xff]
        %v1229 = vld [vmem:[%s295 + $0x1c68] sm:$0xff]
        %v1230 = vld [vmem:[%s295 + $0x1c70] sm:$0xff]
        %v1231 = vld [vmem:[%s295 + $0x1c78] sm:$0xff]
        %v1232 = vld [vmem:[%s295 + $0x1c80] sm:$0xff]
        %v1233 = vld [vmem:[%s295 + $0x1c88] sm:$0xff]
        %v1234 = vld [vmem:[%s295 + $0x1c90] sm:$0xff]
        %v1235 = vld [vmem:[%s295 + $0x1c98] sm:$0xff]
        %v1236 = vld [vmem:[%s295 + $0x1ca0] sm:$0xff]
        %v1237 = vld [vmem:[%s295 + $0x1ca8] sm:$0xff]
        %v1238 = vld [vmem:[%s295 + $0x1cb0] sm:$0xff]
        %v1239 = vld [vmem:[%s295 + $0x1cb8] sm:$0xff]
        %v1240 = vld [vmem:[%s295 + $0x1cc0] sm:$0xff]
        %v1241 = vld [vmem:[%s295 + $0x1cc8] sm:$0xff]
        %v1242 = vld [vmem:[%s295 + $0x1cd0] sm:$0xff]
        %v1243 = vld [vmem:[%s295 + $0x1cd8] sm:$0xff]
        %v1244 = vld [vmem:[%s295 + $0x1ce0] sm:$0xff]
        %v1245 = vld [vmem:[%s295 + $0x1ce8] sm:$0xff]
        %v1246 = vld [vmem:[%s295 + $0x1cf0] sm:$0xff]
        %v1247 = vld [vmem:[%s295 + $0x1cf8] sm:$0xff]
        %v1248 = vld [vmem:[%s295 + $0x1d00] sm:$0xff]
        %v1249 = vld [vmem:[%s295 + $0x1d08] sm:$0xff]
        %v1250 = vld [vmem:[%s295 + $0x1d10] sm:$0xff]
        %v1251 = vld [vmem:[%s295 + $0x1d18] sm:$0xff]
        %v1252 = vld [vmem:[%s295 + $0x1d20] sm:$0xff]
        %v1253 = vld [vmem:[%s295 + $0x1d28] sm:$0xff]
        %v1254 = vld [vmem:[%s295 + $0x1d30] sm:$0xff]
        %v1255 = vld [vmem:[%s295 + $0x1d38] sm:$0xff]
        %v1256 = vld [vmem:[%s295 + $0x1d40] sm:$0xff]
        %v1257 = vld [vmem:[%s295 + $0x1d48] sm:$0xff]
        %v1258 = vld [vmem:[%s295 + $0x1d50] sm:$0xff]
        %v1259 = vld [vmem:[%s295 + $0x1d58] sm:$0xff]
        %v1260 = vld [vmem:[%s295 + $0x1d60] sm:$0xff]
        %v1261 = vld [vmem:[%s295 + $0x1d68] sm:$0xff]
        %v1262 = vld [vmem:[%s295 + $0x1d70] sm:$0xff]
        %v1263 = vld [vmem:[%s295 + $0x1d78] sm:$0xff]
        %v1264 = vld [vmem:[%s295 + $0x1d80] sm:$0xff]
        %v1265 = vld [vmem:[%s295 + $0x1d88] sm:$0xff]
        %v1266 = vld [vmem:[%s295 + $0x1d90] sm:$0xff]
        %v1267 = vld [vmem:[%s295 + $0x1d98] sm:$0xff]
        %v1268 = vld [vmem:[%s295 + $0x1da0] sm:$0xff]
        %v1269 = vld [vmem:[%s295 + $0x1da8] sm:$0xff]
        %v1270 = vld [vmem:[%s295 + $0x1db0] sm:$0xff]
        %v1271 = vld [vmem:[%s295 + $0x1db8] sm:$0xff]
        %v1272 = vld [vmem:[%s295 + $0x1dc0] sm:$0xff]
        %v1273 = vld [vmem:[%s295 + $0x1dc8] sm:$0xff]
        %v1274 = vld [vmem:[%s295 + $0x1dd0] sm:$0xff]
        %v1275 = vld [vmem:[%s295 + $0x1dd8] sm:$0xff]
        %v1276 = vld [vmem:[%s295 + $0x1de0] sm:$0xff]
        %v1277 = vld [vmem:[%s295 + $0x1de8] sm:$0xff]
        %v1278 = vld [vmem:[%s295 + $0x1df0] sm:$0xff]
        %v1279 = vld [vmem:[%s295 + $0x1df8] sm:$0xff]
        %v1280 = vld [vmem:[%s295 + $0x1e00] sm:$0xff]
        %v1281 = vld [vmem:[%s295 + $0x1e08] sm:$0xff]
        %v1282 = vld [vmem:[%s295 + $0x1e10] sm:$0xff]
        %v1283 = vld [vmem:[%s295 + $0x1e18] sm:$0xff]
        %v1284 = vld [vmem:[%s295 + $0x1e20] sm:$0xff]
        %v1285 = vld [vmem:[%s295 + $0x1e28] sm:$0xff]
        %v1286 = vld [vmem:[%s295 + $0x1e30] sm:$0xff]
        %v1287 = vld [vmem:[%s295 + $0x1e38] sm:$0xff]
        %v1288 = vld [vmem:[%s295 + $0x1e40] sm:$0xff]
        %v1289 = vld [vmem:[%s295 + $0x1e48] sm:$0xff]
        %v1290 = vld [vmem:[%s295 + $0x1e50] sm:$0xff]
        %v1291 = vld [vmem:[%s295 + $0x1e58] sm:$0xff]
        %v1292 = vld [vmem:[%s295 + $0x1e60] sm:$0xff]
        %v1293 = vld [vmem:[%s295 + $0x1e68] sm:$0xff]
        %v1294 = vld [vmem:[%s295 + $0x1e70] sm:$0xff]
        %v1295 = vld [vmem:[%s295 + $0x1e78] sm:$0xff]
        %v1296 = vld [vmem:[%s295 + $0x1e80] sm:$0xff]
        %v1297 = vld [vmem:[%s295 + $0x1e88] sm:$0xff]
        %v1298 = vld [vmem:[%s295 + $0x1e90] sm:$0xff]
        %v1299 = vld [vmem:[%s295 + $0x1e98] sm:$0xff]
        %v1300 = vld [vmem:[%s295 + $0x1ea0] sm:$0xff]
        %v1301 = vld [vmem:[%s295 + $0x1ea8] sm:$0xff]
        %v1302 = vld [vmem:[%s295 + $0x1eb0] sm:$0xff]
        %v1303 = vld [vmem:[%s295 + $0x1eb8] sm:$0xff]
        %v1304 = vld [vmem:[%s295 + $0x1ec0] sm:$0xff]
        %v1305 = vld [vmem:[%s295 + $0x1ec8] sm:$0xff]
        %v1306 = vld [vmem:[%s295 + $0x1ed0] sm:$0xff]
        %v1307 = vld [vmem:[%s295 + $0x1ed8] sm:$0xff]
        %v1308 = vld [vmem:[%s295 + $0x1ee0] sm:$0xff]
        %v1309 = vld [vmem:[%s295 + $0x1ee8] sm:$0xff]
        %v1310 = vld [vmem:[%s295 + $0x1ef0] sm:$0xff]
        %v1311 = vld [vmem:[%s295 + $0x1ef8] sm:$0xff]
        %v1312 = vld [vmem:[%s295 + $0x1f00] sm:$0xff]
        %v1313 = vld [vmem:[%s295 + $0x1f08] sm:$0xff]
        %v1314 = vld [vmem:[%s295 + $0x1f10] sm:$0xff]
        %v1315 = vld [vmem:[%s295 + $0x1f18] sm:$0xff]
        %v1316 = vld [vmem:[%s295 + $0x1f20] sm:$0xff]
        %v1317 = vld [vmem:[%s295 + $0x1f28] sm:$0xff]
        %v1318 = vld [vmem:[%s295 + $0x1f30] sm:$0xff]
        %v1319 = vld [vmem:[%s295 + $0x1f38] sm:$0xff]
        %v1320 = vld [vmem:[%s295 + $0x1f40] sm:$0xff]
        %v1321 = vld [vmem:[%s295 + $0x1f48] sm:$0xff]
        %v1322 = vld [vmem:[%s295 + $0x1f50] sm:$0xff]
        %v1323 = vld [vmem:[%s295 + $0x1f58] sm:$0xff]
        %v1324 = vld [vmem:[%s295 + $0x1f60] sm:$0xff]
        %v1325 = vld [vmem:[%s295 + $0x1f68] sm:$0xff]
        %v1326 = vld [vmem:[%s295 + $0x1f70] sm:$0xff]
        %v1327 = vld [vmem:[%s295 + $0x1f78] sm:$0xff]
        %v1328 = vld [vmem:[%s295 + $0x1f80] sm:$0xff]
        %v1329 = vld [vmem:[%s295 + $0x1f88] sm:$0xff]
        %v1330 = vld [vmem:[%s295 + $0x1f90] sm:$0xff]
        %v1331 = vld [vmem:[%s295 + $0x1f98] sm:$0xff]
        %v1332 = vld [vmem:[%s295 + $0x1fa0] sm:$0xff]
        %v1333 = vld [vmem:[%s295 + $0x1fa8] sm:$0xff]
        %v1334 = vld [vmem:[%s295 + $0x1fb0] sm:$0xff]
        %v1335 = vld [vmem:[%s295 + $0x1fb8] sm:$0xff]
        %v1336 = vld [vmem:[%s295 + $0x1fc0] sm:$0xff]
        %v1337 = vld [vmem:[%s295 + $0x1fc8] sm:$0xff]
        %v1338 = vld [vmem:[%s295 + $0x1fd0] sm:$0xff]
        %v1339 = vld [vmem:[%s295 + $0x1fd8] sm:$0xff]
        %v1340 = vld [vmem:[%s295 + $0x1fe0] sm:$0xff]
        %v1341 = vld [vmem:[%s295 + $0x1fe8] sm:$0xff]
        %v1342 = vld [vmem:[%s295 + $0x1ff0] sm:$0xff]
        %v1343 = vld [vmem:[%s295 + $0x1ff8] sm:$0xff]
        %v1346 = vcombine.high %v318, %v318
        %v1348 = vunpack.c.l.s4 1966171168
        %v1349 = vunpack.c.0.s8 %v1348
        %v1350 = vlaneseq
        %v1351 = vshrl.u32 %v1350, 7
        %v1352 = vsub.s32 %v1349, %v1351
        %v1353 = vrot.slane %v318, %v1352
        %v1355 = vunpack.c.l.s4 1966171168
        %v1356 = vunpack.c.0.s8 %v1355
        %v1357 = vlaneseq
        %v1358 = vshrl.u32 %v1357, 7
        %v1359 = vsub.s32 %v1356, %v1358
        %v1360 = vrot.slane %v1346, %v1359
        %v1361 = vcombine.high %v1353, %v1353
        %v1362 = vcombine.high %v1360, %v1360
        %v1364 = vunpack.c.l.s4 1966171168
        %v1365 = vunpack.c.0.s8 %v1364
        %v1366 = vlaneseq
        %v1367 = vshrl.u32 %v1366, 7
        %v1368 = vsub.s32 %v1365, %v1367
        %v1369 = vrot.slane %v1353, %v1368
        %v1371 = vunpack.c.l.s4 1966171168
        %v1372 = vunpack.c.0.s8 %v1371
        %v1373 = vlaneseq
        %v1374 = vshrl.u32 %v1373, 7
        %v1375 = vsub.s32 %v1372, %v1374
        %v1376 = vrot.slane %v1360, %v1375
        %v1378 = vunpack.c.l.s4 1966171168
        %v1379 = vunpack.c.0.s8 %v1378
        %v1380 = vlaneseq
        %v1381 = vshrl.u32 %v1380, 7
        %v1382 = vsub.s32 %v1379, %v1381
        %v1383 = vrot.slane %v1361, %v1382
        %v1385 = vunpack.c.l.s4 1966171168
        %v1386 = vunpack.c.0.s8 %v1385
        %v1387 = vlaneseq
        %v1388 = vshrl.u32 %v1387, 7
        %v1389 = vsub.s32 %v1386, %v1388
        %v1390 = vrot.slane %v1362, %v1389
        %v1391 = vcombine.high %v1369, %v1369
        %v1392 = vcombine.high %v1376, %v1376
        %v1393 = vcombine.high %v1383, %v1383
        %v1394 = vcombine.high %v1390, %v1390
        %v1395 = vcombine.high %v319, %v319
        %v1397 = vunpack.c.l.s4 1966171168
        %v1398 = vunpack.c.0.s8 %v1397
        %v1399 = vlaneseq
        %v1400 = vshrl.u32 %v1399, 7
        %v1401 = vsub.s32 %v1398, %v1400
        %v1402 = vrot.slane %v319, %v1401
        %v1404 = vunpack.c.l.s4 1966171168
        %v1405 = vunpack.c.0.s8 %v1404
        %v1406 = vlaneseq
        %v1407 = vshrl.u32 %v1406, 7
        %v1408 = vsub.s32 %v1405, %v1407
        %v1409 = vrot.slane %v1395, %v1408
        %v1410 = vcombine.high %v1402, %v1402
        %v1411 = vcombine.high %v1409, %v1409
        %v1413 = vunpack.c.l.s4 1966171168
        %v1414 = vunpack.c.0.s8 %v1413
        %v1415 = vlaneseq
        %v1416 = vshrl.u32 %v1415, 7
        %v1417 = vsub.s32 %v1414, %v1416
        %v1418 = vrot.slane %v1402, %v1417
        %v1420 = vunpack.c.l.s4 1966171168
        %v1421 = vunpack.c.0.s8 %v1420
        %v1422 = vlaneseq
        %v1423 = vshrl.u32 %v1422, 7
        %v1424 = vsub.s32 %v1421, %v1423
        %v1425 = vrot.slane %v1409, %v1424
        %v1427 = vunpack.c.l.s4 1966171168
        %v1428 = vunpack.c.0.s8 %v1427
        %v1429 = vlaneseq
        %v1430 = vshrl.u32 %v1429, 7
        %v1431 = vsub.s32 %v1428, %v1430
        %v1432 = vrot.slane %v1410, %v1431
        %v1434 = vunpack.c.l.s4 1966171168
        %v1435 = vunpack.c.0.s8 %v1434
        %v1436 = vlaneseq
        %v1437 = vshrl.u32 %v1436, 7
        %v1438 = vsub.s32 %v1435, %v1437
        %v1439 = vrot.slane %v1411, %v1438
        %v1440 = vcombine.high %v1418, %v1418
        %v1441 = vcombine.high %v1425, %v1425
        %v1442 = vcombine.high %v1432, %v1432
        %v1443 = vcombine.high %v1439, %v1439
        %v2484 = vunpack.c.l.b16 %v320
        %v2485 = vunpack.c.h.b16 %v320
        %v2486 = vunpack.c.l.b16 %v321
        %v2487 = vunpack.c.h.b16 %v321
        %v2488 = vunpack.c.l.b16 %v322
        %v2489 = vunpack.c.h.b16 %v322
        %v2490 = vunpack.c.l.b16 %v323
        %v2491 = vunpack.c.h.b16 %v323
        %v2492 = vunpack.c.l.b16 %v324
        %v2493 = vunpack.c.h.b16 %v324
        %v2494 = vunpack.c.l.b16 %v325
        %v2495 = vunpack.c.h.b16 %v325
        %v2496 = vunpack.c.l.b16 %v326
        %v2497 = vunpack.c.h.b16 %v326
        %v2498 = vunpack.c.l.b16 %v327
        %v2499 = vunpack.c.h.b16 %v327
        %v2500 = vunpack.c.l.b16 %v328
        %v2501 = vunpack.c.h.b16 %v328
        %v2502 = vunpack.c.l.b16 %v329
        %v2503 = vunpack.c.h.b16 %v329
        %v2504 = vunpack.c.l.b16 %v330
        %v2505 = vunpack.c.h.b16 %v330
        %v2506 = vunpack.c.l.b16 %v331
        %v2507 = vunpack.c.h.b16 %v331
        %v2508 = vunpack.c.l.b16 %v332
        %v2509 = vunpack.c.h.b16 %v332
        %v2510 = vunpack.c.l.b16 %v333
        %v2511 = vunpack.c.h.b16 %v333
        %v2512 = vunpack.c.l.b16 %v334
        %v2513 = vunpack.c.h.b16 %v334
        %v2514 = vunpack.c.l.b16 %v335
        %v2515 = vunpack.c.h.b16 %v335
        %v2516 = vunpack.c.l.b16 %v336
        %v2517 = vunpack.c.h.b16 %v336
        %v2518 = vunpack.c.l.b16 %v337
        %v2519 = vunpack.c.h.b16 %v337
        %v2520 = vunpack.c.l.b16 %v338
        %v2521 = vunpack.c.h.b16 %v338
        %v2522 = vunpack.c.l.b16 %v339
        %v2523 = vunpack.c.h.b16 %v339
        %v2524 = vunpack.c.l.b16 %v340
        %v2525 = vunpack.c.h.b16 %v340
        %v2526 = vunpack.c.l.b16 %v341
        %v2527 = vunpack.c.h.b16 %v341
        %v2528 = vunpack.c.l.b16 %v342
        %v2529 = vunpack.c.h.b16 %v342
        %v2530 = vunpack.c.l.b16 %v343
        %v2531 = vunpack.c.h.b16 %v343
        %v2532 = vunpack.c.l.b16 %v344
        %v2533 = vunpack.c.h.b16 %v344
        %v2534 = vunpack.c.l.b16 %v345
        %v2535 = vunpack.c.h.b16 %v345
        %v2536 = vunpack.c.l.b16 %v346
        %v2537 = vunpack.c.h.b16 %v346
        %v2538 = vunpack.c.l.b16 %v347
        %v2539 = vunpack.c.h.b16 %v347
        %v2540 = vunpack.c.l.b16 %v348
        %v2541 = vunpack.c.h.b16 %v348
        %v2542 = vunpack.c.l.b16 %v349
        %v2543 = vunpack.c.h.b16 %v349
        %v2544 = vunpack.c.l.b16 %v350
        %v2545 = vunpack.c.h.b16 %v350
        %v2546 = vunpack.c.l.b16 %v351
        %v2547 = vunpack.c.h.b16 %v351
        %v2548 = vunpack.c.l.b16 %v352
        %v2549 = vunpack.c.h.b16 %v352
        %v2550 = vunpack.c.l.b16 %v353
        %v2551 = vunpack.c.h.b16 %v353
        %v2552 = vunpack.c.l.b16 %v354
        %v2553 = vunpack.c.h.b16 %v354
        %v2554 = vunpack.c.l.b16 %v355
        %v2555 = vunpack.c.h.b16 %v355
        %v2556 = vunpack.c.l.b16 %v356
        %v2557 = vunpack.c.h.b16 %v356
        %v2558 = vunpack.c.l.b16 %v357
        %v2559 = vunpack.c.h.b16 %v357
        %v2560 = vunpack.c.l.b16 %v358
        %v2561 = vunpack.c.h.b16 %v358
        %v2562 = vunpack.c.l.b16 %v359
        %v2563 = vunpack.c.h.b16 %v359
        %v2564 = vunpack.c.l.b16 %v360
        %v2565 = vunpack.c.h.b16 %v360
        %v2566 = vunpack.c.l.b16 %v361
        %v2567 = vunpack.c.h.b16 %v361
        %v2568 = vunpack.c.l.b16 %v362
        %v2569 = vunpack.c.h.b16 %v362
        %v2570 = vunpack.c.l.b16 %v363
        %v2571 = vunpack.c.h.b16 %v363
        %v2572 = vunpack.c.l.b16 %v364
        %v2573 = vunpack.c.h.b16 %v364
        %v2574 = vunpack.c.l.b16 %v365
        %v2575 = vunpack.c.h.b16 %v365
        %v2576 = vunpack.c.l.b16 %v366
        %v2577 = vunpack.c.h.b16 %v366
        %v2578 = vunpack.c.l.b16 %v367
        %v2579 = vunpack.c.h.b16 %v367
        %v2580 = vunpack.c.l.b16 %v368
        %v2581 = vunpack.c.h.b16 %v368
        %v2582 = vunpack.c.l.b16 %v369
        %v2583 = vunpack.c.h.b16 %v369
        %v2584 = vunpack.c.l.b16 %v370
        %v2585 = vunpack.c.h.b16 %v370
        %v2586 = vunpack.c.l.b16 %v371
        %v2587 = vunpack.c.h.b16 %v371
        %v2588 = vunpack.c.l.b16 %v372
        %v2589 = vunpack.c.h.b16 %v372
        %v2590 = vunpack.c.l.b16 %v373
        %v2591 = vunpack.c.h.b16 %v373
        %v2592 = vunpack.c.l.b16 %v374
        %v2593 = vunpack.c.h.b16 %v374
        %v2594 = vunpack.c.l.b16 %v375
        %v2595 = vunpack.c.h.b16 %v375
        %v2596 = vunpack.c.l.b16 %v376
        %v2597 = vunpack.c.h.b16 %v376
        %v2598 = vunpack.c.l.b16 %v377
        %v2599 = vunpack.c.h.b16 %v377
        %v2600 = vunpack.c.l.b16 %v378
        %v2601 = vunpack.c.h.b16 %v378
        %v2602 = vunpack.c.l.b16 %v379
        %v2603 = vunpack.c.h.b16 %v379
        %v2604 = vunpack.c.l.b16 %v380
        %v2605 = vunpack.c.h.b16 %v380
        %v2606 = vunpack.c.l.b16 %v381
        %v2607 = vunpack.c.h.b16 %v381
        %v2608 = vunpack.c.l.b16 %v382
        %v2609 = vunpack.c.h.b16 %v382
        %v2610 = vunpack.c.l.b16 %v383
        %v2611 = vunpack.c.h.b16 %v383
        %v2612 = vunpack.c.l.b16 %v384
        %v2613 = vunpack.c.h.b16 %v384
        %v2614 = vunpack.c.l.b16 %v385
        %v2615 = vunpack.c.h.b16 %v385
        %v2616 = vunpack.c.l.b16 %v386
        %v2617 = vunpack.c.h.b16 %v386
        %v2618 = vunpack.c.l.b16 %v387
        %v2619 = vunpack.c.h.b16 %v387
        %v2620 = vunpack.c.l.b16 %v388
        %v2621 = vunpack.c.h.b16 %v388
        %v2622 = vunpack.c.l.b16 %v389
        %v2623 = vunpack.c.h.b16 %v389
        %v2624 = vunpack.c.l.b16 %v390
        %v2625 = vunpack.c.h.b16 %v390
        %v2626 = vunpack.c.l.b16 %v391
        %v2627 = vunpack.c.h.b16 %v391
        %v2628 = vunpack.c.l.b16 %v392
        %v2629 = vunpack.c.h.b16 %v392
        %v2630 = vunpack.c.l.b16 %v393
        %v2631 = vunpack.c.h.b16 %v393
        %v2632 = vunpack.c.l.b16 %v394
        %v2633 = vunpack.c.h.b16 %v394
        %v2634 = vunpack.c.l.b16 %v395
        %v2635 = vunpack.c.h.b16 %v395
        %v2636 = vunpack.c.l.b16 %v396
        %v2637 = vunpack.c.h.b16 %v396
        %v2638 = vunpack.c.l.b16 %v397
        %v2639 = vunpack.c.h.b16 %v397
        %v2640 = vunpack.c.l.b16 %v398
        %v2641 = vunpack.c.h.b16 %v398
        %v2642 = vunpack.c.l.b16 %v399
        %v2643 = vunpack.c.h.b16 %v399
        %v2644 = vunpack.c.l.b16 %v400
        %v2645 = vunpack.c.h.b16 %v400
        %v2646 = vunpack.c.l.b16 %v401
        %v2647 = vunpack.c.h.b16 %v401
        %v2648 = vunpack.c.l.b16 %v402
        %v2649 = vunpack.c.h.b16 %v402
        %v2650 = vunpack.c.l.b16 %v403
        %v2651 = vunpack.c.h.b16 %v403
        %v2652 = vunpack.c.l.b16 %v404
        %v2653 = vunpack.c.h.b16 %v404
        %v2654 = vunpack.c.l.b16 %v405
        %v2655 = vunpack.c.h.b16 %v405
        %v2656 = vunpack.c.l.b16 %v406
        %v2657 = vunpack.c.h.b16 %v406
        %v2658 = vunpack.c.l.b16 %v407
        %v2659 = vunpack.c.h.b16 %v407
        %v2660 = vunpack.c.l.b16 %v408
        %v2661 = vunpack.c.h.b16 %v408
        %v2662 = vunpack.c.l.b16 %v409
        %v2663 = vunpack.c.h.b16 %v409
        %v2664 = vunpack.c.l.b16 %v410
        %v2665 = vunpack.c.h.b16 %v410
        %v2666 = vunpack.c.l.b16 %v411
        %v2667 = vunpack.c.h.b16 %v411
        %v2668 = vunpack.c.l.b16 %v412
        %v2669 = vunpack.c.h.b16 %v412
        %v2670 = vunpack.c.l.b16 %v413
        %v2671 = vunpack.c.h.b16 %v413
        %v2672 = vunpack.c.l.b16 %v414
        %v2673 = vunpack.c.h.b16 %v414
        %v2674 = vunpack.c.l.b16 %v415
        %v2675 = vunpack.c.h.b16 %v415
        %v2676 = vunpack.c.l.b16 %v416
        %v2677 = vunpack.c.h.b16 %v416
        %v2678 = vunpack.c.l.b16 %v417
        %v2679 = vunpack.c.h.b16 %v417
        %v2680 = vunpack.c.l.b16 %v418
        %v2681 = vunpack.c.h.b16 %v418
        %v2682 = vunpack.c.l.b16 %v419
        %v2683 = vunpack.c.h.b16 %v419
        %v2684 = vunpack.c.l.b16 %v420
        %v2685 = vunpack.c.h.b16 %v420
        %v2686 = vunpack.c.l.b16 %v421
        %v2687 = vunpack.c.h.b16 %v421
        %v2688 = vunpack.c.l.b16 %v422
        %v2689 = vunpack.c.h.b16 %v422
        %v2690 = vunpack.c.l.b16 %v423
        %v2691 = vunpack.c.h.b16 %v423
        %v2692 = vunpack.c.l.b16 %v424
        %v2693 = vunpack.c.h.b16 %v424
        %v2694 = vunpack.c.l.b16 %v425
        %v2695 = vunpack.c.h.b16 %v425
        %v2696 = vunpack.c.l.b16 %v426
        %v2697 = vunpack.c.h.b16 %v426
        %v2698 = vunpack.c.l.b16 %v427
        %v2699 = vunpack.c.h.b16 %v427
        %v2700 = vunpack.c.l.b16 %v428
        %v2701 = vunpack.c.h.b16 %v428
        %v2702 = vunpack.c.l.b16 %v429
        %v2703 = vunpack.c.h.b16 %v429
        %v2704 = vunpack.c.l.b16 %v430
        %v2705 = vunpack.c.h.b16 %v430
        %v2706 = vunpack.c.l.b16 %v431
        %v2707 = vunpack.c.h.b16 %v431
        %v2708 = vunpack.c.l.b16 %v432
        %v2709 = vunpack.c.h.b16 %v432
        %v2710 = vunpack.c.l.b16 %v433
        %v2711 = vunpack.c.h.b16 %v433
        %v2712 = vunpack.c.l.b16 %v434
        %v2713 = vunpack.c.h.b16 %v434
        %v2714 = vunpack.c.l.b16 %v435
        %v2715 = vunpack.c.h.b16 %v435
        %v2716 = vunpack.c.l.b16 %v436
        %v2717 = vunpack.c.h.b16 %v436
        %v2718 = vunpack.c.l.b16 %v437
        %v2719 = vunpack.c.h.b16 %v437
        %v2720 = vunpack.c.l.b16 %v438
        %v2721 = vunpack.c.h.b16 %v438
        %v2722 = vunpack.c.l.b16 %v439
        %v2723 = vunpack.c.h.b16 %v439
        %v2724 = vunpack.c.l.b16 %v440
        %v2725 = vunpack.c.h.b16 %v440
        %v2726 = vunpack.c.l.b16 %v441
        %v2727 = vunpack.c.h.b16 %v441
        %v2728 = vunpack.c.l.b16 %v442
        %v2729 = vunpack.c.h.b16 %v442
        %v2730 = vunpack.c.l.b16 %v443
        %v2731 = vunpack.c.h.b16 %v443
        %v2732 = vunpack.c.l.b16 %v444
        %v2733 = vunpack.c.h.b16 %v444
        %v2734 = vunpack.c.l.b16 %v445
        %v2735 = vunpack.c.h.b16 %v445
        %v2736 = vunpack.c.l.b16 %v446
        %v2737 = vunpack.c.h.b16 %v446
        %v2738 = vunpack.c.l.b16 %v447
        %v2739 = vunpack.c.h.b16 %v447
        %v2740 = vunpack.c.l.b16 %v448
        %v2741 = vunpack.c.h.b16 %v448
        %v2742 = vunpack.c.l.b16 %v449
        %v2743 = vunpack.c.h.b16 %v449
        %v2744 = vunpack.c.l.b16 %v450
        %v2745 = vunpack.c.h.b16 %v450
        %v2746 = vunpack.c.l.b16 %v451
        %v2747 = vunpack.c.h.b16 %v451
        %v2748 = vunpack.c.l.b16 %v452
        %v2749 = vunpack.c.h.b16 %v452
        %v2750 = vunpack.c.l.b16 %v453
        %v2751 = vunpack.c.h.b16 %v453
        %v2752 = vunpack.c.l.b16 %v454
        %v2753 = vunpack.c.h.b16 %v454
        %v2754 = vunpack.c.l.b16 %v455
        %v2755 = vunpack.c.h.b16 %v455
        %v2756 = vunpack.c.l.b16 %v456
        %v2757 = vunpack.c.h.b16 %v456
        %v2758 = vunpack.c.l.b16 %v457
        %v2759 = vunpack.c.h.b16 %v457
        %v2760 = vunpack.c.l.b16 %v458
        %v2761 = vunpack.c.h.b16 %v458
        %v2762 = vunpack.c.l.b16 %v459
        %v2763 = vunpack.c.h.b16 %v459
        %v2764 = vunpack.c.l.b16 %v460
        %v2765 = vunpack.c.h.b16 %v460
        %v2766 = vunpack.c.l.b16 %v461
        %v2767 = vunpack.c.h.b16 %v461
        %v2768 = vunpack.c.l.b16 %v462
        %v2769 = vunpack.c.h.b16 %v462
        %v2770 = vunpack.c.l.b16 %v463
        %v2771 = vunpack.c.h.b16 %v463
        %v2772 = vunpack.c.l.b16 %v464
        %v2773 = vunpack.c.h.b16 %v464
        %v2774 = vunpack.c.l.b16 %v465
        %v2775 = vunpack.c.h.b16 %v465
        %v2776 = vunpack.c.l.b16 %v466
        %v2777 = vunpack.c.h.b16 %v466
        %v2778 = vunpack.c.l.b16 %v467
        %v2779 = vunpack.c.h.b16 %v467
        %v2780 = vunpack.c.l.b16 %v468
        %v2781 = vunpack.c.h.b16 %v468
        %v2782 = vunpack.c.l.b16 %v469
        %v2783 = vunpack.c.h.b16 %v469
        %v2784 = vunpack.c.l.b16 %v470
        %v2785 = vunpack.c.h.b16 %v470
        %v2786 = vunpack.c.l.b16 %v471
        %v2787 = vunpack.c.h.b16 %v471
        %v2788 = vunpack.c.l.b16 %v472
        %v2789 = vunpack.c.h.b16 %v472
        %v2790 = vunpack.c.l.b16 %v473
        %v2791 = vunpack.c.h.b16 %v473
        %v2792 = vunpack.c.l.b16 %v474
        %v2793 = vunpack.c.h.b16 %v474
        %v2794 = vunpack.c.l.b16 %v475
        %v2795 = vunpack.c.h.b16 %v475
        %v2796 = vunpack.c.l.b16 %v476
        %v2797 = vunpack.c.h.b16 %v476
        %v2798 = vunpack.c.l.b16 %v477
        %v2799 = vunpack.c.h.b16 %v477
        %v2800 = vunpack.c.l.b16 %v478
        %v2801 = vunpack.c.h.b16 %v478
        %v2802 = vunpack.c.l.b16 %v479
        %v2803 = vunpack.c.h.b16 %v479
        %v2804 = vunpack.c.l.b16 %v480
        %v2805 = vunpack.c.h.b16 %v480
        %v2806 = vunpack.c.l.b16 %v481
        %v2807 = vunpack.c.h.b16 %v481
        %v2808 = vunpack.c.l.b16 %v482
        %v2809 = vunpack.c.h.b16 %v482
        %v2810 = vunpack.c.l.b16 %v483
        %v2811 = vunpack.c.h.b16 %v483
        %v2812 = vunpack.c.l.b16 %v484
        %v2813 = vunpack.c.h.b16 %v484
        %v2814 = vunpack.c.l.b16 %v485
        %v2815 = vunpack.c.h.b16 %v485
        %v2816 = vunpack.c.l.b16 %v486
        %v2817 = vunpack.c.h.b16 %v486
        %v2818 = vunpack.c.l.b16 %v487
        %v2819 = vunpack.c.h.b16 %v487
        %v2820 = vunpack.c.l.b16 %v488
        %v2821 = vunpack.c.h.b16 %v488
        %v2822 = vunpack.c.l.b16 %v489
        %v2823 = vunpack.c.h.b16 %v489
        %v2824 = vunpack.c.l.b16 %v490
        %v2825 = vunpack.c.h.b16 %v490
        %v2826 = vunpack.c.l.b16 %v491
        %v2827 = vunpack.c.h.b16 %v491
        %v2828 = vunpack.c.l.b16 %v492
        %v2829 = vunpack.c.h.b16 %v492
        %v2830 = vunpack.c.l.b16 %v493
        %v2831 = vunpack.c.h.b16 %v493
        %v2832 = vunpack.c.l.b16 %v494
        %v2833 = vunpack.c.h.b16 %v494
        %v2834 = vunpack.c.l.b16 %v495
        %v2835 = vunpack.c.h.b16 %v495
        %v2836 = vunpack.c.l.b16 %v496
        %v2837 = vunpack.c.h.b16 %v496
        %v2838 = vunpack.c.l.b16 %v497
        %v2839 = vunpack.c.h.b16 %v497
        %v2840 = vunpack.c.l.b16 %v498
        %v2841 = vunpack.c.h.b16 %v498
        %v2842 = vunpack.c.l.b16 %v499
        %v2843 = vunpack.c.h.b16 %v499
        %v2844 = vunpack.c.l.b16 %v500
        %v2845 = vunpack.c.h.b16 %v500
        %v2846 = vunpack.c.l.b16 %v501
        %v2847 = vunpack.c.h.b16 %v501
        %v2848 = vunpack.c.l.b16 %v502
        %v2849 = vunpack.c.h.b16 %v502
        %v2850 = vunpack.c.l.b16 %v503
        %v2851 = vunpack.c.h.b16 %v503
        %v2852 = vunpack.c.l.b16 %v504
        %v2853 = vunpack.c.h.b16 %v504
        %v2854 = vunpack.c.l.b16 %v505
        %v2855 = vunpack.c.h.b16 %v505
        %v2856 = vunpack.c.l.b16 %v506
        %v2857 = vunpack.c.h.b16 %v506
        %v2858 = vunpack.c.l.b16 %v507
        %v2859 = vunpack.c.h.b16 %v507
        %v2860 = vunpack.c.l.b16 %v508
        %v2861 = vunpack.c.h.b16 %v508
        %v2862 = vunpack.c.l.b16 %v509
        %v2863 = vunpack.c.h.b16 %v509
        %v2864 = vunpack.c.l.b16 %v510
        %v2865 = vunpack.c.h.b16 %v510
        %v2866 = vunpack.c.l.b16 %v511
        %v2867 = vunpack.c.h.b16 %v511
        %v2868 = vunpack.c.l.b16 %v512
        %v2869 = vunpack.c.h.b16 %v512
        %v2870 = vunpack.c.l.b16 %v513
        %v2871 = vunpack.c.h.b16 %v513
        %v2872 = vunpack.c.l.b16 %v514
        %v2873 = vunpack.c.h.b16 %v514
        %v2874 = vunpack.c.l.b16 %v515
        %v2875 = vunpack.c.h.b16 %v515
        %v2876 = vunpack.c.l.b16 %v516
        %v2877 = vunpack.c.h.b16 %v516
        %v2878 = vunpack.c.l.b16 %v517
        %v2879 = vunpack.c.h.b16 %v517
        %v2880 = vunpack.c.l.b16 %v518
        %v2881 = vunpack.c.h.b16 %v518
        %v2882 = vunpack.c.l.b16 %v519
        %v2883 = vunpack.c.h.b16 %v519
        %v2884 = vunpack.c.l.b16 %v520
        %v2885 = vunpack.c.h.b16 %v520
        %v2886 = vunpack.c.l.b16 %v521
        %v2887 = vunpack.c.h.b16 %v521
        %v2888 = vunpack.c.l.b16 %v522
        %v2889 = vunpack.c.h.b16 %v522
        %v2890 = vunpack.c.l.b16 %v523
        %v2891 = vunpack.c.h.b16 %v523
        %v2892 = vunpack.c.l.b16 %v524
        %v2893 = vunpack.c.h.b16 %v524
        %v2894 = vunpack.c.l.b16 %v525
        %v2895 = vunpack.c.h.b16 %v525
        %v2896 = vunpack.c.l.b16 %v526
        %v2897 = vunpack.c.h.b16 %v526
        %v2898 = vunpack.c.l.b16 %v527
        %v2899 = vunpack.c.h.b16 %v527
        %v2900 = vunpack.c.l.b16 %v528
        %v2901 = vunpack.c.h.b16 %v528
        %v2902 = vunpack.c.l.b16 %v529
        %v2903 = vunpack.c.h.b16 %v529
        %v2904 = vunpack.c.l.b16 %v530
        %v2905 = vunpack.c.h.b16 %v530
        %v2906 = vunpack.c.l.b16 %v531
        %v2907 = vunpack.c.h.b16 %v531
        %v2908 = vunpack.c.l.b16 %v532
        %v2909 = vunpack.c.h.b16 %v532
        %v2910 = vunpack.c.l.b16 %v533
        %v2911 = vunpack.c.h.b16 %v533
        %v2912 = vunpack.c.l.b16 %v534
        %v2913 = vunpack.c.h.b16 %v534
        %v2914 = vunpack.c.l.b16 %v535
        %v2915 = vunpack.c.h.b16 %v535
        %v2916 = vunpack.c.l.b16 %v536
        %v2917 = vunpack.c.h.b16 %v536
        %v2918 = vunpack.c.l.b16 %v537
        %v2919 = vunpack.c.h.b16 %v537
        %v2920 = vunpack.c.l.b16 %v538
        %v2921 = vunpack.c.h.b16 %v538
        %v2922 = vunpack.c.l.b16 %v539
        %v2923 = vunpack.c.h.b16 %v539
        %v2924 = vunpack.c.l.b16 %v540
        %v2925 = vunpack.c.h.b16 %v540
        %v2926 = vunpack.c.l.b16 %v541
        %v2927 = vunpack.c.h.b16 %v541
        %v2928 = vunpack.c.l.b16 %v542
        %v2929 = vunpack.c.h.b16 %v542
        %v2930 = vunpack.c.l.b16 %v543
        %v2931 = vunpack.c.h.b16 %v543
        %v2932 = vunpack.c.l.b16 %v544
        %v2933 = vunpack.c.h.b16 %v544
        %v2934 = vunpack.c.l.b16 %v545
        %v2935 = vunpack.c.h.b16 %v545
        %v2936 = vunpack.c.l.b16 %v546
        %v2937 = vunpack.c.h.b16 %v546
        %v2938 = vunpack.c.l.b16 %v547
        %v2939 = vunpack.c.h.b16 %v547
        %v2940 = vunpack.c.l.b16 %v548
        %v2941 = vunpack.c.h.b16 %v548
        %v2942 = vunpack.c.l.b16 %v549
        %v2943 = vunpack.c.h.b16 %v549
        %v2944 = vunpack.c.l.b16 %v550
        %v2945 = vunpack.c.h.b16 %v550
        %v2946 = vunpack.c.l.b16 %v551
        %v2947 = vunpack.c.h.b16 %v551
        %v2948 = vunpack.c.l.b16 %v552
        %v2949 = vunpack.c.h.b16 %v552
        %v2950 = vunpack.c.l.b16 %v553
        %v2951 = vunpack.c.h.b16 %v553
        %v2952 = vunpack.c.l.b16 %v554
        %v2953 = vunpack.c.h.b16 %v554
        %v2954 = vunpack.c.l.b16 %v555
        %v2955 = vunpack.c.h.b16 %v555
        %v2956 = vunpack.c.l.b16 %v556
        %v2957 = vunpack.c.h.b16 %v556
        %v2958 = vunpack.c.l.b16 %v557
        %v2959 = vunpack.c.h.b16 %v557
        %v2960 = vunpack.c.l.b16 %v558
        %v2961 = vunpack.c.h.b16 %v558
        %v2962 = vunpack.c.l.b16 %v559
        %v2963 = vunpack.c.h.b16 %v559
        %v2964 = vunpack.c.l.b16 %v560
        %v2965 = vunpack.c.h.b16 %v560
        %v2966 = vunpack.c.l.b16 %v561
        %v2967 = vunpack.c.h.b16 %v561
        %v2968 = vunpack.c.l.b16 %v562
        %v2969 = vunpack.c.h.b16 %v562
        %v2970 = vunpack.c.l.b16 %v563
        %v2971 = vunpack.c.h.b16 %v563
        %v2972 = vunpack.c.l.b16 %v564
        %v2973 = vunpack.c.h.b16 %v564
        %v2974 = vunpack.c.l.b16 %v565
        %v2975 = vunpack.c.h.b16 %v565
        %v2976 = vunpack.c.l.b16 %v566
        %v2977 = vunpack.c.h.b16 %v566
        %v2978 = vunpack.c.l.b16 %v567
        %v2979 = vunpack.c.h.b16 %v567
        %v2980 = vunpack.c.l.b16 %v568
        %v2981 = vunpack.c.h.b16 %v568
        %v2982 = vunpack.c.l.b16 %v569
        %v2983 = vunpack.c.h.b16 %v569
        %v2984 = vunpack.c.l.b16 %v570
        %v2985 = vunpack.c.h.b16 %v570
        %v2986 = vunpack.c.l.b16 %v571
        %v2987 = vunpack.c.h.b16 %v571
        %v2988 = vunpack.c.l.b16 %v572
        %v2989 = vunpack.c.h.b16 %v572
        %v2990 = vunpack.c.l.b16 %v573
        %v2991 = vunpack.c.h.b16 %v573
        %v2992 = vunpack.c.l.b16 %v574
        %v2993 = vunpack.c.h.b16 %v574
        %v2994 = vunpack.c.l.b16 %v575
        %v2995 = vunpack.c.h.b16 %v575
        %v2996 = vunpack.c.l.b16 %v576
        %v2997 = vunpack.c.h.b16 %v576
        %v2998 = vunpack.c.l.b16 %v577
        %v2999 = vunpack.c.h.b16 %v577
        %v3000 = vunpack.c.l.b16 %v578
        %v3001 = vunpack.c.h.b16 %v578
        %v3002 = vunpack.c.l.b16 %v579
        %v3003 = vunpack.c.h.b16 %v579
        %v3004 = vunpack.c.l.b16 %v580
        %v3005 = vunpack.c.h.b16 %v580
        %v3006 = vunpack.c.l.b16 %v581
        %v3007 = vunpack.c.h.b16 %v581
        %v3008 = vunpack.c.l.b16 %v582
        %v3009 = vunpack.c.h.b16 %v582
        %v3010 = vunpack.c.l.b16 %v583
        %v3011 = vunpack.c.h.b16 %v583
        %v3012 = vunpack.c.l.b16 %v584
        %v3013 = vunpack.c.h.b16 %v584
        %v3014 = vunpack.c.l.b16 %v585
        %v3015 = vunpack.c.h.b16 %v585
        %v3016 = vunpack.c.l.b16 %v586
        %v3017 = vunpack.c.h.b16 %v586
        %v3018 = vunpack.c.l.b16 %v587
        %v3019 = vunpack.c.h.b16 %v587
        %v3020 = vunpack.c.l.b16 %v588
        %v3021 = vunpack.c.h.b16 %v588
        %v3022 = vunpack.c.l.b16 %v589
        %v3023 = vunpack.c.h.b16 %v589
        %v3024 = vunpack.c.l.b16 %v590
        %v3025 = vunpack.c.h.b16 %v590
        %v3026 = vunpack.c.l.b16 %v591
        %v3027 = vunpack.c.h.b16 %v591
        %v3028 = vunpack.c.l.b16 %v592
        %v3029 = vunpack.c.h.b16 %v592
        %v3030 = vunpack.c.l.b16 %v593
        %v3031 = vunpack.c.h.b16 %v593
        %v3032 = vunpack.c.l.b16 %v594
        %v3033 = vunpack.c.h.b16 %v594
        %v3034 = vunpack.c.l.b16 %v595
        %v3035 = vunpack.c.h.b16 %v595
        %v3036 = vunpack.c.l.b16 %v596
        %v3037 = vunpack.c.h.b16 %v596
        %v3038 = vunpack.c.l.b16 %v597
        %v3039 = vunpack.c.h.b16 %v597
        %v3040 = vunpack.c.l.b16 %v598
        %v3041 = vunpack.c.h.b16 %v598
        %v3042 = vunpack.c.l.b16 %v599
        %v3043 = vunpack.c.h.b16 %v599
        %v3044 = vunpack.c.l.b16 %v600
        %v3045 = vunpack.c.h.b16 %v600
        %v3046 = vunpack.c.l.b16 %v601
        %v3047 = vunpack.c.h.b16 %v601
        %v3048 = vunpack.c.l.b16 %v602
        %v3049 = vunpack.c.h.b16 %v602
        %v3050 = vunpack.c.l.b16 %v603
        %v3051 = vunpack.c.h.b16 %v603
        %v3052 = vunpack.c.l.b16 %v604
        %v3053 = vunpack.c.h.b16 %v604
        %v3054 = vunpack.c.l.b16 %v605
        %v3055 = vunpack.c.h.b16 %v605
        %v3056 = vunpack.c.l.b16 %v606
        %v3057 = vunpack.c.h.b16 %v606
        %v3058 = vunpack.c.l.b16 %v607
        %v3059 = vunpack.c.h.b16 %v607
        %v3060 = vunpack.c.l.b16 %v608
        %v3061 = vunpack.c.h.b16 %v608
        %v3062 = vunpack.c.l.b16 %v609
        %v3063 = vunpack.c.h.b16 %v609
        %v3064 = vunpack.c.l.b16 %v610
        %v3065 = vunpack.c.h.b16 %v610
        %v3066 = vunpack.c.l.b16 %v611
        %v3067 = vunpack.c.h.b16 %v611
        %v3068 = vunpack.c.l.b16 %v612
        %v3069 = vunpack.c.h.b16 %v612
        %v3070 = vunpack.c.l.b16 %v613
        %v3071 = vunpack.c.h.b16 %v613
        %v3072 = vunpack.c.l.b16 %v614
        %v3073 = vunpack.c.h.b16 %v614
        %v3074 = vunpack.c.l.b16 %v615
        %v3075 = vunpack.c.h.b16 %v615
        %v3076 = vunpack.c.l.b16 %v616
        %v3077 = vunpack.c.h.b16 %v616
        %v3078 = vunpack.c.l.b16 %v617
        %v3079 = vunpack.c.h.b16 %v617
        %v3080 = vunpack.c.l.b16 %v618
        %v3081 = vunpack.c.h.b16 %v618
        %v3082 = vunpack.c.l.b16 %v619
        %v3083 = vunpack.c.h.b16 %v619
        %v3084 = vunpack.c.l.b16 %v620
        %v3085 = vunpack.c.h.b16 %v620
        %v3086 = vunpack.c.l.b16 %v621
        %v3087 = vunpack.c.h.b16 %v621
        %v3088 = vunpack.c.l.b16 %v622
        %v3089 = vunpack.c.h.b16 %v622
        %v3090 = vunpack.c.l.b16 %v623
        %v3091 = vunpack.c.h.b16 %v623
        %v3092 = vunpack.c.l.b16 %v624
        %v3093 = vunpack.c.h.b16 %v624
        %v3094 = vunpack.c.l.b16 %v625
        %v3095 = vunpack.c.h.b16 %v625
        %v3096 = vunpack.c.l.b16 %v626
        %v3097 = vunpack.c.h.b16 %v626
        %v3098 = vunpack.c.l.b16 %v627
        %v3099 = vunpack.c.h.b16 %v627
        %v3100 = vunpack.c.l.b16 %v628
        %v3101 = vunpack.c.h.b16 %v628
        %v3102 = vunpack.c.l.b16 %v629
        %v3103 = vunpack.c.h.b16 %v629
        %v3104 = vunpack.c.l.b16 %v630
        %v3105 = vunpack.c.h.b16 %v630
        %v3106 = vunpack.c.l.b16 %v631
        %v3107 = vunpack.c.h.b16 %v631
        %v3108 = vunpack.c.l.b16 %v632
        %v3109 = vunpack.c.h.b16 %v632
        %v3110 = vunpack.c.l.b16 %v633
        %v3111 = vunpack.c.h.b16 %v633
        %v3112 = vunpack.c.l.b16 %v634
        %v3113 = vunpack.c.h.b16 %v634
        %v3114 = vunpack.c.l.b16 %v635
        %v3115 = vunpack.c.h.b16 %v635
        %v3116 = vunpack.c.l.b16 %v636
        %v3117 = vunpack.c.h.b16 %v636
        %v3118 = vunpack.c.l.b16 %v637
        %v3119 = vunpack.c.h.b16 %v637
        %v3120 = vunpack.c.l.b16 %v638
        %v3121 = vunpack.c.h.b16 %v638
        %v3122 = vunpack.c.l.b16 %v639
        %v3123 = vunpack.c.h.b16 %v639
        %v3124 = vunpack.c.l.b16 %v640
        %v3125 = vunpack.c.h.b16 %v640
        %v3126 = vunpack.c.l.b16 %v641
        %v3127 = vunpack.c.h.b16 %v641
        %v3128 = vunpack.c.l.b16 %v642
        %v3129 = vunpack.c.h.b16 %v642
        %v3130 = vunpack.c.l.b16 %v643
        %v3131 = vunpack.c.h.b16 %v643
        %v3132 = vunpack.c.l.b16 %v644
        %v3133 = vunpack.c.h.b16 %v644
        %v3134 = vunpack.c.l.b16 %v645
        %v3135 = vunpack.c.h.b16 %v645
        %v3136 = vunpack.c.l.b16 %v646
        %v3137 = vunpack.c.h.b16 %v646
        %v3138 = vunpack.c.l.b16 %v647
        %v3139 = vunpack.c.h.b16 %v647
        %v3140 = vunpack.c.l.b16 %v648
        %v3141 = vunpack.c.h.b16 %v648
        %v3142 = vunpack.c.l.b16 %v649
        %v3143 = vunpack.c.h.b16 %v649
        %v3144 = vunpack.c.l.b16 %v650
        %v3145 = vunpack.c.h.b16 %v650
        %v3146 = vunpack.c.l.b16 %v651
        %v3147 = vunpack.c.h.b16 %v651
        %v3148 = vunpack.c.l.b16 %v652
        %v3149 = vunpack.c.h.b16 %v652
        %v3150 = vunpack.c.l.b16 %v653
        %v3151 = vunpack.c.h.b16 %v653
        %v3152 = vunpack.c.l.b16 %v654
        %v3153 = vunpack.c.h.b16 %v654
        %v3154 = vunpack.c.l.b16 %v655
        %v3155 = vunpack.c.h.b16 %v655
        %v3156 = vunpack.c.l.b16 %v656
        %v3157 = vunpack.c.h.b16 %v656
        %v3158 = vunpack.c.l.b16 %v657
        %v3159 = vunpack.c.h.b16 %v657
        %v3160 = vunpack.c.l.b16 %v658
        %v3161 = vunpack.c.h.b16 %v658
        %v3162 = vunpack.c.l.b16 %v659
        %v3163 = vunpack.c.h.b16 %v659
        %v3164 = vunpack.c.l.b16 %v660
        %v3165 = vunpack.c.h.b16 %v660
        %v3166 = vunpack.c.l.b16 %v661
        %v3167 = vunpack.c.h.b16 %v661
        %v3168 = vunpack.c.l.b16 %v662
        %v3169 = vunpack.c.h.b16 %v662
        %v3170 = vunpack.c.l.b16 %v663
        %v3171 = vunpack.c.h.b16 %v663
        %v3172 = vunpack.c.l.b16 %v664
        %v3173 = vunpack.c.h.b16 %v664
        %v3174 = vunpack.c.l.b16 %v665
        %v3175 = vunpack.c.h.b16 %v665
        %v3176 = vunpack.c.l.b16 %v666
        %v3177 = vunpack.c.h.b16 %v666
        %v3178 = vunpack.c.l.b16 %v667
        %v3179 = vunpack.c.h.b16 %v667
        %v3180 = vunpack.c.l.b16 %v668
        %v3181 = vunpack.c.h.b16 %v668
        %v3182 = vunpack.c.l.b16 %v669
        %v3183 = vunpack.c.h.b16 %v669
        %v3184 = vunpack.c.l.b16 %v670
        %v3185 = vunpack.c.h.b16 %v670
        %v3186 = vunpack.c.l.b16 %v671
        %v3187 = vunpack.c.h.b16 %v671
        %v3188 = vunpack.c.l.b16 %v672
        %v3189 = vunpack.c.h.b16 %v672
        %v3190 = vunpack.c.l.b16 %v673
        %v3191 = vunpack.c.h.b16 %v673
        %v3192 = vunpack.c.l.b16 %v674
        %v3193 = vunpack.c.h.b16 %v674
        %v3194 = vunpack.c.l.b16 %v675
        %v3195 = vunpack.c.h.b16 %v675
        %v3196 = vunpack.c.l.b16 %v676
        %v3197 = vunpack.c.h.b16 %v676
        %v3198 = vunpack.c.l.b16 %v677
        %v3199 = vunpack.c.h.b16 %v677
        %v3200 = vunpack.c.l.b16 %v678
        %v3201 = vunpack.c.h.b16 %v678
        %v3202 = vunpack.c.l.b16 %v679
        %v3203 = vunpack.c.h.b16 %v679
        %v3204 = vunpack.c.l.b16 %v680
        %v3205 = vunpack.c.h.b16 %v680
        %v3206 = vunpack.c.l.b16 %v681
        %v3207 = vunpack.c.h.b16 %v681
        %v3208 = vunpack.c.l.b16 %v682
        %v3209 = vunpack.c.h.b16 %v682
        %v3210 = vunpack.c.l.b16 %v683
        %v3211 = vunpack.c.h.b16 %v683
        %v3212 = vunpack.c.l.b16 %v684
        %v3213 = vunpack.c.h.b16 %v684
        %v3214 = vunpack.c.l.b16 %v685
        %v3215 = vunpack.c.h.b16 %v685
        %v3216 = vunpack.c.l.b16 %v686
        %v3217 = vunpack.c.h.b16 %v686
        %v3218 = vunpack.c.l.b16 %v687
        %v3219 = vunpack.c.h.b16 %v687
        %v3220 = vunpack.c.l.b16 %v688
        %v3221 = vunpack.c.h.b16 %v688
        %v3222 = vunpack.c.l.b16 %v689
        %v3223 = vunpack.c.h.b16 %v689
        %v3224 = vunpack.c.l.b16 %v690
        %v3225 = vunpack.c.h.b16 %v690
        %v3226 = vunpack.c.l.b16 %v691
        %v3227 = vunpack.c.h.b16 %v691
        %v3228 = vunpack.c.l.b16 %v692
        %v3229 = vunpack.c.h.b16 %v692
        %v3230 = vunpack.c.l.b16 %v693
        %v3231 = vunpack.c.h.b16 %v693
        %v3232 = vunpack.c.l.b16 %v694
        %v3233 = vunpack.c.h.b16 %v694
        %v3234 = vunpack.c.l.b16 %v695
        %v3235 = vunpack.c.h.b16 %v695
        %v3236 = vunpack.c.l.b16 %v696
        %v3237 = vunpack.c.h.b16 %v696
        %v3238 = vunpack.c.l.b16 %v697
        %v3239 = vunpack.c.h.b16 %v697
        %v3240 = vunpack.c.l.b16 %v698
        %v3241 = vunpack.c.h.b16 %v698
        %v3242 = vunpack.c.l.b16 %v699
        %v3243 = vunpack.c.h.b16 %v699
        %v3244 = vunpack.c.l.b16 %v700
        %v3245 = vunpack.c.h.b16 %v700
        %v3246 = vunpack.c.l.b16 %v701
        %v3247 = vunpack.c.h.b16 %v701
        %v3248 = vunpack.c.l.b16 %v702
        %v3249 = vunpack.c.h.b16 %v702
        %v3250 = vunpack.c.l.b16 %v703
        %v3251 = vunpack.c.h.b16 %v703
        %v3252 = vunpack.c.l.b16 %v704
        %v3253 = vunpack.c.h.b16 %v704
        %v3254 = vunpack.c.l.b16 %v705
        %v3255 = vunpack.c.h.b16 %v705
        %v3256 = vunpack.c.l.b16 %v706
        %v3257 = vunpack.c.h.b16 %v706
        %v3258 = vunpack.c.l.b16 %v707
        %v3259 = vunpack.c.h.b16 %v707
        %v3260 = vunpack.c.l.b16 %v708
        %v3261 = vunpack.c.h.b16 %v708
        %v3262 = vunpack.c.l.b16 %v709
        %v3263 = vunpack.c.h.b16 %v709
        %v3264 = vunpack.c.l.b16 %v710
        %v3265 = vunpack.c.h.b16 %v710
        %v3266 = vunpack.c.l.b16 %v711
        %v3267 = vunpack.c.h.b16 %v711
        %v3268 = vunpack.c.l.b16 %v712
        %v3269 = vunpack.c.h.b16 %v712
        %v3270 = vunpack.c.l.b16 %v713
        %v3271 = vunpack.c.h.b16 %v713
        %v3272 = vunpack.c.l.b16 %v714
        %v3273 = vunpack.c.h.b16 %v714
        %v3274 = vunpack.c.l.b16 %v715
        %v3275 = vunpack.c.h.b16 %v715
        %v3276 = vunpack.c.l.b16 %v716
        %v3277 = vunpack.c.h.b16 %v716
        %v3278 = vunpack.c.l.b16 %v717
        %v3279 = vunpack.c.h.b16 %v717
        %v3280 = vunpack.c.l.b16 %v718
        %v3281 = vunpack.c.h.b16 %v718
        %v3282 = vunpack.c.l.b16 %v719
        %v3283 = vunpack.c.h.b16 %v719
        %v3284 = vunpack.c.l.b16 %v720
        %v3285 = vunpack.c.h.b16 %v720
        %v3286 = vunpack.c.l.b16 %v721
        %v3287 = vunpack.c.h.b16 %v721
        %v3288 = vunpack.c.l.b16 %v722
        %v3289 = vunpack.c.h.b16 %v722
        %v3290 = vunpack.c.l.b16 %v723
        %v3291 = vunpack.c.h.b16 %v723
        %v3292 = vunpack.c.l.b16 %v724
        %v3293 = vunpack.c.h.b16 %v724
        %v3294 = vunpack.c.l.b16 %v725
        %v3295 = vunpack.c.h.b16 %v725
        %v3296 = vunpack.c.l.b16 %v726
        %v3297 = vunpack.c.h.b16 %v726
        %v3298 = vunpack.c.l.b16 %v727
        %v3299 = vunpack.c.h.b16 %v727
        %v3300 = vunpack.c.l.b16 %v728
        %v3301 = vunpack.c.h.b16 %v728
        %v3302 = vunpack.c.l.b16 %v729
        %v3303 = vunpack.c.h.b16 %v729
        %v3304 = vunpack.c.l.b16 %v730
        %v3305 = vunpack.c.h.b16 %v730
        %v3306 = vunpack.c.l.b16 %v731
        %v3307 = vunpack.c.h.b16 %v731
        %v3308 = vunpack.c.l.b16 %v732
        %v3309 = vunpack.c.h.b16 %v732
        %v3310 = vunpack.c.l.b16 %v733
        %v3311 = vunpack.c.h.b16 %v733
        %v3312 = vunpack.c.l.b16 %v734
        %v3313 = vunpack.c.h.b16 %v734
        %v3314 = vunpack.c.l.b16 %v735
        %v3315 = vunpack.c.h.b16 %v735
        %v3316 = vunpack.c.l.b16 %v736
        %v3317 = vunpack.c.h.b16 %v736
        %v3318 = vunpack.c.l.b16 %v737
        %v3319 = vunpack.c.h.b16 %v737
        %v3320 = vunpack.c.l.b16 %v738
        %v3321 = vunpack.c.h.b16 %v738
        %v3322 = vunpack.c.l.b16 %v739
        %v3323 = vunpack.c.h.b16 %v739
        %v3324 = vunpack.c.l.b16 %v740
        %v3325 = vunpack.c.h.b16 %v740
        %v3326 = vunpack.c.l.b16 %v741
        %v3327 = vunpack.c.h.b16 %v741
        %v3328 = vunpack.c.l.b16 %v742
        %v3329 = vunpack.c.h.b16 %v742
        %v3330 = vunpack.c.l.b16 %v743
        %v3331 = vunpack.c.h.b16 %v743
        %v3332 = vunpack.c.l.b16 %v744
        %v3333 = vunpack.c.h.b16 %v744
        %v3334 = vunpack.c.l.b16 %v745
        %v3335 = vunpack.c.h.b16 %v745
        %v3336 = vunpack.c.l.b16 %v746
        %v3337 = vunpack.c.h.b16 %v746
        %v3338 = vunpack.c.l.b16 %v747
        %v3339 = vunpack.c.h.b16 %v747
        %v3340 = vunpack.c.l.b16 %v748
        %v3341 = vunpack.c.h.b16 %v748
        %v3342 = vunpack.c.l.b16 %v749
        %v3343 = vunpack.c.h.b16 %v749
        %v3344 = vunpack.c.l.b16 %v750
        %v3345 = vunpack.c.h.b16 %v750
        %v3346 = vunpack.c.l.b16 %v751
        %v3347 = vunpack.c.h.b16 %v751
        %v3348 = vunpack.c.l.b16 %v752
        %v3349 = vunpack.c.h.b16 %v752
        %v3350 = vunpack.c.l.b16 %v753
        %v3351 = vunpack.c.h.b16 %v753
        %v3352 = vunpack.c.l.b16 %v754
        %v3353 = vunpack.c.h.b16 %v754
        %v3354 = vunpack.c.l.b16 %v755
        %v3355 = vunpack.c.h.b16 %v755
        %v3356 = vunpack.c.l.b16 %v756
        %v3357 = vunpack.c.h.b16 %v756
        %v3358 = vunpack.c.l.b16 %v757
        %v3359 = vunpack.c.h.b16 %v757
        %v3360 = vunpack.c.l.b16 %v758
        %v3361 = vunpack.c.h.b16 %v758
        %v3362 = vunpack.c.l.b16 %v759
        %v3363 = vunpack.c.h.b16 %v759
        %v3364 = vunpack.c.l.b16 %v760
        %v3365 = vunpack.c.h.b16 %v760
        %v3366 = vunpack.c.l.b16 %v761
        %v3367 = vunpack.c.h.b16 %v761
        %v3368 = vunpack.c.l.b16 %v762
        %v3369 = vunpack.c.h.b16 %v762
        %v3370 = vunpack.c.l.b16 %v763
        %v3371 = vunpack.c.h.b16 %v763
        %v3372 = vunpack.c.l.b16 %v764
        %v3373 = vunpack.c.h.b16 %v764
        %v3374 = vunpack.c.l.b16 %v765
        %v3375 = vunpack.c.h.b16 %v765
        %v3376 = vunpack.c.l.b16 %v766
        %v3377 = vunpack.c.h.b16 %v766
        %v3378 = vunpack.c.l.b16 %v767
        %v3379 = vunpack.c.h.b16 %v767
        %v3380 = vunpack.c.l.b16 %v768
        %v3381 = vunpack.c.h.b16 %v768
        %v3382 = vunpack.c.l.b16 %v769
        %v3383 = vunpack.c.h.b16 %v769
        %v3384 = vunpack.c.l.b16 %v770
        %v3385 = vunpack.c.h.b16 %v770
        %v3386 = vunpack.c.l.b16 %v771
        %v3387 = vunpack.c.h.b16 %v771
        %v3388 = vunpack.c.l.b16 %v772
        %v3389 = vunpack.c.h.b16 %v772
        %v3390 = vunpack.c.l.b16 %v773
        %v3391 = vunpack.c.h.b16 %v773
        %v3392 = vunpack.c.l.b16 %v774
        %v3393 = vunpack.c.h.b16 %v774
        %v3394 = vunpack.c.l.b16 %v775
        %v3395 = vunpack.c.h.b16 %v775
        %v3396 = vunpack.c.l.b16 %v776
        %v3397 = vunpack.c.h.b16 %v776
        %v3398 = vunpack.c.l.b16 %v777
        %v3399 = vunpack.c.h.b16 %v777
        %v3400 = vunpack.c.l.b16 %v778
        %v3401 = vunpack.c.h.b16 %v778
        %v3402 = vunpack.c.l.b16 %v779
        %v3403 = vunpack.c.h.b16 %v779
        %v3404 = vunpack.c.l.b16 %v780
        %v3405 = vunpack.c.h.b16 %v780
        %v3406 = vunpack.c.l.b16 %v781
        %v3407 = vunpack.c.h.b16 %v781
        %v3408 = vunpack.c.l.b16 %v782
        %v3409 = vunpack.c.h.b16 %v782
        %v3410 = vunpack.c.l.b16 %v783
        %v3411 = vunpack.c.h.b16 %v783
        %v3412 = vunpack.c.l.b16 %v784
        %v3413 = vunpack.c.h.b16 %v784
        %v3414 = vunpack.c.l.b16 %v785
        %v3415 = vunpack.c.h.b16 %v785
        %v3416 = vunpack.c.l.b16 %v786
        %v3417 = vunpack.c.h.b16 %v786
        %v3418 = vunpack.c.l.b16 %v787
        %v3419 = vunpack.c.h.b16 %v787
        %v3420 = vunpack.c.l.b16 %v788
        %v3421 = vunpack.c.h.b16 %v788
        %v3422 = vunpack.c.l.b16 %v789
        %v3423 = vunpack.c.h.b16 %v789
        %v3424 = vunpack.c.l.b16 %v790
        %v3425 = vunpack.c.h.b16 %v790
        %v3426 = vunpack.c.l.b16 %v791
        %v3427 = vunpack.c.h.b16 %v791
        %v3428 = vunpack.c.l.b16 %v792
        %v3429 = vunpack.c.h.b16 %v792
        %v3430 = vunpack.c.l.b16 %v793
        %v3431 = vunpack.c.h.b16 %v793
        %v3432 = vunpack.c.l.b16 %v794
        %v3433 = vunpack.c.h.b16 %v794
        %v3434 = vunpack.c.l.b16 %v795
        %v3435 = vunpack.c.h.b16 %v795
        %v3436 = vunpack.c.l.b16 %v796
        %v3437 = vunpack.c.h.b16 %v796
        %v3438 = vunpack.c.l.b16 %v797
        %v3439 = vunpack.c.h.b16 %v797
        %v3440 = vunpack.c.l.b16 %v798
        %v3441 = vunpack.c.h.b16 %v798
        %v3442 = vunpack.c.l.b16 %v799
        %v3443 = vunpack.c.h.b16 %v799
        %v3444 = vunpack.c.l.b16 %v800
        %v3445 = vunpack.c.h.b16 %v800
        %v3446 = vunpack.c.l.b16 %v801
        %v3447 = vunpack.c.h.b16 %v801
        %v3448 = vunpack.c.l.b16 %v802
        %v3449 = vunpack.c.h.b16 %v802
        %v3450 = vunpack.c.l.b16 %v803
        %v3451 = vunpack.c.h.b16 %v803
        %v3452 = vunpack.c.l.b16 %v804
        %v3453 = vunpack.c.h.b16 %v804
        %v3454 = vunpack.c.l.b16 %v805
        %v3455 = vunpack.c.h.b16 %v805
        %v3456 = vunpack.c.l.b16 %v806
        %v3457 = vunpack.c.h.b16 %v806
        %v3458 = vunpack.c.l.b16 %v807
        %v3459 = vunpack.c.h.b16 %v807
        %v3460 = vunpack.c.l.b16 %v808
        %v3461 = vunpack.c.h.b16 %v808
        %v3462 = vunpack.c.l.b16 %v809
        %v3463 = vunpack.c.h.b16 %v809
        %v3464 = vunpack.c.l.b16 %v810
        %v3465 = vunpack.c.h.b16 %v810
        %v3466 = vunpack.c.l.b16 %v811
        %v3467 = vunpack.c.h.b16 %v811
        %v3468 = vunpack.c.l.b16 %v812
        %v3469 = vunpack.c.h.b16 %v812
        %v3470 = vunpack.c.l.b16 %v813
        %v3471 = vunpack.c.h.b16 %v813
        %v3472 = vunpack.c.l.b16 %v814
        %v3473 = vunpack.c.h.b16 %v814
        %v3474 = vunpack.c.l.b16 %v815
        %v3475 = vunpack.c.h.b16 %v815
        %v3476 = vunpack.c.l.b16 %v816
        %v3477 = vunpack.c.h.b16 %v816
        %v3478 = vunpack.c.l.b16 %v817
        %v3479 = vunpack.c.h.b16 %v817
        %v3480 = vunpack.c.l.b16 %v818
        %v3481 = vunpack.c.h.b16 %v818
        %v3482 = vunpack.c.l.b16 %v819
        %v3483 = vunpack.c.h.b16 %v819
        %v3484 = vunpack.c.l.b16 %v820
        %v3485 = vunpack.c.h.b16 %v820
        %v3486 = vunpack.c.l.b16 %v821
        %v3487 = vunpack.c.h.b16 %v821
        %v3488 = vunpack.c.l.b16 %v822
        %v3489 = vunpack.c.h.b16 %v822
        %v3490 = vunpack.c.l.b16 %v823
        %v3491 = vunpack.c.h.b16 %v823
        %v3492 = vunpack.c.l.b16 %v824
        %v3493 = vunpack.c.h.b16 %v824
        %v3494 = vunpack.c.l.b16 %v825
        %v3495 = vunpack.c.h.b16 %v825
        %v3496 = vunpack.c.l.b16 %v826
        %v3497 = vunpack.c.h.b16 %v826
        %v3498 = vunpack.c.l.b16 %v827
        %v3499 = vunpack.c.h.b16 %v827
        %v3500 = vunpack.c.l.b16 %v828
        %v3501 = vunpack.c.h.b16 %v828
        %v3502 = vunpack.c.l.b16 %v829
        %v3503 = vunpack.c.h.b16 %v829
        %v3504 = vunpack.c.l.b16 %v830
        %v3505 = vunpack.c.h.b16 %v830
        %v3506 = vunpack.c.l.b16 %v831
        %v3507 = vunpack.c.h.b16 %v831
        %v3508 = vunpack.c.l.b16 %v832
        %v3509 = vunpack.c.h.b16 %v832
        %v3510 = vunpack.c.l.b16 %v833
        %v3511 = vunpack.c.h.b16 %v833
        %v3512 = vunpack.c.l.b16 %v834
        %v3513 = vunpack.c.h.b16 %v834
        %v3514 = vunpack.c.l.b16 %v835
        %v3515 = vunpack.c.h.b16 %v835
        %v3516 = vunpack.c.l.b16 %v836
        %v3517 = vunpack.c.h.b16 %v836
        %v3518 = vunpack.c.l.b16 %v837
        %v3519 = vunpack.c.h.b16 %v837
        %v3520 = vunpack.c.l.b16 %v838
        %v3521 = vunpack.c.h.b16 %v838
        %v3522 = vunpack.c.l.b16 %v839
        %v3523 = vunpack.c.h.b16 %v839
        %v3524 = vunpack.c.l.b16 %v840
        %v3525 = vunpack.c.h.b16 %v840
        %v3526 = vunpack.c.l.b16 %v841
        %v3527 = vunpack.c.h.b16 %v841
        %v3528 = vunpack.c.l.b16 %v842
        %v3529 = vunpack.c.h.b16 %v842
        %v3530 = vunpack.c.l.b16 %v843
        %v3531 = vunpack.c.h.b16 %v843
        %v3532 = vunpack.c.l.b16 %v844
        %v3533 = vunpack.c.h.b16 %v844
        %v3534 = vunpack.c.l.b16 %v845
        %v3535 = vunpack.c.h.b16 %v845
        %v3536 = vunpack.c.l.b16 %v846
        %v3537 = vunpack.c.h.b16 %v846
        %v3538 = vunpack.c.l.b16 %v847
        %v3539 = vunpack.c.h.b16 %v847
        %v3540 = vunpack.c.l.b16 %v848
        %v3541 = vunpack.c.h.b16 %v848
        %v3542 = vunpack.c.l.b16 %v849
        %v3543 = vunpack.c.h.b16 %v849
        %v3544 = vunpack.c.l.b16 %v850
        %v3545 = vunpack.c.h.b16 %v850
        %v3546 = vunpack.c.l.b16 %v851
        %v3547 = vunpack.c.h.b16 %v851
        %v3548 = vunpack.c.l.b16 %v852
        %v3549 = vunpack.c.h.b16 %v852
        %v3550 = vunpack.c.l.b16 %v853
        %v3551 = vunpack.c.h.b16 %v853
        %v3552 = vunpack.c.l.b16 %v854
        %v3553 = vunpack.c.h.b16 %v854
        %v3554 = vunpack.c.l.b16 %v855
        %v3555 = vunpack.c.h.b16 %v855
        %v3556 = vunpack.c.l.b16 %v856
        %v3557 = vunpack.c.h.b16 %v856
        %v3558 = vunpack.c.l.b16 %v857
        %v3559 = vunpack.c.h.b16 %v857
        %v3560 = vunpack.c.l.b16 %v858
        %v3561 = vunpack.c.h.b16 %v858
        %v3562 = vunpack.c.l.b16 %v859
        %v3563 = vunpack.c.h.b16 %v859
        %v3564 = vunpack.c.l.b16 %v860
        %v3565 = vunpack.c.h.b16 %v860
        %v3566 = vunpack.c.l.b16 %v861
        %v3567 = vunpack.c.h.b16 %v861
        %v3568 = vunpack.c.l.b16 %v862
        %v3569 = vunpack.c.h.b16 %v862
        %v3570 = vunpack.c.l.b16 %v863
        %v3571 = vunpack.c.h.b16 %v863
        %v3572 = vunpack.c.l.b16 %v864
        %v3573 = vunpack.c.h.b16 %v864
        %v3574 = vunpack.c.l.b16 %v865
        %v3575 = vunpack.c.h.b16 %v865
        %v3576 = vunpack.c.l.b16 %v866
        %v3577 = vunpack.c.h.b16 %v866
        %v3578 = vunpack.c.l.b16 %v867
        %v3579 = vunpack.c.h.b16 %v867
        %v3580 = vunpack.c.l.b16 %v868
        %v3581 = vunpack.c.h.b16 %v868
        %v3582 = vunpack.c.l.b16 %v869
        %v3583 = vunpack.c.h.b16 %v869
        %v3584 = vunpack.c.l.b16 %v870
        %v3585 = vunpack.c.h.b16 %v870
        %v3586 = vunpack.c.l.b16 %v871
        %v3587 = vunpack.c.h.b16 %v871
        %v3588 = vunpack.c.l.b16 %v872
        %v3589 = vunpack.c.h.b16 %v872
        %v3590 = vunpack.c.l.b16 %v873
        %v3591 = vunpack.c.h.b16 %v873
        %v3592 = vunpack.c.l.b16 %v874
        %v3593 = vunpack.c.h.b16 %v874
        %v3594 = vunpack.c.l.b16 %v875
        %v3595 = vunpack.c.h.b16 %v875
        %v3596 = vunpack.c.l.b16 %v876
        %v3597 = vunpack.c.h.b16 %v876
        %v3598 = vunpack.c.l.b16 %v877
        %v3599 = vunpack.c.h.b16 %v877
        %v3600 = vunpack.c.l.b16 %v878
        %v3601 = vunpack.c.h.b16 %v878
        %v3602 = vunpack.c.l.b16 %v879
        %v3603 = vunpack.c.h.b16 %v879
        %v3604 = vunpack.c.l.b16 %v880
        %v3605 = vunpack.c.h.b16 %v880
        %v3606 = vunpack.c.l.b16 %v881
        %v3607 = vunpack.c.h.b16 %v881
        %v3608 = vunpack.c.l.b16 %v882
        %v3609 = vunpack.c.h.b16 %v882
        %v3610 = vunpack.c.l.b16 %v883
        %v3611 = vunpack.c.h.b16 %v883
        %v3612 = vunpack.c.l.b16 %v884
        %v3613 = vunpack.c.h.b16 %v884
        %v3614 = vunpack.c.l.b16 %v885
        %v3615 = vunpack.c.h.b16 %v885
        %v3616 = vunpack.c.l.b16 %v886
        %v3617 = vunpack.c.h.b16 %v886
        %v3618 = vunpack.c.l.b16 %v887
        %v3619 = vunpack.c.h.b16 %v887
        %v3620 = vunpack.c.l.b16 %v888
        %v3621 = vunpack.c.h.b16 %v888
        %v3622 = vunpack.c.l.b16 %v889
        %v3623 = vunpack.c.h.b16 %v889
        %v3624 = vunpack.c.l.b16 %v890
        %v3625 = vunpack.c.h.b16 %v890
        %v3626 = vunpack.c.l.b16 %v891
        %v3627 = vunpack.c.h.b16 %v891
        %v3628 = vunpack.c.l.b16 %v892
        %v3629 = vunpack.c.h.b16 %v892
        %v3630 = vunpack.c.l.b16 %v893
        %v3631 = vunpack.c.h.b16 %v893
        %v3632 = vunpack.c.l.b16 %v894
        %v3633 = vunpack.c.h.b16 %v894
        %v3634 = vunpack.c.l.b16 %v895
        %v3635 = vunpack.c.h.b16 %v895
        %v3636 = vunpack.c.l.b16 %v896
        %v3637 = vunpack.c.h.b16 %v896
        %v3638 = vunpack.c.l.b16 %v897
        %v3639 = vunpack.c.h.b16 %v897
        %v3640 = vunpack.c.l.b16 %v898
        %v3641 = vunpack.c.h.b16 %v898
        %v3642 = vunpack.c.l.b16 %v899
        %v3643 = vunpack.c.h.b16 %v899
        %v3644 = vunpack.c.l.b16 %v900
        %v3645 = vunpack.c.h.b16 %v900
        %v3646 = vunpack.c.l.b16 %v901
        %v3647 = vunpack.c.h.b16 %v901
        %v3648 = vunpack.c.l.b16 %v902
        %v3649 = vunpack.c.h.b16 %v902
        %v3650 = vunpack.c.l.b16 %v903
        %v3651 = vunpack.c.h.b16 %v903
        %v3652 = vunpack.c.l.b16 %v904
        %v3653 = vunpack.c.h.b16 %v904
        %v3654 = vunpack.c.l.b16 %v905
        %v3655 = vunpack.c.h.b16 %v905
        %v3656 = vunpack.c.l.b16 %v906
        %v3657 = vunpack.c.h.b16 %v906
        %v3658 = vunpack.c.l.b16 %v907
        %v3659 = vunpack.c.h.b16 %v907
        %v3660 = vunpack.c.l.b16 %v908
        %v3661 = vunpack.c.h.b16 %v908
        %v3662 = vunpack.c.l.b16 %v909
        %v3663 = vunpack.c.h.b16 %v909
        %v3664 = vunpack.c.l.b16 %v910
        %v3665 = vunpack.c.h.b16 %v910
        %v3666 = vunpack.c.l.b16 %v911
        %v3667 = vunpack.c.h.b16 %v911
        %v3668 = vunpack.c.l.b16 %v912
        %v3669 = vunpack.c.h.b16 %v912
        %v3670 = vunpack.c.l.b16 %v913
        %v3671 = vunpack.c.h.b16 %v913
        %v3672 = vunpack.c.l.b16 %v914
        %v3673 = vunpack.c.h.b16 %v914
        %v3674 = vunpack.c.l.b16 %v915
        %v3675 = vunpack.c.h.b16 %v915
        %v3676 = vunpack.c.l.b16 %v916
        %v3677 = vunpack.c.h.b16 %v916
        %v3678 = vunpack.c.l.b16 %v917
        %v3679 = vunpack.c.h.b16 %v917
        %v3680 = vunpack.c.l.b16 %v918
        %v3681 = vunpack.c.h.b16 %v918
        %v3682 = vunpack.c.l.b16 %v919
        %v3683 = vunpack.c.h.b16 %v919
        %v3684 = vunpack.c.l.b16 %v920
        %v3685 = vunpack.c.h.b16 %v920
        %v3686 = vunpack.c.l.b16 %v921
        %v3687 = vunpack.c.h.b16 %v921
        %v3688 = vunpack.c.l.b16 %v922
        %v3689 = vunpack.c.h.b16 %v922
        %v3690 = vunpack.c.l.b16 %v923
        %v3691 = vunpack.c.h.b16 %v923
        %v3692 = vunpack.c.l.b16 %v924
        %v3693 = vunpack.c.h.b16 %v924
        %v3694 = vunpack.c.l.b16 %v925
        %v3695 = vunpack.c.h.b16 %v925
        %v3696 = vunpack.c.l.b16 %v926
        %v3697 = vunpack.c.h.b16 %v926
        %v3698 = vunpack.c.l.b16 %v927
        %v3699 = vunpack.c.h.b16 %v927
        %v3700 = vunpack.c.l.b16 %v928
        %v3701 = vunpack.c.h.b16 %v928
        %v3702 = vunpack.c.l.b16 %v929
        %v3703 = vunpack.c.h.b16 %v929
        %v3704 = vunpack.c.l.b16 %v930
        %v3705 = vunpack.c.h.b16 %v930
        %v3706 = vunpack.c.l.b16 %v931
        %v3707 = vunpack.c.h.b16 %v931
        %v3708 = vunpack.c.l.b16 %v932
        %v3709 = vunpack.c.h.b16 %v932
        %v3710 = vunpack.c.l.b16 %v933
        %v3711 = vunpack.c.h.b16 %v933
        %v3712 = vunpack.c.l.b16 %v934
        %v3713 = vunpack.c.h.b16 %v934
        %v3714 = vunpack.c.l.b16 %v935
        %v3715 = vunpack.c.h.b16 %v935
        %v3716 = vunpack.c.l.b16 %v936
        %v3717 = vunpack.c.h.b16 %v936
        %v3718 = vunpack.c.l.b16 %v937
        %v3719 = vunpack.c.h.b16 %v937
        %v3720 = vunpack.c.l.b16 %v938
        %v3721 = vunpack.c.h.b16 %v938
        %v3722 = vunpack.c.l.b16 %v939
        %v3723 = vunpack.c.h.b16 %v939
        %v3724 = vunpack.c.l.b16 %v940
        %v3725 = vunpack.c.h.b16 %v940
        %v3726 = vunpack.c.l.b16 %v941
        %v3727 = vunpack.c.h.b16 %v941
        %v3728 = vunpack.c.l.b16 %v942
        %v3729 = vunpack.c.h.b16 %v942
        %v3730 = vunpack.c.l.b16 %v943
        %v3731 = vunpack.c.h.b16 %v943
        %v3732 = vunpack.c.l.b16 %v944
        %v3733 = vunpack.c.h.b16 %v944
        %v3734 = vunpack.c.l.b16 %v945
        %v3735 = vunpack.c.h.b16 %v945
        %v3736 = vunpack.c.l.b16 %v946
        %v3737 = vunpack.c.h.b16 %v946
        %v3738 = vunpack.c.l.b16 %v947
        %v3739 = vunpack.c.h.b16 %v947
        %v3740 = vunpack.c.l.b16 %v948
        %v3741 = vunpack.c.h.b16 %v948
        %v3742 = vunpack.c.l.b16 %v949
        %v3743 = vunpack.c.h.b16 %v949
        %v3744 = vunpack.c.l.b16 %v950
        %v3745 = vunpack.c.h.b16 %v950
        %v3746 = vunpack.c.l.b16 %v951
        %v3747 = vunpack.c.h.b16 %v951
        %v3748 = vunpack.c.l.b16 %v952
        %v3749 = vunpack.c.h.b16 %v952
        %v3750 = vunpack.c.l.b16 %v953
        %v3751 = vunpack.c.h.b16 %v953
        %v3752 = vunpack.c.l.b16 %v954
        %v3753 = vunpack.c.h.b16 %v954
        %v3754 = vunpack.c.l.b16 %v955
        %v3755 = vunpack.c.h.b16 %v955
        %v3756 = vunpack.c.l.b16 %v956
        %v3757 = vunpack.c.h.b16 %v956
        %v3758 = vunpack.c.l.b16 %v957
        %v3759 = vunpack.c.h.b16 %v957
        %v3760 = vunpack.c.l.b16 %v958
        %v3761 = vunpack.c.h.b16 %v958
        %v3762 = vunpack.c.l.b16 %v959
        %v3763 = vunpack.c.h.b16 %v959
        %v3764 = vunpack.c.l.b16 %v960
        %v3765 = vunpack.c.h.b16 %v960
        %v3766 = vunpack.c.l.b16 %v961
        %v3767 = vunpack.c.h.b16 %v961
        %v3768 = vunpack.c.l.b16 %v962
        %v3769 = vunpack.c.h.b16 %v962
        %v3770 = vunpack.c.l.b16 %v963
        %v3771 = vunpack.c.h.b16 %v963
        %v3772 = vunpack.c.l.b16 %v964
        %v3773 = vunpack.c.h.b16 %v964
        %v3774 = vunpack.c.l.b16 %v965
        %v3775 = vunpack.c.h.b16 %v965
        %v3776 = vunpack.c.l.b16 %v966
        %v3777 = vunpack.c.h.b16 %v966
        %v3778 = vunpack.c.l.b16 %v967
        %v3779 = vunpack.c.h.b16 %v967
        %v3780 = vunpack.c.l.b16 %v968
        %v3781 = vunpack.c.h.b16 %v968
        %v3782 = vunpack.c.l.b16 %v969
        %v3783 = vunpack.c.h.b16 %v969
        %v3784 = vunpack.c.l.b16 %v970
        %v3785 = vunpack.c.h.b16 %v970
        %v3786 = vunpack.c.l.b16 %v971
        %v3787 = vunpack.c.h.b16 %v971
        %v3788 = vunpack.c.l.b16 %v972
        %v3789 = vunpack.c.h.b16 %v972
        %v3790 = vunpack.c.l.b16 %v973
        %v3791 = vunpack.c.h.b16 %v973
        %v3792 = vunpack.c.l.b16 %v974
        %v3793 = vunpack.c.h.b16 %v974
        %v3794 = vunpack.c.l.b16 %v975
        %v3795 = vunpack.c.h.b16 %v975
        %v3796 = vunpack.c.l.b16 %v976
        %v3797 = vunpack.c.h.b16 %v976
        %v3798 = vunpack.c.l.b16 %v977
        %v3799 = vunpack.c.h.b16 %v977
        %v3800 = vunpack.c.l.b16 %v978
        %v3801 = vunpack.c.h.b16 %v978
        %v3802 = vunpack.c.l.b16 %v979
        %v3803 = vunpack.c.h.b16 %v979
        %v3804 = vunpack.c.l.b16 %v980
        %v3805 = vunpack.c.h.b16 %v980
        %v3806 = vunpack.c.l.b16 %v981
        %v3807 = vunpack.c.h.b16 %v981
        %v3808 = vunpack.c.l.b16 %v982
        %v3809 = vunpack.c.h.b16 %v982
        %v3810 = vunpack.c.l.b16 %v983
        %v3811 = vunpack.c.h.b16 %v983
        %v3812 = vunpack.c.l.b16 %v984
        %v3813 = vunpack.c.h.b16 %v984
        %v3814 = vunpack.c.l.b16 %v985
        %v3815 = vunpack.c.h.b16 %v985
        %v3816 = vunpack.c.l.b16 %v986
        %v3817 = vunpack.c.h.b16 %v986
        %v3818 = vunpack.c.l.b16 %v987
        %v3819 = vunpack.c.h.b16 %v987
        %v3820 = vunpack.c.l.b16 %v988
        %v3821 = vunpack.c.h.b16 %v988
        %v3822 = vunpack.c.l.b16 %v989
        %v3823 = vunpack.c.h.b16 %v989
        %v3824 = vunpack.c.l.b16 %v990
        %v3825 = vunpack.c.h.b16 %v990
        %v3826 = vunpack.c.l.b16 %v991
        %v3827 = vunpack.c.h.b16 %v991
        %v3828 = vunpack.c.l.b16 %v992
        %v3829 = vunpack.c.h.b16 %v992
        %v3830 = vunpack.c.l.b16 %v993
        %v3831 = vunpack.c.h.b16 %v993
        %v3832 = vunpack.c.l.b16 %v994
        %v3833 = vunpack.c.h.b16 %v994
        %v3834 = vunpack.c.l.b16 %v995
        %v3835 = vunpack.c.h.b16 %v995
        %v3836 = vunpack.c.l.b16 %v996
        %v3837 = vunpack.c.h.b16 %v996
        %v3838 = vunpack.c.l.b16 %v997
        %v3839 = vunpack.c.h.b16 %v997
        %v3840 = vunpack.c.l.b16 %v998
        %v3841 = vunpack.c.h.b16 %v998
        %v3842 = vunpack.c.l.b16 %v999
        %v3843 = vunpack.c.h.b16 %v999
        %v3844 = vunpack.c.l.b16 %v1000
        %v3845 = vunpack.c.h.b16 %v1000
        %v3846 = vunpack.c.l.b16 %v1001
        %v3847 = vunpack.c.h.b16 %v1001
        %v3848 = vunpack.c.l.b16 %v1002
        %v3849 = vunpack.c.h.b16 %v1002
        %v3850 = vunpack.c.l.b16 %v1003
        %v3851 = vunpack.c.h.b16 %v1003
        %v3852 = vunpack.c.l.b16 %v1004
        %v3853 = vunpack.c.h.b16 %v1004
        %v3854 = vunpack.c.l.b16 %v1005
        %v3855 = vunpack.c.h.b16 %v1005
        %v3856 = vunpack.c.l.b16 %v1006
        %v3857 = vunpack.c.h.b16 %v1006
        %v3858 = vunpack.c.l.b16 %v1007
        %v3859 = vunpack.c.h.b16 %v1007
        %v3860 = vunpack.c.l.b16 %v1008
        %v3861 = vunpack.c.h.b16 %v1008
        %v3862 = vunpack.c.l.b16 %v1009
        %v3863 = vunpack.c.h.b16 %v1009
        %v3864 = vunpack.c.l.b16 %v1010
        %v3865 = vunpack.c.h.b16 %v1010
        %v3866 = vunpack.c.l.b16 %v1011
        %v3867 = vunpack.c.h.b16 %v1011
        %v3868 = vunpack.c.l.b16 %v1012
        %v3869 = vunpack.c.h.b16 %v1012
        %v3870 = vunpack.c.l.b16 %v1013
        %v3871 = vunpack.c.h.b16 %v1013
        %v3872 = vunpack.c.l.b16 %v1014
        %v3873 = vunpack.c.h.b16 %v1014
        %v3874 = vunpack.c.l.b16 %v1015
        %v3875 = vunpack.c.h.b16 %v1015
        %v3876 = vunpack.c.l.b16 %v1016
        %v3877 = vunpack.c.h.b16 %v1016
        %v3878 = vunpack.c.l.b16 %v1017
        %v3879 = vunpack.c.h.b16 %v1017
        %v3880 = vunpack.c.l.b16 %v1018
        %v3881 = vunpack.c.h.b16 %v1018
        %v3882 = vunpack.c.l.b16 %v1019
        %v3883 = vunpack.c.h.b16 %v1019
        %v3884 = vunpack.c.l.b16 %v1020
        %v3885 = vunpack.c.h.b16 %v1020
        %v3886 = vunpack.c.l.b16 %v1021
        %v3887 = vunpack.c.h.b16 %v1021
        %v3888 = vunpack.c.l.b16 %v1022
        %v3889 = vunpack.c.h.b16 %v1022
        %v3890 = vunpack.c.l.b16 %v1023
        %v3891 = vunpack.c.h.b16 %v1023
        %v3892 = vunpack.c.l.b16 %v1024
        %v3893 = vunpack.c.h.b16 %v1024
        %v3894 = vunpack.c.l.b16 %v1025
        %v3895 = vunpack.c.h.b16 %v1025
        %v3896 = vunpack.c.l.b16 %v1026
        %v3897 = vunpack.c.h.b16 %v1026
        %v3898 = vunpack.c.l.b16 %v1027
        %v3899 = vunpack.c.h.b16 %v1027
        %v3900 = vunpack.c.l.b16 %v1028
        %v3901 = vunpack.c.h.b16 %v1028
        %v3902 = vunpack.c.l.b16 %v1029
        %v3903 = vunpack.c.h.b16 %v1029
        %v3904 = vunpack.c.l.b16 %v1030
        %v3905 = vunpack.c.h.b16 %v1030
        %v3906 = vunpack.c.l.b16 %v1031
        %v3907 = vunpack.c.h.b16 %v1031
        %v3908 = vunpack.c.l.b16 %v1032
        %v3909 = vunpack.c.h.b16 %v1032
        %v3910 = vunpack.c.l.b16 %v1033
        %v3911 = vunpack.c.h.b16 %v1033
        %v3912 = vunpack.c.l.b16 %v1034
        %v3913 = vunpack.c.h.b16 %v1034
        %v3914 = vunpack.c.l.b16 %v1035
        %v3915 = vunpack.c.h.b16 %v1035
        %v3916 = vunpack.c.l.b16 %v1036
        %v3917 = vunpack.c.h.b16 %v1036
        %v3918 = vunpack.c.l.b16 %v1037
        %v3919 = vunpack.c.h.b16 %v1037
        %v3920 = vunpack.c.l.b16 %v1038
        %v3921 = vunpack.c.h.b16 %v1038
        %v3922 = vunpack.c.l.b16 %v1039
        %v3923 = vunpack.c.h.b16 %v1039
        %v3924 = vunpack.c.l.b16 %v1040
        %v3925 = vunpack.c.h.b16 %v1040
        %v3926 = vunpack.c.l.b16 %v1041
        %v3927 = vunpack.c.h.b16 %v1041
        %v3928 = vunpack.c.l.b16 %v1042
        %v3929 = vunpack.c.h.b16 %v1042
        %v3930 = vunpack.c.l.b16 %v1043
        %v3931 = vunpack.c.h.b16 %v1043
        %v3932 = vunpack.c.l.b16 %v1044
        %v3933 = vunpack.c.h.b16 %v1044
        %v3934 = vunpack.c.l.b16 %v1045
        %v3935 = vunpack.c.h.b16 %v1045
        %v3936 = vunpack.c.l.b16 %v1046
        %v3937 = vunpack.c.h.b16 %v1046
        %v3938 = vunpack.c.l.b16 %v1047
        %v3939 = vunpack.c.h.b16 %v1047
        %v3940 = vunpack.c.l.b16 %v1048
        %v3941 = vunpack.c.h.b16 %v1048
        %v3942 = vunpack.c.l.b16 %v1049
        %v3943 = vunpack.c.h.b16 %v1049
        %v3944 = vunpack.c.l.b16 %v1050
        %v3945 = vunpack.c.h.b16 %v1050
        %v3946 = vunpack.c.l.b16 %v1051
        %v3947 = vunpack.c.h.b16 %v1051
        %v3948 = vunpack.c.l.b16 %v1052
        %v3949 = vunpack.c.h.b16 %v1052
        %v3950 = vunpack.c.l.b16 %v1053
        %v3951 = vunpack.c.h.b16 %v1053
        %v3952 = vunpack.c.l.b16 %v1054
        %v3953 = vunpack.c.h.b16 %v1054
        %v3954 = vunpack.c.l.b16 %v1055
        %v3955 = vunpack.c.h.b16 %v1055
        %v3956 = vunpack.c.l.b16 %v1056
        %v3957 = vunpack.c.h.b16 %v1056
        %v3958 = vunpack.c.l.b16 %v1057
        %v3959 = vunpack.c.h.b16 %v1057
        %v3960 = vunpack.c.l.b16 %v1058
        %v3961 = vunpack.c.h.b16 %v1058
        %v3962 = vunpack.c.l.b16 %v1059
        %v3963 = vunpack.c.h.b16 %v1059
        %v3964 = vunpack.c.l.b16 %v1060
        %v3965 = vunpack.c.h.b16 %v1060
        %v3966 = vunpack.c.l.b16 %v1061
        %v3967 = vunpack.c.h.b16 %v1061
        %v3968 = vunpack.c.l.b16 %v1062
        %v3969 = vunpack.c.h.b16 %v1062
        %v3970 = vunpack.c.l.b16 %v1063
        %v3971 = vunpack.c.h.b16 %v1063
        %v3972 = vunpack.c.l.b16 %v1064
        %v3973 = vunpack.c.h.b16 %v1064
        %v3974 = vunpack.c.l.b16 %v1065
        %v3975 = vunpack.c.h.b16 %v1065
        %v3976 = vunpack.c.l.b16 %v1066
        %v3977 = vunpack.c.h.b16 %v1066
        %v3978 = vunpack.c.l.b16 %v1067
        %v3979 = vunpack.c.h.b16 %v1067
        %v3980 = vunpack.c.l.b16 %v1068
        %v3981 = vunpack.c.h.b16 %v1068
        %v3982 = vunpack.c.l.b16 %v1069
        %v3983 = vunpack.c.h.b16 %v1069
        %v3984 = vunpack.c.l.b16 %v1070
        %v3985 = vunpack.c.h.b16 %v1070
        %v3986 = vunpack.c.l.b16 %v1071
        %v3987 = vunpack.c.h.b16 %v1071
        %v3988 = vunpack.c.l.b16 %v1072
        %v3989 = vunpack.c.h.b16 %v1072
        %v3990 = vunpack.c.l.b16 %v1073
        %v3991 = vunpack.c.h.b16 %v1073
        %v3992 = vunpack.c.l.b16 %v1074
        %v3993 = vunpack.c.h.b16 %v1074
        %v3994 = vunpack.c.l.b16 %v1075
        %v3995 = vunpack.c.h.b16 %v1075
        %v3996 = vunpack.c.l.b16 %v1076
        %v3997 = vunpack.c.h.b16 %v1076
        %v3998 = vunpack.c.l.b16 %v1077
        %v3999 = vunpack.c.h.b16 %v1077
        %v4000 = vunpack.c.l.b16 %v1078
        %v4001 = vunpack.c.h.b16 %v1078
        %v4002 = vunpack.c.l.b16 %v1079
        %v4003 = vunpack.c.h.b16 %v1079
        %v4004 = vunpack.c.l.b16 %v1080
        %v4005 = vunpack.c.h.b16 %v1080
        %v4006 = vunpack.c.l.b16 %v1081
        %v4007 = vunpack.c.h.b16 %v1081
        %v4008 = vunpack.c.l.b16 %v1082
        %v4009 = vunpack.c.h.b16 %v1082
        %v4010 = vunpack.c.l.b16 %v1083
        %v4011 = vunpack.c.h.b16 %v1083
        %v4012 = vunpack.c.l.b16 %v1084
        %v4013 = vunpack.c.h.b16 %v1084
        %v4014 = vunpack.c.l.b16 %v1085
        %v4015 = vunpack.c.h.b16 %v1085
        %v4016 = vunpack.c.l.b16 %v1086
        %v4017 = vunpack.c.h.b16 %v1086
        %v4018 = vunpack.c.l.b16 %v1087
        %v4019 = vunpack.c.h.b16 %v1087
        %v4020 = vunpack.c.l.b16 %v1088
        %v4021 = vunpack.c.h.b16 %v1088
        %v4022 = vunpack.c.l.b16 %v1089
        %v4023 = vunpack.c.h.b16 %v1089
        %v4024 = vunpack.c.l.b16 %v1090
        %v4025 = vunpack.c.h.b16 %v1090
        %v4026 = vunpack.c.l.b16 %v1091
        %v4027 = vunpack.c.h.b16 %v1091
        %v4028 = vunpack.c.l.b16 %v1092
        %v4029 = vunpack.c.h.b16 %v1092
        %v4030 = vunpack.c.l.b16 %v1093
        %v4031 = vunpack.c.h.b16 %v1093
        %v4032 = vunpack.c.l.b16 %v1094
        %v4033 = vunpack.c.h.b16 %v1094
        %v4034 = vunpack.c.l.b16 %v1095
        %v4035 = vunpack.c.h.b16 %v1095
        %v4036 = vunpack.c.l.b16 %v1096
        %v4037 = vunpack.c.h.b16 %v1096
        %v4038 = vunpack.c.l.b16 %v1097
        %v4039 = vunpack.c.h.b16 %v1097
        %v4040 = vunpack.c.l.b16 %v1098
        %v4041 = vunpack.c.h.b16 %v1098
        %v4042 = vunpack.c.l.b16 %v1099
        %v4043 = vunpack.c.h.b16 %v1099
        %v4044 = vunpack.c.l.b16 %v1100
        %v4045 = vunpack.c.h.b16 %v1100
        %v4046 = vunpack.c.l.b16 %v1101
        %v4047 = vunpack.c.h.b16 %v1101
        %v4048 = vunpack.c.l.b16 %v1102
        %v4049 = vunpack.c.h.b16 %v1102
        %v4050 = vunpack.c.l.b16 %v1103
        %v4051 = vunpack.c.h.b16 %v1103
        %v4052 = vunpack.c.l.b16 %v1104
        %v4053 = vunpack.c.h.b16 %v1104
        %v4054 = vunpack.c.l.b16 %v1105
        %v4055 = vunpack.c.h.b16 %v1105
        %v4056 = vunpack.c.l.b16 %v1106
        %v4057 = vunpack.c.h.b16 %v1106
        %v4058 = vunpack.c.l.b16 %v1107
        %v4059 = vunpack.c.h.b16 %v1107
        %v4060 = vunpack.c.l.b16 %v1108
        %v4061 = vunpack.c.h.b16 %v1108
        %v4062 = vunpack.c.l.b16 %v1109
        %v4063 = vunpack.c.h.b16 %v1109
        %v4064 = vunpack.c.l.b16 %v1110
        %v4065 = vunpack.c.h.b16 %v1110
        %v4066 = vunpack.c.l.b16 %v1111
        %v4067 = vunpack.c.h.b16 %v1111
        %v4068 = vunpack.c.l.b16 %v1112
        %v4069 = vunpack.c.h.b16 %v1112
        %v4070 = vunpack.c.l.b16 %v1113
        %v4071 = vunpack.c.h.b16 %v1113
        %v4072 = vunpack.c.l.b16 %v1114
        %v4073 = vunpack.c.h.b16 %v1114
        %v4074 = vunpack.c.l.b16 %v1115
        %v4075 = vunpack.c.h.b16 %v1115
        %v4076 = vunpack.c.l.b16 %v1116
        %v4077 = vunpack.c.h.b16 %v1116
        %v4078 = vunpack.c.l.b16 %v1117
        %v4079 = vunpack.c.h.b16 %v1117
        %v4080 = vunpack.c.l.b16 %v1118
        %v4081 = vunpack.c.h.b16 %v1118
        %v4082 = vunpack.c.l.b16 %v1119
        %v4083 = vunpack.c.h.b16 %v1119
        %v4084 = vunpack.c.l.b16 %v1120
        %v4085 = vunpack.c.h.b16 %v1120
        %v4086 = vunpack.c.l.b16 %v1121
        %v4087 = vunpack.c.h.b16 %v1121
        %v4088 = vunpack.c.l.b16 %v1122
        %v4089 = vunpack.c.h.b16 %v1122
        %v4090 = vunpack.c.l.b16 %v1123
        %v4091 = vunpack.c.h.b16 %v1123
        %v4092 = vunpack.c.l.b16 %v1124
        %v4093 = vunpack.c.h.b16 %v1124
        %v4094 = vunpack.c.l.b16 %v1125
        %v4095 = vunpack.c.h.b16 %v1125
        %v4096 = vunpack.c.l.b16 %v1126
        %v4097 = vunpack.c.h.b16 %v1126
        %v4098 = vunpack.c.l.b16 %v1127
        %v4099 = vunpack.c.h.b16 %v1127
        %v4100 = vunpack.c.l.b16 %v1128
        %v4101 = vunpack.c.h.b16 %v1128
        %v4102 = vunpack.c.l.b16 %v1129
        %v4103 = vunpack.c.h.b16 %v1129
        %v4104 = vunpack.c.l.b16 %v1130
        %v4105 = vunpack.c.h.b16 %v1130
        %v4106 = vunpack.c.l.b16 %v1131
        %v4107 = vunpack.c.h.b16 %v1131
        %v4108 = vunpack.c.l.b16 %v1132
        %v4109 = vunpack.c.h.b16 %v1132
        %v4110 = vunpack.c.l.b16 %v1133
        %v4111 = vunpack.c.h.b16 %v1133
        %v4112 = vunpack.c.l.b16 %v1134
        %v4113 = vunpack.c.h.b16 %v1134
        %v4114 = vunpack.c.l.b16 %v1135
        %v4115 = vunpack.c.h.b16 %v1135
        %v4116 = vunpack.c.l.b16 %v1136
        %v4117 = vunpack.c.h.b16 %v1136
        %v4118 = vunpack.c.l.b16 %v1137
        %v4119 = vunpack.c.h.b16 %v1137
        %v4120 = vunpack.c.l.b16 %v1138
        %v4121 = vunpack.c.h.b16 %v1138
        %v4122 = vunpack.c.l.b16 %v1139
        %v4123 = vunpack.c.h.b16 %v1139
        %v4124 = vunpack.c.l.b16 %v1140
        %v4125 = vunpack.c.h.b16 %v1140
        %v4126 = vunpack.c.l.b16 %v1141
        %v4127 = vunpack.c.h.b16 %v1141
        %v4128 = vunpack.c.l.b16 %v1142
        %v4129 = vunpack.c.h.b16 %v1142
        %v4130 = vunpack.c.l.b16 %v1143
        %v4131 = vunpack.c.h.b16 %v1143
        %v4132 = vunpack.c.l.b16 %v1144
        %v4133 = vunpack.c.h.b16 %v1144
        %v4134 = vunpack.c.l.b16 %v1145
        %v4135 = vunpack.c.h.b16 %v1145
        %v4136 = vunpack.c.l.b16 %v1146
        %v4137 = vunpack.c.h.b16 %v1146
        %v4138 = vunpack.c.l.b16 %v1147
        %v4139 = vunpack.c.h.b16 %v1147
        %v4140 = vunpack.c.l.b16 %v1148
        %v4141 = vunpack.c.h.b16 %v1148
        %v4142 = vunpack.c.l.b16 %v1149
        %v4143 = vunpack.c.h.b16 %v1149
        %v4144 = vunpack.c.l.b16 %v1150
        %v4145 = vunpack.c.h.b16 %v1150
        %v4146 = vunpack.c.l.b16 %v1151
        %v4147 = vunpack.c.h.b16 %v1151
        %v4148 = vunpack.c.l.b16 %v1152
        %v4149 = vunpack.c.h.b16 %v1152
        %v4150 = vunpack.c.l.b16 %v1153
        %v4151 = vunpack.c.h.b16 %v1153
        %v4152 = vunpack.c.l.b16 %v1154
        %v4153 = vunpack.c.h.b16 %v1154
        %v4154 = vunpack.c.l.b16 %v1155
        %v4155 = vunpack.c.h.b16 %v1155
        %v4156 = vunpack.c.l.b16 %v1156
        %v4157 = vunpack.c.h.b16 %v1156
        %v4158 = vunpack.c.l.b16 %v1157
        %v4159 = vunpack.c.h.b16 %v1157
        %v4160 = vunpack.c.l.b16 %v1158
        %v4161 = vunpack.c.h.b16 %v1158
        %v4162 = vunpack.c.l.b16 %v1159
        %v4163 = vunpack.c.h.b16 %v1159
        %v4164 = vunpack.c.l.b16 %v1160
        %v4165 = vunpack.c.h.b16 %v1160
        %v4166 = vunpack.c.l.b16 %v1161
        %v4167 = vunpack.c.h.b16 %v1161
        %v4168 = vunpack.c.l.b16 %v1162
        %v4169 = vunpack.c.h.b16 %v1162
        %v4170 = vunpack.c.l.b16 %v1163
        %v4171 = vunpack.c.h.b16 %v1163
        %v4172 = vunpack.c.l.b16 %v1164
        %v4173 = vunpack.c.h.b16 %v1164
        %v4174 = vunpack.c.l.b16 %v1165
        %v4175 = vunpack.c.h.b16 %v1165
        %v4176 = vunpack.c.l.b16 %v1166
        %v4177 = vunpack.c.h.b16 %v1166
        %v4178 = vunpack.c.l.b16 %v1167
        %v4179 = vunpack.c.h.b16 %v1167
        %v4180 = vunpack.c.l.b16 %v1168
        %v4181 = vunpack.c.h.b16 %v1168
        %v4182 = vunpack.c.l.b16 %v1169
        %v4183 = vunpack.c.h.b16 %v1169
        %v4184 = vunpack.c.l.b16 %v1170
        %v4185 = vunpack.c.h.b16 %v1170
        %v4186 = vunpack.c.l.b16 %v1171
        %v4187 = vunpack.c.h.b16 %v1171
        %v4188 = vunpack.c.l.b16 %v1172
        %v4189 = vunpack.c.h.b16 %v1172
        %v4190 = vunpack.c.l.b16 %v1173
        %v4191 = vunpack.c.h.b16 %v1173
        %v4192 = vunpack.c.l.b16 %v1174
        %v4193 = vunpack.c.h.b16 %v1174
        %v4194 = vunpack.c.l.b16 %v1175
        %v4195 = vunpack.c.h.b16 %v1175
        %v4196 = vunpack.c.l.b16 %v1176
        %v4197 = vunpack.c.h.b16 %v1176
        %v4198 = vunpack.c.l.b16 %v1177
        %v4199 = vunpack.c.h.b16 %v1177
        %v4200 = vunpack.c.l.b16 %v1178
        %v4201 = vunpack.c.h.b16 %v1178
        %v4202 = vunpack.c.l.b16 %v1179
        %v4203 = vunpack.c.h.b16 %v1179
        %v4204 = vunpack.c.l.b16 %v1180
        %v4205 = vunpack.c.h.b16 %v1180
        %v4206 = vunpack.c.l.b16 %v1181
        %v4207 = vunpack.c.h.b16 %v1181
        %v4208 = vunpack.c.l.b16 %v1182
        %v4209 = vunpack.c.h.b16 %v1182
        %v4210 = vunpack.c.l.b16 %v1183
        %v4211 = vunpack.c.h.b16 %v1183
        %v4212 = vunpack.c.l.b16 %v1184
        %v4213 = vunpack.c.h.b16 %v1184
        %v4214 = vunpack.c.l.b16 %v1185
        %v4215 = vunpack.c.h.b16 %v1185
        %v4216 = vunpack.c.l.b16 %v1186
        %v4217 = vunpack.c.h.b16 %v1186
        %v4218 = vunpack.c.l.b16 %v1187
        %v4219 = vunpack.c.h.b16 %v1187
        %v4220 = vunpack.c.l.b16 %v1188
        %v4221 = vunpack.c.h.b16 %v1188
        %v4222 = vunpack.c.l.b16 %v1189
        %v4223 = vunpack.c.h.b16 %v1189
        %v4224 = vunpack.c.l.b16 %v1190
        %v4225 = vunpack.c.h.b16 %v1190
        %v4226 = vunpack.c.l.b16 %v1191
        %v4227 = vunpack.c.h.b16 %v1191
        %v4228 = vunpack.c.l.b16 %v1192
        %v4229 = vunpack.c.h.b16 %v1192
        %v4230 = vunpack.c.l.b16 %v1193
        %v4231 = vunpack.c.h.b16 %v1193
        %v4232 = vunpack.c.l.b16 %v1194
        %v4233 = vunpack.c.h.b16 %v1194
        %v4234 = vunpack.c.l.b16 %v1195
        %v4235 = vunpack.c.h.b16 %v1195
        %v4236 = vunpack.c.l.b16 %v1196
        %v4237 = vunpack.c.h.b16 %v1196
        %v4238 = vunpack.c.l.b16 %v1197
        %v4239 = vunpack.c.h.b16 %v1197
        %v4240 = vunpack.c.l.b16 %v1198
        %v4241 = vunpack.c.h.b16 %v1198
        %v4242 = vunpack.c.l.b16 %v1199
        %v4243 = vunpack.c.h.b16 %v1199
        %v4244 = vunpack.c.l.b16 %v1200
        %v4245 = vunpack.c.h.b16 %v1200
        %v4246 = vunpack.c.l.b16 %v1201
        %v4247 = vunpack.c.h.b16 %v1201
        %v4248 = vunpack.c.l.b16 %v1202
        %v4249 = vunpack.c.h.b16 %v1202
        %v4250 = vunpack.c.l.b16 %v1203
        %v4251 = vunpack.c.h.b16 %v1203
        %v4252 = vunpack.c.l.b16 %v1204
        %v4253 = vunpack.c.h.b16 %v1204
        %v4254 = vunpack.c.l.b16 %v1205
        %v4255 = vunpack.c.h.b16 %v1205
        %v4256 = vunpack.c.l.b16 %v1206
        %v4257 = vunpack.c.h.b16 %v1206
        %v4258 = vunpack.c.l.b16 %v1207
        %v4259 = vunpack.c.h.b16 %v1207
        %v4260 = vunpack.c.l.b16 %v1208
        %v4261 = vunpack.c.h.b16 %v1208
        %v4262 = vunpack.c.l.b16 %v1209
        %v4263 = vunpack.c.h.b16 %v1209
        %v4264 = vunpack.c.l.b16 %v1210
        %v4265 = vunpack.c.h.b16 %v1210
        %v4266 = vunpack.c.l.b16 %v1211
        %v4267 = vunpack.c.h.b16 %v1211
        %v4268 = vunpack.c.l.b16 %v1212
        %v4269 = vunpack.c.h.b16 %v1212
        %v4270 = vunpack.c.l.b16 %v1213
        %v4271 = vunpack.c.h.b16 %v1213
        %v4272 = vunpack.c.l.b16 %v1214
        %v4273 = vunpack.c.h.b16 %v1214
        %v4274 = vunpack.c.l.b16 %v1215
        %v4275 = vunpack.c.h.b16 %v1215
        %v4276 = vunpack.c.l.b16 %v1216
        %v4277 = vunpack.c.h.b16 %v1216
        %v4278 = vunpack.c.l.b16 %v1217
        %v4279 = vunpack.c.h.b16 %v1217
        %v4280 = vunpack.c.l.b16 %v1218
        %v4281 = vunpack.c.h.b16 %v1218
        %v4282 = vunpack.c.l.b16 %v1219
        %v4283 = vunpack.c.h.b16 %v1219
        %v4284 = vunpack.c.l.b16 %v1220
        %v4285 = vunpack.c.h.b16 %v1220
        %v4286 = vunpack.c.l.b16 %v1221
        %v4287 = vunpack.c.h.b16 %v1221
        %v4288 = vunpack.c.l.b16 %v1222
        %v4289 = vunpack.c.h.b16 %v1222
        %v4290 = vunpack.c.l.b16 %v1223
        %v4291 = vunpack.c.h.b16 %v1223
        %v4292 = vunpack.c.l.b16 %v1224
        %v4293 = vunpack.c.h.b16 %v1224
        %v4294 = vunpack.c.l.b16 %v1225
        %v4295 = vunpack.c.h.b16 %v1225
        %v4296 = vunpack.c.l.b16 %v1226
        %v4297 = vunpack.c.h.b16 %v1226
        %v4298 = vunpack.c.l.b16 %v1227
        %v4299 = vunpack.c.h.b16 %v1227
        %v4300 = vunpack.c.l.b16 %v1228
        %v4301 = vunpack.c.h.b16 %v1228
        %v4302 = vunpack.c.l.b16 %v1229
        %v4303 = vunpack.c.h.b16 %v1229
        %v4304 = vunpack.c.l.b16 %v1230
        %v4305 = vunpack.c.h.b16 %v1230
        %v4306 = vunpack.c.l.b16 %v1231
        %v4307 = vunpack.c.h.b16 %v1231
        %v4308 = vunpack.c.l.b16 %v1232
        %v4309 = vunpack.c.h.b16 %v1232
        %v4310 = vunpack.c.l.b16 %v1233
        %v4311 = vunpack.c.h.b16 %v1233
        %v4312 = vunpack.c.l.b16 %v1234
        %v4313 = vunpack.c.h.b16 %v1234
        %v4314 = vunpack.c.l.b16 %v1235
        %v4315 = vunpack.c.h.b16 %v1235
        %v4316 = vunpack.c.l.b16 %v1236
        %v4317 = vunpack.c.h.b16 %v1236
        %v4318 = vunpack.c.l.b16 %v1237
        %v4319 = vunpack.c.h.b16 %v1237
        %v4320 = vunpack.c.l.b16 %v1238
        %v4321 = vunpack.c.h.b16 %v1238
        %v4322 = vunpack.c.l.b16 %v1239
        %v4323 = vunpack.c.h.b16 %v1239
        %v4324 = vunpack.c.l.b16 %v1240
        %v4325 = vunpack.c.h.b16 %v1240
        %v4326 = vunpack.c.l.b16 %v1241
        %v4327 = vunpack.c.h.b16 %v1241
        %v4328 = vunpack.c.l.b16 %v1242
        %v4329 = vunpack.c.h.b16 %v1242
        %v4330 = vunpack.c.l.b16 %v1243
        %v4331 = vunpack.c.h.b16 %v1243
        %v4332 = vunpack.c.l.b16 %v1244
        %v4333 = vunpack.c.h.b16 %v1244
        %v4334 = vunpack.c.l.b16 %v1245
        %v4335 = vunpack.c.h.b16 %v1245
        %v4336 = vunpack.c.l.b16 %v1246
        %v4337 = vunpack.c.h.b16 %v1246
        %v4338 = vunpack.c.l.b16 %v1247
        %v4339 = vunpack.c.h.b16 %v1247
        %v4340 = vunpack.c.l.b16 %v1248
        %v4341 = vunpack.c.h.b16 %v1248
        %v4342 = vunpack.c.l.b16 %v1249
        %v4343 = vunpack.c.h.b16 %v1249
        %v4344 = vunpack.c.l.b16 %v1250
        %v4345 = vunpack.c.h.b16 %v1250
        %v4346 = vunpack.c.l.b16 %v1251
        %v4347 = vunpack.c.h.b16 %v1251
        %v4348 = vunpack.c.l.b16 %v1252
        %v4349 = vunpack.c.h.b16 %v1252
        %v4350 = vunpack.c.l.b16 %v1253
        %v4351 = vunpack.c.h.b16 %v1253
        %v4352 = vunpack.c.l.b16 %v1254
        %v4353 = vunpack.c.h.b16 %v1254
        %v4354 = vunpack.c.l.b16 %v1255
        %v4355 = vunpack.c.h.b16 %v1255
        %v4356 = vunpack.c.l.b16 %v1256
        %v4357 = vunpack.c.h.b16 %v1256
        %v4358 = vunpack.c.l.b16 %v1257
        %v4359 = vunpack.c.h.b16 %v1257
        %v4360 = vunpack.c.l.b16 %v1258
        %v4361 = vunpack.c.h.b16 %v1258
        %v4362 = vunpack.c.l.b16 %v1259
        %v4363 = vunpack.c.h.b16 %v1259
        %v4364 = vunpack.c.l.b16 %v1260
        %v4365 = vunpack.c.h.b16 %v1260
        %v4366 = vunpack.c.l.b16 %v1261
        %v4367 = vunpack.c.h.b16 %v1261
        %v4368 = vunpack.c.l.b16 %v1262
        %v4369 = vunpack.c.h.b16 %v1262
        %v4370 = vunpack.c.l.b16 %v1263
        %v4371 = vunpack.c.h.b16 %v1263
        %v4372 = vunpack.c.l.b16 %v1264
        %v4373 = vunpack.c.h.b16 %v1264
        %v4374 = vunpack.c.l.b16 %v1265
        %v4375 = vunpack.c.h.b16 %v1265
        %v4376 = vunpack.c.l.b16 %v1266
        %v4377 = vunpack.c.h.b16 %v1266
        %v4378 = vunpack.c.l.b16 %v1267
        %v4379 = vunpack.c.h.b16 %v1267
        %v4380 = vunpack.c.l.b16 %v1268
        %v4381 = vunpack.c.h.b16 %v1268
        %v4382 = vunpack.c.l.b16 %v1269
        %v4383 = vunpack.c.h.b16 %v1269
        %v4384 = vunpack.c.l.b16 %v1270
        %v4385 = vunpack.c.h.b16 %v1270
        %v4386 = vunpack.c.l.b16 %v1271
        %v4387 = vunpack.c.h.b16 %v1271
        %v4388 = vunpack.c.l.b16 %v1272
        %v4389 = vunpack.c.h.b16 %v1272
        %v4390 = vunpack.c.l.b16 %v1273
        %v4391 = vunpack.c.h.b16 %v1273
        %v4392 = vunpack.c.l.b16 %v1274
        %v4393 = vunpack.c.h.b16 %v1274
        %v4394 = vunpack.c.l.b16 %v1275
        %v4395 = vunpack.c.h.b16 %v1275
        %v4396 = vunpack.c.l.b16 %v1276
        %v4397 = vunpack.c.h.b16 %v1276
        %v4398 = vunpack.c.l.b16 %v1277
        %v4399 = vunpack.c.h.b16 %v1277
        %v4400 = vunpack.c.l.b16 %v1278
        %v4401 = vunpack.c.h.b16 %v1278
        %v4402 = vunpack.c.l.b16 %v1279
        %v4403 = vunpack.c.h.b16 %v1279
        %v4404 = vunpack.c.l.b16 %v1280
        %v4405 = vunpack.c.h.b16 %v1280
        %v4406 = vunpack.c.l.b16 %v1281
        %v4407 = vunpack.c.h.b16 %v1281
        %v4408 = vunpack.c.l.b16 %v1282
        %v4409 = vunpack.c.h.b16 %v1282
        %v4410 = vunpack.c.l.b16 %v1283
        %v4411 = vunpack.c.h.b16 %v1283
        %v4412 = vunpack.c.l.b16 %v1284
        %v4413 = vunpack.c.h.b16 %v1284
        %v4414 = vunpack.c.l.b16 %v1285
        %v4415 = vunpack.c.h.b16 %v1285
        %v4416 = vunpack.c.l.b16 %v1286
        %v4417 = vunpack.c.h.b16 %v1286
        %v4418 = vunpack.c.l.b16 %v1287
        %v4419 = vunpack.c.h.b16 %v1287
        %v4420 = vunpack.c.l.b16 %v1288
        %v4421 = vunpack.c.h.b16 %v1288
        %v4422 = vunpack.c.l.b16 %v1289
        %v4423 = vunpack.c.h.b16 %v1289
        %v4424 = vunpack.c.l.b16 %v1290
        %v4425 = vunpack.c.h.b16 %v1290
        %v4426 = vunpack.c.l.b16 %v1291
        %v4427 = vunpack.c.h.b16 %v1291
        %v4428 = vunpack.c.l.b16 %v1292
        %v4429 = vunpack.c.h.b16 %v1292
        %v4430 = vunpack.c.l.b16 %v1293
        %v4431 = vunpack.c.h.b16 %v1293
        %v4432 = vunpack.c.l.b16 %v1294
        %v4433 = vunpack.c.h.b16 %v1294
        %v4434 = vunpack.c.l.b16 %v1295
        %v4435 = vunpack.c.h.b16 %v1295
        %v4436 = vunpack.c.l.b16 %v1296
        %v4437 = vunpack.c.h.b16 %v1296
        %v4438 = vunpack.c.l.b16 %v1297
        %v4439 = vunpack.c.h.b16 %v1297
        %v4440 = vunpack.c.l.b16 %v1298
        %v4441 = vunpack.c.h.b16 %v1298
        %v4442 = vunpack.c.l.b16 %v1299
        %v4443 = vunpack.c.h.b16 %v1299
        %v4444 = vunpack.c.l.b16 %v1300
        %v4445 = vunpack.c.h.b16 %v1300
        %v4446 = vunpack.c.l.b16 %v1301
        %v4447 = vunpack.c.h.b16 %v1301
        %v4448 = vunpack.c.l.b16 %v1302
        %v4449 = vunpack.c.h.b16 %v1302
        %v4450 = vunpack.c.l.b16 %v1303
        %v4451 = vunpack.c.h.b16 %v1303
        %v4452 = vunpack.c.l.b16 %v1304
        %v4453 = vunpack.c.h.b16 %v1304
        %v4454 = vunpack.c.l.b16 %v1305
        %v4455 = vunpack.c.h.b16 %v1305
        %v4456 = vunpack.c.l.b16 %v1306
        %v4457 = vunpack.c.h.b16 %v1306
        %v4458 = vunpack.c.l.b16 %v1307
        %v4459 = vunpack.c.h.b16 %v1307
        %v4460 = vunpack.c.l.b16 %v1308
        %v4461 = vunpack.c.h.b16 %v1308
        %v4462 = vunpack.c.l.b16 %v1309
        %v4463 = vunpack.c.h.b16 %v1309
        %v4464 = vunpack.c.l.b16 %v1310
        %v4465 = vunpack.c.h.b16 %v1310
        %v4466 = vunpack.c.l.b16 %v1311
        %v4467 = vunpack.c.h.b16 %v1311
        %v4468 = vunpack.c.l.b16 %v1312
        %v4469 = vunpack.c.h.b16 %v1312
        %v4470 = vunpack.c.l.b16 %v1313
        %v4471 = vunpack.c.h.b16 %v1313
        %v4472 = vunpack.c.l.b16 %v1314
        %v4473 = vunpack.c.h.b16 %v1314
        %v4474 = vunpack.c.l.b16 %v1315
        %v4475 = vunpack.c.h.b16 %v1315
        %v4476 = vunpack.c.l.b16 %v1316
        %v4477 = vunpack.c.h.b16 %v1316
        %v4478 = vunpack.c.l.b16 %v1317
        %v4479 = vunpack.c.h.b16 %v1317
        %v4480 = vunpack.c.l.b16 %v1318
        %v4481 = vunpack.c.h.b16 %v1318
        %v4482 = vunpack.c.l.b16 %v1319
        %v4483 = vunpack.c.h.b16 %v1319
        %v4484 = vunpack.c.l.b16 %v1320
        %v4485 = vunpack.c.h.b16 %v1320
        %v4486 = vunpack.c.l.b16 %v1321
        %v4487 = vunpack.c.h.b16 %v1321
        %v4488 = vunpack.c.l.b16 %v1322
        %v4489 = vunpack.c.h.b16 %v1322
        %v4490 = vunpack.c.l.b16 %v1323
        %v4491 = vunpack.c.h.b16 %v1323
        %v4492 = vunpack.c.l.b16 %v1324
        %v4493 = vunpack.c.h.b16 %v1324
        %v4494 = vunpack.c.l.b16 %v1325
        %v4495 = vunpack.c.h.b16 %v1325
        %v4496 = vunpack.c.l.b16 %v1326
        %v4497 = vunpack.c.h.b16 %v1326
        %v4498 = vunpack.c.l.b16 %v1327
        %v4499 = vunpack.c.h.b16 %v1327
        %v4500 = vunpack.c.l.b16 %v1328
        %v4501 = vunpack.c.h.b16 %v1328
        %v4502 = vunpack.c.l.b16 %v1329
        %v4503 = vunpack.c.h.b16 %v1329
        %v4504 = vunpack.c.l.b16 %v1330
        %v4505 = vunpack.c.h.b16 %v1330
        %v4506 = vunpack.c.l.b16 %v1331
        %v4507 = vunpack.c.h.b16 %v1331
        %v4508 = vunpack.c.l.b16 %v1332
        %v4509 = vunpack.c.h.b16 %v1332
        %v4510 = vunpack.c.l.b16 %v1333
        %v4511 = vunpack.c.h.b16 %v1333
        %v4512 = vunpack.c.l.b16 %v1334
        %v4513 = vunpack.c.h.b16 %v1334
        %v4514 = vunpack.c.l.b16 %v1335
        %v4515 = vunpack.c.h.b16 %v1335
        %v4516 = vunpack.c.l.b16 %v1336
        %v4517 = vunpack.c.h.b16 %v1336
        %v4518 = vunpack.c.l.b16 %v1337
        %v4519 = vunpack.c.h.b16 %v1337
        %v4520 = vunpack.c.l.b16 %v1338
        %v4521 = vunpack.c.h.b16 %v1338
        %v4522 = vunpack.c.l.b16 %v1339
        %v4523 = vunpack.c.h.b16 %v1339
        %v4524 = vunpack.c.l.b16 %v1340
        %v4525 = vunpack.c.h.b16 %v1340
        %v4526 = vunpack.c.l.b16 %v1341
        %v4527 = vunpack.c.h.b16 %v1341
        %v4528 = vunpack.c.l.b16 %v1342
        %v4529 = vunpack.c.h.b16 %v1342
        %v4530 = vunpack.c.l.b16 %v1343
        %v4531 = vunpack.c.h.b16 %v1343
        %v4532 = vpack.c.b16 %v2492, %v2484
        %v4533 = vpack.c.b16 %v2493, %v2485
        %v4534 = vpack.c.b16 %v2494, %v2486
        %v4535 = vpack.c.b16 %v2495, %v2487
        %v4536 = vpack.c.b16 %v2496, %v2488
        %v4537 = vpack.c.b16 %v2497, %v2489
        %v4538 = vpack.c.b16 %v2498, %v2490
        %v4539 = vpack.c.b16 %v2499, %v2491
        %v4540 = vpack.c.b16 %v2508, %v2500
        %v4541 = vpack.c.b16 %v2509, %v2501
        %v4542 = vpack.c.b16 %v2510, %v2502
        %v4543 = vpack.c.b16 %v2511, %v2503
        %v4544 = vpack.c.b16 %v2512, %v2504
        %v4545 = vpack.c.b16 %v2513, %v2505
        %v4546 = vpack.c.b16 %v2514, %v2506
        %v4547 = vpack.c.b16 %v2515, %v2507
        %v4548 = vpack.c.b16 %v2524, %v2516
        %v4549 = vpack.c.b16 %v2525, %v2517
        %v4550 = vpack.c.b16 %v2526, %v2518
        %v4551 = vpack.c.b16 %v2527, %v2519
        %v4552 = vpack.c.b16 %v2528, %v2520
        %v4553 = vpack.c.b16 %v2529, %v2521
        %v4554 = vpack.c.b16 %v2530, %v2522
        %v4555 = vpack.c.b16 %v2531, %v2523
        %v4556 = vpack.c.b16 %v2540, %v2532
        %v4557 = vpack.c.b16 %v2541, %v2533
        %v4558 = vpack.c.b16 %v2542, %v2534
        %v4559 = vpack.c.b16 %v2543, %v2535
        %v4560 = vpack.c.b16 %v2544, %v2536
        %v4561 = vpack.c.b16 %v2545, %v2537
        %v4562 = vpack.c.b16 %v2546, %v2538
        %v4563 = vpack.c.b16 %v2547, %v2539
        %v4564 = vpack.c.b16 %v2556, %v2548
        %v4565 = vpack.c.b16 %v2557, %v2549
        %v4566 = vpack.c.b16 %v2558, %v2550
        %v4567 = vpack.c.b16 %v2559, %v2551
        %v4568 = vpack.c.b16 %v2560, %v2552
        %v4569 = vpack.c.b16 %v2561, %v2553
        %v4570 = vpack.c.b16 %v2562, %v2554
        %v4571 = vpack.c.b16 %v2563, %v2555
        %v4572 = vpack.c.b16 %v2572, %v2564
        %v4573 = vpack.c.b16 %v2573, %v2565
        %v4574 = vpack.c.b16 %v2574, %v2566
        %v4575 = vpack.c.b16 %v2575, %v2567
        %v4576 = vpack.c.b16 %v2576, %v2568
        %v4577 = vpack.c.b16 %v2577, %v2569
        %v4578 = vpack.c.b16 %v2578, %v2570
        %v4579 = vpack.c.b16 %v2579, %v2571
        %v4580 = vpack.c.b16 %v2588, %v2580
        %v4581 = vpack.c.b16 %v2589, %v2581
        %v4582 = vpack.c.b16 %v2590, %v2582
        %v4583 = vpack.c.b16 %v2591, %v2583
        %v4584 = vpack.c.b16 %v2592, %v2584
        %v4585 = vpack.c.b16 %v2593, %v2585
        %v4586 = vpack.c.b16 %v2594, %v2586
        %v4587 = vpack.c.b16 %v2595, %v2587
        %v4588 = vpack.c.b16 %v2604, %v2596
        %v4589 = vpack.c.b16 %v2605, %v2597
        %v4590 = vpack.c.b16 %v2606, %v2598
        %v4591 = vpack.c.b16 %v2607, %v2599
        %v4592 = vpack.c.b16 %v2608, %v2600
        %v4593 = vpack.c.b16 %v2609, %v2601
        %v4594 = vpack.c.b16 %v2610, %v2602
        %v4595 = vpack.c.b16 %v2611, %v2603
        %v4596 = vpack.c.b16 %v2620, %v2612
        %v4597 = vpack.c.b16 %v2621, %v2613
        %v4598 = vpack.c.b16 %v2622, %v2614
        %v4599 = vpack.c.b16 %v2623, %v2615
        %v4600 = vpack.c.b16 %v2624, %v2616
        %v4601 = vpack.c.b16 %v2625, %v2617
        %v4602 = vpack.c.b16 %v2626, %v2618
        %v4603 = vpack.c.b16 %v2627, %v2619
        %v4604 = vpack.c.b16 %v2636, %v2628
        %v4605 = vpack.c.b16 %v2637, %v2629
        %v4606 = vpack.c.b16 %v2638, %v2630
        %v4607 = vpack.c.b16 %v2639, %v2631
        %v4608 = vpack.c.b16 %v2640, %v2632
        %v4609 = vpack.c.b16 %v2641, %v2633
        %v4610 = vpack.c.b16 %v2642, %v2634
        %v4611 = vpack.c.b16 %v2643, %v2635
        %v4612 = vpack.c.b16 %v2652, %v2644
        %v4613 = vpack.c.b16 %v2653, %v2645
        %v4614 = vpack.c.b16 %v2654, %v2646
        %v4615 = vpack.c.b16 %v2655, %v2647
        %v4616 = vpack.c.b16 %v2656, %v2648
        %v4617 = vpack.c.b16 %v2657, %v2649
        %v4618 = vpack.c.b16 %v2658, %v2650
        %v4619 = vpack.c.b16 %v2659, %v2651
        %v4620 = vpack.c.b16 %v2668, %v2660
        %v4621 = vpack.c.b16 %v2669, %v2661
        %v4622 = vpack.c.b16 %v2670, %v2662
        %v4623 = vpack.c.b16 %v2671, %v2663
        %v4624 = vpack.c.b16 %v2672, %v2664
        %v4625 = vpack.c.b16 %v2673, %v2665
        %v4626 = vpack.c.b16 %v2674, %v2666
        %v4627 = vpack.c.b16 %v2675, %v2667
        %v4628 = vpack.c.b16 %v2684, %v2676
        %v4629 = vpack.c.b16 %v2685, %v2677
        %v4630 = vpack.c.b16 %v2686, %v2678
        %v4631 = vpack.c.b16 %v2687, %v2679
        %v4632 = vpack.c.b16 %v2688, %v2680
        %v4633 = vpack.c.b16 %v2689, %v2681
        %v4634 = vpack.c.b16 %v2690, %v2682
        %v4635 = vpack.c.b16 %v2691, %v2683
        %v4636 = vpack.c.b16 %v2700, %v2692
        %v4637 = vpack.c.b16 %v2701, %v2693
        %v4638 = vpack.c.b16 %v2702, %v2694
        %v4639 = vpack.c.b16 %v2703, %v2695
        %v4640 = vpack.c.b16 %v2704, %v2696
        %v4641 = vpack.c.b16 %v2705, %v2697
        %v4642 = vpack.c.b16 %v2706, %v2698
        %v4643 = vpack.c.b16 %v2707, %v2699
        %v4644 = vpack.c.b16 %v2716, %v2708
        %v4645 = vpack.c.b16 %v2717, %v2709
        %v4646 = vpack.c.b16 %v2718, %v2710
        %v4647 = vpack.c.b16 %v2719, %v2711
        %v4648 = vpack.c.b16 %v2720, %v2712
        %v4649 = vpack.c.b16 %v2721, %v2713
        %v4650 = vpack.c.b16 %v2722, %v2714
        %v4651 = vpack.c.b16 %v2723, %v2715
        %v4652 = vpack.c.b16 %v2732, %v2724
        %v4653 = vpack.c.b16 %v2733, %v2725
        %v4654 = vpack.c.b16 %v2734, %v2726
        %v4655 = vpack.c.b16 %v2735, %v2727
        %v4656 = vpack.c.b16 %v2736, %v2728
        %v4657 = vpack.c.b16 %v2737, %v2729
        %v4658 = vpack.c.b16 %v2738, %v2730
        %v4659 = vpack.c.b16 %v2739, %v2731
        %v4660 = vpack.c.b16 %v2748, %v2740
        %v4661 = vpack.c.b16 %v2749, %v2741
        %v4662 = vpack.c.b16 %v2750, %v2742
        %v4663 = vpack.c.b16 %v2751, %v2743
        %v4664 = vpack.c.b16 %v2752, %v2744
        %v4665 = vpack.c.b16 %v2753, %v2745
        %v4666 = vpack.c.b16 %v2754, %v2746
        %v4667 = vpack.c.b16 %v2755, %v2747
        %v4668 = vpack.c.b16 %v2764, %v2756
        %v4669 = vpack.c.b16 %v2765, %v2757
        %v4670 = vpack.c.b16 %v2766, %v2758
        %v4671 = vpack.c.b16 %v2767, %v2759
        %v4672 = vpack.c.b16 %v2768, %v2760
        %v4673 = vpack.c.b16 %v2769, %v2761
        %v4674 = vpack.c.b16 %v2770, %v2762
        %v4675 = vpack.c.b16 %v2771, %v2763
        %v4676 = vpack.c.b16 %v2780, %v2772
        %v4677 = vpack.c.b16 %v2781, %v2773
        %v4678 = vpack.c.b16 %v2782, %v2774
        %v4679 = vpack.c.b16 %v2783, %v2775
        %v4680 = vpack.c.b16 %v2784, %v2776
        %v4681 = vpack.c.b16 %v2785, %v2777
        %v4682 = vpack.c.b16 %v2786, %v2778
        %v4683 = vpack.c.b16 %v2787, %v2779
        %v4684 = vpack.c.b16 %v2796, %v2788
        %v4685 = vpack.c.b16 %v2797, %v2789
        %v4686 = vpack.c.b16 %v2798, %v2790
        %v4687 = vpack.c.b16 %v2799, %v2791
        %v4688 = vpack.c.b16 %v2800, %v2792
        %v4689 = vpack.c.b16 %v2801, %v2793
        %v4690 = vpack.c.b16 %v2802, %v2794
        %v4691 = vpack.c.b16 %v2803, %v2795
        %v4692 = vpack.c.b16 %v2812, %v2804
        %v4693 = vpack.c.b16 %v2813, %v2805
        %v4694 = vpack.c.b16 %v2814, %v2806
        %v4695 = vpack.c.b16 %v2815, %v2807
        %v4696 = vpack.c.b16 %v2816, %v2808
        %v4697 = vpack.c.b16 %v2817, %v2809
        %v4698 = vpack.c.b16 %v2818, %v2810
        %v4699 = vpack.c.b16 %v2819, %v2811
        %v4700 = vpack.c.b16 %v2828, %v2820
        %v4701 = vpack.c.b16 %v2829, %v2821
        %v4702 = vpack.c.b16 %v2830, %v2822
        %v4703 = vpack.c.b16 %v2831, %v2823
        %v4704 = vpack.c.b16 %v2832, %v2824
        %v4705 = vpack.c.b16 %v2833, %v2825
        %v4706 = vpack.c.b16 %v2834, %v2826
        %v4707 = vpack.c.b16 %v2835, %v2827
        %v4708 = vpack.c.b16 %v2844, %v2836
        %v4709 = vpack.c.b16 %v2845, %v2837
        %v4710 = vpack.c.b16 %v2846, %v2838
        %v4711 = vpack.c.b16 %v2847, %v2839
        %v4712 = vpack.c.b16 %v2848, %v2840
        %v4713 = vpack.c.b16 %v2849, %v2841
        %v4714 = vpack.c.b16 %v2850, %v2842
        %v4715 = vpack.c.b16 %v2851, %v2843
        %v4716 = vpack.c.b16 %v2860, %v2852
        %v4717 = vpack.c.b16 %v2861, %v2853
        %v4718 = vpack.c.b16 %v2862, %v2854
        %v4719 = vpack.c.b16 %v2863, %v2855
        %v4720 = vpack.c.b16 %v2864, %v2856
        %v4721 = vpack.c.b16 %v2865, %v2857
        %v4722 = vpack.c.b16 %v2866, %v2858
        %v4723 = vpack.c.b16 %v2867, %v2859
        %v4724 = vpack.c.b16 %v2876, %v2868
        %v4725 = vpack.c.b16 %v2877, %v2869
        %v4726 = vpack.c.b16 %v2878, %v2870
        %v4727 = vpack.c.b16 %v2879, %v2871
        %v4728 = vpack.c.b16 %v2880, %v2872
        %v4729 = vpack.c.b16 %v2881, %v2873
        %v4730 = vpack.c.b16 %v2882, %v2874
        %v4731 = vpack.c.b16 %v2883, %v2875
        %v4732 = vpack.c.b16 %v2892, %v2884
        %v4733 = vpack.c.b16 %v2893, %v2885
        %v4734 = vpack.c.b16 %v2894, %v2886
        %v4735 = vpack.c.b16 %v2895, %v2887
        %v4736 = vpack.c.b16 %v2896, %v2888
        %v4737 = vpack.c.b16 %v2897, %v2889
        %v4738 = vpack.c.b16 %v2898, %v2890
        %v4739 = vpack.c.b16 %v2899, %v2891
        %v4740 = vpack.c.b16 %v2908, %v2900
        %v4741 = vpack.c.b16 %v2909, %v2901
        %v4742 = vpack.c.b16 %v2910, %v2902
        %v4743 = vpack.c.b16 %v2911, %v2903
        %v4744 = vpack.c.b16 %v2912, %v2904
        %v4745 = vpack.c.b16 %v2913, %v2905
        %v4746 = vpack.c.b16 %v2914, %v2906
        %v4747 = vpack.c.b16 %v2915, %v2907
        %v4748 = vpack.c.b16 %v2924, %v2916
        %v4749 = vpack.c.b16 %v2925, %v2917
        %v4750 = vpack.c.b16 %v2926, %v2918
        %v4751 = vpack.c.b16 %v2927, %v2919
        %v4752 = vpack.c.b16 %v2928, %v2920
        %v4753 = vpack.c.b16 %v2929, %v2921
        %v4754 = vpack.c.b16 %v2930, %v2922
        %v4755 = vpack.c.b16 %v2931, %v2923
        %v4756 = vpack.c.b16 %v2940, %v2932
        %v4757 = vpack.c.b16 %v2941, %v2933
        %v4758 = vpack.c.b16 %v2942, %v2934
        %v4759 = vpack.c.b16 %v2943, %v2935
        %v4760 = vpack.c.b16 %v2944, %v2936
        %v4761 = vpack.c.b16 %v2945, %v2937
        %v4762 = vpack.c.b16 %v2946, %v2938
        %v4763 = vpack.c.b16 %v2947, %v2939
        %v4764 = vpack.c.b16 %v2956, %v2948
        %v4765 = vpack.c.b16 %v2957, %v2949
        %v4766 = vpack.c.b16 %v2958, %v2950
        %v4767 = vpack.c.b16 %v2959, %v2951
        %v4768 = vpack.c.b16 %v2960, %v2952
        %v4769 = vpack.c.b16 %v2961, %v2953
        %v4770 = vpack.c.b16 %v2962, %v2954
        %v4771 = vpack.c.b16 %v2963, %v2955
        %v4772 = vpack.c.b16 %v2972, %v2964
        %v4773 = vpack.c.b16 %v2973, %v2965
        %v4774 = vpack.c.b16 %v2974, %v2966
        %v4775 = vpack.c.b16 %v2975, %v2967
        %v4776 = vpack.c.b16 %v2976, %v2968
        %v4777 = vpack.c.b16 %v2977, %v2969
        %v4778 = vpack.c.b16 %v2978, %v2970
        %v4779 = vpack.c.b16 %v2979, %v2971
        %v4780 = vpack.c.b16 %v2988, %v2980
        %v4781 = vpack.c.b16 %v2989, %v2981
        %v4782 = vpack.c.b16 %v2990, %v2982
        %v4783 = vpack.c.b16 %v2991, %v2983
        %v4784 = vpack.c.b16 %v2992, %v2984
        %v4785 = vpack.c.b16 %v2993, %v2985
        %v4786 = vpack.c.b16 %v2994, %v2986
        %v4787 = vpack.c.b16 %v2995, %v2987
        %v4788 = vpack.c.b16 %v3004, %v2996
        %v4789 = vpack.c.b16 %v3005, %v2997
        %v4790 = vpack.c.b16 %v3006, %v2998
        %v4791 = vpack.c.b16 %v3007, %v2999
        %v4792 = vpack.c.b16 %v3008, %v3000
        %v4793 = vpack.c.b16 %v3009, %v3001
        %v4794 = vpack.c.b16 %v3010, %v3002
        %v4795 = vpack.c.b16 %v3011, %v3003
        %v4796 = vpack.c.b16 %v3020, %v3012
        %v4797 = vpack.c.b16 %v3021, %v3013
        %v4798 = vpack.c.b16 %v3022, %v3014
        %v4799 = vpack.c.b16 %v3023, %v3015
        %v4800 = vpack.c.b16 %v3024, %v3016
        %v4801 = vpack.c.b16 %v3025, %v3017
        %v4802 = vpack.c.b16 %v3026, %v3018
        %v4803 = vpack.c.b16 %v3027, %v3019
        %v4804 = vpack.c.b16 %v3036, %v3028
        %v4805 = vpack.c.b16 %v3037, %v3029
        %v4806 = vpack.c.b16 %v3038, %v3030
        %v4807 = vpack.c.b16 %v3039, %v3031
        %v4808 = vpack.c.b16 %v3040, %v3032
        %v4809 = vpack.c.b16 %v3041, %v3033
        %v4810 = vpack.c.b16 %v3042, %v3034
        %v4811 = vpack.c.b16 %v3043, %v3035
        %v4812 = vpack.c.b16 %v3052, %v3044
        %v4813 = vpack.c.b16 %v3053, %v3045
        %v4814 = vpack.c.b16 %v3054, %v3046
        %v4815 = vpack.c.b16 %v3055, %v3047
        %v4816 = vpack.c.b16 %v3056, %v3048
        %v4817 = vpack.c.b16 %v3057, %v3049
        %v4818 = vpack.c.b16 %v3058, %v3050
        %v4819 = vpack.c.b16 %v3059, %v3051
        %v4820 = vpack.c.b16 %v3068, %v3060
        %v4821 = vpack.c.b16 %v3069, %v3061
        %v4822 = vpack.c.b16 %v3070, %v3062
        %v4823 = vpack.c.b16 %v3071, %v3063
        %v4824 = vpack.c.b16 %v3072, %v3064
        %v4825 = vpack.c.b16 %v3073, %v3065
        %v4826 = vpack.c.b16 %v3074, %v3066
        %v4827 = vpack.c.b16 %v3075, %v3067
        %v4828 = vpack.c.b16 %v3084, %v3076
        %v4829 = vpack.c.b16 %v3085, %v3077
        %v4830 = vpack.c.b16 %v3086, %v3078
        %v4831 = vpack.c.b16 %v3087, %v3079
        %v4832 = vpack.c.b16 %v3088, %v3080
        %v4833 = vpack.c.b16 %v3089, %v3081
        %v4834 = vpack.c.b16 %v3090, %v3082
        %v4835 = vpack.c.b16 %v3091, %v3083
        %v4836 = vpack.c.b16 %v3100, %v3092
        %v4837 = vpack.c.b16 %v3101, %v3093
        %v4838 = vpack.c.b16 %v3102, %v3094
        %v4839 = vpack.c.b16 %v3103, %v3095
        %v4840 = vpack.c.b16 %v3104, %v3096
        %v4841 = vpack.c.b16 %v3105, %v3097
        %v4842 = vpack.c.b16 %v3106, %v3098
        %v4843 = vpack.c.b16 %v3107, %v3099
        %v4844 = vpack.c.b16 %v3116, %v3108
        %v4845 = vpack.c.b16 %v3117, %v3109
        %v4846 = vpack.c.b16 %v3118, %v3110
        %v4847 = vpack.c.b16 %v3119, %v3111
        %v4848 = vpack.c.b16 %v3120, %v3112
        %v4849 = vpack.c.b16 %v3121, %v3113
        %v4850 = vpack.c.b16 %v3122, %v3114
        %v4851 = vpack.c.b16 %v3123, %v3115
        %v4852 = vpack.c.b16 %v3132, %v3124
        %v4853 = vpack.c.b16 %v3133, %v3125
        %v4854 = vpack.c.b16 %v3134, %v3126
        %v4855 = vpack.c.b16 %v3135, %v3127
        %v4856 = vpack.c.b16 %v3136, %v3128
        %v4857 = vpack.c.b16 %v3137, %v3129
        %v4858 = vpack.c.b16 %v3138, %v3130
        %v4859 = vpack.c.b16 %v3139, %v3131
        %v4860 = vpack.c.b16 %v3148, %v3140
        %v4861 = vpack.c.b16 %v3149, %v3141
        %v4862 = vpack.c.b16 %v3150, %v3142
        %v4863 = vpack.c.b16 %v3151, %v3143
        %v4864 = vpack.c.b16 %v3152, %v3144
        %v4865 = vpack.c.b16 %v3153, %v3145
        %v4866 = vpack.c.b16 %v3154, %v3146
        %v4867 = vpack.c.b16 %v3155, %v3147
        %v4868 = vpack.c.b16 %v3164, %v3156
        %v4869 = vpack.c.b16 %v3165, %v3157
        %v4870 = vpack.c.b16 %v3166, %v3158
        %v4871 = vpack.c.b16 %v3167, %v3159
        %v4872 = vpack.c.b16 %v3168, %v3160
        %v4873 = vpack.c.b16 %v3169, %v3161
        %v4874 = vpack.c.b16 %v3170, %v3162
        %v4875 = vpack.c.b16 %v3171, %v3163
        %v4876 = vpack.c.b16 %v3180, %v3172
        %v4877 = vpack.c.b16 %v3181, %v3173
        %v4878 = vpack.c.b16 %v3182, %v3174
        %v4879 = vpack.c.b16 %v3183, %v3175
        %v4880 = vpack.c.b16 %v3184, %v3176
        %v4881 = vpack.c.b16 %v3185, %v3177
        %v4882 = vpack.c.b16 %v3186, %v3178
        %v4883 = vpack.c.b16 %v3187, %v3179
        %v4884 = vpack.c.b16 %v3196, %v3188
        %v4885 = vpack.c.b16 %v3197, %v3189
        %v4886 = vpack.c.b16 %v3198, %v3190
        %v4887 = vpack.c.b16 %v3199, %v3191
        %v4888 = vpack.c.b16 %v3200, %v3192
        %v4889 = vpack.c.b16 %v3201, %v3193
        %v4890 = vpack.c.b16 %v3202, %v3194
        %v4891 = vpack.c.b16 %v3203, %v3195
        %v4892 = vpack.c.b16 %v3212, %v3204
        %v4893 = vpack.c.b16 %v3213, %v3205
        %v4894 = vpack.c.b16 %v3214, %v3206
        %v4895 = vpack.c.b16 %v3215, %v3207
        %v4896 = vpack.c.b16 %v3216, %v3208
        %v4897 = vpack.c.b16 %v3217, %v3209
        %v4898 = vpack.c.b16 %v3218, %v3210
        %v4899 = vpack.c.b16 %v3219, %v3211
        %v4900 = vpack.c.b16 %v3228, %v3220
        %v4901 = vpack.c.b16 %v3229, %v3221
        %v4902 = vpack.c.b16 %v3230, %v3222
        %v4903 = vpack.c.b16 %v3231, %v3223
        %v4904 = vpack.c.b16 %v3232, %v3224
        %v4905 = vpack.c.b16 %v3233, %v3225
        %v4906 = vpack.c.b16 %v3234, %v3226
        %v4907 = vpack.c.b16 %v3235, %v3227
        %v4908 = vpack.c.b16 %v3244, %v3236
        %v4909 = vpack.c.b16 %v3245, %v3237
        %v4910 = vpack.c.b16 %v3246, %v3238
        %v4911 = vpack.c.b16 %v3247, %v3239
        %v4912 = vpack.c.b16 %v3248, %v3240
        %v4913 = vpack.c.b16 %v3249, %v3241
        %v4914 = vpack.c.b16 %v3250, %v3242
        %v4915 = vpack.c.b16 %v3251, %v3243
        %v4916 = vpack.c.b16 %v3260, %v3252
        %v4917 = vpack.c.b16 %v3261, %v3253
        %v4918 = vpack.c.b16 %v3262, %v3254
        %v4919 = vpack.c.b16 %v3263, %v3255
        %v4920 = vpack.c.b16 %v3264, %v3256
        %v4921 = vpack.c.b16 %v3265, %v3257
        %v4922 = vpack.c.b16 %v3266, %v3258
        %v4923 = vpack.c.b16 %v3267, %v3259
        %v4924 = vpack.c.b16 %v3276, %v3268
        %v4925 = vpack.c.b16 %v3277, %v3269
        %v4926 = vpack.c.b16 %v3278, %v3270
        %v4927 = vpack.c.b16 %v3279, %v3271
        %v4928 = vpack.c.b16 %v3280, %v3272
        %v4929 = vpack.c.b16 %v3281, %v3273
        %v4930 = vpack.c.b16 %v3282, %v3274
        %v4931 = vpack.c.b16 %v3283, %v3275
        %v4932 = vpack.c.b16 %v3292, %v3284
        %v4933 = vpack.c.b16 %v3293, %v3285
        %v4934 = vpack.c.b16 %v3294, %v3286
        %v4935 = vpack.c.b16 %v3295, %v3287
        %v4936 = vpack.c.b16 %v3296, %v3288
        %v4937 = vpack.c.b16 %v3297, %v3289
        %v4938 = vpack.c.b16 %v3298, %v3290
        %v4939 = vpack.c.b16 %v3299, %v3291
        %v4940 = vpack.c.b16 %v3308, %v3300
        %v4941 = vpack.c.b16 %v3309, %v3301
        %v4942 = vpack.c.b16 %v3310, %v3302
        %v4943 = vpack.c.b16 %v3311, %v3303
        %v4944 = vpack.c.b16 %v3312, %v3304
        %v4945 = vpack.c.b16 %v3313, %v3305
        %v4946 = vpack.c.b16 %v3314, %v3306
        %v4947 = vpack.c.b16 %v3315, %v3307
        %v4948 = vpack.c.b16 %v3324, %v3316
        %v4949 = vpack.c.b16 %v3325, %v3317
        %v4950 = vpack.c.b16 %v3326, %v3318
        %v4951 = vpack.c.b16 %v3327, %v3319
        %v4952 = vpack.c.b16 %v3328, %v3320
        %v4953 = vpack.c.b16 %v3329, %v3321
        %v4954 = vpack.c.b16 %v3330, %v3322
        %v4955 = vpack.c.b16 %v3331, %v3323
        %v4956 = vpack.c.b16 %v3340, %v3332
        %v4957 = vpack.c.b16 %v3341, %v3333
        %v4958 = vpack.c.b16 %v3342, %v3334
        %v4959 = vpack.c.b16 %v3343, %v3335
        %v4960 = vpack.c.b16 %v3344, %v3336
        %v4961 = vpack.c.b16 %v3345, %v3337
        %v4962 = vpack.c.b16 %v3346, %v3338
        %v4963 = vpack.c.b16 %v3347, %v3339
        %v4964 = vpack.c.b16 %v3356, %v3348
        %v4965 = vpack.c.b16 %v3357, %v3349
        %v4966 = vpack.c.b16 %v3358, %v3350
        %v4967 = vpack.c.b16 %v3359, %v3351
        %v4968 = vpack.c.b16 %v3360, %v3352
        %v4969 = vpack.c.b16 %v3361, %v3353
        %v4970 = vpack.c.b16 %v3362, %v3354
        %v4971 = vpack.c.b16 %v3363, %v3355
        %v4972 = vpack.c.b16 %v3372, %v3364
        %v4973 = vpack.c.b16 %v3373, %v3365
        %v4974 = vpack.c.b16 %v3374, %v3366
        %v4975 = vpack.c.b16 %v3375, %v3367
        %v4976 = vpack.c.b16 %v3376, %v3368
        %v4977 = vpack.c.b16 %v3377, %v3369
        %v4978 = vpack.c.b16 %v3378, %v3370
        %v4979 = vpack.c.b16 %v3379, %v3371
        %v4980 = vpack.c.b16 %v3388, %v3380
        %v4981 = vpack.c.b16 %v3389, %v3381
        %v4982 = vpack.c.b16 %v3390, %v3382
        %v4983 = vpack.c.b16 %v3391, %v3383
        %v4984 = vpack.c.b16 %v3392, %v3384
        %v4985 = vpack.c.b16 %v3393, %v3385
        %v4986 = vpack.c.b16 %v3394, %v3386
        %v4987 = vpack.c.b16 %v3395, %v3387
        %v4988 = vpack.c.b16 %v3404, %v3396
        %v4989 = vpack.c.b16 %v3405, %v3397
        %v4990 = vpack.c.b16 %v3406, %v3398
        %v4991 = vpack.c.b16 %v3407, %v3399
        %v4992 = vpack.c.b16 %v3408, %v3400
        %v4993 = vpack.c.b16 %v3409, %v3401
        %v4994 = vpack.c.b16 %v3410, %v3402
        %v4995 = vpack.c.b16 %v3411, %v3403
        %v4996 = vpack.c.b16 %v3420, %v3412
        %v4997 = vpack.c.b16 %v3421, %v3413
        %v4998 = vpack.c.b16 %v3422, %v3414
        %v4999 = vpack.c.b16 %v3423, %v3415
        %v5000 = vpack.c.b16 %v3424, %v3416
        %v5001 = vpack.c.b16 %v3425, %v3417
        %v5002 = vpack.c.b16 %v3426, %v3418
        %v5003 = vpack.c.b16 %v3427, %v3419
        %v5004 = vpack.c.b16 %v3436, %v3428
        %v5005 = vpack.c.b16 %v3437, %v3429
        %v5006 = vpack.c.b16 %v3438, %v3430
        %v5007 = vpack.c.b16 %v3439, %v3431
        %v5008 = vpack.c.b16 %v3440, %v3432
        %v5009 = vpack.c.b16 %v3441, %v3433
        %v5010 = vpack.c.b16 %v3442, %v3434
        %v5011 = vpack.c.b16 %v3443, %v3435
        %v5012 = vpack.c.b16 %v3452, %v3444
        %v5013 = vpack.c.b16 %v3453, %v3445
        %v5014 = vpack.c.b16 %v3454, %v3446
        %v5015 = vpack.c.b16 %v3455, %v3447
        %v5016 = vpack.c.b16 %v3456, %v3448
        %v5017 = vpack.c.b16 %v3457, %v3449
        %v5018 = vpack.c.b16 %v3458, %v3450
        %v5019 = vpack.c.b16 %v3459, %v3451
        %v5020 = vpack.c.b16 %v3468, %v3460
        %v5021 = vpack.c.b16 %v3469, %v3461
        %v5022 = vpack.c.b16 %v3470, %v3462
        %v5023 = vpack.c.b16 %v3471, %v3463
        %v5024 = vpack.c.b16 %v3472, %v3464
        %v5025 = vpack.c.b16 %v3473, %v3465
        %v5026 = vpack.c.b16 %v3474, %v3466
        %v5027 = vpack.c.b16 %v3475, %v3467
        %v5028 = vpack.c.b16 %v3484, %v3476
        %v5029 = vpack.c.b16 %v3485, %v3477
        %v5030 = vpack.c.b16 %v3486, %v3478
        %v5031 = vpack.c.b16 %v3487, %v3479
        %v5032 = vpack.c.b16 %v3488, %v3480
        %v5033 = vpack.c.b16 %v3489, %v3481
        %v5034 = vpack.c.b16 %v3490, %v3482
        %v5035 = vpack.c.b16 %v3491, %v3483
        %v5036 = vpack.c.b16 %v3500, %v3492
        %v5037 = vpack.c.b16 %v3501, %v3493
        %v5038 = vpack.c.b16 %v3502, %v3494
        %v5039 = vpack.c.b16 %v3503, %v3495
        %v5040 = vpack.c.b16 %v3504, %v3496
        %v5041 = vpack.c.b16 %v3505, %v3497
        %v5042 = vpack.c.b16 %v3506, %v3498
        %v5043 = vpack.c.b16 %v3507, %v3499
        %v5044 = vpack.c.b16 %v3516, %v3508
        %v5045 = vpack.c.b16 %v3517, %v3509
        %v5046 = vpack.c.b16 %v3518, %v3510
        %v5047 = vpack.c.b16 %v3519, %v3511
        %v5048 = vpack.c.b16 %v3520, %v3512
        %v5049 = vpack.c.b16 %v3521, %v3513
        %v5050 = vpack.c.b16 %v3522, %v3514
        %v5051 = vpack.c.b16 %v3523, %v3515
        %v5052 = vpack.c.b16 %v3532, %v3524
        %v5053 = vpack.c.b16 %v3533, %v3525
        %v5054 = vpack.c.b16 %v3534, %v3526
        %v5055 = vpack.c.b16 %v3535, %v3527
        %v5056 = vpack.c.b16 %v3536, %v3528
        %v5057 = vpack.c.b16 %v3537, %v3529
        %v5058 = vpack.c.b16 %v3538, %v3530
        %v5059 = vpack.c.b16 %v3539, %v3531
        %v5060 = vpack.c.b16 %v3548, %v3540
        %v5061 = vpack.c.b16 %v3549, %v3541
        %v5062 = vpack.c.b16 %v3550, %v3542
        %v5063 = vpack.c.b16 %v3551, %v3543
        %v5064 = vpack.c.b16 %v3552, %v3544
        %v5065 = vpack.c.b16 %v3553, %v3545
        %v5066 = vpack.c.b16 %v3554, %v3546
        %v5067 = vpack.c.b16 %v3555, %v3547
        %v5068 = vpack.c.b16 %v3564, %v3556
        %v5069 = vpack.c.b16 %v3565, %v3557
        %v5070 = vpack.c.b16 %v3566, %v3558
        %v5071 = vpack.c.b16 %v3567, %v3559
        %v5072 = vpack.c.b16 %v3568, %v3560
        %v5073 = vpack.c.b16 %v3569, %v3561
        %v5074 = vpack.c.b16 %v3570, %v3562
        %v5075 = vpack.c.b16 %v3571, %v3563
        %v5076 = vpack.c.b16 %v3580, %v3572
        %v5077 = vpack.c.b16 %v3581, %v3573
        %v5078 = vpack.c.b16 %v3582, %v3574
        %v5079 = vpack.c.b16 %v3583, %v3575
        %v5080 = vpack.c.b16 %v3584, %v3576
        %v5081 = vpack.c.b16 %v3585, %v3577
        %v5082 = vpack.c.b16 %v3586, %v3578
        %v5083 = vpack.c.b16 %v3587, %v3579
        %v5084 = vpack.c.b16 %v3596, %v3588
        %v5085 = vpack.c.b16 %v3597, %v3589
        %v5086 = vpack.c.b16 %v3598, %v3590
        %v5087 = vpack.c.b16 %v3599, %v3591
        %v5088 = vpack.c.b16 %v3600, %v3592
        %v5089 = vpack.c.b16 %v3601, %v3593
        %v5090 = vpack.c.b16 %v3602, %v3594
        %v5091 = vpack.c.b16 %v3603, %v3595
        %v5092 = vpack.c.b16 %v3612, %v3604
        %v5093 = vpack.c.b16 %v3613, %v3605
        %v5094 = vpack.c.b16 %v3614, %v3606
        %v5095 = vpack.c.b16 %v3615, %v3607
        %v5096 = vpack.c.b16 %v3616, %v3608
        %v5097 = vpack.c.b16 %v3617, %v3609
        %v5098 = vpack.c.b16 %v3618, %v3610
        %v5099 = vpack.c.b16 %v3619, %v3611
        %v5100 = vpack.c.b16 %v3628, %v3620
        %v5101 = vpack.c.b16 %v3629, %v3621
        %v5102 = vpack.c.b16 %v3630, %v3622
        %v5103 = vpack.c.b16 %v3631, %v3623
        %v5104 = vpack.c.b16 %v3632, %v3624
        %v5105 = vpack.c.b16 %v3633, %v3625
        %v5106 = vpack.c.b16 %v3634, %v3626
        %v5107 = vpack.c.b16 %v3635, %v3627
        %v5108 = vpack.c.b16 %v3644, %v3636
        %v5109 = vpack.c.b16 %v3645, %v3637
        %v5110 = vpack.c.b16 %v3646, %v3638
        %v5111 = vpack.c.b16 %v3647, %v3639
        %v5112 = vpack.c.b16 %v3648, %v3640
        %v5113 = vpack.c.b16 %v3649, %v3641
        %v5114 = vpack.c.b16 %v3650, %v3642
        %v5115 = vpack.c.b16 %v3651, %v3643
        %v5116 = vpack.c.b16 %v3660, %v3652
        %v5117 = vpack.c.b16 %v3661, %v3653
        %v5118 = vpack.c.b16 %v3662, %v3654
        %v5119 = vpack.c.b16 %v3663, %v3655
        %v5120 = vpack.c.b16 %v3664, %v3656
        %v5121 = vpack.c.b16 %v3665, %v3657
        %v5122 = vpack.c.b16 %v3666, %v3658
        %v5123 = vpack.c.b16 %v3667, %v3659
        %v5124 = vpack.c.b16 %v3676, %v3668
        %v5125 = vpack.c.b16 %v3677, %v3669
        %v5126 = vpack.c.b16 %v3678, %v3670
        %v5127 = vpack.c.b16 %v3679, %v3671
        %v5128 = vpack.c.b16 %v3680, %v3672
        %v5129 = vpack.c.b16 %v3681, %v3673
        %v5130 = vpack.c.b16 %v3682, %v3674
        %v5131 = vpack.c.b16 %v3683, %v3675
        %v5132 = vpack.c.b16 %v3692, %v3684
        %v5133 = vpack.c.b16 %v3693, %v3685
        %v5134 = vpack.c.b16 %v3694, %v3686
        %v5135 = vpack.c.b16 %v3695, %v3687
        %v5136 = vpack.c.b16 %v3696, %v3688
        %v5137 = vpack.c.b16 %v3697, %v3689
        %v5138 = vpack.c.b16 %v3698, %v3690
        %v5139 = vpack.c.b16 %v3699, %v3691
        %v5140 = vpack.c.b16 %v3708, %v3700
        %v5141 = vpack.c.b16 %v3709, %v3701
        %v5142 = vpack.c.b16 %v3710, %v3702
        %v5143 = vpack.c.b16 %v3711, %v3703
        %v5144 = vpack.c.b16 %v3712, %v3704
        %v5145 = vpack.c.b16 %v3713, %v3705
        %v5146 = vpack.c.b16 %v3714, %v3706
        %v5147 = vpack.c.b16 %v3715, %v3707
        %v5148 = vpack.c.b16 %v3724, %v3716
        %v5149 = vpack.c.b16 %v3725, %v3717
        %v5150 = vpack.c.b16 %v3726, %v3718
        %v5151 = vpack.c.b16 %v3727, %v3719
        %v5152 = vpack.c.b16 %v3728, %v3720
        %v5153 = vpack.c.b16 %v3729, %v3721
        %v5154 = vpack.c.b16 %v3730, %v3722
        %v5155 = vpack.c.b16 %v3731, %v3723
        %v5156 = vpack.c.b16 %v3740, %v3732
        %v5157 = vpack.c.b16 %v3741, %v3733
        %v5158 = vpack.c.b16 %v3742, %v3734
        %v5159 = vpack.c.b16 %v3743, %v3735
        %v5160 = vpack.c.b16 %v3744, %v3736
        %v5161 = vpack.c.b16 %v3745, %v3737
        %v5162 = vpack.c.b16 %v3746, %v3738
        %v5163 = vpack.c.b16 %v3747, %v3739
        %v5164 = vpack.c.b16 %v3756, %v3748
        %v5165 = vpack.c.b16 %v3757, %v3749
        %v5166 = vpack.c.b16 %v3758, %v3750
        %v5167 = vpack.c.b16 %v3759, %v3751
        %v5168 = vpack.c.b16 %v3760, %v3752
        %v5169 = vpack.c.b16 %v3761, %v3753
        %v5170 = vpack.c.b16 %v3762, %v3754
        %v5171 = vpack.c.b16 %v3763, %v3755
        %v5172 = vpack.c.b16 %v3772, %v3764
        %v5173 = vpack.c.b16 %v3773, %v3765
        %v5174 = vpack.c.b16 %v3774, %v3766
        %v5175 = vpack.c.b16 %v3775, %v3767
        %v5176 = vpack.c.b16 %v3776, %v3768
        %v5177 = vpack.c.b16 %v3777, %v3769
        %v5178 = vpack.c.b16 %v3778, %v3770
        %v5179 = vpack.c.b16 %v3779, %v3771
        %v5180 = vpack.c.b16 %v3788, %v3780
        %v5181 = vpack.c.b16 %v3789, %v3781
        %v5182 = vpack.c.b16 %v3790, %v3782
        %v5183 = vpack.c.b16 %v3791, %v3783
        %v5184 = vpack.c.b16 %v3792, %v3784
        %v5185 = vpack.c.b16 %v3793, %v3785
        %v5186 = vpack.c.b16 %v3794, %v3786
        %v5187 = vpack.c.b16 %v3795, %v3787
        %v5188 = vpack.c.b16 %v3804, %v3796
        %v5189 = vpack.c.b16 %v3805, %v3797
        %v5190 = vpack.c.b16 %v3806, %v3798
        %v5191 = vpack.c.b16 %v3807, %v3799
        %v5192 = vpack.c.b16 %v3808, %v3800
        %v5193 = vpack.c.b16 %v3809, %v3801
        %v5194 = vpack.c.b16 %v3810, %v3802
        %v5195 = vpack.c.b16 %v3811, %v3803
        %v5196 = vpack.c.b16 %v3820, %v3812
        %v5197 = vpack.c.b16 %v3821, %v3813
        %v5198 = vpack.c.b16 %v3822, %v3814
        %v5199 = vpack.c.b16 %v3823, %v3815
        %v5200 = vpack.c.b16 %v3824, %v3816
        %v5201 = vpack.c.b16 %v3825, %v3817
        %v5202 = vpack.c.b16 %v3826, %v3818
        %v5203 = vpack.c.b16 %v3827, %v3819
        %v5204 = vpack.c.b16 %v3836, %v3828
        %v5205 = vpack.c.b16 %v3837, %v3829
        %v5206 = vpack.c.b16 %v3838, %v3830
        %v5207 = vpack.c.b16 %v3839, %v3831
        %v5208 = vpack.c.b16 %v3840, %v3832
        %v5209 = vpack.c.b16 %v3841, %v3833
        %v5210 = vpack.c.b16 %v3842, %v3834
        %v5211 = vpack.c.b16 %v3843, %v3835
        %v5212 = vpack.c.b16 %v3852, %v3844
        %v5213 = vpack.c.b16 %v3853, %v3845
        %v5214 = vpack.c.b16 %v3854, %v3846
        %v5215 = vpack.c.b16 %v3855, %v3847
        %v5216 = vpack.c.b16 %v3856, %v3848
        %v5217 = vpack.c.b16 %v3857, %v3849
        %v5218 = vpack.c.b16 %v3858, %v3850
        %v5219 = vpack.c.b16 %v3859, %v3851
        %v5220 = vpack.c.b16 %v3868, %v3860
        %v5221 = vpack.c.b16 %v3869, %v3861
        %v5222 = vpack.c.b16 %v3870, %v3862
        %v5223 = vpack.c.b16 %v3871, %v3863
        %v5224 = vpack.c.b16 %v3872, %v3864
        %v5225 = vpack.c.b16 %v3873, %v3865
        %v5226 = vpack.c.b16 %v3874, %v3866
        %v5227 = vpack.c.b16 %v3875, %v3867
        %v5228 = vpack.c.b16 %v3884, %v3876
        %v5229 = vpack.c.b16 %v3885, %v3877
        %v5230 = vpack.c.b16 %v3886, %v3878
        %v5231 = vpack.c.b16 %v3887, %v3879
        %v5232 = vpack.c.b16 %v3888, %v3880
        %v5233 = vpack.c.b16 %v3889, %v3881
        %v5234 = vpack.c.b16 %v3890, %v3882
        %v5235 = vpack.c.b16 %v3891, %v3883
        %v5236 = vpack.c.b16 %v3900, %v3892
        %v5237 = vpack.c.b16 %v3901, %v3893
        %v5238 = vpack.c.b16 %v3902, %v3894
        %v5239 = vpack.c.b16 %v3903, %v3895
        %v5240 = vpack.c.b16 %v3904, %v3896
        %v5241 = vpack.c.b16 %v3905, %v3897
        %v5242 = vpack.c.b16 %v3906, %v3898
        %v5243 = vpack.c.b16 %v3907, %v3899
        %v5244 = vpack.c.b16 %v3916, %v3908
        %v5245 = vpack.c.b16 %v3917, %v3909
        %v5246 = vpack.c.b16 %v3918, %v3910
        %v5247 = vpack.c.b16 %v3919, %v3911
        %v5248 = vpack.c.b16 %v3920, %v3912
        %v5249 = vpack.c.b16 %v3921, %v3913
        %v5250 = vpack.c.b16 %v3922, %v3914
        %v5251 = vpack.c.b16 %v3923, %v3915
        %v5252 = vpack.c.b16 %v3932, %v3924
        %v5253 = vpack.c.b16 %v3933, %v3925
        %v5254 = vpack.c.b16 %v3934, %v3926
        %v5255 = vpack.c.b16 %v3935, %v3927
        %v5256 = vpack.c.b16 %v3936, %v3928
        %v5257 = vpack.c.b16 %v3937, %v3929
        %v5258 = vpack.c.b16 %v3938, %v3930
        %v5259 = vpack.c.b16 %v3939, %v3931
        %v5260 = vpack.c.b16 %v3948, %v3940
        %v5261 = vpack.c.b16 %v3949, %v3941
        %v5262 = vpack.c.b16 %v3950, %v3942
        %v5263 = vpack.c.b16 %v3951, %v3943
        %v5264 = vpack.c.b16 %v3952, %v3944
        %v5265 = vpack.c.b16 %v3953, %v3945
        %v5266 = vpack.c.b16 %v3954, %v3946
        %v5267 = vpack.c.b16 %v3955, %v3947
        %v5268 = vpack.c.b16 %v3964, %v3956
        %v5269 = vpack.c.b16 %v3965, %v3957
        %v5270 = vpack.c.b16 %v3966, %v3958
        %v5271 = vpack.c.b16 %v3967, %v3959
        %v5272 = vpack.c.b16 %v3968, %v3960
        %v5273 = vpack.c.b16 %v3969, %v3961
        %v5274 = vpack.c.b16 %v3970, %v3962
        %v5275 = vpack.c.b16 %v3971, %v3963
        %v5276 = vpack.c.b16 %v3980, %v3972
        %v5277 = vpack.c.b16 %v3981, %v3973
        %v5278 = vpack.c.b16 %v3982, %v3974
        %v5279 = vpack.c.b16 %v3983, %v3975
        %v5280 = vpack.c.b16 %v3984, %v3976
        %v5281 = vpack.c.b16 %v3985, %v3977
        %v5282 = vpack.c.b16 %v3986, %v3978
        %v5283 = vpack.c.b16 %v3987, %v3979
        %v5284 = vpack.c.b16 %v3996, %v3988
        %v5285 = vpack.c.b16 %v3997, %v3989
        %v5286 = vpack.c.b16 %v3998, %v3990
        %v5287 = vpack.c.b16 %v3999, %v3991
        %v5288 = vpack.c.b16 %v4000, %v3992
        %v5289 = vpack.c.b16 %v4001, %v3993
        %v5290 = vpack.c.b16 %v4002, %v3994
        %v5291 = vpack.c.b16 %v4003, %v3995
        %v5292 = vpack.c.b16 %v4012, %v4004
        %v5293 = vpack.c.b16 %v4013, %v4005
        %v5294 = vpack.c.b16 %v4014, %v4006
        %v5295 = vpack.c.b16 %v4015, %v4007
        %v5296 = vpack.c.b16 %v4016, %v4008
        %v5297 = vpack.c.b16 %v4017, %v4009
        %v5298 = vpack.c.b16 %v4018, %v4010
        %v5299 = vpack.c.b16 %v4019, %v4011
        %v5300 = vpack.c.b16 %v4028, %v4020
        %v5301 = vpack.c.b16 %v4029, %v4021
        %v5302 = vpack.c.b16 %v4030, %v4022
        %v5303 = vpack.c.b16 %v4031, %v4023
        %v5304 = vpack.c.b16 %v4032, %v4024
        %v5305 = vpack.c.b16 %v4033, %v4025
        %v5306 = vpack.c.b16 %v4034, %v4026
        %v5307 = vpack.c.b16 %v4035, %v4027
        %v5308 = vpack.c.b16 %v4044, %v4036
        %v5309 = vpack.c.b16 %v4045, %v4037
        %v5310 = vpack.c.b16 %v4046, %v4038
        %v5311 = vpack.c.b16 %v4047, %v4039
        %v5312 = vpack.c.b16 %v4048, %v4040
        %v5313 = vpack.c.b16 %v4049, %v4041
        %v5314 = vpack.c.b16 %v4050, %v4042
        %v5315 = vpack.c.b16 %v4051, %v4043
        %v5316 = vpack.c.b16 %v4060, %v4052
        %v5317 = vpack.c.b16 %v4061, %v4053
        %v5318 = vpack.c.b16 %v4062, %v4054
        %v5319 = vpack.c.b16 %v4063, %v4055
        %v5320 = vpack.c.b16 %v4064, %v4056
        %v5321 = vpack.c.b16 %v4065, %v4057
        %v5322 = vpack.c.b16 %v4066, %v4058
        %v5323 = vpack.c.b16 %v4067, %v4059
        %v5324 = vpack.c.b16 %v4076, %v4068
        %v5325 = vpack.c.b16 %v4077, %v4069
        %v5326 = vpack.c.b16 %v4078, %v4070
        %v5327 = vpack.c.b16 %v4079, %v4071
        %v5328 = vpack.c.b16 %v4080, %v4072
        %v5329 = vpack.c.b16 %v4081, %v4073
        %v5330 = vpack.c.b16 %v4082, %v4074
        %v5331 = vpack.c.b16 %v4083, %v4075
        %v5332 = vpack.c.b16 %v4092, %v4084
        %v5333 = vpack.c.b16 %v4093, %v4085
        %v5334 = vpack.c.b16 %v4094, %v4086
        %v5335 = vpack.c.b16 %v4095, %v4087
        %v5336 = vpack.c.b16 %v4096, %v4088
        %v5337 = vpack.c.b16 %v4097, %v4089
        %v5338 = vpack.c.b16 %v4098, %v4090
        %v5339 = vpack.c.b16 %v4099, %v4091
        %v5340 = vpack.c.b16 %v4108, %v4100
        %v5341 = vpack.c.b16 %v4109, %v4101
        %v5342 = vpack.c.b16 %v4110, %v4102
        %v5343 = vpack.c.b16 %v4111, %v4103
        %v5344 = vpack.c.b16 %v4112, %v4104
        %v5345 = vpack.c.b16 %v4113, %v4105
        %v5346 = vpack.c.b16 %v4114, %v4106
        %v5347 = vpack.c.b16 %v4115, %v4107
        %v5348 = vpack.c.b16 %v4124, %v4116
        %v5349 = vpack.c.b16 %v4125, %v4117
        %v5350 = vpack.c.b16 %v4126, %v4118
        %v5351 = vpack.c.b16 %v4127, %v4119
        %v5352 = vpack.c.b16 %v4128, %v4120
        %v5353 = vpack.c.b16 %v4129, %v4121
        %v5354 = vpack.c.b16 %v4130, %v4122
        %v5355 = vpack.c.b16 %v4131, %v4123
        %v5356 = vpack.c.b16 %v4140, %v4132
        %v5357 = vpack.c.b16 %v4141, %v4133
        %v5358 = vpack.c.b16 %v4142, %v4134
        %v5359 = vpack.c.b16 %v4143, %v4135
        %v5360 = vpack.c.b16 %v4144, %v4136
        %v5361 = vpack.c.b16 %v4145, %v4137
        %v5362 = vpack.c.b16 %v4146, %v4138
        %v5363 = vpack.c.b16 %v4147, %v4139
        %v5364 = vpack.c.b16 %v4156, %v4148
        %v5365 = vpack.c.b16 %v4157, %v4149
        %v5366 = vpack.c.b16 %v4158, %v4150
        %v5367 = vpack.c.b16 %v4159, %v4151
        %v5368 = vpack.c.b16 %v4160, %v4152
        %v5369 = vpack.c.b16 %v4161, %v4153
        %v5370 = vpack.c.b16 %v4162, %v4154
        %v5371 = vpack.c.b16 %v4163, %v4155
        %v5372 = vpack.c.b16 %v4172, %v4164
        %v5373 = vpack.c.b16 %v4173, %v4165
        %v5374 = vpack.c.b16 %v4174, %v4166
        %v5375 = vpack.c.b16 %v4175, %v4167
        %v5376 = vpack.c.b16 %v4176, %v4168
        %v5377 = vpack.c.b16 %v4177, %v4169
        %v5378 = vpack.c.b16 %v4178, %v4170
        %v5379 = vpack.c.b16 %v4179, %v4171
        %v5380 = vpack.c.b16 %v4188, %v4180
        %v5381 = vpack.c.b16 %v4189, %v4181
        %v5382 = vpack.c.b16 %v4190, %v4182
        %v5383 = vpack.c.b16 %v4191, %v4183
        %v5384 = vpack.c.b16 %v4192, %v4184
        %v5385 = vpack.c.b16 %v4193, %v4185
        %v5386 = vpack.c.b16 %v4194, %v4186
        %v5387 = vpack.c.b16 %v4195, %v4187
        %v5388 = vpack.c.b16 %v4204, %v4196
        %v5389 = vpack.c.b16 %v4205, %v4197
        %v5390 = vpack.c.b16 %v4206, %v4198
        %v5391 = vpack.c.b16 %v4207, %v4199
        %v5392 = vpack.c.b16 %v4208, %v4200
        %v5393 = vpack.c.b16 %v4209, %v4201
        %v5394 = vpack.c.b16 %v4210, %v4202
        %v5395 = vpack.c.b16 %v4211, %v4203
        %v5396 = vpack.c.b16 %v4220, %v4212
        %v5397 = vpack.c.b16 %v4221, %v4213
        %v5398 = vpack.c.b16 %v4222, %v4214
        %v5399 = vpack.c.b16 %v4223, %v4215
        %v5400 = vpack.c.b16 %v4224, %v4216
        %v5401 = vpack.c.b16 %v4225, %v4217
        %v5402 = vpack.c.b16 %v4226, %v4218
        %v5403 = vpack.c.b16 %v4227, %v4219
        %v5404 = vpack.c.b16 %v4236, %v4228
        %v5405 = vpack.c.b16 %v4237, %v4229
        %v5406 = vpack.c.b16 %v4238, %v4230
        %v5407 = vpack.c.b16 %v4239, %v4231
        %v5408 = vpack.c.b16 %v4240, %v4232
        %v5409 = vpack.c.b16 %v4241, %v4233
        %v5410 = vpack.c.b16 %v4242, %v4234
        %v5411 = vpack.c.b16 %v4243, %v4235
        %v5412 = vpack.c.b16 %v4252, %v4244
        %v5413 = vpack.c.b16 %v4253, %v4245
        %v5414 = vpack.c.b16 %v4254, %v4246
        %v5415 = vpack.c.b16 %v4255, %v4247
        %v5416 = vpack.c.b16 %v4256, %v4248
        %v5417 = vpack.c.b16 %v4257, %v4249
        %v5418 = vpack.c.b16 %v4258, %v4250
        %v5419 = vpack.c.b16 %v4259, %v4251
        %v5420 = vpack.c.b16 %v4268, %v4260
        %v5421 = vpack.c.b16 %v4269, %v4261
        %v5422 = vpack.c.b16 %v4270, %v4262
        %v5423 = vpack.c.b16 %v4271, %v4263
        %v5424 = vpack.c.b16 %v4272, %v4264
        %v5425 = vpack.c.b16 %v4273, %v4265
        %v5426 = vpack.c.b16 %v4274, %v4266
        %v5427 = vpack.c.b16 %v4275, %v4267
        %v5428 = vpack.c.b16 %v4284, %v4276
        %v5429 = vpack.c.b16 %v4285, %v4277
        %v5430 = vpack.c.b16 %v4286, %v4278
        %v5431 = vpack.c.b16 %v4287, %v4279
        %v5432 = vpack.c.b16 %v4288, %v4280
        %v5433 = vpack.c.b16 %v4289, %v4281
        %v5434 = vpack.c.b16 %v4290, %v4282
        %v5435 = vpack.c.b16 %v4291, %v4283
        %v5436 = vpack.c.b16 %v4300, %v4292
        %v5437 = vpack.c.b16 %v4301, %v4293
        %v5438 = vpack.c.b16 %v4302, %v4294
        %v5439 = vpack.c.b16 %v4303, %v4295
        %v5440 = vpack.c.b16 %v4304, %v4296
        %v5441 = vpack.c.b16 %v4305, %v4297
        %v5442 = vpack.c.b16 %v4306, %v4298
        %v5443 = vpack.c.b16 %v4307, %v4299
        %v5444 = vpack.c.b16 %v4316, %v4308
        %v5445 = vpack.c.b16 %v4317, %v4309
        %v5446 = vpack.c.b16 %v4318, %v4310
        %v5447 = vpack.c.b16 %v4319, %v4311
        %v5448 = vpack.c.b16 %v4320, %v4312
        %v5449 = vpack.c.b16 %v4321, %v4313
        %v5450 = vpack.c.b16 %v4322, %v4314
        %v5451 = vpack.c.b16 %v4323, %v4315
        %v5452 = vpack.c.b16 %v4332, %v4324
        %v5453 = vpack.c.b16 %v4333, %v4325
        %v5454 = vpack.c.b16 %v4334, %v4326
        %v5455 = vpack.c.b16 %v4335, %v4327
        %v5456 = vpack.c.b16 %v4336, %v4328
        %v5457 = vpack.c.b16 %v4337, %v4329
        %v5458 = vpack.c.b16 %v4338, %v4330
        %v5459 = vpack.c.b16 %v4339, %v4331
        %v5460 = vpack.c.b16 %v4348, %v4340
        %v5461 = vpack.c.b16 %v4349, %v4341
        %v5462 = vpack.c.b16 %v4350, %v4342
        %v5463 = vpack.c.b16 %v4351, %v4343
        %v5464 = vpack.c.b16 %v4352, %v4344
        %v5465 = vpack.c.b16 %v4353, %v4345
        %v5466 = vpack.c.b16 %v4354, %v4346
        %v5467 = vpack.c.b16 %v4355, %v4347
        %v5468 = vpack.c.b16 %v4364, %v4356
        %v5469 = vpack.c.b16 %v4365, %v4357
        %v5470 = vpack.c.b16 %v4366, %v4358
        %v5471 = vpack.c.b16 %v4367, %v4359
        %v5472 = vpack.c.b16 %v4368, %v4360
        %v5473 = vpack.c.b16 %v4369, %v4361
        %v5474 = vpack.c.b16 %v4370, %v4362
        %v5475 = vpack.c.b16 %v4371, %v4363
        %v5476 = vpack.c.b16 %v4380, %v4372
        %v5477 = vpack.c.b16 %v4381, %v4373
        %v5478 = vpack.c.b16 %v4382, %v4374
        %v5479 = vpack.c.b16 %v4383, %v4375
        %v5480 = vpack.c.b16 %v4384, %v4376
        %v5481 = vpack.c.b16 %v4385, %v4377
        %v5482 = vpack.c.b16 %v4386, %v4378
        %v5483 = vpack.c.b16 %v4387, %v4379
        %v5484 = vpack.c.b16 %v4396, %v4388
        %v5485 = vpack.c.b16 %v4397, %v4389
        %v5486 = vpack.c.b16 %v4398, %v4390
        %v5487 = vpack.c.b16 %v4399, %v4391
        %v5488 = vpack.c.b16 %v4400, %v4392
        %v5489 = vpack.c.b16 %v4401, %v4393
        %v5490 = vpack.c.b16 %v4402, %v4394
        %v5491 = vpack.c.b16 %v4403, %v4395
        %v5492 = vpack.c.b16 %v4412, %v4404
        %v5493 = vpack.c.b16 %v4413, %v4405
        %v5494 = vpack.c.b16 %v4414, %v4406
        %v5495 = vpack.c.b16 %v4415, %v4407
        %v5496 = vpack.c.b16 %v4416, %v4408
        %v5497 = vpack.c.b16 %v4417, %v4409
        %v5498 = vpack.c.b16 %v4418, %v4410
        %v5499 = vpack.c.b16 %v4419, %v4411
        %v5500 = vpack.c.b16 %v4428, %v4420
        %v5501 = vpack.c.b16 %v4429, %v4421
        %v5502 = vpack.c.b16 %v4430, %v4422
        %v5503 = vpack.c.b16 %v4431, %v4423
        %v5504 = vpack.c.b16 %v4432, %v4424
        %v5505 = vpack.c.b16 %v4433, %v4425
        %v5506 = vpack.c.b16 %v4434, %v4426
        %v5507 = vpack.c.b16 %v4435, %v4427
        %v5508 = vpack.c.b16 %v4444, %v4436
        %v5509 = vpack.c.b16 %v4445, %v4437
        %v5510 = vpack.c.b16 %v4446, %v4438
        %v5511 = vpack.c.b16 %v4447, %v4439
        %v5512 = vpack.c.b16 %v4448, %v4440
        %v5513 = vpack.c.b16 %v4449, %v4441
        %v5514 = vpack.c.b16 %v4450, %v4442
        %v5515 = vpack.c.b16 %v4451, %v4443
        %v5516 = vpack.c.b16 %v4460, %v4452
        %v5517 = vpack.c.b16 %v4461, %v4453
        %v5518 = vpack.c.b16 %v4462, %v4454
        %v5519 = vpack.c.b16 %v4463, %v4455
        %v5520 = vpack.c.b16 %v4464, %v4456
        %v5521 = vpack.c.b16 %v4465, %v4457
        %v5522 = vpack.c.b16 %v4466, %v4458
        %v5523 = vpack.c.b16 %v4467, %v4459
        %v5524 = vpack.c.b16 %v4476, %v4468
        %v5525 = vpack.c.b16 %v4477, %v4469
        %v5526 = vpack.c.b16 %v4478, %v4470
        %v5527 = vpack.c.b16 %v4479, %v4471
        %v5528 = vpack.c.b16 %v4480, %v4472
        %v5529 = vpack.c.b16 %v4481, %v4473
        %v5530 = vpack.c.b16 %v4482, %v4474
        %v5531 = vpack.c.b16 %v4483, %v4475
        %v5532 = vpack.c.b16 %v4492, %v4484
        %v5533 = vpack.c.b16 %v4493, %v4485
        %v5534 = vpack.c.b16 %v4494, %v4486
        %v5535 = vpack.c.b16 %v4495, %v4487
        %v5536 = vpack.c.b16 %v4496, %v4488
        %v5537 = vpack.c.b16 %v4497, %v4489
        %v5538 = vpack.c.b16 %v4498, %v4490
        %v5539 = vpack.c.b16 %v4499, %v4491
        %v5540 = vpack.c.b16 %v4508, %v4500
        %v5541 = vpack.c.b16 %v4509, %v4501
        %v5542 = vpack.c.b16 %v4510, %v4502
        %v5543 = vpack.c.b16 %v4511, %v4503
        %v5544 = vpack.c.b16 %v4512, %v4504
        %v5545 = vpack.c.b16 %v4513, %v4505
        %v5546 = vpack.c.b16 %v4514, %v4506
        %v5547 = vpack.c.b16 %v4515, %v4507
        %v5548 = vpack.c.b16 %v4524, %v4516
        %v5549 = vpack.c.b16 %v4525, %v4517
        %v5550 = vpack.c.b16 %v4526, %v4518
        %v5551 = vpack.c.b16 %v4527, %v4519
        %v5552 = vpack.c.b16 %v4528, %v4520
        %v5553 = vpack.c.b16 %v4529, %v4521
        %v5554 = vpack.c.b16 %v4530, %v4522
        %v5555 = vpack.c.b16 %v4531, %v4523
        %6580 = vmatprep.subr.bf16.mxu0 %v4533
        %6581 = vmatpush1.bf16.msra.mxu0 %v4532
        %6582 = vmatprep.subr.bf16.mxu0 %v4541
        %6583 = vmatpush1.bf16.msra.mxu0 %v4540
        %6584 = vmatprep.subr.bf16.mxu0 %v4549
        %6585 = vmatpush1.bf16.msra.mxu0 %v4548
        %6586 = vmatprep.subr.bf16.mxu0 %v4557
        %6587 = vmatpush1.bf16.msra.mxu0 %v4556
        %6588 = vmatprep.subr.bf16.mxu0 %v4565
        %6589 = vmatpush1.bf16.msra.mxu0 %v4564
        %6590 = vmatprep.subr.bf16.mxu0 %v4573
        %6591 = vmatpush1.bf16.msra.mxu0 %v4572
        %6592 = vmatprep.subr.bf16.mxu0 %v4581
        %6593 = vmatpush1.bf16.msra.mxu0 %v4580
        %6594 = vmatprep.subr.bf16.mxu0 %v4589
        %6595 = vmatpush1.bf16.msra.mxu0 %v4588
        %6596 = vmatprep.subr.bf16.mxu0 %v4597
        %6597 = vmatpush1.bf16.msra.mxu0 %v4596
        %6598 = vmatprep.subr.bf16.mxu0 %v4605
        %6599 = vmatpush1.bf16.msra.mxu0 %v4604
        %6600 = vmatprep.subr.bf16.mxu0 %v4613
        %6601 = vmatpush1.bf16.msra.mxu0 %v4612
        %6602 = vmatprep.subr.bf16.mxu0 %v4621
        %6603 = vmatpush1.bf16.msra.mxu0 %v4620
        %6604 = vmatprep.subr.bf16.mxu0 %v4629
        %6605 = vmatpush1.bf16.msra.mxu0 %v4628
        %6606 = vmatprep.subr.bf16.mxu0 %v4637
        %6607 = vmatpush1.bf16.msra.mxu0 %v4636
        %6608 = vmatprep.subr.bf16.mxu0 %v4645
        %6609 = vmatpush1.bf16.msra.mxu0 %v4644
        %6610 = vmatprep.subr.bf16.mxu0 %v4653
        %6611 = vmatpush1.bf16.msra.mxu0 %v4652
        %6612 = vmatprep.mubr.bf16.mxu0 %v1383
        %6613 = vmatmul.mubr.bf16.gmra.mrb[0].mxu0 %v1369
        %v6614 = vpop.f32.mrb[0].mxu0
        %v6615 = vadd.f32 0.0, %v6614
        %v6616 = vpop.f32.mrb[0].mxu0
        %v6617 = vadd.f32 0.0, %v6616
        %v6618 = vpop.f32.mrb[0].mxu0
        %v6619 = vpop.f32.mrb[0].mxu0
        %6620 = vdwg.mxu0
        %6621 = vmatprep.subr.bf16.mxu0 %v4661
        %6622 = vmatpush1.bf16.msra.mxu0 %v4660
        %6623 = vmatprep.subr.bf16.mxu0 %v4669
        %6624 = vmatpush1.bf16.msra.mxu0 %v4668
        %6625 = vmatprep.subr.bf16.mxu0 %v4677
        %6626 = vmatpush1.bf16.msra.mxu0 %v4676
        %6627 = vmatprep.subr.bf16.mxu0 %v4685
        %6628 = vmatpush1.bf16.msra.mxu0 %v4684
        %6629 = vmatprep.subr.bf16.mxu0 %v4693
        %6630 = vmatpush1.bf16.msra.mxu0 %v4692
        %6631 = vmatprep.subr.bf16.mxu0 %v4701
        %6632 = vmatpush1.bf16.msra.mxu0 %v4700
        %6633 = vmatprep.subr.bf16.mxu0 %v4709
        %6634 = vmatpush1.bf16.msra.mxu0 %v4708
        %6635 = vmatprep.subr.bf16.mxu0 %v4717
        %6636 = vmatpush1.bf16.msra.mxu0 %v4716
        %6637 = vmatprep.subr.bf16.mxu0 %v4725
        %6638 = vmatpush1.bf16.msra.mxu0 %v4724
        %6639 = vmatprep.subr.bf16.mxu0 %v4733
        %6640 = vmatpush1.bf16.msra.mxu0 %v4732
        %6641 = vmatprep.subr.bf16.mxu0 %v4741
        %6642 = vmatpush1.bf16.msra.mxu0 %v4740
        %6643 = vmatprep.subr.bf16.mxu0 %v4749
        %6644 = vmatpush1.bf16.msra.mxu0 %v4748
        %6645 = vmatprep.subr.bf16.mxu0 %v4757
        %6646 = vmatpush1.bf16.msra.mxu0 %v4756
        %6647 = vmatprep.subr.bf16.mxu0 %v4765
        %6648 = vmatpush1.bf16.msra.mxu0 %v4764
        %6649 = vmatprep.subr.bf16.mxu0 %v4773
        %6650 = vmatpush1.bf16.msra.mxu0 %v4772
        %6651 = vmatprep.subr.bf16.mxu0 %v4781
        %6652 = vmatpush1.bf16.msra.mxu0 %v4780
        %6653 = vmatprep.mubr.bf16.mxu0 %v1393
        %6654 = vmatmul.mubr.bf16.gmra.mrb[0].mxu0 %v1391
        %v6655 = vpop.f32.mrb[0].mxu0
        %v6656 = vadd.f32 %v6615, %v6655
        %v6657 = vpop.f32.mrb[0].mxu0
        %v6658 = vadd.f32 %v6617, %v6657
        %v6659 = vpop.f32.mrb[0].mxu0
        %v6660 = vpop.f32.mrb[0].mxu0
        %6661 = vdwg.mxu0
        %6662 = vmatprep.subr.bf16.mxu0 %v4789
        %6663 = vmatpush1.bf16.msra.mxu0 %v4788
        %6664 = vmatprep.subr.bf16.mxu0 %v4797
        %6665 = vmatpush1.bf16.msra.mxu0 %v4796
        %6666 = vmatprep.subr.bf16.mxu0 %v4805
        %6667 = vmatpush1.bf16.msra.mxu0 %v4804
        %6668 = vmatprep.subr.bf16.mxu0 %v4813
        %6669 = vmatpush1.bf16.msra.mxu0 %v4812
        %6670 = vmatprep.subr.bf16.mxu0 %v4821
        %6671 = vmatpush1.bf16.msra.mxu0 %v4820
        %6672 = vmatprep.subr.bf16.mxu0 %v4829
        %6673 = vmatpush1.bf16.msra.mxu0 %v4828
        %6674 = vmatprep.subr.bf16.mxu0 %v4837
        %6675 = vmatpush1.bf16.msra.mxu0 %v4836
        %6676 = vmatprep.subr.bf16.mxu0 %v4845
        %6677 = vmatpush1.bf16.msra.mxu0 %v4844
        %6678 = vmatprep.subr.bf16.mxu0 %v4853
        %6679 = vmatpush1.bf16.msra.mxu0 %v4852
        %6680 = vmatprep.subr.bf16.mxu0 %v4861
        %6681 = vmatpush1.bf16.msra.mxu0 %v4860
        %6682 = vmatprep.subr.bf16.mxu0 %v4869
        %6683 = vmatpush1.bf16.msra.mxu0 %v4868
        %6684 = vmatprep.subr.bf16.mxu0 %v4877
        %6685 = vmatpush1.bf16.msra.mxu0 %v4876
        %6686 = vmatprep.subr.bf16.mxu0 %v4885
        %6687 = vmatpush1.bf16.msra.mxu0 %v4884
        %6688 = vmatprep.subr.bf16.mxu0 %v4893
        %6689 = vmatpush1.bf16.msra.mxu0 %v4892
        %6690 = vmatprep.subr.bf16.mxu0 %v4901
        %6691 = vmatpush1.bf16.msra.mxu0 %v4900
        %6692 = vmatprep.subr.bf16.mxu0 %v4909
        %6693 = vmatpush1.bf16.msra.mxu0 %v4908
        %6694 = vmatprep.mubr.bf16.mxu0 %v1390
        %6695 = vmatmul.mubr.bf16.gmra.mrb[0].mxu0 %v1376
        %v6696 = vpop.f32.mrb[0].mxu0
        %v6697 = vadd.f32 %v6656, %v6696
        %v6698 = vpop.f32.mrb[0].mxu0
        %v6699 = vadd.f32 %v6658, %v6698
        %v6700 = vpop.f32.mrb[0].mxu0
        %v6701 = vpop.f32.mrb[0].mxu0
        %6702 = vdwg.mxu0
        %6703 = vmatprep.subr.bf16.mxu0 %v4917
        %6704 = vmatpush1.bf16.msra.mxu0 %v4916
        %6705 = vmatprep.subr.bf16.mxu0 %v4925
        %6706 = vmatpush1.bf16.msra.mxu0 %v4924
        %6707 = vmatprep.subr.bf16.mxu0 %v4933
        %6708 = vmatpush1.bf16.msra.mxu0 %v4932
        %6709 = vmatprep.subr.bf16.mxu0 %v4941
        %6710 = vmatpush1.bf16.msra.mxu0 %v4940
        %6711 = vmatprep.subr.bf16.mxu0 %v4949
        %6712 = vmatpush1.bf16.msra.mxu0 %v4948
        %6713 = vmatprep.subr.bf16.mxu0 %v4957
        %6714 = vmatpush1.bf16.msra.mxu0 %v4956
        %6715 = vmatprep.subr.bf16.mxu0 %v4965
        %6716 = vmatpush1.bf16.msra.mxu0 %v4964
        %6717 = vmatprep.subr.bf16.mxu0 %v4973
        %6718 = vmatpush1.bf16.msra.mxu0 %v4972
        %6719 = vmatprep.subr.bf16.mxu0 %v4981
        %6720 = vmatpush1.bf16.msra.mxu0 %v4980
        %6721 = vmatprep.subr.bf16.mxu0 %v4989
        %6722 = vmatpush1.bf16.msra.mxu0 %v4988
        %6723 = vmatprep.subr.bf16.mxu0 %v4997
        %6724 = vmatpush1.bf16.msra.mxu0 %v4996
        %6725 = vmatprep.subr.bf16.mxu0 %v5005
        %6726 = vmatpush1.bf16.msra.mxu0 %v5004
        %6727 = vmatprep.subr.bf16.mxu0 %v5013
        %6728 = vmatpush1.bf16.msra.mxu0 %v5012
        %6729 = vmatprep.subr.bf16.mxu0 %v5021
        %6730 = vmatpush1.bf16.msra.mxu0 %v5020
        %6731 = vmatprep.subr.bf16.mxu0 %v5029
        %6732 = vmatpush1.bf16.msra.mxu0 %v5028
        %6733 = vmatprep.subr.bf16.mxu0 %v5037
        %6734 = vmatpush1.bf16.msra.mxu0 %v5036
        %6735 = vmatprep.mubr.bf16.mxu0 %v1394
        %6736 = vmatmul.mubr.bf16.gmra.mrb[0].mxu0 %v1392
        %v6737 = vpop.f32.mrb[0].mxu0
        %v6738 = vadd.f32 %v6697, %v6737
        %v6739 = vpop.f32.mrb[0].mxu0
        %v6740 = vadd.f32 %v6699, %v6739
        %v6741 = vpop.f32.mrb[0].mxu0
        %v6742 = vpop.f32.mrb[0].mxu0
        %6743 = vdwg.mxu0
        %6744 = vmatprep.subr.bf16.mxu0 %v5045
        %6745 = vmatpush1.bf16.msra.mxu0 %v5044
        %6746 = vmatprep.subr.bf16.mxu0 %v5053
        %6747 = vmatpush1.bf16.msra.mxu0 %v5052
        %6748 = vmatprep.subr.bf16.mxu0 %v5061
        %6749 = vmatpush1.bf16.msra.mxu0 %v5060
        %6750 = vmatprep.subr.bf16.mxu0 %v5069
        %6751 = vmatpush1.bf16.msra.mxu0 %v5068
        %6752 = vmatprep.subr.bf16.mxu0 %v5077
        %6753 = vmatpush1.bf16.msra.mxu0 %v5076
        %6754 = vmatprep.subr.bf16.mxu0 %v5085
        %6755 = vmatpush1.bf16.msra.mxu0 %v5084
        %6756 = vmatprep.subr.bf16.mxu0 %v5093
        %6757 = vmatpush1.bf16.msra.mxu0 %v5092
        %6758 = vmatprep.subr.bf16.mxu0 %v5101
        %6759 = vmatpush1.bf16.msra.mxu0 %v5100
        %6760 = vmatprep.subr.bf16.mxu0 %v5109
        %6761 = vmatpush1.bf16.msra.mxu0 %v5108
        %6762 = vmatprep.subr.bf16.mxu0 %v5117
        %6763 = vmatpush1.bf16.msra.mxu0 %v5116
        %6764 = vmatprep.subr.bf16.mxu0 %v5125
        %6765 = vmatpush1.bf16.msra.mxu0 %v5124
        %6766 = vmatprep.subr.bf16.mxu0 %v5133
        %6767 = vmatpush1.bf16.msra.mxu0 %v5132
        %6768 = vmatprep.subr.bf16.mxu0 %v5141
        %6769 = vmatpush1.bf16.msra.mxu0 %v5140
        %6770 = vmatprep.subr.bf16.mxu0 %v5149
        %6771 = vmatpush1.bf16.msra.mxu0 %v5148
        %6772 = vmatprep.subr.bf16.mxu0 %v5157
        %6773 = vmatpush1.bf16.msra.mxu0 %v5156
        %6774 = vmatprep.subr.bf16.mxu0 %v5165
        %6775 = vmatpush1.bf16.msra.mxu0 %v5164
        %6776 = vmatprep.mubr.bf16.mxu0 %v1432
        %6777 = vmatmul.mubr.bf16.gmra.mrb[0].mxu0 %v1418
        %v6778 = vpop.f32.mrb[0].mxu0
        %v6779 = vadd.f32 %v6738, %v6778
        %v6780 = vpop.f32.mrb[0].mxu0
        %v6781 = vadd.f32 %v6740, %v6780
        %v6782 = vpop.f32.mrb[0].mxu0
        %v6783 = vpop.f32.mrb[0].mxu0
        %6784 = vdwg.mxu0
        %6785 = vmatprep.subr.bf16.mxu0 %v5173
        %6786 = vmatpush1.bf16.msra.mxu0 %v5172
        %6787 = vmatprep.subr.bf16.mxu0 %v5181
        %6788 = vmatpush1.bf16.msra.mxu0 %v5180
        %6789 = vmatprep.subr.bf16.mxu0 %v5189
        %6790 = vmatpush1.bf16.msra.mxu0 %v5188
        %6791 = vmatprep.subr.bf16.mxu0 %v5197
        %6792 = vmatpush1.bf16.msra.mxu0 %v5196
        %6793 = vmatprep.subr.bf16.mxu0 %v5205
        %6794 = vmatpush1.bf16.msra.mxu0 %v5204
        %6795 = vmatprep.subr.bf16.mxu0 %v5213
        %6796 = vmatpush1.bf16.msra.mxu0 %v5212
        %6797 = vmatprep.subr.bf16.mxu0 %v5221
        %6798 = vmatpush1.bf16.msra.mxu0 %v5220
        %6799 = vmatprep.subr.bf16.mxu0 %v5229
        %6800 = vmatpush1.bf16.msra.mxu0 %v5228
        %6801 = vmatprep.subr.bf16.mxu0 %v5237
        %6802 = vmatpush1.bf16.msra.mxu0 %v5236
        %6803 = vmatprep.subr.bf16.mxu0 %v5245
        %6804 = vmatpush1.bf16.msra.mxu0 %v5244
        %6805 = vmatprep.subr.bf16.mxu0 %v5253
        %6806 = vmatpush1.bf16.msra.mxu0 %v5252
        %6807 = vmatprep.subr.bf16.mxu0 %v5261
        %6808 = vmatpush1.bf16.msra.mxu0 %v5260
        %6809 = vmatprep.subr.bf16.mxu0 %v5269
        %6810 = vmatpush1.bf16.msra.mxu0 %v5268
        %6811 = vmatprep.subr.bf16.mxu0 %v5277
        %6812 = vmatpush1.bf16.msra.mxu0 %v5276
        %6813 = vmatprep.subr.bf16.mxu0 %v5285
        %6814 = vmatpush1.bf16.msra.mxu0 %v5284
        %6815 = vmatprep.subr.bf16.mxu0 %v5293
        %6816 = vmatpush1.bf16.msra.mxu0 %v5292
        %6817 = vmatprep.mubr.bf16.mxu0 %v1442
        %6818 = vmatmul.mubr.bf16.gmra.mrb[0].mxu0 %v1440
        %v6819 = vpop.f32.mrb[0].mxu0
        %v6820 = vadd.f32 %v6779, %v6819
        %v6821 = vpop.f32.mrb[0].mxu0
        %v6822 = vadd.f32 %v6781, %v6821
        %v6823 = vpop.f32.mrb[0].mxu0
        %v6824 = vpop.f32.mrb[0].mxu0
        %6825 = vdwg.mxu0
        %6826 = vmatprep.subr.bf16.mxu0 %v5301
        %6827 = vmatpush1.bf16.msra.mxu0 %v5300
        %6828 = vmatprep.subr.bf16.mxu0 %v5309
        %6829 = vmatpush1.bf16.msra.mxu0 %v5308
        %6830 = vmatprep.subr.bf16.mxu0 %v5317
        %6831 = vmatpush1.bf16.msra.mxu0 %v5316
        %6832 = vmatprep.subr.bf16.mxu0 %v5325
        %6833 = vmatpush1.bf16.msra.mxu0 %v5324
        %6834 = vmatprep.subr.bf16.mxu0 %v5333
        %6835 = vmatpush1.bf16.msra.mxu0 %v5332
        %6836 = vmatprep.subr.bf16.mxu0 %v5341
        %6837 = vmatpush1.bf16.msra.mxu0 %v5340
        %6838 = vmatprep.subr.bf16.mxu0 %v5349
        %6839 = vmatpush1.bf16.msra.mxu0 %v5348
        %6840 = vmatprep.subr.bf16.mxu0 %v5357
        %6841 = vmatpush1.bf16.msra.mxu0 %v5356
        %6842 = vmatprep.subr.bf16.mxu0 %v5365
        %6843 = vmatpush1.bf16.msra.mxu0 %v5364
        %6844 = vmatprep.subr.bf16.mxu0 %v5373
        %6845 = vmatpush1.bf16.msra.mxu0 %v5372
        %6846 = vmatprep.subr.bf16.mxu0 %v5381
        %6847 = vmatpush1.bf16.msra.mxu0 %v5380
        %6848 = vmatprep.subr.bf16.mxu0 %v5389
        %6849 = vmatpush1.bf16.msra.mxu0 %v5388
        %6850 = vmatprep.subr.bf16.mxu0 %v5397
        %6851 = vmatpush1.bf16.msra.mxu0 %v5396
        %6852 = vmatprep.subr.bf16.mxu0 %v5405
        %6853 = vmatpush1.bf16.msra.mxu0 %v5404
        %6854 = vmatprep.subr.bf16.mxu0 %v5413
        %6855 = vmatpush1.bf16.msra.mxu0 %v5412
        %6856 = vmatprep.subr.bf16.mxu0 %v5421
        %6857 = vmatpush1.bf16.msra.mxu0 %v5420
        %6858 = vmatprep.mubr.bf16.mxu0 %v1439
        %6859 = vmatmul.mubr.bf16.gmra.mrb[0].mxu0 %v1425
        %v6860 = vpop.f32.mrb[0].mxu0
        %v6861 = vadd.f32 %v6820, %v6860
        %v6862 = vpop.f32.mrb[0].mxu0
        %v6863 = vadd.f32 %v6822, %v6862
        %v6864 = vpop.f32.mrb[0].mxu0
        %v6865 = vpop.f32.mrb[0].mxu0
        %6866 = vdwg.mxu0
        %6867 = vmatprep.subr.bf16.mxu0 %v5429
        %6868 = vmatpush1.bf16.msra.mxu0 %v5428
        %6869 = vmatprep.subr.bf16.mxu0 %v5437
        %6870 = vmatpush1.bf16.msra.mxu0 %v5436
        %6871 = vmatprep.subr.bf16.mxu0 %v5445
        %6872 = vmatpush1.bf16.msra.mxu0 %v5444
        %6873 = vmatprep.subr.bf16.mxu0 %v5453
        %6874 = vmatpush1.bf16.msra.mxu0 %v5452
        %6875 = vmatprep.subr.bf16.mxu0 %v5461
        %6876 = vmatpush1.bf16.msra.mxu0 %v5460
        %6877 = vmatprep.subr.bf16.mxu0 %v5469
        %6878 = vmatpush1.bf16.msra.mxu0 %v5468
        %6879 = vmatprep.subr.bf16.mxu0 %v5477
        %6880 = vmatpush1.bf16.msra.mxu0 %v5476
        %6881 = vmatprep.subr.bf16.mxu0 %v5485
        %6882 = vmatpush1.bf16.msra.mxu0 %v5484
        %6883 = vmatprep.subr.bf16.mxu0 %v5493
        %6884 = vmatpush1.bf16.msra.mxu0 %v5492
        %6885 = vmatprep.subr.bf16.mxu0 %v5501
        %6886 = vmatpush1.bf16.msra.mxu0 %v5500
        %6887 = vmatprep.subr.bf16.mxu0 %v5509
        %6888 = vmatpush1.bf16.msra.mxu0 %v5508
        %6889 = vmatprep.subr.bf16.mxu0 %v5517
        %6890 = vmatpush1.bf16.msra.mxu0 %v5516
        %6891 = vmatprep.subr.bf16.mxu0 %v5525
        %6892 = vmatpush1.bf16.msra.mxu0 %v5524
        %6893 = vmatprep.subr.bf16.mxu0 %v5533
        %6894 = vmatpush1.bf16.msra.mxu0 %v5532
        %6895 = vmatprep.subr.bf16.mxu0 %v5541
        %6896 = vmatpush1.bf16.msra.mxu0 %v5540
        %6897 = vmatprep.subr.bf16.mxu0 %v5549
        %6898 = vmatpush1.bf16.msra.mxu0 %v5548
        %6899 = vmatprep.mubr.bf16.mxu0 %v1443
        %6900 = vmatmul.mubr.bf16.gmra.mrb[0].mxu0 %v1441
        %v6901 = vpop.f32.mrb[0].mxu0
        %v6902 = vadd.f32 %v6861, %v6901
        %v6903 = vpop.f32.mrb[0].mxu0
        %v6904 = vadd.f32 %v6863, %v6903
        %v6905 = vpop.f32.mrb[0].mxu0
        %v6906 = vpop.f32.mrb[0].mxu0
        %6907 = vdwg.mxu0
        %6908 = vmatprep.subr.bf16.mxu0 %v4535
        %6909 = vmatpush1.bf16.msra.mxu0 %v4534
        %6910 = vmatprep.subr.bf16.mxu0 %v4543
        %6911 = vmatpush1.bf16.msra.mxu0 %v4542
        %6912 = vmatprep.subr.bf16.mxu0 %v4551
        %6913 = vmatpush1.bf16.msra.mxu0 %v4550
        %6914 = vmatprep.subr.bf16.mxu0 %v4559
        %6915 = vmatpush1.bf16.msra.mxu0 %v4558
        %6916 = vmatprep.subr.bf16.mxu0 %v4567
        %6917 = vmatpush1.bf16.msra.mxu0 %v4566
        %6918 = vmatprep.subr.bf16.mxu0 %v4575
        %6919 = vmatpush1.bf16.msra.mxu0 %v4574
        %6920 = vmatprep.subr.bf16.mxu0 %v4583
        %6921 = vmatpush1.bf16.msra.mxu0 %v4582
        %6922 = vmatprep.subr.bf16.mxu0 %v4591
        %6923 = vmatpush1.bf16.msra.mxu0 %v4590
        %6924 = vmatprep.subr.bf16.mxu0 %v4599
        %6925 = vmatpush1.bf16.msra.mxu0 %v4598
        %6926 = vmatprep.subr.bf16.mxu0 %v4607
        %6927 = vmatpush1.bf16.msra.mxu0 %v4606
        %6928 = vmatprep.subr.bf16.mxu0 %v4615
        %6929 = vmatpush1.bf16.msra.mxu0 %v4614
        %6930 = vmatprep.subr.bf16.mxu0 %v4623
        %6931 = vmatpush1.bf16.msra.mxu0 %v4622
        %6932 = vmatprep.subr.bf16.mxu0 %v4631
        %6933 = vmatpush1.bf16.msra.mxu0 %v4630
        %6934 = vmatprep.subr.bf16.mxu0 %v4639
        %6935 = vmatpush1.bf16.msra.mxu0 %v4638
        %6936 = vmatprep.subr.bf16.mxu0 %v4647
        %6937 = vmatpush1.bf16.msra.mxu0 %v4646
        %6938 = vmatprep.subr.bf16.mxu0 %v4655
        %6939 = vmatpush1.bf16.msra.mxu0 %v4654
        %6940 = vmatprep.mubr.bf16.mxu0 %v1383
        %6941 = vmatmul.mubr.bf16.gmra.mrb[0].mxu0 %v1369
        %v6942 = vpop.f32.mrb[0].mxu0
        %v6943 = vadd.f32 0.0, %v6942
        %v6944 = vpop.f32.mrb[0].mxu0
        %v6945 = vadd.f32 0.0, %v6944
        %v6946 = vpop.f32.mrb[0].mxu0
        %v6947 = vpop.f32.mrb[0].mxu0
        %6948 = vdwg.mxu0
        %6949 = vmatprep.subr.bf16.mxu0 %v4663
        %6950 = vmatpush1.bf16.msra.mxu0 %v4662
        %6951 = vmatprep.subr.bf16.mxu0 %v4671
        %6952 = vmatpush1.bf16.msra.mxu0 %v4670
        %6953 = vmatprep.subr.bf16.mxu0 %v4679
        %6954 = vmatpush1.bf16.msra.mxu0 %v4678
        %6955 = vmatprep.subr.bf16.mxu0 %v4687
        %6956 = vmatpush1.bf16.msra.mxu0 %v4686
        %6957 = vmatprep.subr.bf16.mxu0 %v4695
        %6958 = vmatpush1.bf16.msra.mxu0 %v4694
        %6959 = vmatprep.subr.bf16.mxu0 %v4703
        %6960 = vmatpush1.bf16.msra.mxu0 %v4702
        %6961 = vmatprep.subr.bf16.mxu0 %v4711
        %6962 = vmatpush1.bf16.msra.mxu0 %v4710
        %6963 = vmatprep.subr.bf16.mxu0 %v4719
        %6964 = vmatpush1.bf16.msra.mxu0 %v4718
        %6965 = vmatprep.subr.bf16.mxu0 %v4727
        %6966 = vmatpush1.bf16.msra.mxu0 %v4726
        %6967 = vmatprep.subr.bf16.mxu0 %v4735
        %6968 = vmatpush1.bf16.msra.mxu0 %v4734
        %6969 = vmatprep.subr.bf16.mxu0 %v4743
        %6970 = vmatpush1.bf16.msra.mxu0 %v4742
        %6971 = vmatprep.subr.bf16.mxu0 %v4751
        %6972 = vmatpush1.bf16.msra.mxu0 %v4750
        %6973 = vmatprep.subr.bf16.mxu0 %v4759
        %6974 = vmatpush1.bf16.msra.mxu0 %v4758
        %6975 = vmatprep.subr.bf16.mxu0 %v4767
        %6976 = vmatpush1.bf16.msra.mxu0 %v4766
        %6977 = vmatprep.subr.bf16.mxu0 %v4775
        %6978 = vmatpush1.bf16.msra.mxu0 %v4774
        %6979 = vmatprep.subr.bf16.mxu0 %v4783
        %6980 = vmatpush1.bf16.msra.mxu0 %v4782
        %6981 = vmatprep.mubr.bf16.mxu0 %v1393
        %6982 = vmatmul.mubr.bf16.gmra.mrb[0].mxu0 %v1391
        %v6983 = vpop.f32.mrb[0].mxu0
        %v6984 = vadd.f32 %v6943, %v6983
        %v6985 = vpop.f32.mrb[0].mxu0
        %v6986 = vadd.f32 %v6945, %v6985
        %v6987 = vpop.f32.mrb[0].mxu0
        %v6988 = vpop.f32.mrb[0].mxu0
        %6989 = vdwg.mxu0
        %6990 = vmatprep.subr.bf16.mxu0 %v4791
        %6991 = vmatpush1.bf16.msra.mxu0 %v4790
        %6992 = vmatprep.subr.bf16.mxu0 %v4799
        %6993 = vmatpush1.bf16.msra.mxu0 %v4798
        %6994 = vmatprep.subr.bf16.mxu0 %v4807
        %6995 = vmatpush1.bf16.msra.mxu0 %v4806
        %6996 = vmatprep.subr.bf16.mxu0 %v4815
        %6997 = vmatpush1.bf16.msra.mxu0 %v4814
        %6998 = vmatprep.subr.bf16.mxu0 %v4823
        %6999 = vmatpush1.bf16.msra.mxu0 %v4822
        %7000 = vmatprep.subr.bf16.mxu0 %v4831
        %7001 = vmatpush1.bf16.msra.mxu0 %v4830
        %7002 = vmatprep.subr.bf16.mxu0 %v4839
        %7003 = vmatpush1.bf16.msra.mxu0 %v4838
        %7004 = vmatprep.subr.bf16.mxu0 %v4847
        %7005 = vmatpush1.bf16.msra.mxu0 %v4846
        %7006 = vmatprep.subr.bf16.mxu0 %v4855
        %7007 = vmatpush1.bf16.msra.mxu0 %v4854
        %7008 = vmatprep.subr.bf16.mxu0 %v4863
        %7009 = vmatpush1.bf16.msra.mxu0 %v4862
        %7010 = vmatprep.subr.bf16.mxu0 %v4871
        %7011 = vmatpush1.bf16.msra.mxu0 %v4870
        %7012 = vmatprep.subr.bf16.mxu0 %v4879
        %7013 = vmatpush1.bf16.msra.mxu0 %v4878
        %7014 = vmatprep.subr.bf16.mxu0 %v4887
        %7015 = vmatpush1.bf16.msra.mxu0 %v4886
        %7016 = vmatprep.subr.bf16.mxu0 %v4895
        %7017 = vmatpush1.bf16.msra.mxu0 %v4894
        %7018 = vmatprep.subr.bf16.mxu0 %v4903
        %7019 = vmatpush1.bf16.msra.mxu0 %v4902
        %7020 = vmatprep.subr.bf16.mxu0 %v4911
        %7021 = vmatpush1.bf16.msra.mxu0 %v4910
        %7022 = vmatprep.mubr.bf16.mxu0 %v1390
        %7023 = vmatmul.mubr.bf16.gmra.mrb[0].mxu0 %v1376
        %v7024 = vpop.f32.mrb[0].mxu0
        %v7025 = vadd.f32 %v6984, %v7024
        %v7026 = vpop.f32.mrb[0].mxu0
        %v7027 = vadd.f32 %v6986, %v7026
        %v7028 = vpop.f32.mrb[0].mxu0
        %v7029 = vpop.f32.mrb[0].mxu0
        %7030 = vdwg.mxu0
        %7031 = vmatprep.subr.bf16.mxu0 %v4919
        %7032 = vmatpush1.bf16.msra.mxu0 %v4918
        %7033 = vmatprep.subr.bf16.mxu0 %v4927
        %7034 = vmatpush1.bf16.msra.mxu0 %v4926
        %7035 = vmatprep.subr.bf16.mxu0 %v4935
        %7036 = vmatpush1.bf16.msra.mxu0 %v4934
        %7037 = vmatprep.subr.bf16.mxu0 %v4943
        %7038 = vmatpush1.bf16.msra.mxu0 %v4942
        %7039 = vmatprep.subr.bf16.mxu0 %v4951
        %7040 = vmatpush1.bf16.msra.mxu0 %v4950
        %7041 = vmatprep.subr.bf16.mxu0 %v4959
        %7042 = vmatpush1.bf16.msra.mxu0 %v4958
        %7043 = vmatprep.subr.bf16.mxu0 %v4967
        %7044 = vmatpush1.bf16.msra.mxu0 %v4966
        %7045 = vmatprep.subr.bf16.mxu0 %v4975
        %7046 = vmatpush1.bf16.msra.mxu0 %v4974
        %7047 = vmatprep.subr.bf16.mxu0 %v4983
        %7048 = vmatpush1.bf16.msra.mxu0 %v4982
        %7049 = vmatprep.subr.bf16.mxu0 %v4991
        %7050 = vmatpush1.bf16.msra.mxu0 %v4990
        %7051 = vmatprep.subr.bf16.mxu0 %v4999
        %7052 = vmatpush1.bf16.msra.mxu0 %v4998
        %7053 = vmatprep.subr.bf16.mxu0 %v5007
        %7054 = vmatpush1.bf16.msra.mxu0 %v5006
        %7055 = vmatprep.subr.bf16.mxu0 %v5015
        %7056 = vmatpush1.bf16.msra.mxu0 %v5014
        %7057 = vmatprep.subr.bf16.mxu0 %v5023
        %7058 = vmatpush1.bf16.msra.mxu0 %v5022
        %7059 = vmatprep.subr.bf16.mxu0 %v5031
        %7060 = vmatpush1.bf16.msra.mxu0 %v5030
        %7061 = vmatprep.subr.bf16.mxu0 %v5039
        %7062 = vmatpush1.bf16.msra.mxu0 %v5038
        %7063 = vmatprep.mubr.bf16.mxu0 %v1394
        %7064 = vmatmul.mubr.bf16.gmra.mrb[0].mxu0 %v1392
        %v7065 = vpop.f32.mrb[0].mxu0
        %v7066 = vadd.f32 %v7025, %v7065
        %v7067 = vpop.f32.mrb[0].mxu0
        %v7068 = vadd.f32 %v7027, %v7067
        %v7069 = vpop.f32.mrb[0].mxu0
        %v7070 = vpop.f32.mrb[0].mxu0
        %7071 = vdwg.mxu0
        %7072 = vmatprep.subr.bf16.mxu0 %v5047
        %7073 = vmatpush1.bf16.msra.mxu0 %v5046
        %7074 = vmatprep.subr.bf16.mxu0 %v5055
        %7075 = vmatpush1.bf16.msra.mxu0 %v5054
        %7076 = vmatprep.subr.bf16.mxu0 %v5063
        %7077 = vmatpush1.bf16.msra.mxu0 %v5062
        %7078 = vmatprep.subr.bf16.mxu0 %v5071
        %7079 = vmatpush1.bf16.msra.mxu0 %v5070
        %7080 = vmatprep.subr.bf16.mxu0 %v5079
        %7081 = vmatpush1.bf16.msra.mxu0 %v5078
        %7082 = vmatprep.subr.bf16.mxu0 %v5087
        %7083 = vmatpush1.bf16.msra.mxu0 %v5086
        %7084 = vmatprep.subr.bf16.mxu0 %v5095
        %7085 = vmatpush1.bf16.msra.mxu0 %v5094
        %7086 = vmatprep.subr.bf16.mxu0 %v5103
        %7087 = vmatpush1.bf16.msra.mxu0 %v5102
        %7088 = vmatprep.subr.bf16.mxu0 %v5111
        %7089 = vmatpush1.bf16.msra.mxu0 %v5110
        %7090 = vmatprep.subr.bf16.mxu0 %v5119
        %7091 = vmatpush1.bf16.msra.mxu0 %v5118
        %7092 = vmatprep.subr.bf16.mxu0 %v5127
        %7093 = vmatpush1.bf16.msra.mxu0 %v5126
        %7094 = vmatprep.subr.bf16.mxu0 %v5135
        %7095 = vmatpush1.bf16.msra.mxu0 %v5134
        %7096 = vmatprep.subr.bf16.mxu0 %v5143
        %7097 = vmatpush1.bf16.msra.mxu0 %v5142
        %7098 = vmatprep.subr.bf16.mxu0 %v5151
        %7099 = vmatpush1.bf16.msra.mxu0 %v5150
        %7100 = vmatprep.subr.bf16.mxu0 %v5159
        %7101 = vmatpush1.bf16.msra.mxu0 %v5158
        %7102 = vmatprep.subr.bf16.mxu0 %v5167
        %7103 = vmatpush1.bf16.msra.mxu0 %v5166
        %7104 = vmatprep.mubr.bf16.mxu0 %v1432
        %7105 = vmatmul.mubr.bf16.gmra.mrb[0].mxu0 %v1418
        %v7106 = vpop.f32.mrb[0].mxu0
        %v7107 = vadd.f32 %v7066, %v7106
        %v7108 = vpop.f32.mrb[0].mxu0
        %v7109 = vadd.f32 %v7068, %v7108
        %v7110 = vpop.f32.mrb[0].mxu0
        %v7111 = vpop.f32.mrb[0].mxu0
        %7112 = vdwg.mxu0
        %7113 = vmatprep.subr.bf16.mxu0 %v5175
        %7114 = vmatpush1.bf16.msra.mxu0 %v5174
        %7115 = vmatprep.subr.bf16.mxu0 %v5183
        %7116 = vmatpush1.bf16.msra.mxu0 %v5182
        %7117 = vmatprep.subr.bf16.mxu0 %v5191
        %7118 = vmatpush1.bf16.msra.mxu0 %v5190
        %7119 = vmatprep.subr.bf16.mxu0 %v5199
        %7120 = vmatpush1.bf16.msra.mxu0 %v5198
        %7121 = vmatprep.subr.bf16.mxu0 %v5207
        %7122 = vmatpush1.bf16.msra.mxu0 %v5206
        %7123 = vmatprep.subr.bf16.mxu0 %v5215
        %7124 = vmatpush1.bf16.msra.mxu0 %v5214
        %7125 = vmatprep.subr.bf16.mxu0 %v5223
        %7126 = vmatpush1.bf16.msra.mxu0 %v5222
        %7127 = vmatprep.subr.bf16.mxu0 %v5231
        %7128 = vmatpush1.bf16.msra.mxu0 %v5230
        %7129 = vmatprep.subr.bf16.mxu0 %v5239
        %7130 = vmatpush1.bf16.msra.mxu0 %v5238
        %7131 = vmatprep.subr.bf16.mxu0 %v5247
        %7132 = vmatpush1.bf16.msra.mxu0 %v5246
        %7133 = vmatprep.subr.bf16.mxu0 %v5255
        %7134 = vmatpush1.bf16.msra.mxu0 %v5254
        %7135 = vmatprep.subr.bf16.mxu0 %v5263
        %7136 = vmatpush1.bf16.msra.mxu0 %v5262
        %7137 = vmatprep.subr.bf16.mxu0 %v5271
        %7138 = vmatpush1.bf16.msra.mxu0 %v5270
        %7139 = vmatprep.subr.bf16.mxu0 %v5279
        %7140 = vmatpush1.bf16.msra.mxu0 %v5278
        %7141 = vmatprep.subr.bf16.mxu0 %v5287
        %7142 = vmatpush1.bf16.msra.mxu0 %v5286
        %7143 = vmatprep.subr.bf16.mxu0 %v5295
        %7144 = vmatpush1.bf16.msra.mxu0 %v5294
        %7145 = vmatprep.mubr.bf16.mxu0 %v1442
        %7146 = vmatmul.mubr.bf16.gmra.mrb[0].mxu0 %v1440
        %v7147 = vpop.f32.mrb[0].mxu0
        %v7148 = vadd.f32 %v7107, %v7147
        %v7149 = vpop.f32.mrb[0].mxu0
        %v7150 = vadd.f32 %v7109, %v7149
        %v7151 = vpop.f32.mrb[0].mxu0
        %v7152 = vpop.f32.mrb[0].mxu0
        %7153 = vdwg.mxu0
        %7154 = vmatprep.subr.bf16.mxu0 %v5303
        %7155 = vmatpush1.bf16.msra.mxu0 %v5302
        %7156 = vmatprep.subr.bf16.mxu0 %v5311
        %7157 = vmatpush1.bf16.msra.mxu0 %v5310
        %7158 = vmatprep.subr.bf16.mxu0 %v5319
        %7159 = vmatpush1.bf16.msra.mxu0 %v5318
        %7160 = vmatprep.subr.bf16.mxu0 %v5327
        %7161 = vmatpush1.bf16.msra.mxu0 %v5326
        %7162 = vmatprep.subr.bf16.mxu0 %v5335
        %7163 = vmatpush1.bf16.msra.mxu0 %v5334
        %7164 = vmatprep.subr.bf16.mxu0 %v5343
        %7165 = vmatpush1.bf16.msra.mxu0 %v5342
        %7166 = vmatprep.subr.bf16.mxu0 %v5351
        %7167 = vmatpush1.bf16.msra.mxu0 %v5350
        %7168 = vmatprep.subr.bf16.mxu0 %v5359
        %7169 = vmatpush1.bf16.msra.mxu0 %v5358
        %7170 = vmatprep.subr.bf16.mxu0 %v5367
        %7171 = vmatpush1.bf16.msra.mxu0 %v5366
        %7172 = vmatprep.subr.bf16.mxu0 %v5375
        %7173 = vmatpush1.bf16.msra.mxu0 %v5374
        %7174 = vmatprep.subr.bf16.mxu0 %v5383
        %7175 = vmatpush1.bf16.msra.mxu0 %v5382
        %7176 = vmatprep.subr.bf16.mxu0 %v5391
        %7177 = vmatpush1.bf16.msra.mxu0 %v5390
        %7178 = vmatprep.subr.bf16.mxu0 %v5399
        %7179 = vmatpush1.bf16.msra.mxu0 %v5398
        %7180 = vmatprep.subr.bf16.mxu0 %v5407
        %7181 = vmatpush1.bf16.msra.mxu0 %v5406
        %7182 = vmatprep.subr.bf16.mxu0 %v5415
        %7183 = vmatpush1.bf16.msra.mxu0 %v5414
        %7184 = vmatprep.subr.bf16.mxu0 %v5423
        %7185 = vmatpush1.bf16.msra.mxu0 %v5422
        %7186 = vmatprep.mubr.bf16.mxu0 %v1439
        %7187 = vmatmul.mubr.bf16.gmra.mrb[0].mxu0 %v1425
        %v7188 = vpop.f32.mrb[0].mxu0
        %v7189 = vadd.f32 %v7148, %v7188
        %v7190 = vpop.f32.mrb[0].mxu0
        %v7191 = vadd.f32 %v7150, %v7190
        %v7192 = vpop.f32.mrb[0].mxu0
        %v7193 = vpop.f32.mrb[0].mxu0
        %7194 = vdwg.mxu0
        %7195 = vmatprep.subr.bf16.mxu0 %v5431
        %7196 = vmatpush1.bf16.msra.mxu0 %v5430
        %7197 = vmatprep.subr.bf16.mxu0 %v5439
        %7198 = vmatpush1.bf16.msra.mxu0 %v5438
        %7199 = vmatprep.subr.bf16.mxu0 %v5447
        %7200 = vmatpush1.bf16.msra.mxu0 %v5446
        %7201 = vmatprep.subr.bf16.mxu0 %v5455
        %7202 = vmatpush1.bf16.msra.mxu0 %v5454
        %7203 = vmatprep.subr.bf16.mxu0 %v5463
        %7204 = vmatpush1.bf16.msra.mxu0 %v5462
        %7205 = vmatprep.subr.bf16.mxu0 %v5471
        %7206 = vmatpush1.bf16.msra.mxu0 %v5470
        %7207 = vmatprep.subr.bf16.mxu0 %v5479
        %7208 = vmatpush1.bf16.msra.mxu0 %v5478
        %7209 = vmatprep.subr.bf16.mxu0 %v5487
        %7210 = vmatpush1.bf16.msra.mxu0 %v5486
        %7211 = vmatprep.subr.bf16.mxu0 %v5495
        %7212 = vmatpush1.bf16.msra.mxu0 %v5494
        %7213 = vmatprep.subr.bf16.mxu0 %v5503
        %7214 = vmatpush1.bf16.msra.mxu0 %v5502
        %7215 = vmatprep.subr.bf16.mxu0 %v5511
        %7216 = vmatpush1.bf16.msra.mxu0 %v5510
        %7217 = vmatprep.subr.bf16.mxu0 %v5519
        %7218 = vmatpush1.bf16.msra.mxu0 %v5518
        %7219 = vmatprep.subr.bf16.mxu0 %v5527
        %7220 = vmatpush1.bf16.msra.mxu0 %v5526
        %7221 = vmatprep.subr.bf16.mxu0 %v5535
        %7222 = vmatpush1.bf16.msra.mxu0 %v5534
        %7223 = vmatprep.subr.bf16.mxu0 %v5543
        %7224 = vmatpush1.bf16.msra.mxu0 %v5542
        %7225 = vmatprep.subr.bf16.mxu0 %v5551
        %7226 = vmatpush1.bf16.msra.mxu0 %v5550
        %7227 = vmatprep.mubr.bf16.mxu0 %v1443
        %7228 = vmatmul.mubr.bf16.gmra.mrb[0].mxu0 %v1441
        %v7229 = vpop.f32.mrb[0].mxu0
        %v7230 = vadd.f32 %v7189, %v7229
        %v7231 = vpop.f32.mrb[0].mxu0
        %v7232 = vadd.f32 %v7191, %v7231
        %v7233 = vpop.f32.mrb[0].mxu0
        %v7234 = vpop.f32.mrb[0].mxu0
        %7235 = vdwg.mxu0
        %7236 = vmatprep.subr.bf16.mxu0 %v4537
        %7237 = vmatpush1.bf16.msra.mxu0 %v4536
        %7238 = vmatprep.subr.bf16.mxu0 %v4545
        %7239 = vmatpush1.bf16.msra.mxu0 %v4544
        %7240 = vmatprep.subr.bf16.mxu0 %v4553
        %7241 = vmatpush1.bf16.msra.mxu0 %v4552
        %7242 = vmatprep.subr.bf16.mxu0 %v4561
        %7243 = vmatpush1.bf16.msra.mxu0 %v4560
        %7244 = vmatprep.subr.bf16.mxu0 %v4569
        %7245 = vmatpush1.bf16.msra.mxu0 %v4568
        %7246 = vmatprep.subr.bf16.mxu0 %v4577
        %7247 = vmatpush1.bf16.msra.mxu0 %v4576
        %7248 = vmatprep.subr.bf16.mxu0 %v4585
        %7249 = vmatpush1.bf16.msra.mxu0 %v4584
        %7250 = vmatprep.subr.bf16.mxu0 %v4593
        %7251 = vmatpush1.bf16.msra.mxu0 %v4592
        %7252 = vmatprep.subr.bf16.mxu0 %v4601
        %7253 = vmatpush1.bf16.msra.mxu0 %v4600
        %7254 = vmatprep.subr.bf16.mxu0 %v4609
        %7255 = vmatpush1.bf16.msra.mxu0 %v4608
        %7256 = vmatprep.subr.bf16.mxu0 %v4617
        %7257 = vmatpush1.bf16.msra.mxu0 %v4616
        %7258 = vmatprep.subr.bf16.mxu0 %v4625
        %7259 = vmatpush1.bf16.msra.mxu0 %v4624
        %7260 = vmatprep.subr.bf16.mxu0 %v4633
        %7261 = vmatpush1.bf16.msra.mxu0 %v4632
        %7262 = vmatprep.subr.bf16.mxu0 %v4641
        %7263 = vmatpush1.bf16.msra.mxu0 %v4640
        %7264 = vmatprep.subr.bf16.mxu0 %v4649
        %7265 = vmatpush1.bf16.msra.mxu0 %v4648
        %7266 = vmatprep.subr.bf16.mxu0 %v4657
        %7267 = vmatpush1.bf16.msra.mxu0 %v4656
        %7268 = vmatprep.mubr.bf16.mxu0 %v1383
        %7269 = vmatmul.mubr.bf16.gmra.mrb[0].mxu0 %v1369
        %v7270 = vpop.f32.mrb[0].mxu0
        %v7271 = vadd.f32 0.0, %v7270
        %v7272 = vpop.f32.mrb[0].mxu0
        %v7273 = vadd.f32 0.0, %v7272
        %v7274 = vpop.f32.mrb[0].mxu0
        %v7275 = vpop.f32.mrb[0].mxu0
        %7276 = vdwg.mxu0
        %7277 = vmatprep.subr.bf16.mxu0 %v4665
        %7278 = vmatpush1.bf16.msra.mxu0 %v4664
        %7279 = vmatprep.subr.bf16.mxu0 %v4673
        %7280 = vmatpush1.bf16.msra.mxu0 %v4672
        %7281 = vmatprep.subr.bf16.mxu0 %v4681
        %7282 = vmatpush1.bf16.msra.mxu0 %v4680
        %7283 = vmatprep.subr.bf16.mxu0 %v4689
        %7284 = vmatpush1.bf16.msra.mxu0 %v4688
        %7285 = vmatprep.subr.bf16.mxu0 %v4697
        %7286 = vmatpush1.bf16.msra.mxu0 %v4696
        %7287 = vmatprep.subr.bf16.mxu0 %v4705
        %7288 = vmatpush1.bf16.msra.mxu0 %v4704
        %7289 = vmatprep.subr.bf16.mxu0 %v4713
        %7290 = vmatpush1.bf16.msra.mxu0 %v4712
        %7291 = vmatprep.subr.bf16.mxu0 %v4721
        %7292 = vmatpush1.bf16.msra.mxu0 %v4720
        %7293 = vmatprep.subr.bf16.mxu0 %v4729
        %7294 = vmatpush1.bf16.msra.mxu0 %v4728
        %7295 = vmatprep.subr.bf16.mxu0 %v4737
        %7296 = vmatpush1.bf16.msra.mxu0 %v4736
        %7297 = vmatprep.subr.bf16.mxu0 %v4745
        %7298 = vmatpush1.bf16.msra.mxu0 %v4744
        %7299 = vmatprep.subr.bf16.mxu0 %v4753
        %7300 = vmatpush1.bf16.msra.mxu0 %v4752
        %7301 = vmatprep.subr.bf16.mxu0 %v4761
        %7302 = vmatpush1.bf16.msra.mxu0 %v4760
        %7303 = vmatprep.subr.bf16.mxu0 %v4769
        %7304 = vmatpush1.bf16.msra.mxu0 %v4768
        %7305 = vmatprep.subr.bf16.mxu0 %v4777
        %7306 = vmatpush1.bf16.msra.mxu0 %v4776
        %7307 = vmatprep.subr.bf16.mxu0 %v4785
        %7308 = vmatpush1.bf16.msra.mxu0 %v4784
        %7309 = vmatprep.mubr.bf16.mxu0 %v1393
        %7310 = vmatmul.mubr.bf16.gmra.mrb[0].mxu0 %v1391
        %v7311 = vpop.f32.mrb[0].mxu0
        %v7312 = vadd.f32 %v7271, %v7311
        %v7313 = vpop.f32.mrb[0].mxu0
        %v7314 = vadd.f32 %v7273, %v7313
        %v7315 = vpop.f32.mrb[0].mxu0
        %v7316 = vpop.f32.mrb[0].mxu0
        %7317 = vdwg.mxu0
        %7318 = vmatprep.subr.bf16.mxu0 %v4793
        %7319 = vmatpush1.bf16.msra.mxu0 %v4792
        %7320 = vmatprep.subr.bf16.mxu0 %v4801
        %7321 = vmatpush1.bf16.msra.mxu0 %v4800
        %7322 = vmatprep.subr.bf16.mxu0 %v4809
        %7323 = vmatpush1.bf16.msra.mxu0 %v4808
        %7324 = vmatprep.subr.bf16.mxu0 %v4817
        %7325 = vmatpush1.bf16.msra.mxu0 %v4816
        %7326 = vmatprep.subr.bf16.mxu0 %v4825
        %7327 = vmatpush1.bf16.msra.mxu0 %v4824
        %7328 = vmatprep.subr.bf16.mxu0 %v4833
        %7329 = vmatpush1.bf16.msra.mxu0 %v4832
        %7330 = vmatprep.subr.bf16.mxu0 %v4841
        %7331 = vmatpush1.bf16.msra.mxu0 %v4840
        %7332 = vmatprep.subr.bf16.mxu0 %v4849
        %7333 = vmatpush1.bf16.msra.mxu0 %v4848
        %7334 = vmatprep.subr.bf16.mxu0 %v4857
        %7335 = vmatpush1.bf16.msra.mxu0 %v4856
        %7336 = vmatprep.subr.bf16.mxu0 %v4865
        %7337 = vmatpush1.bf16.msra.mxu0 %v4864
        %7338 = vmatprep.subr.bf16.mxu0 %v4873
        %7339 = vmatpush1.bf16.msra.mxu0 %v4872
        %7340 = vmatprep.subr.bf16.mxu0 %v4881
        %7341 = vmatpush1.bf16.msra.mxu0 %v4880
        %7342 = vmatprep.subr.bf16.mxu0 %v4889
        %7343 = vmatpush1.bf16.msra.mxu0 %v4888
        %7344 = vmatprep.subr.bf16.mxu0 %v4897
        %7345 = vmatpush1.bf16.msra.mxu0 %v4896
        %7346 = vmatprep.subr.bf16.mxu0 %v4905
        %7347 = vmatpush1.bf16.msra.mxu0 %v4904
        %7348 = vmatprep.subr.bf16.mxu0 %v4913
        %7349 = vmatpush1.bf16.msra.mxu0 %v4912
        %7350 = vmatprep.mubr.bf16.mxu0 %v1390
        %7351 = vmatmul.mubr.bf16.gmra.mrb[0].mxu0 %v1376
        %v7352 = vpop.f32.mrb[0].mxu0
        %v7353 = vadd.f32 %v7312, %v7352
        %v7354 = vpop.f32.mrb[0].mxu0
        %v7355 = vadd.f32 %v7314, %v7354
        %v7356 = vpop.f32.mrb[0].mxu0
        %v7357 = vpop.f32.mrb[0].mxu0
        %7358 = vdwg.mxu0
        %7359 = vmatprep.subr.bf16.mxu0 %v4921
        %7360 = vmatpush1.bf16.msra.mxu0 %v4920
        %7361 = vmatprep.subr.bf16.mxu0 %v4929
        %7362 = vmatpush1.bf16.msra.mxu0 %v4928
        %7363 = vmatprep.subr.bf16.mxu0 %v4937
        %7364 = vmatpush1.bf16.msra.mxu0 %v4936
        %7365 = vmatprep.subr.bf16.mxu0 %v4945
        %7366 = vmatpush1.bf16.msra.mxu0 %v4944
        %7367 = vmatprep.subr.bf16.mxu0 %v4953
        %7368 = vmatpush1.bf16.msra.mxu0 %v4952
        %7369 = vmatprep.subr.bf16.mxu0 %v4961
        %7370 = vmatpush1.bf16.msra.mxu0 %v4960
        %7371 = vmatprep.subr.bf16.mxu0 %v4969
        %7372 = vmatpush1.bf16.msra.mxu0 %v4968
        %7373 = vmatprep.subr.bf16.mxu0 %v4977
        %7374 = vmatpush1.bf16.msra.mxu0 %v4976
        %7375 = vmatprep.subr.bf16.mxu0 %v4985
        %7376 = vmatpush1.bf16.msra.mxu0 %v4984
        %7377 = vmatprep.subr.bf16.mxu0 %v4993
        %7378 = vmatpush1.bf16.msra.mxu0 %v4992
        %7379 = vmatprep.subr.bf16.mxu0 %v5001
        %7380 = vmatpush1.bf16.msra.mxu0 %v5000
        %7381 = vmatprep.subr.bf16.mxu0 %v5009
        %7382 = vmatpush1.bf16.msra.mxu0 %v5008
        %7383 = vmatprep.subr.bf16.mxu0 %v5017
        %7384 = vmatpush1.bf16.msra.mxu0 %v5016
        %7385 = vmatprep.subr.bf16.mxu0 %v5025
        %7386 = vmatpush1.bf16.msra.mxu0 %v5024
        %7387 = vmatprep.subr.bf16.mxu0 %v5033
        %7388 = vmatpush1.bf16.msra.mxu0 %v5032
        %7389 = vmatprep.subr.bf16.mxu0 %v5041
        %7390 = vmatpush1.bf16.msra.mxu0 %v5040
        %7391 = vmatprep.mubr.bf16.mxu0 %v1394
        %7392 = vmatmul.mubr.bf16.gmra.mrb[0].mxu0 %v1392
        %v7393 = vpop.f32.mrb[0].mxu0
        %v7394 = vadd.f32 %v7353, %v7393
        %v7395 = vpop.f32.mrb[0].mxu0
        %v7396 = vadd.f32 %v7355, %v7395
        %v7397 = vpop.f32.mrb[0].mxu0
        %v7398 = vpop.f32.mrb[0].mxu0
        %7399 = vdwg.mxu0
        %7400 = vmatprep.subr.bf16.mxu0 %v5049
        %7401 = vmatpush1.bf16.msra.mxu0 %v5048
        %7402 = vmatprep.subr.bf16.mxu0 %v5057
        %7403 = vmatpush1.bf16.msra.mxu0 %v5056
        %7404 = vmatprep.subr.bf16.mxu0 %v5065
        %7405 = vmatpush1.bf16.msra.mxu0 %v5064
        %7406 = vmatprep.subr.bf16.mxu0 %v5073
        %7407 = vmatpush1.bf16.msra.mxu0 %v5072
        %7408 = vmatprep.subr.bf16.mxu0 %v5081
        %7409 = vmatpush1.bf16.msra.mxu0 %v5080
        %7410 = vmatprep.subr.bf16.mxu0 %v5089
        %7411 = vmatpush1.bf16.msra.mxu0 %v5088
        %7412 = vmatprep.subr.bf16.mxu0 %v5097
        %7413 = vmatpush1.bf16.msra.mxu0 %v5096
        %7414 = vmatprep.subr.bf16.mxu0 %v5105
        %7415 = vmatpush1.bf16.msra.mxu0 %v5104
        %7416 = vmatprep.subr.bf16.mxu0 %v5113
        %7417 = vmatpush1.bf16.msra.mxu0 %v5112
        %7418 = vmatprep.subr.bf16.mxu0 %v5121
        %7419 = vmatpush1.bf16.msra.mxu0 %v5120
        %7420 = vmatprep.subr.bf16.mxu0 %v5129
        %7421 = vmatpush1.bf16.msra.mxu0 %v5128
        %7422 = vmatprep.subr.bf16.mxu0 %v5137
        %7423 = vmatpush1.bf16.msra.mxu0 %v5136
        %7424 = vmatprep.subr.bf16.mxu0 %v5145
        %7425 = vmatpush1.bf16.msra.mxu0 %v5144
        %7426 = vmatprep.subr.bf16.mxu0 %v5153
        %7427 = vmatpush1.bf16.msra.mxu0 %v5152
        %7428 = vmatprep.subr.bf16.mxu0 %v5161
        %7429 = vmatpush1.bf16.msra.mxu0 %v5160
        %7430 = vmatprep.subr.bf16.mxu0 %v5169
        %7431 = vmatpush1.bf16.msra.mxu0 %v5168
        %7432 = vmatprep.mubr.bf16.mxu0 %v1432
        %7433 = vmatmul.mubr.bf16.gmra.mrb[0].mxu0 %v1418
        %v7434 = vpop.f32.mrb[0].mxu0
        %v7435 = vadd.f32 %v7394, %v7434
        %v7436 = vpop.f32.mrb[0].mxu0
        %v7437 = vadd.f32 %v7396, %v7436
        %v7438 = vpop.f32.mrb[0].mxu0
        %v7439 = vpop.f32.mrb[0].mxu0
        %7440 = vdwg.mxu0
        %7441 = vmatprep.subr.bf16.mxu0 %v5177
        %7442 = vmatpush1.bf16.msra.mxu0 %v5176
        %7443 = vmatprep.subr.bf16.mxu0 %v5185
        %7444 = vmatpush1.bf16.msra.mxu0 %v5184
        %7445 = vmatprep.subr.bf16.mxu0 %v5193
        %7446 = vmatpush1.bf16.msra.mxu0 %v5192
        %7447 = vmatprep.subr.bf16.mxu0 %v5201
        %7448 = vmatpush1.bf16.msra.mxu0 %v5200
        %7449 = vmatprep.subr.bf16.mxu0 %v5209
        %7450 = vmatpush1.bf16.msra.mxu0 %v5208
        %7451 = vmatprep.subr.bf16.mxu0 %v5217
        %7452 = vmatpush1.bf16.msra.mxu0 %v5216
        %7453 = vmatprep.subr.bf16.mxu0 %v5225
        %7454 = vmatpush1.bf16.msra.mxu0 %v5224
        %7455 = vmatprep.subr.bf16.mxu0 %v5233
        %7456 = vmatpush1.bf16.msra.mxu0 %v5232
        %7457 = vmatprep.subr.bf16.mxu0 %v5241
        %7458 = vmatpush1.bf16.msra.mxu0 %v5240
        %7459 = vmatprep.subr.bf16.mxu0 %v5249
        %7460 = vmatpush1.bf16.msra.mxu0 %v5248
        %7461 = vmatprep.subr.bf16.mxu0 %v5257
        %7462 = vmatpush1.bf16.msra.mxu0 %v5256
        %7463 = vmatprep.subr.bf16.mxu0 %v5265
        %7464 = vmatpush1.bf16.msra.mxu0 %v5264
        %7465 = vmatprep.subr.bf16.mxu0 %v5273
        %7466 = vmatpush1.bf16.msra.mxu0 %v5272
        %7467 = vmatprep.subr.bf16.mxu0 %v5281
        %7468 = vmatpush1.bf16.msra.mxu0 %v5280
        %7469 = vmatprep.subr.bf16.mxu0 %v5289
        %7470 = vmatpush1.bf16.msra.mxu0 %v5288
        %7471 = vmatprep.subr.bf16.mxu0 %v5297
        %7472 = vmatpush1.bf16.msra.mxu0 %v5296
        %7473 = vmatprep.mubr.bf16.mxu0 %v1442
        %7474 = vmatmul.mubr.bf16.gmra.mrb[0].mxu0 %v1440
        %v7475 = vpop.f32.mrb[0].mxu0
        %v7476 = vadd.f32 %v7435, %v7475
        %v7477 = vpop.f32.mrb[0].mxu0
        %v7478 = vadd.f32 %v7437, %v7477
        %v7479 = vpop.f32.mrb[0].mxu0
        %v7480 = vpop.f32.mrb[0].mxu0
        %7481 = vdwg.mxu0
        %7482 = vmatprep.subr.bf16.mxu0 %v5305
        %7483 = vmatpush1.bf16.msra.mxu0 %v5304
        %7484 = vmatprep.subr.bf16.mxu0 %v5313
        %7485 = vmatpush1.bf16.msra.mxu0 %v5312
        %7486 = vmatprep.subr.bf16.mxu0 %v5321
        %7487 = vmatpush1.bf16.msra.mxu0 %v5320
        %7488 = vmatprep.subr.bf16.mxu0 %v5329
        %7489 = vmatpush1.bf16.msra.mxu0 %v5328
        %7490 = vmatprep.subr.bf16.mxu0 %v5337
        %7491 = vmatpush1.bf16.msra.mxu0 %v5336
        %7492 = vmatprep.subr.bf16.mxu0 %v5345
        %7493 = vmatpush1.bf16.msra.mxu0 %v5344
        %7494 = vmatprep.subr.bf16.mxu0 %v5353
        %7495 = vmatpush1.bf16.msra.mxu0 %v5352
        %7496 = vmatprep.subr.bf16.mxu0 %v5361
        %7497 = vmatpush1.bf16.msra.mxu0 %v5360
        %7498 = vmatprep.subr.bf16.mxu0 %v5369
        %7499 = vmatpush1.bf16.msra.mxu0 %v5368
        %7500 = vmatprep.subr.bf16.mxu0 %v5377
        %7501 = vmatpush1.bf16.msra.mxu0 %v5376
        %7502 = vmatprep.subr.bf16.mxu0 %v5385
        %7503 = vmatpush1.bf16.msra.mxu0 %v5384
        %7504 = vmatprep.subr.bf16.mxu0 %v5393
        %7505 = vmatpush1.bf16.msra.mxu0 %v5392
        %7506 = vmatprep.subr.bf16.mxu0 %v5401
        %7507 = vmatpush1.bf16.msra.mxu0 %v5400
        %7508 = vmatprep.subr.bf16.mxu0 %v5409
        %7509 = vmatpush1.bf16.msra.mxu0 %v5408
        %7510 = vmatprep.subr.bf16.mxu0 %v5417
        %7511 = vmatpush1.bf16.msra.mxu0 %v5416
        %7512 = vmatprep.subr.bf16.mxu0 %v5425
        %7513 = vmatpush1.bf16.msra.mxu0 %v5424
        %7514 = vmatprep.mubr.bf16.mxu0 %v1439
        %7515 = vmatmul.mubr.bf16.gmra.mrb[0].mxu0 %v1425
        %v7516 = vpop.f32.mrb[0].mxu0
        %v7517 = vadd.f32 %v7476, %v7516
        %v7518 = vpop.f32.mrb[0].mxu0
        %v7519 = vadd.f32 %v7478, %v7518
        %v7520 = vpop.f32.mrb[0].mxu0
        %v7521 = vpop.f32.mrb[0].mxu0
        %7522 = vdwg.mxu0
        %7523 = vmatprep.subr.bf16.mxu0 %v5433
        %7524 = vmatpush1.bf16.msra.mxu0 %v5432
        %7525 = vmatprep.subr.bf16.mxu0 %v5441
        %7526 = vmatpush1.bf16.msra.mxu0 %v5440
        %7527 = vmatprep.subr.bf16.mxu0 %v5449
        %7528 = vmatpush1.bf16.msra.mxu0 %v5448
        %7529 = vmatprep.subr.bf16.mxu0 %v5457
        %7530 = vmatpush1.bf16.msra.mxu0 %v5456
        %7531 = vmatprep.subr.bf16.mxu0 %v5465
        %7532 = vmatpush1.bf16.msra.mxu0 %v5464
        %7533 = vmatprep.subr.bf16.mxu0 %v5473
        %7534 = vmatpush1.bf16.msra.mxu0 %v5472
        %7535 = vmatprep.subr.bf16.mxu0 %v5481
        %7536 = vmatpush1.bf16.msra.mxu0 %v5480
        %7537 = vmatprep.subr.bf16.mxu0 %v5489
        %7538 = vmatpush1.bf16.msra.mxu0 %v5488
        %7539 = vmatprep.subr.bf16.mxu0 %v5497
        %7540 = vmatpush1.bf16.msra.mxu0 %v5496
        %7541 = vmatprep.subr.bf16.mxu0 %v5505
        %7542 = vmatpush1.bf16.msra.mxu0 %v5504
        %7543 = vmatprep.subr.bf16.mxu0 %v5513
        %7544 = vmatpush1.bf16.msra.mxu0 %v5512
        %7545 = vmatprep.subr.bf16.mxu0 %v5521
        %7546 = vmatpush1.bf16.msra.mxu0 %v5520
        %7547 = vmatprep.subr.bf16.mxu0 %v5529
        %7548 = vmatpush1.bf16.msra.mxu0 %v5528
        %7549 = vmatprep.subr.bf16.mxu0 %v5537
        %7550 = vmatpush1.bf16.msra.mxu0 %v5536
        %7551 = vmatprep.subr.bf16.mxu0 %v5545
        %7552 = vmatpush1.bf16.msra.mxu0 %v5544
        %7553 = vmatprep.subr.bf16.mxu0 %v5553
        %7554 = vmatpush1.bf16.msra.mxu0 %v5552
        %7555 = vmatprep.mubr.bf16.mxu0 %v1443
        %7556 = vmatmul.mubr.bf16.gmra.mrb[0].mxu0 %v1441
        %v7557 = vpop.f32.mrb[0].mxu0
        %v7558 = vadd.f32 %v7517, %v7557
        %v7559 = vpop.f32.mrb[0].mxu0
        %v7560 = vadd.f32 %v7519, %v7559
        %v7561 = vpop.f32.mrb[0].mxu0
        %v7562 = vpop.f32.mrb[0].mxu0
        %7563 = vdwg.mxu0
        %7564 = vmatprep.subr.bf16.mxu0 %v4539
        %7565 = vmatpush1.bf16.msra.mxu0 %v4538
        %7566 = vmatprep.subr.bf16.mxu0 %v4547
        %7567 = vmatpush1.bf16.msra.mxu0 %v4546
        %7568 = vmatprep.subr.bf16.mxu0 %v4555
        %7569 = vmatpush1.bf16.msra.mxu0 %v4554
        %7570 = vmatprep.subr.bf16.mxu0 %v4563
        %7571 = vmatpush1.bf16.msra.mxu0 %v4562
        %7572 = vmatprep.subr.bf16.mxu0 %v4571
        %7573 = vmatpush1.bf16.msra.mxu0 %v4570
        %7574 = vmatprep.subr.bf16.mxu0 %v4579
        %7575 = vmatpush1.bf16.msra.mxu0 %v4578
        %7576 = vmatprep.subr.bf16.mxu0 %v4587
        %7577 = vmatpush1.bf16.msra.mxu0 %v4586
        %7578 = vmatprep.subr.bf16.mxu0 %v4595
        %7579 = vmatpush1.bf16.msra.mxu0 %v4594
        %7580 = vmatprep.subr.bf16.mxu0 %v4603
        %7581 = vmatpush1.bf16.msra.mxu0 %v4602
        %7582 = vmatprep.subr.bf16.mxu0 %v4611
        %7583 = vmatpush1.bf16.msra.mxu0 %v4610
        %7584 = vmatprep.subr.bf16.mxu0 %v4619
        %7585 = vmatpush1.bf16.msra.mxu0 %v4618
        %7586 = vmatprep.subr.bf16.mxu0 %v4627
        %7587 = vmatpush1.bf16.msra.mxu0 %v4626
        %7588 = vmatprep.subr.bf16.mxu0 %v4635
        %7589 = vmatpush1.bf16.msra.mxu0 %v4634
        %7590 = vmatprep.subr.bf16.mxu0 %v4643
        %7591 = vmatpush1.bf16.msra.mxu0 %v4642
        %7592 = vmatprep.subr.bf16.mxu0 %v4651
        %7593 = vmatpush1.bf16.msra.mxu0 %v4650
        %7594 = vmatprep.subr.bf16.mxu0 %v4659
        %7595 = vmatpush1.bf16.msra.mxu0 %v4658
        %7596 = vmatprep.mubr.bf16.mxu0 %v1383
        %7597 = vmatmul.mubr.bf16.gmra.mrb[0].mxu0 %v1369
        %v7598 = vpop.f32.mrb[0].mxu0
        %v7599 = vadd.f32 0.0, %v7598
        %v7600 = vpop.f32.mrb[0].mxu0
        %v7601 = vadd.f32 0.0, %v7600
        %v7602 = vpop.f32.mrb[0].mxu0
        %v7603 = vpop.f32.mrb[0].mxu0
        %7604 = vdwg.mxu0
        %7605 = vmatprep.subr.bf16.mxu0 %v4667
        %7606 = vmatpush1.bf16.msra.mxu0 %v4666
        %7607 = vmatprep.subr.bf16.mxu0 %v4675
        %7608 = vmatpush1.bf16.msra.mxu0 %v4674
        %7609 = vmatprep.subr.bf16.mxu0 %v4683
        %7610 = vmatpush1.bf16.msra.mxu0 %v4682
        %7611 = vmatprep.subr.bf16.mxu0 %v4691
        %7612 = vmatpush1.bf16.msra.mxu0 %v4690
        %7613 = vmatprep.subr.bf16.mxu0 %v4699
        %7614 = vmatpush1.bf16.msra.mxu0 %v4698
        %7615 = vmatprep.subr.bf16.mxu0 %v4707
        %7616 = vmatpush1.bf16.msra.mxu0 %v4706
        %7617 = vmatprep.subr.bf16.mxu0 %v4715
        %7618 = vmatpush1.bf16.msra.mxu0 %v4714
        %7619 = vmatprep.subr.bf16.mxu0 %v4723
        %7620 = vmatpush1.bf16.msra.mxu0 %v4722
        %7621 = vmatprep.subr.bf16.mxu0 %v4731
        %7622 = vmatpush1.bf16.msra.mxu0 %v4730
        %7623 = vmatprep.subr.bf16.mxu0 %v4739
        %7624 = vmatpush1.bf16.msra.mxu0 %v4738
        %7625 = vmatprep.subr.bf16.mxu0 %v4747
        %7626 = vmatpush1.bf16.msra.mxu0 %v4746
        %7627 = vmatprep.subr.bf16.mxu0 %v4755
        %7628 = vmatpush1.bf16.msra.mxu0 %v4754
        %7629 = vmatprep.subr.bf16.mxu0 %v4763
        %7630 = vmatpush1.bf16.msra.mxu0 %v4762
        %7631 = vmatprep.subr.bf16.mxu0 %v4771
        %7632 = vmatpush1.bf16.msra.mxu0 %v4770
        %7633 = vmatprep.subr.bf16.mxu0 %v4779
        %7634 = vmatpush1.bf16.msra.mxu0 %v4778
        %7635 = vmatprep.subr.bf16.mxu0 %v4787
        %7636 = vmatpush1.bf16.msra.mxu0 %v4786
        %7637 = vmatprep.mubr.bf16.mxu0 %v1393
        %7638 = vmatmul.mubr.bf16.gmra.mrb[0].mxu0 %v1391
        %v7639 = vpop.f32.mrb[0].mxu0
        %v7640 = vadd.f32 %v7599, %v7639
        %v7641 = vpop.f32.mrb[0].mxu0
        %v7642 = vadd.f32 %v7601, %v7641
        %v7643 = vpop.f32.mrb[0].mxu0
        %v7644 = vpop.f32.mrb[0].mxu0
        %7645 = vdwg.mxu0
        %7646 = vmatprep.subr.bf16.mxu0 %v4795
        %7647 = vmatpush1.bf16.msra.mxu0 %v4794
        %7648 = vmatprep.subr.bf16.mxu0 %v4803
        %7649 = vmatpush1.bf16.msra.mxu0 %v4802
        %7650 = vmatprep.subr.bf16.mxu0 %v4811
        %7651 = vmatpush1.bf16.msra.mxu0 %v4810
        %7652 = vmatprep.subr.bf16.mxu0 %v4819
        %7653 = vmatpush1.bf16.msra.mxu0 %v4818
        %7654 = vmatprep.subr.bf16.mxu0 %v4827
        %7655 = vmatpush1.bf16.msra.mxu0 %v4826
        %7656 = vmatprep.subr.bf16.mxu0 %v4835
        %7657 = vmatpush1.bf16.msra.mxu0 %v4834
        %7658 = vmatprep.subr.bf16.mxu0 %v4843
        %7659 = vmatpush1.bf16.msra.mxu0 %v4842
        %7660 = vmatprep.subr.bf16.mxu0 %v4851
        %7661 = vmatpush1.bf16.msra.mxu0 %v4850
        %7662 = vmatprep.subr.bf16.mxu0 %v4859
        %7663 = vmatpush1.bf16.msra.mxu0 %v4858
        %7664 = vmatprep.subr.bf16.mxu0 %v4867
        %7665 = vmatpush1.bf16.msra.mxu0 %v4866
        %7666 = vmatprep.subr.bf16.mxu0 %v4875
        %7667 = vmatpush1.bf16.msra.mxu0 %v4874
        %7668 = vmatprep.subr.bf16.mxu0 %v4883
        %7669 = vmatpush1.bf16.msra.mxu0 %v4882
        %7670 = vmatprep.subr.bf16.mxu0 %v4891
        %7671 = vmatpush1.bf16.msra.mxu0 %v4890
        %7672 = vmatprep.subr.bf16.mxu0 %v4899
        %7673 = vmatpush1.bf16.msra.mxu0 %v4898
        %7674 = vmatprep.subr.bf16.mxu0 %v4907
        %7675 = vmatpush1.bf16.msra.mxu0 %v4906
        %7676 = vmatprep.subr.bf16.mxu0 %v4915
        %7677 = vmatpush1.bf16.msra.mxu0 %v4914
        %7678 = vmatprep.mubr.bf16.mxu0 %v1390
        %7679 = vmatmul.mubr.bf16.gmra.mrb[0].mxu0 %v1376
        %v7680 = vpop.f32.mrb[0].mxu0
        %v7681 = vadd.f32 %v7640, %v7680
        %v7682 = vpop.f32.mrb[0].mxu0
        %v7683 = vadd.f32 %v7642, %v7682
        %v7684 = vpop.f32.mrb[0].mxu0
        %v7685 = vpop.f32.mrb[0].mxu0
        %7686 = vdwg.mxu0
        %7687 = vmatprep.subr.bf16.mxu0 %v4923
        %7688 = vmatpush1.bf16.msra.mxu0 %v4922
        %7689 = vmatprep.subr.bf16.mxu0 %v4931
        %7690 = vmatpush1.bf16.msra.mxu0 %v4930
        %7691 = vmatprep.subr.bf16.mxu0 %v4939
        %7692 = vmatpush1.bf16.msra.mxu0 %v4938
        %7693 = vmatprep.subr.bf16.mxu0 %v4947
        %7694 = vmatpush1.bf16.msra.mxu0 %v4946
        %7695 = vmatprep.subr.bf16.mxu0 %v4955
        %7696 = vmatpush1.bf16.msra.mxu0 %v4954
        %7697 = vmatprep.subr.bf16.mxu0 %v4963
        %7698 = vmatpush1.bf16.msra.mxu0 %v4962
        %7699 = vmatprep.subr.bf16.mxu0 %v4971
        %7700 = vmatpush1.bf16.msra.mxu0 %v4970
        %7701 = vmatprep.subr.bf16.mxu0 %v4979
        %7702 = vmatpush1.bf16.msra.mxu0 %v4978
        %7703 = vmatprep.subr.bf16.mxu0 %v4987
        %7704 = vmatpush1.bf16.msra.mxu0 %v4986
        %7705 = vmatprep.subr.bf16.mxu0 %v4995
        %7706 = vmatpush1.bf16.msra.mxu0 %v4994
        %7707 = vmatprep.subr.bf16.mxu0 %v5003
        %7708 = vmatpush1.bf16.msra.mxu0 %v5002
        %7709 = vmatprep.subr.bf16.mxu0 %v5011
        %7710 = vmatpush1.bf16.msra.mxu0 %v5010
        %7711 = vmatprep.subr.bf16.mxu0 %v5019
        %7712 = vmatpush1.bf16.msra.mxu0 %v5018
        %7713 = vmatprep.subr.bf16.mxu0 %v5027
        %7714 = vmatpush1.bf16.msra.mxu0 %v5026
        %7715 = vmatprep.subr.bf16.mxu0 %v5035
        %7716 = vmatpush1.bf16.msra.mxu0 %v5034
        %7717 = vmatprep.subr.bf16.mxu0 %v5043
        %7718 = vmatpush1.bf16.msra.mxu0 %v5042
        %7719 = vmatprep.mubr.bf16.mxu0 %v1394
        %7720 = vmatmul.mubr.bf16.gmra.mrb[0].mxu0 %v1392
        %v7721 = vpop.f32.mrb[0].mxu0
        %v7722 = vadd.f32 %v7681, %v7721
        %v7723 = vpop.f32.mrb[0].mxu0
        %v7724 = vadd.f32 %v7683, %v7723
        %v7725 = vpop.f32.mrb[0].mxu0
        %v7726 = vpop.f32.mrb[0].mxu0
        %7727 = vdwg.mxu0
        %7728 = vmatprep.subr.bf16.mxu0 %v5051
        %7729 = vmatpush1.bf16.msra.mxu0 %v5050
        %7730 = vmatprep.subr.bf16.mxu0 %v5059
        %7731 = vmatpush1.bf16.msra.mxu0 %v5058
        %7732 = vmatprep.subr.bf16.mxu0 %v5067
        %7733 = vmatpush1.bf16.msra.mxu0 %v5066
        %7734 = vmatprep.subr.bf16.mxu0 %v5075
        %7735 = vmatpush1.bf16.msra.mxu0 %v5074
        %7736 = vmatprep.subr.bf16.mxu0 %v5083
        %7737 = vmatpush1.bf16.msra.mxu0 %v5082
        %7738 = vmatprep.subr.bf16.mxu0 %v5091
        %7739 = vmatpush1.bf16.msra.mxu0 %v5090
        %7740 = vmatprep.subr.bf16.mxu0 %v5099
        %7741 = vmatpush1.bf16.msra.mxu0 %v5098
        %7742 = vmatprep.subr.bf16.mxu0 %v5107
        %7743 = vmatpush1.bf16.msra.mxu0 %v5106
        %7744 = vmatprep.subr.bf16.mxu0 %v5115
        %7745 = vmatpush1.bf16.msra.mxu0 %v5114
        %7746 = vmatprep.subr.bf16.mxu0 %v5123
        %7747 = vmatpush1.bf16.msra.mxu0 %v5122
        %7748 = vmatprep.subr.bf16.mxu0 %v5131
        %7749 = vmatpush1.bf16.msra.mxu0 %v5130
        %7750 = vmatprep.subr.bf16.mxu0 %v5139
        %7751 = vmatpush1.bf16.msra.mxu0 %v5138
        %7752 = vmatprep.subr.bf16.mxu0 %v5147
        %7753 = vmatpush1.bf16.msra.mxu0 %v5146
        %7754 = vmatprep.subr.bf16.mxu0 %v5155
        %7755 = vmatpush1.bf16.msra.mxu0 %v5154
        %7756 = vmatprep.subr.bf16.mxu0 %v5163
        %7757 = vmatpush1.bf16.msra.mxu0 %v5162
        %7758 = vmatprep.subr.bf16.mxu0 %v5171
        %7759 = vmatpush1.bf16.msra.mxu0 %v5170
        %7760 = vmatprep.mubr.bf16.mxu0 %v1432
        %7761 = vmatmul.mubr.bf16.gmra.mrb[0].mxu0 %v1418
        %v7762 = vpop.f32.mrb[0].mxu0
        %v7763 = vadd.f32 %v7722, %v7762
        %v7764 = vpop.f32.mrb[0].mxu0
        %v7765 = vadd.f32 %v7724, %v7764
        %v7766 = vpop.f32.mrb[0].mxu0
        %v7767 = vpop.f32.mrb[0].mxu0
        %7768 = vdwg.mxu0
        %7769 = vmatprep.subr.bf16.mxu0 %v5179
        %7770 = vmatpush1.bf16.msra.mxu0 %v5178
        %7771 = vmatprep.subr.bf16.mxu0 %v5187
        %7772 = vmatpush1.bf16.msra.mxu0 %v5186
        %7773 = vmatprep.subr.bf16.mxu0 %v5195
        %7774 = vmatpush1.bf16.msra.mxu0 %v5194
        %7775 = vmatprep.subr.bf16.mxu0 %v5203
        %7776 = vmatpush1.bf16.msra.mxu0 %v5202
        %7777 = vmatprep.subr.bf16.mxu0 %v5211
        %7778 = vmatpush1.bf16.msra.mxu0 %v5210
        %7779 = vmatprep.subr.bf16.mxu0 %v5219
        %7780 = vmatpush1.bf16.msra.mxu0 %v5218
        %7781 = vmatprep.subr.bf16.mxu0 %v5227
        %7782 = vmatpush1.bf16.msra.mxu0 %v5226
        %7783 = vmatprep.subr.bf16.mxu0 %v5235
        %7784 = vmatpush1.bf16.msra.mxu0 %v5234
        %7785 = vmatprep.subr.bf16.mxu0 %v5243
        %7786 = vmatpush1.bf16.msra.mxu0 %v5242
        %7787 = vmatprep.subr.bf16.mxu0 %v5251
        %7788 = vmatpush1.bf16.msra.mxu0 %v5250
        %7789 = vmatprep.subr.bf16.mxu0 %v5259
        %7790 = vmatpush1.bf16.msra.mxu0 %v5258
        %7791 = vmatprep.subr.bf16.mxu0 %v5267
        %7792 = vmatpush1.bf16.msra.mxu0 %v5266
        %7793 = vmatprep.subr.bf16.mxu0 %v5275
        %7794 = vmatpush1.bf16.msra.mxu0 %v5274
        %7795 = vmatprep.subr.bf16.mxu0 %v5283
        %7796 = vmatpush1.bf16.msra.mxu0 %v5282
        %7797 = vmatprep.subr.bf16.mxu0 %v5291
        %7798 = vmatpush1.bf16.msra.mxu0 %v5290
        %7799 = vmatprep.subr.bf16.mxu0 %v5299
        %7800 = vmatpush1.bf16.msra.mxu0 %v5298
        %7801 = vmatprep.mubr.bf16.mxu0 %v1442
        %7802 = vmatmul.mubr.bf16.gmra.mrb[0].mxu0 %v1440
        %v7803 = vpop.f32.mrb[0].mxu0
        %v7804 = vadd.f32 %v7763, %v7803
        %v7805 = vpop.f32.mrb[0].mxu0
        %v7806 = vadd.f32 %v7765, %v7805
        %v7807 = vpop.f32.mrb[0].mxu0
        %v7808 = vpop.f32.mrb[0].mxu0
        %7809 = vdwg.mxu0
        %7810 = vmatprep.subr.bf16.mxu0 %v5307
        %7811 = vmatpush1.bf16.msra.mxu0 %v5306
        %7812 = vmatprep.subr.bf16.mxu0 %v5315
        %7813 = vmatpush1.bf16.msra.mxu0 %v5314
        %7814 = vmatprep.subr.bf16.mxu0 %v5323
        %7815 = vmatpush1.bf16.msra.mxu0 %v5322
        %7816 = vmatprep.subr.bf16.mxu0 %v5331
        %7817 = vmatpush1.bf16.msra.mxu0 %v5330
        %7818 = vmatprep.subr.bf16.mxu0 %v5339
        %7819 = vmatpush1.bf16.msra.mxu0 %v5338
        %7820 = vmatprep.subr.bf16.mxu0 %v5347
        %7821 = vmatpush1.bf16.msra.mxu0 %v5346
        %7822 = vmatprep.subr.bf16.mxu0 %v5355
        %7823 = vmatpush1.bf16.msra.mxu0 %v5354
        %7824 = vmatprep.subr.bf16.mxu0 %v5363
        %7825 = vmatpush1.bf16.msra.mxu0 %v5362
        %7826 = vmatprep.subr.bf16.mxu0 %v5371
        %7827 = vmatpush1.bf16.msra.mxu0 %v5370
        %7828 = vmatprep.subr.bf16.mxu0 %v5379
        %7829 = vmatpush1.bf16.msra.mxu0 %v5378
        %7830 = vmatprep.subr.bf16.mxu0 %v5387
        %7831 = vmatpush1.bf16.msra.mxu0 %v5386
        %7832 = vmatprep.subr.bf16.mxu0 %v5395
        %7833 = vmatpush1.bf16.msra.mxu0 %v5394
        %7834 = vmatprep.subr.bf16.mxu0 %v5403
        %7835 = vmatpush1.bf16.msra.mxu0 %v5402
        %7836 = vmatprep.subr.bf16.mxu0 %v5411
        %7837 = vmatpush1.bf16.msra.mxu0 %v5410
        %7838 = vmatprep.subr.bf16.mxu0 %v5419
        %7839 = vmatpush1.bf16.msra.mxu0 %v5418
        %7840 = vmatprep.subr.bf16.mxu0 %v5427
        %7841 = vmatpush1.bf16.msra.mxu0 %v5426
        %7842 = vmatprep.mubr.bf16.mxu0 %v1439
        %7843 = vmatmul.mubr.bf16.gmra.mrb[0].mxu0 %v1425
        %v7844 = vpop.f32.mrb[0].mxu0
        %v7845 = vadd.f32 %v7804, %v7844
        %v7846 = vpop.f32.mrb[0].mxu0
        %v7847 = vadd.f32 %v7806, %v7846
        %v7848 = vpop.f32.mrb[0].mxu0
        %v7849 = vpop.f32.mrb[0].mxu0
        %7850 = vdwg.mxu0
        %7851 = vmatprep.subr.bf16.mxu0 %v5435
        %7852 = vmatpush1.bf16.msra.mxu0 %v5434
        %7853 = vmatprep.subr.bf16.mxu0 %v5443
        %7854 = vmatpush1.bf16.msra.mxu0 %v5442
        %7855 = vmatprep.subr.bf16.mxu0 %v5451
        %7856 = vmatpush1.bf16.msra.mxu0 %v5450
        %7857 = vmatprep.subr.bf16.mxu0 %v5459
        %7858 = vmatpush1.bf16.msra.mxu0 %v5458
        %7859 = vmatprep.subr.bf16.mxu0 %v5467
        %7860 = vmatpush1.bf16.msra.mxu0 %v5466
        %7861 = vmatprep.subr.bf16.mxu0 %v5475
        %7862 = vmatpush1.bf16.msra.mxu0 %v5474
        %7863 = vmatprep.subr.bf16.mxu0 %v5483
        %7864 = vmatpush1.bf16.msra.mxu0 %v5482
        %7865 = vmatprep.subr.bf16.mxu0 %v5491
        %7866 = vmatpush1.bf16.msra.mxu0 %v5490
        %7867 = vmatprep.subr.bf16.mxu0 %v5499
        %7868 = vmatpush1.bf16.msra.mxu0 %v5498
        %7869 = vmatprep.subr.bf16.mxu0 %v5507
        %7870 = vmatpush1.bf16.msra.mxu0 %v5506
        %7871 = vmatprep.subr.bf16.mxu0 %v5515
        %7872 = vmatpush1.bf16.msra.mxu0 %v5514
        %7873 = vmatprep.subr.bf16.mxu0 %v5523
        %7874 = vmatpush1.bf16.msra.mxu0 %v5522
        %7875 = vmatprep.subr.bf16.mxu0 %v5531
        %7876 = vmatpush1.bf16.msra.mxu0 %v5530
        %7877 = vmatprep.subr.bf16.mxu0 %v5539
        %7878 = vmatpush1.bf16.msra.mxu0 %v5538
        %7879 = vmatprep.subr.bf16.mxu0 %v5547
        %7880 = vmatpush1.bf16.msra.mxu0 %v5546
        %7881 = vmatprep.subr.bf16.mxu0 %v5555
        %7882 = vmatpush1.bf16.msra.mxu0 %v5554
        %7883 = vmatprep.mubr.bf16.mxu0 %v1443
        %7884 = vmatmul.mubr.bf16.gmra.mrb[0].mxu0 %v1441
        %v7885 = vpop.f32.mrb[0].mxu0
        %v7886 = vadd.f32 %v7845, %v7885
        %v7887 = vpop.f32.mrb[0].mxu0
        %v7888 = vadd.f32 %v7847, %v7887
        %v7889 = vpop.f32.mrb[0].mxu0
        %v7890 = vpop.f32.mrb[0].mxu0
        %7891 = vdwg.mxu0
        %v7900 = vcombine.low %v6902, %v6904
        %v7901 = vcombine.low %v7230, %v7232
        %v7903 = vunpack.c.l.s4 1983009808
        %v7904 = vunpack.c.0.s8 %v7903
        %v7905 = vlaneseq
        %v7906 = vshrl.u32 %v7905, 7
        %v7907 = vsub.s32 %v7904, %v7906
        %v7908 = vrot.slane %v7900, %v7907
        %v7910 = vunpack.c.l.s4 1983009808
        %v7911 = vunpack.c.0.s8 %v7910
        %v7912 = vlaneseq
        %v7913 = vshrl.u32 %v7912, 7
        %v7914 = vsub.s32 %v7911, %v7913
        %v7915 = vrot.slane %v7901, %v7914
        %v7916 = vcombine.low %v7908, %v7915
        %v7917 = vcombine.low %v7558, %v7560
        %v7918 = vcombine.low %v7886, %v7888
        %v7920 = vunpack.c.l.s4 1983009808
        %v7921 = vunpack.c.0.s8 %v7920
        %v7922 = vlaneseq
        %v7923 = vshrl.u32 %v7922, 7
        %v7924 = vsub.s32 %v7921, %v7923
        %v7925 = vrot.slane %v7917, %v7924
        %v7927 = vunpack.c.l.s4 1983009808
        %v7928 = vunpack.c.0.s8 %v7927
        %v7929 = vlaneseq
        %v7930 = vshrl.u32 %v7929, 7
        %v7931 = vsub.s32 %v7928, %v7930
        %v7932 = vrot.slane %v7918, %v7931
        %v7933 = vcombine.low %v7925, %v7932
        %v7936 = vadd.f32 %v316, %v7916
        %v7937 = vadd.f32 %v317, %v7933
        %7938 = vst [vmem:[#allocation2] sm:$0xff] %v7936
        %7939 = vst [vmem:[#allocation2 + $0x8] sm:$0xff] %v7937
        %p7940 = scmp.eq.s32.totalorder %s22, 1
        // Predicated region
        $region45: #{encoder_forward.7} parent=39 // pred_check
          %p7941 = pneg %p7940
        $region46: #{encoder_forward.7} parent=39 // pred_check_branch
          %7943 = sbr.rel (%p7941) target = $region48
        $region47: #{encoder_forward.7} parent=39 // pred_region
          %v7944 = vld [vmem:[#allocation2] sm:$0xff]
          %v7945 = vld [vmem:[#allocation2 + $0x8] sm:$0xff]
          %v7946 = vld [vmem:[%s301] sm:$0xff]
          %v7948 = vlaneseq
          %v7949 = vshrl.u32 %v7948, 7
          %v7950 = vsub.s32 0, %v7949
          %v7951 = vrot.slane %v7946, %v7950
          %v7952 = vlaneseq
          %v7953 = vshrl.u32 %v7952, 7
          %v7954 = vsub.s32 1, %v7953
          %v7955 = vrot.slane %v7946, %v7954
          %v7956 = vlaneseq
          %v7957 = vshrl.u32 %v7956, 7
          %v7958 = vsub.s32 2, %v7957
          %v7959 = vrot.slane %v7946, %v7958
          %v7960 = vlaneseq
          %v7961 = vshrl.u32 %v7960, 7
          %v7962 = vsub.s32 3, %v7961
          %v7963 = vrot.slane %v7946, %v7962
          %v7964 = vlaneseq
          %v7965 = vshrl.u32 %v7964, 7
          %v7966 = vsub.s32 4, %v7965
          %v7967 = vrot.slane %v7946, %v7966
          %v7968 = vlaneseq
          %v7969 = vshrl.u32 %v7968, 7
          %v7970 = vsub.s32 5, %v7969
          %v7971 = vrot.slane %v7946, %v7970
          %v7972 = vlaneseq
          %v7973 = vshrl.u32 %v7972, 7
          %v7974 = vsub.s32 6, %v7973
          %v7975 = vrot.slane %v7946, %v7974
          %v7976 = vlaneseq
          %v7977 = vshrl.u32 %v7976, 7
          %v7978 = vsub.s32 7, %v7977
          %v7979 = vrot.slane %v7946, %v7978
          %v7980 = vcombine.low %v7951, %v7955
          %v7981 = vcombine.low %v7959, %v7963
          %v7983 = vunpack.c.l.s4 1983009808
          %v7984 = vunpack.c.0.s8 %v7983
          %v7985 = vlaneseq
          %v7986 = vshrl.u32 %v7985, 7
          %v7987 = vsub.s32 %v7984, %v7986
          %v7988 = vrot.slane %v7980, %v7987
          %v7990 = vunpack.c.l.s4 1983009808
          %v7991 = vunpack.c.0.s8 %v7990
          %v7992 = vlaneseq
          %v7993 = vshrl.u32 %v7992, 7
          %v7994 = vsub.s32 %v7991, %v7993
          %v7995 = vrot.slane %v7981, %v7994
          %v7996 = vcombine.low %v7988, %v7995
          %v7997 = vcombine.low %v7967, %v7971
          %v7998 = vcombine.low %v7975, %v7979
          %v8000 = vunpack.c.l.s4 1983009808
          %v8001 = vunpack.c.0.s8 %v8000
          %v8002 = vlaneseq
          %v8003 = vshrl.u32 %v8002, 7
          %v8004 = vsub.s32 %v8001, %v8003
          %v8005 = vrot.slane %v7997, %v8004
          %v8007 = vunpack.c.l.s4 1983009808
          %v8008 = vunpack.c.0.s8 %v8007
          %v8009 = vlaneseq
          %v8010 = vshrl.u32 %v8009, 7
          %v8011 = vsub.s32 %v8008, %v8010
          %v8012 = vrot.slane %v7998, %v8011
          %v8013 = vcombine.low %v8005, %v8012
          %v8016 = vadd.f32 %v7944, %v7996
          %v8017 = vadd.f32 %v7945, %v8013
          %vm8018 = vcmp.gt.f32.partialorder %v8016, 0.0
          %vm8019 = vcmp.gt.f32.partialorder %v8017, 0.0
          %v8020 = vmul.f32 %v8016, 0.01
          %v8021 = vmul.f32 %v8017, 0.01
          %v8022 = vsel %vm8018, %v8016, %v8020
          %v8023 = vsel %vm8019, %v8017, %v8021
          %v8026 = vcombine.high %v8022, %v8022
          %v8028 = vunpack.c.l.s4 1983009808
          %v8029 = vunpack.c.0.s8 %v8028
          %v8030 = vlaneseq
          %v8031 = vshrl.u32 %v8030, 7
          %v8032 = vsub.s32 %v8029, %v8031
          %v8033 = vrot.slane %v8022, %v8032
          %v8035 = vunpack.c.l.s4 1983009808
          %v8036 = vunpack.c.0.s8 %v8035
          %v8037 = vlaneseq
          %v8038 = vshrl.u32 %v8037, 7
          %v8039 = vsub.s32 %v8036, %v8038
          %v8040 = vrot.slane %v8026, %v8039
          %v8041 = vcombine.high %v8033, %v8033
          %v8042 = vcombine.high %v8040, %v8040
          %v8043 = vcombine.high %v8023, %v8023
          %v8045 = vunpack.c.l.s4 1983009808
          %v8046 = vunpack.c.0.s8 %v8045
          %v8047 = vlaneseq
          %v8048 = vshrl.u32 %v8047, 7
          %v8049 = vsub.s32 %v8046, %v8048
          %v8050 = vrot.slane %v8023, %v8049
          %v8052 = vunpack.c.l.s4 1983009808
          %v8053 = vunpack.c.0.s8 %v8052
          %v8054 = vlaneseq
          %v8055 = vshrl.u32 %v8054, 7
          %v8056 = vsub.s32 %v8053, %v8055
          %v8057 = vrot.slane %v8043, %v8056
          %v8058 = vcombine.high %v8050, %v8050
          %v8059 = vcombine.high %v8057, %v8057
          %v8068 = vpack.c.bf16 %v8033, %v8033
          %v8069 = vpack.c.bf16 %v8041, %v8041
          %v8070 = vpack.c.bf16 %v8040, %v8040
          %v8071 = vpack.c.bf16 %v8042, %v8042
          %v8072 = vpack.c.bf16 %v8050, %v8050
          %v8073 = vpack.c.bf16 %v8058, %v8058
          %v8074 = vpack.c.bf16 %v8057, %v8057
          %v8075 = vpack.c.bf16 %v8059, %v8059
          %v8076 = vld [vmem:[%s307] sm:$0xf]
          %v8077 = vld [vmem:[%s307 + $0x4] sm:$0xf]
          %v8078 = vld [vmem:[%s307 + $0x8] sm:$0xf]
          %v8079 = vld [vmem:[%s307 + $0xc] sm:$0xf]
          %v8080 = vld [vmem:[%s307 + $0x10] sm:$0xf]
          %v8081 = vld [vmem:[%s307 + $0x14] sm:$0xf]
          %v8082 = vld [vmem:[%s307 + $0x18] sm:$0xf]
          %v8083 = vld [vmem:[%s307 + $0x1c] sm:$0xf]
          %v8084 = vld [vmem:[%s307 + $0x20] sm:$0xf]
          %v8085 = vld [vmem:[%s307 + $0x24] sm:$0xf]
          %v8086 = vld [vmem:[%s307 + $0x28] sm:$0xf]
          %v8087 = vld [vmem:[%s307 + $0x2c] sm:$0xf]
          %v8088 = vld [vmem:[%s307 + $0x30] sm:$0xf]
          %v8089 = vld [vmem:[%s307 + $0x34] sm:$0xf]
          %v8090 = vld [vmem:[%s307 + $0x38] sm:$0xf]
          %v8091 = vld [vmem:[%s307 + $0x3c] sm:$0xf]
          %v8092 = vld [vmem:[%s307 + $0x40] sm:$0xf]
          %v8093 = vld [vmem:[%s307 + $0x44] sm:$0xf]
          %v8094 = vld [vmem:[%s307 + $0x48] sm:$0xf]
          %v8095 = vld [vmem:[%s307 + $0x4c] sm:$0xf]
          %v8096 = vld [vmem:[%s307 + $0x50] sm:$0xf]
          %v8097 = vld [vmem:[%s307 + $0x54] sm:$0xf]
          %v8098 = vld [vmem:[%s307 + $0x58] sm:$0xf]
          %v8099 = vld [vmem:[%s307 + $0x5c] sm:$0xf]
          %v8100 = vld [vmem:[%s307 + $0x60] sm:$0xf]
          %v8101 = vld [vmem:[%s307 + $0x64] sm:$0xf]
          %v8102 = vld [vmem:[%s307 + $0x68] sm:$0xf]
          %v8103 = vld [vmem:[%s307 + $0x6c] sm:$0xf]
          %v8104 = vld [vmem:[%s307 + $0x70] sm:$0xf]
          %v8105 = vld [vmem:[%s307 + $0x74] sm:$0xf]
          %v8106 = vld [vmem:[%s307 + $0x78] sm:$0xf]
          %v8107 = vld [vmem:[%s307 + $0x7c] sm:$0xf]
          %v8108 = vld [vmem:[%s307 + $0x80] sm:$0xf]
          %v8109 = vld [vmem:[%s307 + $0x84] sm:$0xf]
          %v8110 = vld [vmem:[%s307 + $0x88] sm:$0xf]
          %v8111 = vld [vmem:[%s307 + $0x8c] sm:$0xf]
          %v8112 = vld [vmem:[%s307 + $0x90] sm:$0xf]
          %v8113 = vld [vmem:[%s307 + $0x94] sm:$0xf]
          %v8114 = vld [vmem:[%s307 + $0x98] sm:$0xf]
          %v8115 = vld [vmem:[%s307 + $0x9c] sm:$0xf]
          %v8116 = vld [vmem:[%s307 + $0xa0] sm:$0xf]
          %v8117 = vld [vmem:[%s307 + $0xa4] sm:$0xf]
          %v8118 = vld [vmem:[%s307 + $0xa8] sm:$0xf]
          %v8119 = vld [vmem:[%s307 + $0xac] sm:$0xf]
          %v8120 = vld [vmem:[%s307 + $0xb0] sm:$0xf]
          %v8121 = vld [vmem:[%s307 + $0xb4] sm:$0xf]
          %v8122 = vld [vmem:[%s307 + $0xb8] sm:$0xf]
          %v8123 = vld [vmem:[%s307 + $0xbc] sm:$0xf]
          %v8124 = vld [vmem:[%s307 + $0xc0] sm:$0xf]
          %v8125 = vld [vmem:[%s307 + $0xc4] sm:$0xf]
          %v8126 = vld [vmem:[%s307 + $0xc8] sm:$0xf]
          %v8127 = vld [vmem:[%s307 + $0xcc] sm:$0xf]
          %v8128 = vld [vmem:[%s307 + $0xd0] sm:$0xf]
          %v8129 = vld [vmem:[%s307 + $0xd4] sm:$0xf]
          %v8130 = vld [vmem:[%s307 + $0xd8] sm:$0xf]
          %v8131 = vld [vmem:[%s307 + $0xdc] sm:$0xf]
          %v8132 = vld [vmem:[%s307 + $0xe0] sm:$0xf]
          %v8133 = vld [vmem:[%s307 + $0xe4] sm:$0xf]
          %v8134 = vld [vmem:[%s307 + $0xe8] sm:$0xf]
          %v8135 = vld [vmem:[%s307 + $0xec] sm:$0xf]
          %v8136 = vld [vmem:[%s307 + $0xf0] sm:$0xf]
          %v8137 = vld [vmem:[%s307 + $0xf4] sm:$0xf]
          %v8138 = vld [vmem:[%s307 + $0xf8] sm:$0xf]
          %v8139 = vld [vmem:[%s307 + $0xfc] sm:$0xf]
          %v8140 = vld [vmem:[%s307 + $0x100] sm:$0xf]
          %v8141 = vld [vmem:[%s307 + $0x104] sm:$0xf]
          %v8142 = vld [vmem:[%s307 + $0x108] sm:$0xf]
          %v8143 = vld [vmem:[%s307 + $0x10c] sm:$0xf]
          %v8144 = vld [vmem:[%s307 + $0x110] sm:$0xf]
          %v8145 = vld [vmem:[%s307 + $0x114] sm:$0xf]
          %v8146 = vld [vmem:[%s307 + $0x118] sm:$0xf]
          %v8147 = vld [vmem:[%s307 + $0x11c] sm:$0xf]
          %v8148 = vld [vmem:[%s307 + $0x120] sm:$0xf]
          %v8149 = vld [vmem:[%s307 + $0x124] sm:$0xf]
          %v8150 = vld [vmem:[%s307 + $0x128] sm:$0xf]
          %v8151 = vld [vmem:[%s307 + $0x12c] sm:$0xf]
          %v8152 = vld [vmem:[%s307 + $0x130] sm:$0xf]
          %v8153 = vld [vmem:[%s307 + $0x134] sm:$0xf]
          %v8154 = vld [vmem:[%s307 + $0x138] sm:$0xf]
          %v8155 = vld [vmem:[%s307 + $0x13c] sm:$0xf]
          %v8156 = vld [vmem:[%s307 + $0x140] sm:$0xf]
          %v8157 = vld [vmem:[%s307 + $0x144] sm:$0xf]
          %v8158 = vld [vmem:[%s307 + $0x148] sm:$0xf]
          %v8159 = vld [vmem:[%s307 + $0x14c] sm:$0xf]
          %v8160 = vld [vmem:[%s307 + $0x150] sm:$0xf]
          %v8161 = vld [vmem:[%s307 + $0x154] sm:$0xf]
          %v8162 = vld [vmem:[%s307 + $0x158] sm:$0xf]
          %v8163 = vld [vmem:[%s307 + $0x15c] sm:$0xf]
          %v8164 = vld [vmem:[%s307 + $0x160] sm:$0xf]
          %v8165 = vld [vmem:[%s307 + $0x164] sm:$0xf]
          %v8166 = vld [vmem:[%s307 + $0x168] sm:$0xf]
          %v8167 = vld [vmem:[%s307 + $0x16c] sm:$0xf]
          %v8168 = vld [vmem:[%s307 + $0x170] sm:$0xf]
          %v8169 = vld [vmem:[%s307 + $0x174] sm:$0xf]
          %v8170 = vld [vmem:[%s307 + $0x178] sm:$0xf]
          %v8171 = vld [vmem:[%s307 + $0x17c] sm:$0xf]
          %v8172 = vld [vmem:[%s307 + $0x180] sm:$0xf]
          %v8173 = vld [vmem:[%s307 + $0x184] sm:$0xf]
          %v8174 = vld [vmem:[%s307 + $0x188] sm:$0xf]
          %v8175 = vld [vmem:[%s307 + $0x18c] sm:$0xf]
          %v8176 = vld [vmem:[%s307 + $0x190] sm:$0xf]
          %v8177 = vld [vmem:[%s307 + $0x194] sm:$0xf]
          %v8178 = vld [vmem:[%s307 + $0x198] sm:$0xf]
          %v8179 = vld [vmem:[%s307 + $0x19c] sm:$0xf]
          %v8180 = vld [vmem:[%s307 + $0x1a0] sm:$0xf]
          %v8181 = vld [vmem:[%s307 + $0x1a4] sm:$0xf]
          %v8182 = vld [vmem:[%s307 + $0x1a8] sm:$0xf]
          %v8183 = vld [vmem:[%s307 + $0x1ac] sm:$0xf]
          %v8184 = vld [vmem:[%s307 + $0x1b0] sm:$0xf]
          %v8185 = vld [vmem:[%s307 + $0x1b4] sm:$0xf]
          %v8186 = vld [vmem:[%s307 + $0x1b8] sm:$0xf]
          %v8187 = vld [vmem:[%s307 + $0x1bc] sm:$0xf]
          %v8188 = vld [vmem:[%s307 + $0x1c0] sm:$0xf]
          %v8189 = vld [vmem:[%s307 + $0x1c4] sm:$0xf]
          %v8190 = vld [vmem:[%s307 + $0x1c8] sm:$0xf]
          %v8191 = vld [vmem:[%s307 + $0x1cc] sm:$0xf]
          %v8192 = vld [vmem:[%s307 + $0x1d0] sm:$0xf]
          %v8193 = vld [vmem:[%s307 + $0x1d4] sm:$0xf]
          %v8194 = vld [vmem:[%s307 + $0x1d8] sm:$0xf]
          %v8195 = vld [vmem:[%s307 + $0x1dc] sm:$0xf]
          %v8196 = vld [vmem:[%s307 + $0x1e0] sm:$0xf]
          %v8197 = vld [vmem:[%s307 + $0x1e4] sm:$0xf]
          %v8198 = vld [vmem:[%s307 + $0x1e8] sm:$0xf]
          %v8199 = vld [vmem:[%s307 + $0x1ec] sm:$0xf]
          %v8200 = vld [vmem:[%s307 + $0x1f0] sm:$0xf]
          %v8201 = vld [vmem:[%s307 + $0x1f4] sm:$0xf]
          %v8202 = vld [vmem:[%s307 + $0x1f8] sm:$0xf]
          %v8203 = vld [vmem:[%s307 + $0x1fc] sm:$0xf]
          %v8204 = vld [vmem:[%s4] sm:$0x1]
          %p8205 = scmp.eq.s32.totalorder %s21, 0
          %s8206 = scalar_select %p8205, 1, 0
          %s8207 = scvt.s32.f32 %s8206
          %v8208 = vstv %s8207
          %v8209 = vmul.f32 %v8204, %v8208
          %v8211 = vlaneseq
          %v8212 = vshrl.u32 %v8211, 7
          %v8213 = vsub.s32 0, %v8212
          %v8214 = vrot.slane %v8209, %v8213
          %v8344 = vunpack.c.l.b16 %v8076
          %v8345 = vunpack.c.l.b16 %v8077
          %v8346 = vunpack.c.l.b16 %v8078
          %v8347 = vunpack.c.l.b16 %v8079
          %v8348 = vunpack.c.l.b16 %v8080
          %v8349 = vunpack.c.l.b16 %v8081
          %v8350 = vunpack.c.l.b16 %v8082
          %v8351 = vunpack.c.l.b16 %v8083
          %v8352 = vunpack.c.l.b16 %v8084
          %v8353 = vunpack.c.l.b16 %v8085
          %v8354 = vunpack.c.l.b16 %v8086
          %v8355 = vunpack.c.l.b16 %v8087
          %v8356 = vunpack.c.l.b16 %v8088
          %v8357 = vunpack.c.l.b16 %v8089
          %v8358 = vunpack.c.l.b16 %v8090
          %v8359 = vunpack.c.l.b16 %v8091
          %v8360 = vunpack.c.l.b16 %v8092
          %v8361 = vunpack.c.l.b16 %v8093
          %v8362 = vunpack.c.l.b16 %v8094
          %v8363 = vunpack.c.l.b16 %v8095
          %v8364 = vunpack.c.l.b16 %v8096
          %v8365 = vunpack.c.l.b16 %v8097
          %v8366 = vunpack.c.l.b16 %v8098
          %v8367 = vunpack.c.l.b16 %v8099
          %v8368 = vunpack.c.l.b16 %v8100
          %v8369 = vunpack.c.l.b16 %v8101
          %v8370 = vunpack.c.l.b16 %v8102
          %v8371 = vunpack.c.l.b16 %v8103
          %v8372 = vunpack.c.l.b16 %v8104
          %v8373 = vunpack.c.l.b16 %v8105
          %v8374 = vunpack.c.l.b16 %v8106
          %v8375 = vunpack.c.l.b16 %v8107
          %v8376 = vunpack.c.l.b16 %v8108
          %v8377 = vunpack.c.l.b16 %v8109
          %v8378 = vunpack.c.l.b16 %v8110
          %v8379 = vunpack.c.l.b16 %v8111
          %v8380 = vunpack.c.l.b16 %v8112
          %v8381 = vunpack.c.l.b16 %v8113
          %v8382 = vunpack.c.l.b16 %v8114
          %v8383 = vunpack.c.l.b16 %v8115
          %v8384 = vunpack.c.l.b16 %v8116
          %v8385 = vunpack.c.l.b16 %v8117
          %v8386 = vunpack.c.l.b16 %v8118
          %v8387 = vunpack.c.l.b16 %v8119
          %v8388 = vunpack.c.l.b16 %v8120
          %v8389 = vunpack.c.l.b16 %v8121
          %v8390 = vunpack.c.l.b16 %v8122
          %v8391 = vunpack.c.l.b16 %v8123
          %v8392 = vunpack.c.l.b16 %v8124
          %v8393 = vunpack.c.l.b16 %v8125
          %v8394 = vunpack.c.l.b16 %v8126
          %v8395 = vunpack.c.l.b16 %v8127
          %v8396 = vunpack.c.l.b16 %v8128
          %v8397 = vunpack.c.l.b16 %v8129
          %v8398 = vunpack.c.l.b16 %v8130
          %v8399 = vunpack.c.l.b16 %v8131
          %v8400 = vunpack.c.l.b16 %v8132
          %v8401 = vunpack.c.l.b16 %v8133
          %v8402 = vunpack.c.l.b16 %v8134
          %v8403 = vunpack.c.l.b16 %v8135
          %v8404 = vunpack.c.l.b16 %v8136
          %v8405 = vunpack.c.l.b16 %v8137
          %v8406 = vunpack.c.l.b16 %v8138
          %v8407 = vunpack.c.l.b16 %v8139
          %v8408 = vunpack.c.l.b16 %v8140
          %v8409 = vunpack.c.l.b16 %v8141
          %v8410 = vunpack.c.l.b16 %v8142
          %v8411 = vunpack.c.l.b16 %v8143
          %v8412 = vunpack.c.l.b16 %v8144
          %v8413 = vunpack.c.l.b16 %v8145
          %v8414 = vunpack.c.l.b16 %v8146
          %v8415 = vunpack.c.l.b16 %v8147
          %v8416 = vunpack.c.l.b16 %v8148
          %v8417 = vunpack.c.l.b16 %v8149
          %v8418 = vunpack.c.l.b16 %v8150
          %v8419 = vunpack.c.l.b16 %v8151
          %v8420 = vunpack.c.l.b16 %v8152
          %v8421 = vunpack.c.l.b16 %v8153
          %v8422 = vunpack.c.l.b16 %v8154
          %v8423 = vunpack.c.l.b16 %v8155
          %v8424 = vunpack.c.l.b16 %v8156
          %v8425 = vunpack.c.l.b16 %v8157
          %v8426 = vunpack.c.l.b16 %v8158
          %v8427 = vunpack.c.l.b16 %v8159
          %v8428 = vunpack.c.l.b16 %v8160
          %v8429 = vunpack.c.l.b16 %v8161
          %v8430 = vunpack.c.l.b16 %v8162
          %v8431 = vunpack.c.l.b16 %v8163
          %v8432 = vunpack.c.l.b16 %v8164
          %v8433 = vunpack.c.l.b16 %v8165
          %v8434 = vunpack.c.l.b16 %v8166
          %v8435 = vunpack.c.l.b16 %v8167
          %v8436 = vunpack.c.l.b16 %v8168
          %v8437 = vunpack.c.l.b16 %v8169
          %v8438 = vunpack.c.l.b16 %v8170
          %v8439 = vunpack.c.l.b16 %v8171
          %v8440 = vunpack.c.l.b16 %v8172
          %v8441 = vunpack.c.l.b16 %v8173
          %v8442 = vunpack.c.l.b16 %v8174
          %v8443 = vunpack.c.l.b16 %v8175
          %v8444 = vunpack.c.l.b16 %v8176
          %v8445 = vunpack.c.l.b16 %v8177
          %v8446 = vunpack.c.l.b16 %v8178
          %v8447 = vunpack.c.l.b16 %v8179
          %v8448 = vunpack.c.l.b16 %v8180
          %v8449 = vunpack.c.l.b16 %v8181
          %v8450 = vunpack.c.l.b16 %v8182
          %v8451 = vunpack.c.l.b16 %v8183
          %v8452 = vunpack.c.l.b16 %v8184
          %v8453 = vunpack.c.l.b16 %v8185
          %v8454 = vunpack.c.l.b16 %v8186
          %v8455 = vunpack.c.l.b16 %v8187
          %v8456 = vunpack.c.l.b16 %v8188
          %v8457 = vunpack.c.l.b16 %v8189
          %v8458 = vunpack.c.l.b16 %v8190
          %v8459 = vunpack.c.l.b16 %v8191
          %v8460 = vunpack.c.l.b16 %v8192
          %v8461 = vunpack.c.l.b16 %v8193
          %v8462 = vunpack.c.l.b16 %v8194
          %v8463 = vunpack.c.l.b16 %v8195
          %v8464 = vunpack.c.l.b16 %v8196
          %v8465 = vunpack.c.l.b16 %v8197
          %v8466 = vunpack.c.l.b16 %v8198
          %v8467 = vunpack.c.l.b16 %v8199
          %v8468 = vunpack.c.l.b16 %v8200
          %v8469 = vunpack.c.l.b16 %v8201
          %v8470 = vunpack.c.l.b16 %v8202
          %v8471 = vunpack.c.l.b16 %v8203
          %v8472 = vpack.c.b16 %v8345, %v8344
          %v8473 = vpack.c.b16 %v8347, %v8346
          %v8474 = vpack.c.b16 %v8349, %v8348
          %v8475 = vpack.c.b16 %v8351, %v8350
          %v8476 = vpack.c.b16 %v8353, %v8352
          %v8477 = vpack.c.b16 %v8355, %v8354
          %v8478 = vpack.c.b16 %v8357, %v8356
          %v8479 = vpack.c.b16 %v8359, %v8358
          %v8480 = vpack.c.b16 %v8361, %v8360
          %v8481 = vpack.c.b16 %v8363, %v8362
          %v8482 = vpack.c.b16 %v8365, %v8364
          %v8483 = vpack.c.b16 %v8367, %v8366
          %v8484 = vpack.c.b16 %v8369, %v8368
          %v8485 = vpack.c.b16 %v8371, %v8370
          %v8486 = vpack.c.b16 %v8373, %v8372
          %v8487 = vpack.c.b16 %v8375, %v8374
          %v8488 = vpack.c.b16 %v8377, %v8376
          %v8489 = vpack.c.b16 %v8379, %v8378
          %v8490 = vpack.c.b16 %v8381, %v8380
          %v8491 = vpack.c.b16 %v8383, %v8382
          %v8492 = vpack.c.b16 %v8385, %v8384
          %v8493 = vpack.c.b16 %v8387, %v8386
          %v8494 = vpack.c.b16 %v8389, %v8388
          %v8495 = vpack.c.b16 %v8391, %v8390
          %v8496 = vpack.c.b16 %v8393, %v8392
          %v8497 = vpack.c.b16 %v8395, %v8394
          %v8498 = vpack.c.b16 %v8397, %v8396
          %v8499 = vpack.c.b16 %v8399, %v8398
          %v8500 = vpack.c.b16 %v8401, %v8400
          %v8501 = vpack.c.b16 %v8403, %v8402
          %v8502 = vpack.c.b16 %v8405, %v8404
          %v8503 = vpack.c.b16 %v8407, %v8406
          %v8504 = vpack.c.b16 %v8409, %v8408
          %v8505 = vpack.c.b16 %v8411, %v8410
          %v8506 = vpack.c.b16 %v8413, %v8412
          %v8507 = vpack.c.b16 %v8415, %v8414
          %v8508 = vpack.c.b16 %v8417, %v8416
          %v8509 = vpack.c.b16 %v8419, %v8418
          %v8510 = vpack.c.b16 %v8421, %v8420
          %v8511 = vpack.c.b16 %v8423, %v8422
          %v8512 = vpack.c.b16 %v8425, %v8424
          %v8513 = vpack.c.b16 %v8427, %v8426
          %v8514 = vpack.c.b16 %v8429, %v8428
          %v8515 = vpack.c.b16 %v8431, %v8430
          %v8516 = vpack.c.b16 %v8433, %v8432
          %v8517 = vpack.c.b16 %v8435, %v8434
          %v8518 = vpack.c.b16 %v8437, %v8436
          %v8519 = vpack.c.b16 %v8439, %v8438
          %v8520 = vpack.c.b16 %v8441, %v8440
          %v8521 = vpack.c.b16 %v8443, %v8442
          %v8522 = vpack.c.b16 %v8445, %v8444
          %v8523 = vpack.c.b16 %v8447, %v8446
          %v8524 = vpack.c.b16 %v8449, %v8448
          %v8525 = vpack.c.b16 %v8451, %v8450
          %v8526 = vpack.c.b16 %v8453, %v8452
          %v8527 = vpack.c.b16 %v8455, %v8454
          %v8528 = vpack.c.b16 %v8457, %v8456
          %v8529 = vpack.c.b16 %v8459, %v8458
          %v8530 = vpack.c.b16 %v8461, %v8460
          %v8531 = vpack.c.b16 %v8463, %v8462
          %v8532 = vpack.c.b16 %v8465, %v8464
          %v8533 = vpack.c.b16 %v8467, %v8466
          %v8534 = vpack.c.b16 %v8469, %v8468
          %v8535 = vpack.c.b16 %v8471, %v8470
          %8600 = vmatprep.subr.bf16.mxu0 0
          %8601 = vmatpush1.bf16.msra.mxu0 %v8472
          %8602 = vmatprep.subr.bf16.mxu0 0
          %8603 = vmatpush1.bf16.msra.mxu0 %v8473
          %8604 = vmatprep.subr.bf16.mxu0 0
          %8605 = vmatpush1.bf16.msra.mxu0 %v8474
          %8606 = vmatprep.subr.bf16.mxu0 0
          %8607 = vmatpush1.bf16.msra.mxu0 %v8475
          %8608 = vmatprep.subr.bf16.mxu0 0
          %8609 = vmatpush1.bf16.msra.mxu0 %v8476
          %8610 = vmatprep.subr.bf16.mxu0 0
          %8611 = vmatpush1.bf16.msra.mxu0 %v8477
          %8612 = vmatprep.subr.bf16.mxu0 0
          %8613 = vmatpush1.bf16.msra.mxu0 %v8478
          %8614 = vmatprep.subr.bf16.mxu0 0
          %8615 = vmatpush1.bf16.msra.mxu0 %v8479
          %8616 = vmatprep.subr.bf16.mxu0 0
          %8617 = vmatpush1.bf16.msra.mxu0 %v8480
          %8618 = vmatprep.subr.bf16.mxu0 0
          %8619 = vmatpush1.bf16.msra.mxu0 %v8481
          %8620 = vmatprep.subr.bf16.mxu0 0
          %8621 = vmatpush1.bf16.msra.mxu0 %v8482
          %8622 = vmatprep.subr.bf16.mxu0 0
          %8623 = vmatpush1.bf16.msra.mxu0 %v8483
          %8624 = vmatprep.subr.bf16.mxu0 0
          %8625 = vmatpush1.bf16.msra.mxu0 %v8484
          %8626 = vmatprep.subr.bf16.mxu0 0
          %8627 = vmatpush1.bf16.msra.mxu0 %v8485
          %8628 = vmatprep.subr.bf16.mxu0 0
          %8629 = vmatpush1.bf16.msra.mxu0 %v8486
          %8630 = vmatprep.subr.bf16.mxu0 0
          %8631 = vmatpush1.bf16.msra.mxu0 %v8487
          %8632 = vmatprep.mubr.bf16.mxu0 %v8069
          %8633 = vmatmul.mubr.bf16.gmra.mrb[0].mxu0 %v8068
          %v8634 = vpop.f32.mrb[0].mxu0
          %v8635 = vadd.f32 %v8214, %v8634
          %v8636 = vpop.f32.mrb[0].mxu0
          %v8637 = vpop.f32.mrb[0].mxu0
          %v8638 = vpop.f32.mrb[0].mxu0
          %8639 = vdwg.mxu0
          %8640 = vmatprep.subr.bf16.mxu0 0
          %8641 = vmatpush1.bf16.msra.mxu0 %v8488
          %8642 = vmatprep.subr.bf16.mxu0 0
          %8643 = vmatpush1.bf16.msra.mxu0 %v8489
          %8644 = vmatprep.subr.bf16.mxu0 0
          %8645 = vmatpush1.bf16.msra.mxu0 %v8490
          %8646 = vmatprep.subr.bf16.mxu0 0
          %8647 = vmatpush1.bf16.msra.mxu0 %v8491
          %8648 = vmatprep.subr.bf16.mxu0 0
          %8649 = vmatpush1.bf16.msra.mxu0 %v8492
          %8650 = vmatprep.subr.bf16.mxu0 0
          %8651 = vmatpush1.bf16.msra.mxu0 %v8493
          %8652 = vmatprep.subr.bf16.mxu0 0
          %8653 = vmatpush1.bf16.msra.mxu0 %v8494
          %8654 = vmatprep.subr.bf16.mxu0 0
          %8655 = vmatpush1.bf16.msra.mxu0 %v8495
          %8656 = vmatprep.subr.bf16.mxu0 0
          %8657 = vmatpush1.bf16.msra.mxu0 %v8496
          %8658 = vmatprep.subr.bf16.mxu0 0
          %8659 = vmatpush1.bf16.msra.mxu0 %v8497
          %8660 = vmatprep.subr.bf16.mxu0 0
          %8661 = vmatpush1.bf16.msra.mxu0 %v8498
          %8662 = vmatprep.subr.bf16.mxu0 0
          %8663 = vmatpush1.bf16.msra.mxu0 %v8499
          %8664 = vmatprep.subr.bf16.mxu0 0
          %8665 = vmatpush1.bf16.msra.mxu0 %v8500
          %8666 = vmatprep.subr.bf16.mxu0 0
          %8667 = vmatpush1.bf16.msra.mxu0 %v8501
          %8668 = vmatprep.subr.bf16.mxu0 0
          %8669 = vmatpush1.bf16.msra.mxu0 %v8502
          %8670 = vmatprep.subr.bf16.mxu0 0
          %8671 = vmatpush1.bf16.msra.mxu0 %v8503
          %8672 = vmatprep.mubr.bf16.mxu0 %v8071
          %8673 = vmatmul.mubr.bf16.gmra.mrb[0].mxu0 %v8070
          %v8674 = vpop.f32.mrb[0].mxu0
          %v8675 = vadd.f32 %v8635, %v8674
          %v8676 = vpop.f32.mrb[0].mxu0
          %v8677 = vpop.f32.mrb[0].mxu0
          %v8678 = vpop.f32.mrb[0].mxu0
          %8679 = vdwg.mxu0
          %8680 = vmatprep.subr.bf16.mxu0 0
          %8681 = vmatpush1.bf16.msra.mxu0 %v8504
          %8682 = vmatprep.subr.bf16.mxu0 0
          %8683 = vmatpush1.bf16.msra.mxu0 %v8505
          %8684 = vmatprep.subr.bf16.mxu0 0
          %8685 = vmatpush1.bf16.msra.mxu0 %v8506
          %8686 = vmatprep.subr.bf16.mxu0 0
          %8687 = vmatpush1.bf16.msra.mxu0 %v8507
          %8688 = vmatprep.subr.bf16.mxu0 0
          %8689 = vmatpush1.bf16.msra.mxu0 %v8508
          %8690 = vmatprep.subr.bf16.mxu0 0
          %8691 = vmatpush1.bf16.msra.mxu0 %v8509
          %8692 = vmatprep.subr.bf16.mxu0 0
          %8693 = vmatpush1.bf16.msra.mxu0 %v8510
          %8694 = vmatprep.subr.bf16.mxu0 0
          %8695 = vmatpush1.bf16.msra.mxu0 %v8511
          %8696 = vmatprep.subr.bf16.mxu0 0
          %8697 = vmatpush1.bf16.msra.mxu0 %v8512
          %8698 = vmatprep.subr.bf16.mxu0 0
          %8699 = vmatpush1.bf16.msra.mxu0 %v8513
          %8700 = vmatprep.subr.bf16.mxu0 0
          %8701 = vmatpush1.bf16.msra.mxu0 %v8514
          %8702 = vmatprep.subr.bf16.mxu0 0
          %8703 = vmatpush1.bf16.msra.mxu0 %v8515
          %8704 = vmatprep.subr.bf16.mxu0 0
          %8705 = vmatpush1.bf16.msra.mxu0 %v8516
          %8706 = vmatprep.subr.bf16.mxu0 0
          %8707 = vmatpush1.bf16.msra.mxu0 %v8517
          %8708 = vmatprep.subr.bf16.mxu0 0
          %8709 = vmatpush1.bf16.msra.mxu0 %v8518
          %8710 = vmatprep.subr.bf16.mxu0 0
          %8711 = vmatpush1.bf16.msra.mxu0 %v8519
          %8712 = vmatprep.mubr.bf16.mxu0 %v8073
          %8713 = vmatmul.mubr.bf16.gmra.mrb[0].mxu0 %v8072
          %v8714 = vpop.f32.mrb[0].mxu0
          %v8715 = vadd.f32 %v8675, %v8714
          %v8716 = vpop.f32.mrb[0].mxu0
          %v8717 = vpop.f32.mrb[0].mxu0
          %v8718 = vpop.f32.mrb[0].mxu0
          %8719 = vdwg.mxu0
          %8720 = vmatprep.subr.bf16.mxu0 0
          %8721 = vmatpush1.bf16.msra.mxu0 %v8520
          %8722 = vmatprep.subr.bf16.mxu0 0
          %8723 = vmatpush1.bf16.msra.mxu0 %v8521
          %8724 = vmatprep.subr.bf16.mxu0 0
          %8725 = vmatpush1.bf16.msra.mxu0 %v8522
          %8726 = vmatprep.subr.bf16.mxu0 0
          %8727 = vmatpush1.bf16.msra.mxu0 %v8523
          %8728 = vmatprep.subr.bf16.mxu0 0
          %8729 = vmatpush1.bf16.msra.mxu0 %v8524
          %8730 = vmatprep.subr.bf16.mxu0 0
          %8731 = vmatpush1.bf16.msra.mxu0 %v8525
          %8732 = vmatprep.subr.bf16.mxu0 0
          %8733 = vmatpush1.bf16.msra.mxu0 %v8526
          %8734 = vmatprep.subr.bf16.mxu0 0
          %8735 = vmatpush1.bf16.msra.mxu0 %v8527
          %8736 = vmatprep.subr.bf16.mxu0 0
          %8737 = vmatpush1.bf16.msra.mxu0 %v8528
          %8738 = vmatprep.subr.bf16.mxu0 0
          %8739 = vmatpush1.bf16.msra.mxu0 %v8529
          %8740 = vmatprep.subr.bf16.mxu0 0
          %8741 = vmatpush1.bf16.msra.mxu0 %v8530
          %8742 = vmatprep.subr.bf16.mxu0 0
          %8743 = vmatpush1.bf16.msra.mxu0 %v8531
          %8744 = vmatprep.subr.bf16.mxu0 0
          %8745 = vmatpush1.bf16.msra.mxu0 %v8532
          %8746 = vmatprep.subr.bf16.mxu0 0
          %8747 = vmatpush1.bf16.msra.mxu0 %v8533
          %8748 = vmatprep.subr.bf16.mxu0 0
          %8749 = vmatpush1.bf16.msra.mxu0 %v8534
          %8750 = vmatprep.subr.bf16.mxu0 0
          %8751 = vmatpush1.bf16.msra.mxu0 %v8535
          %8752 = vmatprep.mubr.bf16.mxu0 %v8075
          %8753 = vmatmul.mubr.bf16.gmra.mrb[0].mxu0 %v8074
          %v8754 = vpop.f32.mrb[0].mxu0
          %v8755 = vadd.f32 %v8715, %v8754
          %v8756 = vpop.f32.mrb[0].mxu0
          %v8757 = vpop.f32.mrb[0].mxu0
          %v8758 = vpop.f32.mrb[0].mxu0
          %8759 = vdwg.mxu0
          %vm8760 = vcmask 123904
          %8761 = vst.msk [vmem:[#allocation3] sm:$0x3] %vm8760, %v8755
        $region48: #{encoder_forward.7} parent=39 // pred_fallthru
          _
        // Predicated region
        $region49: #{encoder_forward.7} parent=39 // pred_check
          %p8762 = pneg %p174
        $region50: #{encoder_forward.7} parent=39 // pred_check_branch
          %8764 = sbr.rel (%p8762) target = $region52
        $region51: #{encoder_forward.7} parent=39 // pred_region
          %s8766 = ssub.s32 32, 32
          %8767 = vsyncadd [#allocation4], %s8766
          %s8768 = smul.addr %s21, 32
          %s8769 = scalar_lea.hbm %s5, %s8768
          %s8771 = sshll.u32 [#allocation3], 4
          %s8772 = int_to_ptr.vmem [resolvable:$true] %s8771
          %8774 = dma.vmem_to_hbm [thread:$0]  %s8772, 32, %s8769, [#allocation4]
        $region52: #{encoder_forward.7} parent=39 // pred_fallthru
          _
        // Predicated region
        $region53: #{encoder_forward.7} parent=39 // pred_check
          %p8775 = pneg %p174
        $region54: #{encoder_forward.7} parent=39 // pred_check_branch
          %8777 = sbr.rel (%p8775) target = $region56
        $region55: #{encoder_forward.7} parent=39 // pred_region
          %8778 = dma.done [#allocation4], 32
        $region56: #{encoder_forward.7} parent=39 // pred_fallthru
          _
      $region40: #{encoder_forward.7} parent=5 // pred_fallthru
        _
      %p8779 = scmp.le.s32.totalorder 2, %s12
      // Predicated region
      $region57: #{encoder_forward.7} parent=5 // pred_check
        %p8780 = pneg %p8779
      $region58: #{encoder_forward.7} parent=5 // pred_check_branch
        %8782 = sbr.rel (%p8780) target = $region60
      $region59: #{encoder_forward.7} parent=5 // pred_region
        %s8783 = ssub.s32 %s12, 2
      $region60: #{encoder_forward.7} parent=5 // pred_fallthru
        _
    $region6: #{encoder_forward.7} parent=1 // loop_footer
      %s16 = sadd.s32 1, %s12
    $region7: #{encoder_forward.7} parent=1 // loop_footer_branch
      %11 = sbr.rel target = $region3
    $region8: #{encoder_forward.7} parent=1 // loop_exit
      _
    %8784 = vsyncpa [#allocation4], 1
    %s8785 = scalar_lea.sflag [#allocation4], 1
    %8786 = vsyncpa %s8785, 1

</llo_original>
